<compile_context>
chip_gen: v5e
topology: v5e:2x2
jax: 0.10.0
libtpu: 0.0.40
codegen_flags: <defaults>
</compile_context>

<pallas_src>
import math

import jax
import jax.numpy as jnp
from jax import lax
from jax.experimental import pallas as pl
from jax.experimental.pallas import tpu as pltpu


_VMEM_LIMIT = 48 * 1024 * 1024   # leaves headroom on v7x's 64 MiB physical VMEM


# --------------------------------------------------------------------------
# small helpers
# --------------------------------------------------------------------------

def _round_up(x, m):
    return ((x + m - 1) // m) * m


def _softmax_lastdim(x):
    m = jnp.max(x, axis=-1, keepdims=True)
    e = jnp.exp(x - m)
    return e * pl.reciprocal(jnp.sum(e, axis=-1, keepdims=True), approx=True)


def mask_logits(logits, mask):
    return logits + (1.0 - mask) * (-1e30)


# --------------------------------------------------------------------------
# Pallas kernels
# --------------------------------------------------------------------------

def _xattn_kernel(x_ref, y_ref, ym_ref, o_ref):
    # masked single-head scaled-dot cross attention: x attends over y
    x = x_ref[0]                       # (TX, D) bf16
    y = y_ref[0]                       # (Ty, D) bf16
    ym = ym_ref[0]                     # (1, Ty) f32
    scale = 1.0 / math.sqrt(x.shape[-1])
    s = lax.dot_general(x, y, (((1,), (1,)), ((), ())),
                        preferred_element_type=jnp.float32) * scale     # (TX, Ty)
    s = jnp.where(ym > 0, s, -1e30)
    p = _softmax_lastdim(s).astype(y.dtype)
    o_ref[0] = jnp.dot(p, y, preferred_element_type=jnp.float32).astype(o_ref.dtype)


def pallas_xattn(x, y, ymask, out_dtype=jnp.float32, row_tile=128):
    B, Tx, D = x.shape
    Ty = y.shape[1]
    TX = min(row_tile, Tx)
    return pl.pallas_call(
        _xattn_kernel,
        out_shape=jax.ShapeDtypeStruct((B, Tx, D), out_dtype),
        grid=(B, pl.cdiv(Tx, TX)),
        in_specs=[pl.BlockSpec((1, TX, D), lambda b, r: (b, r, 0)),
                  pl.BlockSpec((1, Ty, D), lambda b, r: (b, 0, 0)),
                  pl.BlockSpec((1, 1, Ty), lambda b, r: (b, 0, 0))],
        out_specs=pl.BlockSpec((1, TX, D), lambda b, r: (b, r, 0)),
        compiler_params=pltpu.CompilerParams(
            dimension_semantics=("parallel", "parallel"),
            vmem_limit_bytes=_VMEM_LIMIT),
    )(x.astype(jnp.bfloat16), y.astype(jnp.bfloat16),
      ymask.reshape(B, 1, Ty).astype(jnp.float32))


def _cqa_fuse_core(v, q, qv, qm, vm, wf, bf):
    """Context-query attention on a row tile + 4-way concat projection, all in VMEM.

    v: (R, D) bf16, q/qv: (L, D) bf16, qm: (1, L) f32, vm: (R, 1) f32,
    wf: (4D, D) bf16, bf: (1, D) f32.  Returns masked fused features (R, D) f32.
    """
    scale = 1.0 / math.sqrt(q.shape[-1])
    s = lax.dot_general(v, q, (((1,), (1,)), ((), ())),
                        preferred_element_type=jnp.float32) * scale     # (R, L)
    s = jnp.where(qm > 0, s, -1e30)
    p = _softmax_lastdim(s).astype(jnp.bfloat16)
    a = jnp.dot(p, q, preferred_element_type=jnp.float32)               # v2q context
    b = jnp.dot(p, qv, preferred_element_type=jnp.float32)              # v2q2v context
    vf = v.astype(jnp.float32)
    # D is a multiple of 128 in the demo config -> concat pieces are 128-lane aligned.
    cat = jnp.concatenate([vf, a, vf * a, vf * b], axis=-1).astype(jnp.bfloat16)
    y = jnp.dot(cat, wf, preferred_element_type=jnp.float32) + bf
    return y * vm


def _fuse1_kernel(v_ref, q_ref, qv_ref, qm_ref, vm_ref,
                  wf_ref, bf_ref, hw_ref, hb_ref, wih_ref, bih_ref,
                  feat_ref, gate_ref, hsc_ref):
    # fuser1 + highlight head/gate + LSTM input projection, fully fused per row tile.
    vm = vm_ref[0]                                                       # (TMv, 1)
    y = _cqa_fuse_core(v_ref[0], q_ref[0], qv_ref[0], qm_ref[0], vm,
                       wf_ref[...], bf_ref[...])                         # (TMv, D) f32
    hl = jnp.dot(y.astype(jnp.bfloat16), hw_ref[...],
                 preferred_element_type=jnp.float32) + hb_ref[...]       # (TMv, 1)
    hsc = jax.nn.sigmoid(hl + (1.0 - vm) * (-1e30))
    fg = y * hsc
    gate_ref[0] = jnp.dot(fg.astype(jnp.bfloat16), wih_ref[...],
                          preferred_element_type=jnp.float32) + bih_ref[...]
    feat_ref[0] = fg
    hsc_ref[0] = hsc


def pallas_fuse1(v, q, qv, vmask, qmask, wf, bf, hw, hb, wih, bih, row_tile=128):
    B, T, D = v.shape
    L = q.shape[1]
    H4 = wih.shape[1]
    TMv = min(row_tile, T)
    feats, gates, hsc = pl.pallas_call(
        _fuse1_kernel,
        out_shape=(jax.ShapeDtypeStruct((B, T, D), jnp.float32),
                   jax.ShapeDtypeStruct((B, T, H4), jnp.float32),
                   jax.ShapeDtypeStruct((B, T, 1), jnp.float32)),
        grid=(B, pl.cdiv(T, TMv)),
        in_specs=[
            pl.BlockSpec((1, TMv, D), lambda b, r: (b, r, 0)),
            pl.BlockSpec((1, L, D), lambda b, r: (b, 0, 0)),
            pl.BlockSpec((1, L, D), lambda b, r: (b, 0, 0)),
            pl.BlockSpec((1, 1, L), lambda b, r: (b, 0, 0)),
            pl.BlockSpec((1, TMv, 1), lambda b, r: (b, r, 0)),
            pl.BlockSpec((4 * D, D), lambda b, r: (0, 0)),
            pl.BlockSpec((1, D), lambda b, r: (0, 0)),
            pl.BlockSpec((D, 1), lambda b, r: (0, 0)),
            pl.BlockSpec((1, 1), lambda b, r: (0, 0)),
            pl.BlockSpec((D, H4), lambda b, r: (0, 0)),
            pl.BlockSpec((1, H4), lambda b, r: (0, 0)),
        ],
        out_specs=(pl.BlockSpec((1, TMv, D), lambda b, r: (b, r, 0)),
                   pl.BlockSpec((1, TMv, H4), lambda b, r: (b, r, 0)),
                   pl.BlockSpec((1, TMv, 1), lambda b, r: (b, r, 0))),
        compiler_params=pltpu.CompilerParams(
            dimension_semantics=("parallel", "parallel"),
            vmem_limit_bytes=_VMEM_LIMIT),
    )(v.astype(jnp.bfloat16), q.astype(jnp.bfloat16), qv.astype(jnp.bfloat16),
      qmask.reshape(B, 1, L).astype(jnp.float32),
      vmask.reshape(B, T, 1).astype(jnp.float32),
      wf.astype(jnp.bfloat16), bf.reshape(1, D).astype(jnp.float32),
      hw.astype(jnp.bfloat16), hb.reshape(1, 1).astype(jnp.float32),
      wih.astype(jnp.bfloat16), bih.reshape(1, H4).astype(jnp.float32))
    return feats, gates, hsc[..., 0]


def _pf_attn_kernel(q_ref, cum_ref, pool_ref, pm_ref, o_ref, m_sc, l_sc, acc_sc):
    # flash-style q -> proposal-map attention; proposal features reconstructed from the
    # segment cumsum in VMEM, so the (T*T, D) map never touches HBM.
    kv = pl.program_id(1)

    @pl.when(kv == 0)
    def _():
        m_sc[...] = jnp.full_like(m_sc, -1e30)
        l_sc[...] = jnp.zeros_like(l_sc)
        acc_sc[...] = jnp.zeros_like(acc_sc)

    pooled = jnp.dot(pool_ref[...], cum_ref[0],
                     preferred_element_type=jnp.float32)                 # (TK, D)
    pf = pooled.astype(jnp.bfloat16)
    q = q_ref[0]                                                         # (L, D) bf16
    pm = pm_ref[0]                                                       # (1, TK)
    scale = 1.0 / math.sqrt(q.shape[-1])
    s = lax.dot_general(q, pf, (((1,), (1,)), ((), ())),
                        preferred_element_type=jnp.float32) * scale      # (L, TK)
    s = jnp.where(pm > 0, s, -1e30)
    m_new = jnp.maximum(m_sc[...], jnp.max(s, axis=-1, keepdims=True))
    alpha = jnp.exp(m_sc[...] - m_new)
    p = jnp.exp(s - m_new)
    l_sc[...] = alpha * l_sc[...] + jnp.sum(p, axis=-1, keepdims=True)
    acc_sc[...] = alpha * acc_sc[...] + jnp.dot(p.astype(jnp.bfloat16), pf,
                                                preferred_element_type=jnp.float32)
    m_sc[...] = m_new

    @pl.when(kv == pl.num_programs(1) - 1)
    def _():
        o_ref[0] = (acc_sc[...] * pl.reciprocal(l_sc[...], approx=True)
                    ).astype(o_ref.dtype)


def pallas_pf_attn(q, cum, pool, pm_row, kv_tile=128):
    B, L, D = q.shape
    Tp1 = cum.shape[1]
    Mp = pool.shape[0]
    TK = min(kv_tile, Mp)
    n_kv = Mp // TK
    return pl.pallas_call(
        _pf_attn_kernel,
        out_shape=jax.ShapeDtypeStruct((B, L, D), jnp.bfloat16),
        grid=(B, n_kv),
        in_specs=[
            pl.BlockSpec((1, L, D), lambda b, k: (b, 0, 0)),
            pl.BlockSpec((1, Tp1, D), lambda b, k: (b, 0, 0)),
            pl.BlockSpec((TK, Tp1), lambda b, k: (k, 0)),
            pl.BlockSpec((1, 1, TK), lambda b, k: (b, 0, k)),
        ],
        out_specs=pl.BlockSpec((1, L, D), lambda b, k: (b, 0, 0)),
        scratch_shapes=[pltpu.VMEM((L, 1), jnp.float32),
                        pltpu.VMEM((L, 1), jnp.float32),
                        pltpu.VMEM((L, D), jnp.float32)],
        compiler_params=pltpu.CompilerParams(
            dimension_semantics=("parallel", "arbitrary"),
            vmem_limit_bytes=_VMEM_LIMIT),
    )(q.astype(jnp.bfloat16), cum, pool, pm_row.astype(jnp.float32))


def _fuse2_rank_kernel(pool_ref, cum_ref, q_ref, qv_ref, qm_ref, pmc_ref, pmr_ref,
                       wf_ref, bf_ref, w1_ref, b1_ref, w2_ref, b2_ref, o_ref):
    # fuser2 + Conv2dRanker fused; proposal features rebuilt in VMEM from the cumsum and
    # the final score stored as a lane-dense (1, TMr) row.
    pooled = jnp.dot(pool_ref[...], cum_ref[0],
                     preferred_element_type=jnp.float32)                 # (TMr, D)
    vm = pmc_ref[0]                                                      # (TMr, 1)
    y = _cqa_fuse_core(pooled.astype(jnp.bfloat16), q_ref[0], qv_ref[0], qm_ref[0], vm,
                       wf_ref[...], bf_ref[...])                         # (TMr, D) f32
    h = jnp.maximum(jnp.dot(y.astype(jnp.bfloat16), w1_ref[...],
                            preferred_element_type=jnp.float32) + b1_ref[...], 0.0)
    # (1, D) x (TMr, D)^T -> (1, TMr): lane-dense logits row, no (TMr, 1) intermediate.
    logit = lax.dot_general(w2_ref[...], h.astype(jnp.bfloat16),
                            (((1,), (1,)), ((), ())),
                            preferred_element_type=jnp.float32) + b2_ref[...]
    vmr = pmr_ref[0]                                                     # (1, TMr)
    o_ref[0, 0] = jax.nn.sigmoid(logit + (1.0 - vmr) * (-1e30)) * vmr


def pallas_fuse2_rank(pool, cum, q, qv, qmask, pm_col, pm_row,
                      wf, bf, w1, b1, w2, b2, row_tile=128):
    B, Tp1, D = cum.shape
    L = q.shape[1]
    Mp = pool.shape[0]
    TMr = min(row_tile, Mp)
    n_r = Mp // TMr
    out = pl.pallas_call(
        _fuse2_rank_kernel,
        out_shape=jax.ShapeDtypeStruct((B, n_r, 1, TMr), jnp.float32),
        grid=(B, n_r),
        in_specs=[
            pl.BlockSpec((TMr, Tp1), lambda b, r: (r, 0)),
            pl.BlockSpec((1, Tp1, D), lambda b, r: (b, 0, 0)),
            pl.BlockSpec((1, L, D), lambda b, r: (b, 0, 0)),
            pl.BlockSpec((1, L, D), lambda b, r: (b, 0, 0)),
            pl.BlockSpec((1, 1, L), lambda b, r: (b, 0, 0)),
            pl.BlockSpec((1, TMr, 1), lambda b, r: (b, r, 0)),
            pl.BlockSpec((1, 1, TMr), lambda b, r: (b, 0, r)),
            pl.BlockSpec((4 * D, D), lambda b, r: (0, 0)),
            pl.BlockSpec((1, D), lambda b, r: (0, 0)),
            pl.BlockSpec((D, D), lambda b, r: (0, 0)),
            pl.BlockSpec((1, D), lambda b, r: (0, 0)),
            pl.BlockSpec((1, D), lambda b, r: (0, 0)),
            pl.BlockSpec((1, 1), lambda b, r: (0, 0)),
        ],
        out_specs=pl.BlockSpec((1, 1, 1, TMr), lambda b, r: (b, r, 0, 0)),
        compiler_params=pltpu.CompilerParams(
            dimension_semantics=("parallel", "parallel"),
            vmem_limit_bytes=_VMEM_LIMIT),
    )(pool, cum, q.astype(jnp.bfloat16), qv.astype(jnp.bfloat16),
      qmask.reshape(B, 1, L).astype(jnp.float32),
      pm_col.astype(jnp.float32), pm_row.astype(jnp.float32),
      wf.astype(jnp.bfloat16), bf.reshape(1, D).astype(jnp.float32),
      w1.astype(jnp.bfloat16), b1.reshape(1, D).astype(jnp.float32),
      w2.reshape(1, D).astype(jnp.bfloat16), b2.reshape(1, 1).astype(jnp.float32))
    return out.reshape(B, Mp)


def _lstm_kernel(gx_ref, whh_ref, h_ref, h_sc, c_sc):
    # W_hh resident in VMEM; h/c carried across time-tile grid steps in scratch.
    @pl.when(pl.program_id(0) == 0)
    def _():
        h_sc[...] = jnp.zeros_like(h_sc)
        c_sc[...] = jnp.zeros_like(c_sc)

    whh = whh_ref[...]                                   # (H, 4H) bf16
    TT = gx_ref.shape[0]

    def step(t, carry):
        hprev, cprev = carry
        gates = gx_ref[t] + jnp.dot(hprev.astype(whh.dtype), whh,
                                    preferred_element_type=jnp.float32)  # (B, 4H)
        ii, ff, gg, oo = jnp.split(gates, 4, axis=-1)    # 128-aligned slices (H = 128)
        c = jax.nn.sigmoid(ff) * cprev + jax.nn.sigmoid(ii) * jnp.tanh(gg)
        h = jax.nn.sigmoid(oo) * jnp.tanh(c)
        h_ref[t] = h
        return (h, c)

    hN, cN = lax.fori_loop(0, TT, step, (h_sc[...], c_sc[...]), unroll=True)
    h_sc[...] = hN
    c_sc[...] = cN


def pallas_lstm(gates_x, w_hh, time_tile=None):
    """gates_x: (B, T, 4H) = x @ W_ih + b_ih (fused upstream); returns h: (B, T, H)."""
    B, T, H4 = gates_x.shape
    H = H4 // 4
    TT = time_tile or min(T, 32)
    Tp = _round_up(T, TT)
    gx = jnp.swapaxes(gates_x, 0, 1)                     # (T, B, 4H) time-major
    if Tp != T:
        gx = jnp.pad(gx, ((0, Tp - T), (0, 0), (0, 0)))
    out = pl.pallas_call(
        _lstm_kernel,
        out_shape=jax.ShapeDtypeStruct((Tp, B, H), jnp.float32),
        grid=(Tp // TT,),
        in_specs=[pl.BlockSpec((TT, B, H4), lambda i: (i, 0, 0)),
                  pl.BlockSpec((H, H4), lambda i: (0, 0))],
        out_specs=pl.BlockSpec((TT, B, H), lambda i: (i, 0, 0)),
        scratch_shapes=[pltpu.VMEM((B, H), jnp.float32),
                        pltpu.VMEM((B, H), jnp.float32)],
        compiler_params=pltpu.CompilerParams(
            dimension_semantics=("arbitrary",),
            vmem_limit_bytes=_VMEM_LIMIT),
    )(gx, w_hh.astype(jnp.bfloat16))
    return jnp.swapaxes(out[:T], 0, 1)


# --------------------------------------------------------------------------
# Plain-JAX glue (embedding gathers, positions, cumsum / pooling matrix)
# --------------------------------------------------------------------------

def cosine_position(x):
    T, D = x.shape[1], x.shape[2]
    pos = jnp.arange(T, dtype=jnp.float32)[:, None]
    div = jnp.exp(jnp.arange(0, D, 2, dtype=jnp.float32) * (-math.log(10000.0) / D))
    pe = jnp.reshape(jnp.stack([jnp.sin(pos * div), jnp.cos(pos * div)], axis=-1), (T, D))
    return x + pe[None]


def tan2d_prep(v, vmask, row_tile=128):
    """2D-TAN prep: segment cumsum, (T*T, T+1) pooling matrix, proposals, masks.

    proposal_features[b, s, e] = mean(v[b, s:e+1]) is reconstructed *inside* the Pallas
    kernels as pool @ cum[b]; the (B, T, T, D) tensor never exists in HBM.
    """
    B, T, D = v.shape
    cum = jnp.cumsum(v * vmask[..., None], axis=1)
    cum = jnp.concatenate([jnp.zeros((B, 1, D), v.dtype), cum], axis=1)   # (B, T+1, D)

    M = T * T
    TMr = min(row_tile, _round_up(M, 128))
    Mp = _round_up(M, TMr)

    rows = jnp.arange(Mp)
    s = rows // T
    e = rows % T
    valid = (e >= s) & (rows < M)
    length = jnp.clip((e - s + 1).astype(jnp.float32), 1.0, None)
    cols = jnp.arange(T + 1)
    ssel = (cols[None, :] == s[:, None]).astype(jnp.float32)
    esel = (cols[None, :] == (e + 1)[:, None]).astype(jnp.float32)
    pool = (esel - ssel) * (valid.astype(jnp.float32) / length)[:, None]  # (Mp, T+1)

    i = jnp.arange(T)
    proposals = jnp.stack(jnp.broadcast_arrays(i[:, None], i[None, :]), axis=-1)
    proposals = jnp.broadcast_to(proposals[None], (B, T, T, 2))
    lens = jnp.sum(vmask, axis=-1)
    valid2d = (i[None, :] >= i[:, None]).astype(jnp.float32)
    p_mask = valid2d[None] * (i[None, None, :] < lens[:, None, None]).astype(jnp.float32)

    pm_flat = p_mask.reshape(B, M)
    if Mp != M:
        pm_flat = jnp.pad(pm_flat, ((0, 0), (0, Mp - M)))
    return cum, pool, proposals, p_mask, pm_flat, TMr


# --------------------------------------------------------------------------
# Parameters
# --------------------------------------------------------------------------

def xavier(key, shape):
    lim = math.sqrt(6.0 / (shape[0] + shape[-1]))
    return jax.random.uniform(key, shape, jnp.float32, -lim, lim)


def init_params(key, cfg):
    ks = iter(jax.random.split(key, 24))
    D = cfg["dim"]
    p = {}
    p["word_vectors"] = 0.1 * jax.random.normal(next(ks), (cfg["word_size"], cfg["word_dim"]), jnp.float32)
    p["char_emb"] = 0.1 * jax.random.normal(next(ks), (cfg["char_size"], cfg["char_dim"]), jnp.float32)
    p["emb_w"] = xavier(next(ks), (cfg["word_dim"] + cfg["char_dim"], D)); p["emb_b"] = jnp.zeros((D,))
    p["vid_w"] = xavier(next(ks), (cfg["video_feature_dim"], D));          p["vid_b"] = jnp.zeros((D,))
    p["fuse1_w"] = xavier(next(ks), (4 * D, D));                           p["fuse1_b"] = jnp.zeros((D,))
    p["fuse2_w"] = xavier(next(ks), (4 * D, D));                           p["fuse2_b"] = jnp.zeros((D,))
    p["hl_w"] = xavier(next(ks), (D, 1));                                  p["hl_b"] = jnp.zeros((1,))
    p["lstm_wih"] = xavier(next(ks), (D, 4 * D));                          p["lstm_bih"] = jnp.zeros((4 * D,))
    p["lstm_whh"] = xavier(next(ks), (D, 4 * D))
    p["se_w"] = xavier(next(ks), (2 * D, 2));                              p["se_b"] = jnp.zeros((2,))
    p["rank_w1"] = xavier(next(ks), (D, D));                               p["rank_b1"] = jnp.zeros((D,))
    p["rank_w2"] = xavier(next(ks), (D, 1));                               p["rank_b2"] = jnp.zeros((1,))
    return p


# --------------------------------------------------------------------------
# EMB forward (inference: drop_rate treated as 0)
# --------------------------------------------------------------------------

def emb_forward(p, word_ids, char_ids, video_features, v_mask, q_mask):
    B, T = video_features.shape[0], video_features.shape[1]
    L = word_ids.shape[1]

    # tiny projections in plain XLA (per review: no 1-step pallas launches)
    v = video_features @ p["vid_w"] + p["vid_b"]
    w_emb = p["word_vectors"][word_ids]                  # (B, L, word_dim)
    c_emb = p["char_emb"][char_ids]                      # (B, L, CL, char_dim)
    c_feat = jnp.max(c_emb, axis=2)                      # TODO(synk): char CNN replaced by max-pool over chars
    q = jnp.concatenate([w_emb, c_feat], axis=-1) @ p["emb_w"] + p["emb_b"]

    # CosinePosition
    v = cosine_position(v)
    q = cosine_position(q)

    # GuidedAttentionEncoder: masked cross-attention both ways
    v2 = v + pallas_xattn(v, q, q_mask)                  # f32 (residual)
    q2 = q + pallas_xattn(q, v, v_mask)                  # f32 (residual)
    q2_bf = q2.astype(jnp.bfloat16)

    # TAN2dProposal prep (cumsum + tiny pooling matrix; no (B,T,T,D) in HBM)
    cum, pool, proposals, p_mask, pm_flat, TMr = tan2d_prep(v2, v_mask)

    # fuser1 + HighLightLayer + LSTM input projection fused in one kernel
    qv1 = pallas_xattn(q2, v2, v_mask, out_dtype=jnp.bfloat16)
    feats, gates_x, h_score = pallas_fuse1(v2, q2_bf, qv1, v_mask, q_mask,
                                           p["fuse1_w"], p["fuse1_b"],
                                           p["hl_w"], p["hl_b"],
                                           p["lstm_wih"], p["lstm_bih"])

    # ConditionedPredictor: LSTM recurrence in Pallas, start/end heads in XLA
    h = pallas_lstm(gates_x, p["lstm_whh"])
    cat = jnp.concatenate([feats, h], axis=-1)
    se_logits = cat @ p["se_w"] + p["se_b"]              # fused start+end heads
    start_logits = mask_logits(se_logits[..., 0], v_mask)
    end_logits = mask_logits(se_logits[..., 1], v_mask)

    # fuser2 + Conv2dRanker: flash-style q->proposal attention then fused rank kernel
    pm_row = pm_flat.reshape(B, 1, -1)
    pm_col = pm_flat.reshape(B, -1, 1)
    qv2 = pallas_pf_attn(q2_bf, cum, pool, pm_row)       # (B, L, D) bf16
    p_score = pallas_fuse2_rank(pool, cum, q2_bf, qv2, q_mask, pm_col, pm_row,
                                p["fuse2_w"], p["fuse2_b"],
                                p["rank_w1"], p["rank_b1"],
                                p["rank_w2"], p["rank_b2"],
                                row_tile=TMr)[:, :T * T].reshape(B, T, T)

    return h_score, start_logits, end_logits, proposals, p_score, p_mask


# --------------------------------------------------------------------------
# main
# --------------------------------------------------------------------------

if __name__ == "__main__":
    # dim=128 so every matmul has K/N >= 128 and all stores are lane-dense.
    cfg = dict(dim=128, word_size=100, char_size=20, word_dim=32, char_dim=16,
               video_feature_dim=128, drop_rate=0.0)
    B, T, L, CL = 2, 16, 8, 4

    key = jax.random.PRNGKey(0)
    kp, k1, k2, k3 = jax.random.split(key, 4)
    params = init_params(kp, cfg)

    word_ids = jax.random.randint(k1, (B, L), 0, cfg["word_size"])
    char_ids = jax.random.randint(k2, (B, L, CL), 0, cfg["char_size"])
    video_features = jax.random.normal(k3, (B, T, cfg["video_feature_dim"]), jnp.float32)
    v_lens = jnp.array([T, 12])
    q_lens = jnp.array([L, 5])
    v_mask = (jnp.arange(T)[None, :] < v_lens[:, None]).astype(jnp.float32)
    q_mask = (jnp.arange(L)[None, :] < q_lens[:, None]).astype(jnp.float32)

    fwd = jax.jit(emb_forward)
    out = fwd(params, word_ids, char_ids, video_features, v_mask, q_mask)
    jax.block_until_ready(out)

    h_score, start_logits, end_logits, proposals, p_score, p_mask = out
    assert h_score.shape == (B, T)
    assert start_logits.shape == (B, T) and end_logits.shape == (B, T)
    assert proposals.shape == (B, T, T, 2)
    assert p_score.shape == (B, T, T) and p_mask.shape == (B, T, T)
    assert all(bool(jnp.isfinite(x).all()) for x in
               (h_score, start_logits, end_logits, p_score))
    print("KERNEL_OK")
</pallas_src>

<mosaic_0001>
module attributes {stable_mosaic.version = 11 : i64} {
  func.func @_xattn_kernel(%arg0: i32, %arg1: i32, %arg2: memref<1x8x128xbf16, #tpu.memory_space<vmem>>, %arg3: memref<1x16x128xbf16, #tpu.memory_space<vmem>>, %arg4: memref<1x1x16xf32, #tpu.memory_space<vmem>>, %arg5: memref<1x8x128xf32, #tpu.memory_space<vmem>>) attributes {dimension_semantics = [#tpu.dimension_semantics<parallel>, #tpu.dimension_semantics<parallel>], iteration_bounds = array<i64: 2, 1>, scalar_prefetch = 0 : i64, scratch_operands = 0 : i64, tpu.core_type = #tpu.core_type<tc>, window_params = [{transform_indices = @transform_0, window_bounds = array<i64: 1, 8, 128>}, {transform_indices = @transform_1, window_bounds = array<i64: 1, 16, 128>}, {transform_indices = @transform_2, window_bounds = array<i64: 1, 1, 16>}, {transform_indices = @transform_3, window_bounds = array<i64: 1, 8, 128>}]} {
    %c0 = arith.constant 0 : index
    %c0_0 = arith.constant 0 : index
    %c0_1 = arith.constant 0 : index
    %0 = vector.load %arg2[%c0, %c0_0, %c0_1] : memref<1x8x128xbf16, #tpu.memory_space<vmem>>, vector<1x8x128xbf16>
    %1 = vector.shape_cast %0 : vector<1x8x128xbf16> to vector<8x128xbf16>
    %c0_2 = arith.constant 0 : index
    %c0_3 = arith.constant 0 : index
    %c0_4 = arith.constant 0 : index
    %2 = vector.load %arg3[%c0_2, %c0_3, %c0_4] : memref<1x16x128xbf16, #tpu.memory_space<vmem>>, vector<1x16x128xbf16>
    %3 = vector.shape_cast %2 : vector<1x16x128xbf16> to vector<16x128xbf16>
    %c0_5 = arith.constant 0 : index
    %c0_6 = arith.constant 0 : index
    %c0_7 = arith.constant 0 : index
    %4 = vector.load %arg4[%c0_5, %c0_6, %c0_7] : memref<1x1x16xf32, #tpu.memory_space<vmem>>, vector<1x1x16xf32>
    %5 = vector.shape_cast %4 : vector<1x1x16xf32> to vector<1x16xf32>
    %cst = arith.constant dense<0.000000e+00> : vector<8x16xf32>
    %6 = tpu.matmul %1, %3, %cst {dimension_numbers = #tpu.dot_dimension_numbers<[1], [1], [0], [0], [0, 0, 1, 0], [], []>} : vector<8x128xbf16>, vector<16x128xbf16>, vector<8x16xf32> -> vector<8x16xf32>
    %cst_8 = arith.constant 0.0883883461 : f32
    %7 = vector.broadcast %cst_8 : f32 to vector<8x16xf32>
    %8 = arith.mulf %6, %7 : vector<8x16xf32>
    %cst_9 = arith.constant 0.000000e+00 : f32
    %9 = vector.broadcast %cst_9 : f32 to vector<1x16xf32>
    %10 = arith.cmpf ogt, %5, %9 : vector<1x16xf32>
    %cst_10 = arith.constant -1.000000e+30 : f32
    %11 = vector.shape_cast %10 : vector<1x16xi1> to vector<1x16xi1>
    %12 = vector.broadcast %11 : vector<1x16xi1> to vector<8x16xi1>
    %13 = vector.broadcast %cst_10 : f32 to vector<8x16xf32>
    %14 = arith.select %12, %8, %13 : vector<8x16xi1>, vector<8x16xf32>
    %cst_11 = arith.constant dense<0xFF800000> : vector<8xf32>
    %15 = vector.multi_reduction <maximumf>, %14, %cst_11 [1] : vector<8x16xf32> to vector<8xf32>
    %16 = vector.shape_cast %15 : vector<8xf32> to vector<8x1xf32>
    %17 = vector.broadcast %16 : vector<8x1xf32> to vector<8x16xf32>
    %18 = arith.subf %14, %17 : vector<8x16xf32>
    %19 = math.exp %18 : vector<8x16xf32>
    %cst_12 = arith.constant dense<0.000000e+00> : vector<8xf32>
    %20 = vector.multi_reduction <add>, %19, %cst_12 [1] : vector<8x16xf32> to vector<8xf32>
    %21 = vector.shape_cast %20 : vector<8xf32> to vector<8x1xf32>
    %22 = tpu.reciprocal %21 {approx = true} : vector<8x1xf32> -> vector<8x1xf32>
    %23 = vector.broadcast %22 : vector<8x1xf32> to vector<8x16xf32>
    %24 = arith.mulf %19, %23 : vector<8x16xf32>
    %25 = arith.truncf %24 : vector<8x16xf32> to vector<8x16xbf16>
    %cst_13 = arith.constant dense<0.000000e+00> : vector<8x128xf32>
    %26 = tpu.matmul %25, %3, %cst_13 {dimension_numbers = #tpu.dot_dimension_numbers<[1], [0], [0], [1], [0, 0, 1, 1], [], []>} : vector<8x16xbf16>, vector<16x128xbf16>, vector<8x128xf32> -> vector<8x128xf32>
    %c0_14 = arith.constant 0 : index
    %c0_15 = arith.constant 0 : index
    %c0_16 = arith.constant 0 : index
    %27 = vector.load %arg5[%c0_14, %c0_15, %c0_16] : memref<1x8x128xf32, #tpu.memory_space<vmem>>, vector<1x8x128xf32>
    %28 = vector.shape_cast %27 : vector<1x8x128xf32> to vector<8x128xf32>
    %29 = vector.shape_cast %26 : vector<8x128xf32> to vector<1x8x128xf32>
    tpu.vector_store %arg5[%c0_14, %c0_15, %c0_16], %29 {strides = array<i32>} : memref<1x8x128xf32, #tpu.memory_space<vmem>>, vector<1x8x128xf32>,
    return
  }
  func.func @transform_0(%arg0: i32, %arg1: i32) -> (i32, i32, i32) {
    %c0_i32 = arith.constant 0 : i32
    %c0_i32_0 = arith.constant 0 : i32
    return %arg0, %arg1, %c0_i32 : i32, i32, i32
  }
  func.func @transform_1(%arg0: i32, %arg1: i32) -> (i32, i32, i32) {
    %c0_i32 = arith.constant 0 : i32
    %c0_i32_0 = arith.constant 0 : i32
    %c0_i32_1 = arith.constant 0 : i32
    return %arg0, %c0_i32, %c0_i32_0 : i32, i32, i32
  }
  func.func @transform_2(%arg0: i32, %arg1: i32) -> (i32, i32, i32) {
    %c0_i32 = arith.constant 0 : i32
    %c0_i32_0 = arith.constant 0 : i32
    %c0_i32_1 = arith.constant 0 : i32
    return %arg0, %c0_i32, %c0_i32_0 : i32, i32, i32
  }
  func.func @transform_3(%arg0: i32, %arg1: i32) -> (i32, i32, i32) {
    %c0_i32 = arith.constant 0 : i32
    %c0_i32_0 = arith.constant 0 : i32
    return %arg0, %arg1, %c0_i32 : i32, i32, i32
  }
}

module attributes {stable_mosaic.version = 11 : i64} {
  func.func @_xattn_kernel(%arg0: i32, %arg1: i32, %arg2: memref<1x16x128xbf16, #tpu.memory_space<vmem>>, %arg3: memref<1x8x128xbf16, #tpu.memory_space<vmem>>, %arg4: memref<1x1x8xf32, #tpu.memory_space<vmem>>, %arg5: memref<1x16x128xf32, #tpu.memory_space<vmem>>) attributes {dimension_semantics = [#tpu.dimension_semantics<parallel>, #tpu.dimension_semantics<parallel>], iteration_bounds = array<i64: 2, 1>, scalar_prefetch = 0 : i64, scratch_operands = 0 : i64, tpu.core_type = #tpu.core_type<tc>, window_params = [{transform_indices = @transform_0, window_bounds = array<i64: 1, 16, 128>}, {transform_indices = @transform_1, window_bounds = array<i64: 1, 8, 128>}, {transform_indices = @transform_2, window_bounds = array<i64: 1, 1, 8>}, {transform_indices = @transform_3, window_bounds = array<i64: 1, 16, 128>}]} {
    %c0 = arith.constant 0 : index
    %c0_0 = arith.constant 0 : index
    %c0_1 = arith.constant 0 : index
    %0 = vector.load %arg2[%c0, %c0_0, %c0_1] : memref<1x16x128xbf16, #tpu.memory_space<vmem>>, vector<1x16x128xbf16>
    %1 = vector.shape_cast %0 : vector<1x16x128xbf16> to vector<16x128xbf16>
    %c0_2 = arith.constant 0 : index
    %c0_3 = arith.constant 0 : index
    %c0_4 = arith.constant 0 : index
    %2 = vector.load %arg3[%c0_2, %c0_3, %c0_4] : memref<1x8x128xbf16, #tpu.memory_space<vmem>>, vector<1x8x128xbf16>
    %3 = vector.shape_cast %2 : vector<1x8x128xbf16> to vector<8x128xbf16>
    %c0_5 = arith.constant 0 : index
    %c0_6 = arith.constant 0 : index
    %c0_7 = arith.constant 0 : index
    %4 = vector.load %arg4[%c0_5, %c0_6, %c0_7] : memref<1x1x8xf32, #tpu.memory_space<vmem>>, vector<1x1x8xf32>
    %5 = vector.shape_cast %4 : vector<1x1x8xf32> to vector<1x8xf32>
    %cst = arith.constant dense<0.000000e+00> : vector<16x8xf32>
    %6 = tpu.matmul %1, %3, %cst {dimension_numbers = #tpu.dot_dimension_numbers<[1], [1], [0], [0], [0, 0, 1, 0], [], []>} : vector<16x128xbf16>, vector<8x128xbf16>, vector<16x8xf32> -> vector<16x8xf32>
    %cst_8 = arith.constant 0.0883883461 : f32
    %7 = vector.broadcast %cst_8 : f32 to vector<16x8xf32>
    %8 = arith.mulf %6, %7 : vector<16x8xf32>
    %cst_9 = arith.constant 0.000000e+00 : f32
    %9 = vector.broadcast %cst_9 : f32 to vector<1x8xf32>
    %10 = arith.cmpf ogt, %5, %9 : vector<1x8xf32>
    %cst_10 = arith.constant -1.000000e+30 : f32
    %11 = vector.shape_cast %10 : vector<1x8xi1> to vector<1x8xi1>
    %12 = vector.broadcast %11 : vector<1x8xi1> to vector<16x8xi1>
    %13 = vector.broadcast %cst_10 : f32 to vector<16x8xf32>
    %14 = arith.select %12, %8, %13 : vector<16x8xi1>, vector<16x8xf32>
    %cst_11 = arith.constant dense<0xFF800000> : vector<16xf32>
    %15 = vector.multi_reduction <maximumf>, %14, %cst_11 [1] : vector<16x8xf32> to vector<16xf32>
    %16 = vector.shape_cast %15 : vector<16xf32> to vector<16x1xf32>
    %17 = vector.broadcast %16 : vector<16x1xf32> to vector<16x8xf32>
    %18 = arith.subf %14, %17 : vector<16x8xf32>
    %19 = math.exp %18 : vector<16x8xf32>
    %cst_12 = arith.constant dense<0.000000e+00> : vector<16xf32>
    %20 = vector.multi_reduction <add>, %19, %cst_12 [1] : vector<16x8xf32> to vector<16xf32>
    %21 = vector.shape_cast %20 : vector<16xf32> to vector<16x1xf32>
    %22 = tpu.reciprocal %21 {approx = true} : vector<16x1xf32> -> vector<16x1xf32>
    %23 = vector.broadcast %22 : vector<16x1xf32> to vector<16x8xf32>
    %24 = arith.mulf %19, %23 : vector<16x8xf32>
    %25 = arith.truncf %24 : vector<16x8xf32> to vector<16x8xbf16>
    %cst_13 = arith.constant dense<0.000000e+00> : vector<16x128xf32>
    %26 = tpu.matmul %25, %3, %cst_13 {dimension_numbers = #tpu.dot_dimension_numbers<[1], [0], [0], [1], [0, 0, 1, 1], [], []>} : vector<16x8xbf16>, vector<8x128xbf16>, vector<16x128xf32> -> vector<16x128xf32>
    %c0_14 = arith.constant 0 : index
    %c0_15 = arith.constant 0 : index
    %c0_16 = arith.constant 0 : index
    %27 = vector.load %arg5[%c0_14, %c0_15, %c0_16] : memref<1x16x128xf32, #tpu.memory_space<vmem>>, vector<1x16x128xf32>
    %28 = vector.shape_cast %27 : vector<1x16x128xf32> to vector<16x128xf32>
    %29 = vector.shape_cast %26 : vector<16x128xf32> to vector<1x16x128xf32>
    tpu.vector_store %arg5[%c0_14, %c0_15, %c0_16], %29 {strides = array<i32>} : memref<1x16x128xf32, #tpu.memory_space<vmem>>, vector<1x16x128xf32>,
    return
  }
  func.func @transform_0(%arg0: i32, %arg1: i32) -> (i32, i32, i32) {
    %c0_i32 = arith.constant 0 : i32
    %c0_i32_0 = arith.constant 0 : i32
    return %arg0, %arg1, %c0_i32 : i32, i32, i32
  }
  func.func @transform_1(%arg0: i32, %arg1: i32) -> (i32, i32, i32) {
    %c0_i32 = arith.constant 0 : i32
    %c0_i32_0 = arith.constant 0 : i32
    %c0_i32_1 = arith.constant 0 : i32
    return %arg0, %c0_i32, %c0_i32_0 : i32, i32, i32
  }
  func.func @transform_2(%arg0: i32, %arg1: i32) -> (i32, i32, i32) {
    %c0_i32 = arith.constant 0 : i32
    %c0_i32_0 = arith.constant 0 : i32
    %c0_i32_1 = arith.constant 0 : i32
    return %arg0, %c0_i32, %c0_i32_0 : i32, i32, i32
  }
  func.func @transform_3(%arg0: i32, %arg1: i32) -> (i32, i32, i32) {
    %c0_i32 = arith.constant 0 : i32
    %c0_i32_0 = arith.constant 0 : i32
    return %arg0, %arg1, %c0_i32 : i32, i32, i32
  }
}

module attributes {stable_mosaic.version = 11 : i64} {
  func.func @_xattn_kernel(%arg0: i32, %arg1: i32, %arg2: memref<1x8x128xbf16, #tpu.memory_space<vmem>>, %arg3: memref<1x16x128xbf16, #tpu.memory_space<vmem>>, %arg4: memref<1x1x16xf32, #tpu.memory_space<vmem>>, %arg5: memref<1x8x128xbf16, #tpu.memory_space<vmem>>) attributes {dimension_semantics = [#tpu.dimension_semantics<parallel>, #tpu.dimension_semantics<parallel>], iteration_bounds = array<i64: 2, 1>, scalar_prefetch = 0 : i64, scratch_operands = 0 : i64, tpu.core_type = #tpu.core_type<tc>, window_params = [{transform_indices = @transform_0, window_bounds = array<i64: 1, 8, 128>}, {transform_indices = @transform_1, window_bounds = array<i64: 1, 16, 128>}, {transform_indices = @transform_2, window_bounds = array<i64: 1, 1, 16>}, {transform_indices = @transform_3, window_bounds = array<i64: 1, 8, 128>}]} {
    %c0 = arith.constant 0 : index
    %c0_0 = arith.constant 0 : index
    %c0_1 = arith.constant 0 : index
    %0 = vector.load %arg2[%c0, %c0_0, %c0_1] : memref<1x8x128xbf16, #tpu.memory_space<vmem>>, vector<1x8x128xbf16>
    %1 = vector.shape_cast %0 : vector<1x8x128xbf16> to vector<8x128xbf16>
    %c0_2 = arith.constant 0 : index
    %c0_3 = arith.constant 0 : index
    %c0_4 = arith.constant 0 : index
    %2 = vector.load %arg3[%c0_2, %c0_3, %c0_4] : memref<1x16x128xbf16, #tpu.memory_space<vmem>>, vector<1x16x128xbf16>
    %3 = vector.shape_cast %2 : vector<1x16x128xbf16> to vector<16x128xbf16>
    %c0_5 = arith.constant 0 : index
    %c0_6 = arith.constant 0 : index
    %c0_7 = arith.constant 0 : index
    %4 = vector.load %arg4[%c0_5, %c0_6, %c0_7] : memref<1x1x16xf32, #tpu.memory_space<vmem>>, vector<1x1x16xf32>
    %5 = vector.shape_cast %4 : vector<1x1x16xf32> to vector<1x16xf32>
    %cst = arith.constant dense<0.000000e+00> : vector<8x16xf32>
    %6 = tpu.matmul %1, %3, %cst {dimension_numbers = #tpu.dot_dimension_numbers<[1], [1], [0], [0], [0, 0, 1, 0], [], []>} : vector<8x128xbf16>, vector<16x128xbf16>, vector<8x16xf32> -> vector<8x16xf32>
    %cst_8 = arith.constant 0.0883883461 : f32
    %7 = vector.broadcast %cst_8 : f32 to vector<8x16xf32>
    %8 = arith.mulf %6, %7 : vector<8x16xf32>
    %cst_9 = arith.constant 0.000000e+00 : f32
    %9 = vector.broadcast %cst_9 : f32 to vector<1x16xf32>
    %10 = arith.cmpf ogt, %5, %9 : vector<1x16xf32>
    %cst_10 = arith.constant -1.000000e+30 : f32
    %11 = vector.shape_cast %10 : vector<1x16xi1> to vector<1x16xi1>
    %12 = vector.broadcast %11 : vector<1x16xi1> to vector<8x16xi1>
    %13 = vector.broadcast %cst_10 : f32 to vector<8x16xf32>
    %14 = arith.select %12, %8, %13 : vector<8x16xi1>, vector<8x16xf32>
    %cst_11 = arith.constant dense<0xFF800000> : vector<8xf32>
    %15 = vector.multi_reduction <maximumf>, %14, %cst_11 [1] : vector<8x16xf32> to vector<8xf32>
    %16 = vector.shape_cast %15 : vector<8xf32> to vector<8x1xf32>
    %17 = vector.broadcast %16 : vector<8x1xf32> to vector<8x16xf32>
    %18 = arith.subf %14, %17 : vector<8x16xf32>
    %19 = math.exp %18 : vector<8x16xf32>
    %cst_12 = arith.constant dense<0.000000e+00> : vector<8xf32>
    %20 = vector.multi_reduction <add>, %19, %cst_12 [1] : vector<8x16xf32> to vector<8xf32>
    %21 = vector.shape_cast %20 : vector<8xf32> to vector<8x1xf32>
    %22 = tpu.reciprocal %21 {approx = true} : vector<8x1xf32> -> vector<8x1xf32>
    %23 = vector.broadcast %22 : vector<8x1xf32> to vector<8x16xf32>
    %24 = arith.mulf %19, %23 : vector<8x16xf32>
    %25 = arith.truncf %24 : vector<8x16xf32> to vector<8x16xbf16>
    %cst_13 = arith.constant dense<0.000000e+00> : vector<8x128xf32>
    %26 = tpu.matmul %25, %3, %cst_13 {dimension_numbers = #tpu.dot_dimension_numbers<[1], [0], [0], [1], [0, 0, 1, 1], [], []>} : vector<8x16xbf16>, vector<16x128xbf16>, vector<8x128xf32> -> vector<8x128xf32>
    %27 = arith.truncf %26 : vector<8x128xf32> to vector<8x128xbf16>
    %c0_14 = arith.constant 0 : index
    %c0_15 = arith.constant 0 : index
    %c0_16 = arith.constant 0 : index
    %28 = vector.load %arg5[%c0_14, %c0_15, %c0_16] : memref<1x8x128xbf16, #tpu.memory_space<vmem>>, vector<1x8x128xbf16>
    %29 = vector.shape_cast %28 : vector<1x8x128xbf16> to vector<8x128xbf16>
    %30 = vector.shape_cast %27 : vector<8x128xbf16> to vector<1x8x128xbf16>
    tpu.vector_store %arg5[%c0_14, %c0_15, %c0_16], %30 {strides = array<i32>} : memref<1x8x128xbf16, #tpu.memory_space<vmem>>, vector<1x8x128xbf16>,
    return
  }
  func.func @transform_0(%arg0: i32, %arg1: i32) -> (i32, i32, i32) {
    %c0_i32 = arith.constant 0 : i32
    %c0_i32_0 = arith.constant 0 : i32
    return %arg0, %arg1, %c0_i32 : i32, i32, i32
  }
  func.func @transform_1(%arg0: i32, %arg1: i32) -> (i32, i32, i32) {
    %c0_i32 = arith.constant 0 : i32
    %c0_i32_0 = arith.constant 0 : i32
    %c0_i32_1 = arith.constant 0 : i32
    return %arg0, %c0_i32, %c0_i32_0 : i32, i32, i32
  }
  func.func @transform_2(%arg0: i32, %arg1: i32) -> (i32, i32, i32) {
    %c0_i32 = arith.constant 0 : i32
    %c0_i32_0 = arith.constant 0 : i32
    %c0_i32_1 = arith.constant 0 : i32
    return %arg0, %c0_i32, %c0_i32_0 : i32, i32, i32
  }
  func.func @transform_3(%arg0: i32, %arg1: i32) -> (i32, i32, i32) {
    %c0_i32 = arith.constant 0 : i32
    %c0_i32_0 = arith.constant 0 : i32
    return %arg0, %arg1, %c0_i32 : i32, i32, i32
  }
}

module attributes {stable_mosaic.version = 11 : i64} {
  func.func @_fuse1_kernel(%arg0: i32, %arg1: i32, %arg2: memref<1x16x128xbf16, #tpu.memory_space<vmem>>, %arg3: memref<1x8x128xbf16, #tpu.memory_space<vmem>>, %arg4: memref<1x8x128xbf16, #tpu.memory_space<vmem>>, %arg5: memref<1x1x8xf32, #tpu.memory_space<vmem>>, %arg6: memref<1x16x1xf32, #tpu.memory_space<vmem>>, %arg7: memref<512x128xbf16, #tpu.memory_space<vmem>>, %arg8: memref<1x128xf32, #tpu.memory_space<vmem>>, %arg9: memref<128x1xbf16, #tpu.memory_space<vmem>>, %arg10: memref<1x1xf32, #tpu.memory_space<vmem>>, %arg11: memref<128x512xbf16, #tpu.memory_space<vmem>>, %arg12: memref<1x512xf32, #tpu.memory_space<vmem>>, %arg13: memref<1x16x128xf32, #tpu.memory_space<vmem>>, %arg14: memref<1x16x512xf32, #tpu.memory_space<vmem>>, %arg15: memref<1x16x1xf32, #tpu.memory_space<vmem>>) attributes {dimension_semantics = [#tpu.dimension_semantics<parallel>, #tpu.dimension_semantics<parallel>], iteration_bounds = array<i64: 2, 1>, scalar_prefetch = 0 : i64, scratch_operands = 0 : i64, tpu.core_type = #tpu.core_type<tc>, window_params = [{transform_indices = @transform_0, window_bounds = array<i64: 1, 16, 128>}, {transform_indices = @transform_1, window_bounds = array<i64: 1, 8, 128>}, {transform_indices = @transform_2, window_bounds = array<i64: 1, 8, 128>}, {transform_indices = @transform_3, window_bounds = array<i64: 1, 1, 8>}, {transform_indices = @transform_4, window_bounds = array<i64: 1, 16, 1>}, {pipeline_mode = #tpu.pipeline_mode<synchronous>, transform_indices = @transform_5, window_bounds = array<i64: 512, 128>}, {pipeline_mode = #tpu.pipeline_mode<synchronous>, transform_indices = @transform_6, window_bounds = array<i64: 1, 128>}, {pipeline_mode = #tpu.pipeline_mode<synchronous>, transform_indices = @transform_7, window_bounds = array<i64: 128, 1>}, {pipeline_mode = #tpu.pipeline_mode<synchronous>, transform_indices = @transform_8, window_bounds = array<i64: 1, 1>}, {pipeline_mode = #tpu.pipeline_mode<synchronous>, transform_indices = @transform_9, window_bounds = array<i64: 128, 512>}, {pipeline_mode = #tpu.pipeline_mode<synchronous>, transform_indices = @transform_10, window_bounds = array<i64: 1, 512>}, {transform_indices = @transform_11, window_bounds = array<i64: 1, 16, 128>}, {transform_indices = @transform_12, window_bounds = array<i64: 1, 16, 512>}, {transform_indices = @transform_13, window_bounds = array<i64: 1, 16, 1>}]} {
    %c0 = arith.constant 0 : index
    %c0_0 = arith.constant 0 : index
    %c0_1 = arith.constant 0 : index
    %0 = vector.load %arg6[%c0, %c0_0, %c0_1] : memref<1x16x1xf32, #tpu.memory_space<vmem>>, vector<1x16x1xf32>
    %1 = vector.shape_cast %0 : vector<1x16x1xf32> to vector<16x1xf32>
    %c0_2 = arith.constant 0 : index
    %c0_3 = arith.constant 0 : index
    %c0_4 = arith.constant 0 : index
    %2 = vector.load %arg2[%c0_2, %c0_3, %c0_4] : memref<1x16x128xbf16, #tpu.memory_space<vmem>>, vector<1x16x128xbf16>
    %3 = vector.shape_cast %2 : vector<1x16x128xbf16> to vector<16x128xbf16>
    %c0_5 = arith.constant 0 : index
    %c0_6 = arith.constant 0 : index
    %c0_7 = arith.constant 0 : index
    %4 = vector.load %arg3[%c0_5, %c0_6, %c0_7] : memref<1x8x128xbf16, #tpu.memory_space<vmem>>, vector<1x8x128xbf16>
    %5 = vector.shape_cast %4 : vector<1x8x128xbf16> to vector<8x128xbf16>
    %c0_8 = arith.constant 0 : index
    %c0_9 = arith.constant 0 : index
    %c0_10 = arith.constant 0 : index
    %6 = vector.load %arg4[%c0_8, %c0_9, %c0_10] : memref<1x8x128xbf16, #tpu.memory_space<vmem>>, vector<1x8x128xbf16>
    %7 = vector.shape_cast %6 : vector<1x8x128xbf16> to vector<8x128xbf16>
    %c0_11 = arith.constant 0 : index
    %c0_12 = arith.constant 0 : index
    %c0_13 = arith.constant 0 : index
    %8 = vector.load %arg5[%c0_11, %c0_12, %c0_13] : memref<1x1x8xf32, #tpu.memory_space<vmem>>, vector<1x1x8xf32>
    %9 = vector.shape_cast %8 : vector<1x1x8xf32> to vector<1x8xf32>
    %c0_14 = arith.constant 0 : index
    %c0_15 = arith.constant 0 : index
    %10 = vector.load %arg7[%c0_14, %c0_15] : memref<512x128xbf16, #tpu.memory_space<vmem>>, vector<512x128xbf16>
    %c0_16 = arith.constant 0 : index
    %c0_17 = arith.constant 0 : index
    %11 = vector.load %arg8[%c0_16, %c0_17] : memref<1x128xf32, #tpu.memory_space<vmem>>, vector<1x128xf32>
    %cst = arith.constant dense<0.000000e+00> : vector<16x8xf32>
    %12 = tpu.matmul %3, %5, %cst {dimension_numbers = #tpu.dot_dimension_numbers<[1], [1], [0], [0], [0, 0, 1, 0], [], []>} : vector<16x128xbf16>, vector<8x128xbf16>, vector<16x8xf32> -> vector<16x8xf32>
    %cst_18 = arith.constant 0.0883883461 : f32
    %13 = vector.broadcast %cst_18 : f32 to vector<16x8xf32>
    %14 = arith.mulf %12, %13 : vector<16x8xf32>
    %cst_19 = arith.constant 0.000000e+00 : f32
    %15 = vector.broadcast %cst_19 : f32 to vector<1x8xf32>
    %16 = arith.cmpf ogt, %9, %15 : vector<1x8xf32>
    %cst_20 = arith.constant -1.000000e+30 : f32
    %17 = vector.shape_cast %16 : vector<1x8xi1> to vector<1x8xi1>
    %18 = vector.broadcast %17 : vector<1x8xi1> to vector<16x8xi1>
    %19 = vector.broadcast %cst_20 : f32 to vector<16x8xf32>
    %20 = arith.select %18, %14, %19 : vector<16x8xi1>, vector<16x8xf32>
    %cst_21 = arith.constant dense<0xFF800000> : vector<16xf32>
    %21 = vector.multi_reduction <maximumf>, %20, %cst_21 [1] : vector<16x8xf32> to vector<16xf32>
    %22 = vector.shape_cast %21 : vector<16xf32> to vector<16x1xf32>
    %23 = vector.broadcast %22 : vector<16x1xf32> to vector<16x8xf32>
    %24 = arith.subf %20, %23 : vector<16x8xf32>
    %25 = math.exp %24 : vector<16x8xf32>
    %cst_22 = arith.constant dense<0.000000e+00> : vector<16xf32>
    %26 = vector.multi_reduction <add>, %25, %cst_22 [1] : vector<16x8xf32> to vector<16xf32>
    %27 = vector.shape_cast %26 : vector<16xf32> to vector<16x1xf32>
    %28 = tpu.reciprocal %27 {approx = true} : vector<16x1xf32> -> vector<16x1xf32>
    %29 = vector.broadcast %28 : vector<16x1xf32> to vector<16x8xf32>
    %30 = arith.mulf %25, %29 : vector<16x8xf32>
    %31 = arith.truncf %30 : vector<16x8xf32> to vector<16x8xbf16>
    %cst_23 = arith.constant dense<0.000000e+00> : vector<16x128xf32>
    %32 = tpu.matmul %31, %5, %cst_23 {dimension_numbers = #tpu.dot_dimension_numbers<[1], [0], [0], [1], [0, 0, 1, 1], [], []>} : vector<16x8xbf16>, vector<8x128xbf16>, vector<16x128xf32> -> vector<16x128xf32>
    %cst_24 = arith.constant dense<0.000000e+00> : vector<16x128xf32>
    %33 = tpu.matmul %31, %7, %cst_24 {dimension_numbers = #tpu.dot_dimension_numbers<[1], [0], [0], [1], [0, 0, 1, 1], [], []>} : vector<16x8xbf16>, vector<8x128xbf16>, vector<16x128xf32> -> vector<16x128xf32>
    %34 = arith.extf %3 : vector<16x128xbf16> to vector<16x128xf32>
    %35 = arith.mulf %34, %32 : vector<16x128xf32>
    %36 = arith.mulf %34, %33 : vector<16x128xf32>
    %37 = tpu.concatenate %34, %32, %35, %36 in 1 : vector<16x128xf32>, vector<16x128xf32>, vector<16x128xf32>, vector<16x128xf32> -> vector<16x512xf32>
    %38 = arith.truncf %37 : vector<16x512xf32> to vector<16x512xbf16>
    %cst_25 = arith.constant dense<0.000000e+00> : vector<16x128xf32>
    %39 = tpu.matmul %38, %10, %cst_25 {dimension_numbers = #tpu.dot_dimension_numbers<[1], [0], [0], [1], [0, 0, 1, 1], [], []>} : vector<16x512xbf16>, vector<512x128xbf16>, vector<16x128xf32> -> vector<16x128xf32>
    %40 = vector.broadcast %11 : vector<1x128xf32> to vector<16x128xf32>
    %41 = arith.addf %39, %40 : vector<16x128xf32>
    %42 = vector.broadcast %1 : vector<16x1xf32> to vector<16x128xf32>
    %43 = arith.mulf %41, %42 : vector<16x128xf32>
    %44 = arith.truncf %43 : vector<16x128xf32> to vector<16x128xbf16>
    %c0_26 = arith.constant 0 : index
    %c0_27 = arith.constant 0 : index
    %45 = vector.load %arg9[%c0_26, %c0_27] : memref<128x1xbf16, #tpu.memory_space<vmem>>, vector<128x1xbf16>
    %cst_28 = arith.constant dense<0.000000e+00> : vector<16x1xf32>
    %46 = tpu.matmul %44, %45, %cst_28 {dimension_numbers = #tpu.dot_dimension_numbers<[1], [0], [0], [1], [0, 0, 1, 1], [], []>} : vector<16x128xbf16>, vector<128x1xbf16>, vector<16x1xf32> -> vector<16x1xf32>
    %c0_29 = arith.constant 0 : index
    %c0_30 = arith.constant 0 : index
    %47 = vector.load %arg10[%c0_29, %c0_30] : memref<1x1xf32, #tpu.memory_space<vmem>>, vector<1x1xf32>
    %48 = vector.broadcast %47 : vector<1x1xf32> to vector<16x1xf32>
    %49 = arith.addf %46, %48 : vector<16x1xf32>
    %cst_31 = arith.constant 1.000000e+00 : f32
    %50 = vector.broadcast %cst_31 : f32 to vector<16x1xf32>
    %51 = arith.subf %50, %1 : vector<16x1xf32>
    %cst_32 = arith.constant -1.000000e+30 : f32
    %52 = vector.broadcast %cst_32 : f32 to vector<16x1xf32>
    %53 = arith.mulf %51, %52 : vector<16x1xf32>
    %54 = arith.addf %49, %53 : vector<16x1xf32>
    %55 = arith.negf %54 : vector<16x1xf32>
    %56 = math.exp %55 : vector<16x1xf32>
    %cst_33 = arith.constant 1.000000e+00 : f32
    %57 = vector.broadcast %cst_33 : f32 to vector<16x1xf32>
    %58 = arith.addf %57, %56 : vector<16x1xf32>
    %59 = arith.divf %57, %58 : vector<16x1xf32>
    %60 = vector.broadcast %59 : vector<16x1xf32> to vector<16x128xf32>
    %61 = arith.mulf %43, %60 : vector<16x128xf32>
    %62 = arith.truncf %61 : vector<16x128xf32> to vector<16x128xbf16>
    %c0_34 = arith.constant 0 : index
    %c0_35 = arith.constant 0 : index
    %63 = vector.load %arg11[%c0_34, %c0_35] : memref<128x512xbf16, #tpu.memory_space<vmem>>, vector<128x512xbf16>
    %cst_36 = arith.constant dense<0.000000e+00> : vector<16x512xf32>
    %64 = tpu.matmul %62, %63, %cst_36 {dimension_numbers = #tpu.dot_dimension_numbers<[1], [0], [0], [1], [0, 0, 1, 1], [], []>} : vector<16x128xbf16>, vector<128x512xbf16>, vector<16x512xf32> -> vector<16x512xf32>
    %c0_37 = arith.constant 0 : index
    %c0_38 = arith.constant 0 : index
    %65 = vector.load %arg12[%c0_37, %c0_38] : memref<1x512xf32, #tpu.memory_space<vmem>>, vector<1x512xf32>
    %66 = vector.broadcast %65 : vector<1x512xf32> to vector<16x512xf32>
    %67 = arith.addf %64, %66 : vector<16x512xf32>
    %c0_39 = arith.constant 0 : index
    %c0_40 = arith.constant 0 : index
    %c0_41 = arith.constant 0 : index
    %68 = vector.load %arg14[%c0_39, %c0_40, %c0_41] : memref<1x16x512xf32, #tpu.memory_space<vmem>>, vector<1x16x512xf32>
    %69 = vector.shape_cast %68 : vector<1x16x512xf32> to vector<16x512xf32>
    %70 = vector.shape_cast %67 : vector<16x512xf32> to vector<1x16x512xf32>
    tpu.vector_store %arg14[%c0_39, %c0_40, %c0_41], %70 {strides = array<i32>} : memref<1x16x512xf32, #tpu.memory_space<vmem>>, vector<1x16x512xf32>,
    %c0_42 = arith.constant 0 : index
    %c0_43 = arith.constant 0 : index
    %c0_44 = arith.constant 0 : index
    %71 = vector.load %arg13[%c0_42, %c0_43, %c0_44] : memref<1x16x128xf32, #tpu.memory_space<vmem>>, vector<1x16x128xf32>
    %72 = vector.shape_cast %71 : vector<1x16x128xf32> to vector<16x128xf32>
    %73 = vector.shape_cast %61 : vector<16x128xf32> to vector<1x16x128xf32>
    tpu.vector_store %arg13[%c0_42, %c0_43, %c0_44], %73 {strides = array<i32>} : memref<1x16x128xf32, #tpu.memory_space<vmem>>, vector<1x16x128xf32>,
    %c0_45 = arith.constant 0 : index
    %c0_46 = arith.constant 0 : index
    %c0_47 = arith.constant 0 : index
    %74 = vector.load %arg15[%c0_45, %c0_46, %c0_47] : memref<1x16x1xf32, #tpu.memory_space<vmem>>, vector<1x16x1xf32>
    %75 = vector.shape_cast %74 : vector<1x16x1xf32> to vector<16x1xf32>
    %76 = vector.shape_cast %59 : vector<16x1xf32> to vector<1x16x1xf32>
    tpu.vector_store %arg15[%c0_45, %c0_46, %c0_47], %76 {strides = array<i32>} : memref<1x16x1xf32, #tpu.memory_space<vmem>>, vector<1x16x1xf32>,
    return
  }
  func.func @transform_0(%arg0: i32, %arg1: i32) -> (i32, i32, i32) {
    %c0_i32 = arith.constant 0 : i32
    %c0_i32_0 = arith.constant 0 : i32
    return %arg0, %arg1, %c0_i32 : i32, i32, i32
  }
  func.func @transform_1(%arg0: i32, %arg1: i32) -> (i32, i32, i32) {
    %c0_i32 = arith.constant 0 : i32
    %c0_i32_0 = arith.constant 0 : i32
    %c0_i32_1 = arith.constant 0 : i32
    return %arg0, %c0_i32, %c0_i32_0 : i32, i32, i32
  }
  func.func @transform_2(%arg0: i32, %arg1: i32) -> (i32, i32, i32) {
    %c0_i32 = arith.constant 0 : i32
    %c0_i32_0 = arith.constant 0 : i32
    %c0_i32_1 = arith.constant 0 : i32
    return %arg0, %c0_i32, %c0_i32_0 : i32, i32, i32
  }
  func.func @transform_3(%arg0: i32, %arg1: i32) -> (i32, i32, i32) {
    %c0_i32 = arith.constant 0 : i32
    %c0_i32_0 = arith.constant 0 : i32
    %c0_i32_1 = arith.constant 0 : i32
    return %arg0, %c0_i32, %c0_i32_0 : i32, i32, i32
  }
  func.func @transform_4(%arg0: i32, %arg1: i32) -> (i32, i32, i32) {
    %c0_i32 = arith.constant 0 : i32
    %c0_i32_0 = arith.constant 0 : i32
    return %arg0, %arg1, %c0_i32 : i32, i32, i32
  }
  func.func @transform_5(%arg0: i32, %arg1: i32) -> (i32, i32) {
    %c0_i32 = arith.constant 0 : i32
    %c0_i32_0 = arith.constant 0 : i32
    %c0_i32_1 = arith.constant 0 : i32
    return %c0_i32, %c0_i32_0 : i32, i32
  }
  func.func @transform_6(%arg0: i32, %arg1: i32) -> (i32, i32) {
    %c0_i32 = arith.constant 0 : i32
    %c0_i32_0 = arith.constant 0 : i32
    %c0_i32_1 = arith.constant 0 : i32
    return %c0_i32, %c0_i32_0 : i32, i32
  }
  func.func @transform_7(%arg0: i32, %arg1: i32) -> (i32, i32) {
    %c0_i32 = arith.constant 0 : i32
    %c0_i32_0 = arith.constant 0 : i32
    %c0_i32_1 = arith.constant 0 : i32
    return %c0_i32, %c0_i32_0 : i32, i32
  }
  func.func @transform_8(%arg0: i32, %arg1: i32) -> (i32, i32) {
    %c0_i32 = arith.constant 0 : i32
    %c0_i32_0 = arith.constant 0 : i32
    %c0_i32_1 = arith.constant 0 : i32
    return %c0_i32, %c0_i32_0 : i32, i32
  }
  func.func @transform_9(%arg0: i32, %arg1: i32) -> (i32, i32) {
    %c0_i32 = arith.constant 0 : i32
    %c0_i32_0 = arith.constant 0 : i32
    %c0_i32_1 = arith.constant 0 : i32
    return %c0_i32, %c0_i32_0 : i32, i32
  }
  func.func @transform_10(%arg0: i32, %arg1: i32) -> (i32, i32) {
    %c0_i32 = arith.constant 0 : i32
    %c0_i32_0 = arith.constant 0 : i32
    %c0_i32_1 = arith.constant 0 : i32
    return %c0_i32, %c0_i32_0 : i32, i32
  }
  func.func @transform_11(%arg0: i32, %arg1: i32) -> (i32, i32, i32) {
    %c0_i32 = arith.constant 0 : i32
    %c0_i32_0 = arith.constant 0 : i32
    return %arg0, %arg1, %c0_i32 : i32, i32, i32
  }
  func.func @transform_12(%arg0: i32, %arg1: i32) -> (i32, i32, i32) {
    %c0_i32 = arith.constant 0 : i32
    %c0_i32_0 = arith.constant 0 : i32
    return %arg0, %arg1, %c0_i32 : i32, i32, i32
  }
  func.func @transform_13(%arg0: i32, %arg1: i32) -> (i32, i32, i32) {
    %c0_i32 = arith.constant 0 : i32
    %c0_i32_0 = arith.constant 0 : i32
    return %arg0, %arg1, %c0_i32 : i32, i32, i32
  }
}

module attributes {stable_mosaic.version = 11 : i64} {
  func.func @_lstm_kernel(%arg0: i32, %arg1: memref<16x2x512xf32, #tpu.memory_space<vmem>>, %arg2: memref<128x512xbf16, #tpu.memory_space<vmem>>, %arg3: memref<16x2x128xf32, #tpu.memory_space<vmem>>, %arg4: memref<2x128xf32, #tpu.memory_space<vmem>>, %arg5: memref<2x128xf32, #tpu.memory_space<vmem>>) attributes {dimension_semantics = [#tpu.dimension_semantics<arbitrary>], iteration_bounds = array<i64: 1>, scalar_prefetch = 0 : i64, scratch_operands = 2 : i64, tpu.core_type = #tpu.core_type<tc>, window_params = [{transform_indices = @transform_0, window_bounds = array<i64: 16, 2, 512>}, {pipeline_mode = #tpu.pipeline_mode<synchronous>, transform_indices = @transform_1, window_bounds = array<i64: 128, 512>}, {transform_indices = @transform_2, window_bounds = array<i64: 16, 2, 128>}]} {
    %c0_i32 = arith.constant 0 : i32
    %0 = arith.cmpi eq, %arg0, %c0_i32 : i32
    %1 = arith.extui %0 : i1 to i32
    %c0_i32_0 = arith.constant 0 : i32
    %2 = arith.cmpi ne, %1, %c0_i32_0 : i32
    scf.if %2 {
      %cst_138 = arith.constant 0.000000e+00 : f32
      %568 = vector.broadcast %cst_138 : f32 to vector<2x128xf32>
      %c0_139 = arith.constant 0 : index
      %c0_140 = arith.constant 0 : index
      %569 = vector.load %arg4[%c0_139, %c0_140] : memref<2x128xf32, #tpu.memory_space<vmem>>, vector<2x128xf32>
      tpu.vector_store %arg4[%c0_139, %c0_140], %568 {strides = array<i32>} : memref<2x128xf32, #tpu.memory_space<vmem>>, vector<2x128xf32>,
      %cst_141 = arith.constant 0.000000e+00 : f32
      %570 = vector.broadcast %cst_141 : f32 to vector<2x128xf32>
      %c0_142 = arith.constant 0 : index
      %c0_143 = arith.constant 0 : index
      %571 = vector.load %arg5[%c0_142, %c0_143] : memref<2x128xf32, #tpu.memory_space<vmem>>, vector<2x128xf32>
      tpu.vector_store %arg5[%c0_142, %c0_143], %570 {strides = array<i32>} : memref<2x128xf32, #tpu.memory_space<vmem>>, vector<2x128xf32>,
    } else {
    }
    %c0 = arith.constant 0 : index
    %c0_1 = arith.constant 0 : index
    %3 = vector.load %arg2[%c0, %c0_1] : memref<128x512xbf16, #tpu.memory_space<vmem>>, vector<128x512xbf16>
    %c0_2 = arith.constant 0 : index
    %c0_3 = arith.constant 0 : index
    %4 = vector.load %arg4[%c0_2, %c0_3] : memref<2x128xf32, #tpu.memory_space<vmem>>, vector<2x128xf32>
    %c0_4 = arith.constant 0 : index
    %c0_5 = arith.constant 0 : index
    %5 = vector.load %arg5[%c0_4, %c0_5] : memref<2x128xf32, #tpu.memory_space<vmem>>, vector<2x128xf32>
    %c0_i32_6 = arith.constant 0 : i32
    %6 = arith.index_cast %c0_i32_6 : i32 to index
    %c0_7 = arith.constant 0 : index
    %c0_8 = arith.constant 0 : index
    %7 = vector.load %arg1[%6, %c0_7, %c0_8] : memref<16x2x512xf32, #tpu.memory_space<vmem>>, vector<1x2x512xf32>
    %8 = vector.shape_cast %7 : vector<1x2x512xf32> to vector<2x512xf32>
    %9 = arith.truncf %4 : vector<2x128xf32> to vector<2x128xbf16>
    %cst = arith.constant dense<0.000000e+00> : vector<2x512xf32>
    %10 = tpu.matmul %9, %3, %cst {dimension_numbers = #tpu.dot_dimension_numbers<[1], [0], [0], [1], [0, 0, 1, 1], [], []>} : vector<2x128xbf16>, vector<128x512xbf16>, vector<2x512xf32> -> vector<2x512xf32>
    %11 = arith.addf %8, %10 : vector<2x512xf32>
    %12 = vector.extract_strided_slice %11 {offsets = [0, 0], sizes = [2, 128], strides = [1, 1]} : vector<2x512xf32> to vector<2x128xf32>
    %13 = vector.extract_strided_slice %11 {offsets = [0, 128], sizes = [2, 128], strides = [1, 1]} : vector<2x512xf32> to vector<2x128xf32>
    %14 = vector.extract_strided_slice %11 {offsets = [0, 256], sizes = [2, 128], strides = [1, 1]} : vector<2x512xf32> to vector<2x128xf32>
    %15 = vector.extract_strided_slice %11 {offsets = [0, 384], sizes = [2, 128], strides = [1, 1]} : vector<2x512xf32> to vector<2x128xf32>
    %16 = arith.negf %13 : vector<2x128xf32>
    %17 = math.exp %16 : vector<2x128xf32>
    %cst_9 = arith.constant 1.000000e+00 : f32
    %18 = vector.broadcast %cst_9 : f32 to vector<2x128xf32>
    %19 = arith.addf %18, %17 : vector<2x128xf32>
    %20 = arith.divf %18, %19 : vector<2x128xf32>
    %21 = arith.mulf %20, %5 : vector<2x128xf32>
    %22 = arith.negf %12 : vector<2x128xf32>
    %23 = math.exp %22 : vector<2x128xf32>
    %cst_10 = arith.constant 1.000000e+00 : f32
    %24 = vector.broadcast %cst_10 : f32 to vector<2x128xf32>
    %25 = arith.addf %24, %23 : vector<2x128xf32>
    %26 = arith.divf %24, %25 : vector<2x128xf32>
    %27 = math.tanh %14 : vector<2x128xf32>
    %28 = arith.mulf %26, %27 : vector<2x128xf32>
    %29 = arith.addf %21, %28 : vector<2x128xf32>
    %30 = arith.negf %15 : vector<2x128xf32>
    %31 = math.exp %30 : vector<2x128xf32>
    %cst_11 = arith.constant 1.000000e+00 : f32
    %32 = vector.broadcast %cst_11 : f32 to vector<2x128xf32>
    %33 = arith.addf %32, %31 : vector<2x128xf32>
    %34 = arith.divf %32, %33 : vector<2x128xf32>
    %35 = math.tanh %29 : vector<2x128xf32>
    %36 = arith.mulf %34, %35 : vector<2x128xf32>
    %37 = arith.index_cast %c0_i32_6 : i32 to index
    %c0_12 = arith.constant 0 : index
    %c0_13 = arith.constant 0 : index
    %38 = vector.load %arg3[%37, %c0_12, %c0_13] : memref<16x2x128xf32, #tpu.memory_space<vmem>>, vector<1x2x128xf32>
    %39 = vector.shape_cast %38 : vector<1x2x128xf32> to vector<2x128xf32>
    %40 = vector.shape_cast %36 : vector<2x128xf32> to vector<1x2x128xf32>
    tpu.vector_store %arg3[%37, %c0_12, %c0_13], %40 {strides = array<i32>} : memref<16x2x128xf32, #tpu.memory_space<vmem>>, vector<1x2x128xf32>,
    %c1_i32 = arith.constant 1 : i32
    %41 = arith.index_cast %c1_i32 : i32 to index
    %c0_14 = arith.constant 0 : index
    %c0_15 = arith.constant 0 : index
    %42 = vector.load %arg1[%41, %c0_14, %c0_15] : memref<16x2x512xf32, #tpu.memory_space<vmem>>, vector<1x2x512xf32>
    %43 = vector.shape_cast %42 : vector<1x2x512xf32> to vector<2x512xf32>
    %44 = arith.truncf %36 : vector<2x128xf32> to vector<2x128xbf16>
    %cst_16 = arith.constant dense<0.000000e+00> : vector<2x512xf32>
    %45 = tpu.matmul %44, %3, %cst_16 {dimension_numbers = #tpu.dot_dimension_numbers<[1], [0], [0], [1], [0, 0, 1, 1], [], []>} : vector<2x128xbf16>, vector<128x512xbf16>, vector<2x512xf32> -> vector<2x512xf32>
    %46 = arith.addf %43, %45 : vector<2x512xf32>
    %47 = vector.extract_strided_slice %46 {offsets = [0, 0], sizes = [2, 128], strides = [1, 1]} : vector<2x512xf32> to vector<2x128xf32>
    %48 = vector.extract_strided_slice %46 {offsets = [0, 128], sizes = [2, 128], strides = [1, 1]} : vector<2x512xf32> to vector<2x128xf32>
    %49 = vector.extract_strided_slice %46 {offsets = [0, 256], sizes = [2, 128], strides = [1, 1]} : vector<2x512xf32> to vector<2x128xf32>
    %50 = vector.extract_strided_slice %46 {offsets = [0, 384], sizes = [2, 128], strides = [1, 1]} : vector<2x512xf32> to vector<2x128xf32>
    %51 = arith.negf %48 : vector<2x128xf32>
    %52 = math.exp %51 : vector<2x128xf32>
    %cst_17 = arith.constant 1.000000e+00 : f32
    %53 = vector.broadcast %cst_17 : f32 to vector<2x128xf32>
    %54 = arith.addf %53, %52 : vector<2x128xf32>
    %55 = arith.divf %53, %54 : vector<2x128xf32>
    %56 = arith.mulf %55, %29 : vector<2x128xf32>
    %57 = arith.negf %47 : vector<2x128xf32>
    %58 = math.exp %57 : vector<2x128xf32>
    %cst_18 = arith.constant 1.000000e+00 : f32
    %59 = vector.broadcast %cst_18 : f32 to vector<2x128xf32>
    %60 = arith.addf %59, %58 : vector<2x128xf32>
    %61 = arith.divf %59, %60 : vector<2x128xf32>
    %62 = math.tanh %49 : vector<2x128xf32>
    %63 = arith.mulf %61, %62 : vector<2x128xf32>
    %64 = arith.addf %56, %63 : vector<2x128xf32>
    %65 = arith.negf %50 : vector<2x128xf32>
    %66 = math.exp %65 : vector<2x128xf32>
    %cst_19 = arith.constant 1.000000e+00 : f32
    %67 = vector.broadcast %cst_19 : f32 to vector<2x128xf32>
    %68 = arith.addf %67, %66 : vector<2x128xf32>
    %69 = arith.divf %67, %68 : vector<2x128xf32>
    %70 = math.tanh %64 : vector<2x128xf32>
    %71 = arith.mulf %69, %70 : vector<2x128xf32>
    %72 = arith.index_cast %c1_i32 : i32 to index
    %c0_20 = arith.constant 0 : index
    %c0_21 = arith.constant 0 : index
    %73 = vector.load %arg3[%72, %c0_20, %c0_21] : memref<16x2x128xf32, #tpu.memory_space<vmem>>, vector<1x2x128xf32>
    %74 = vector.shape_cast %73 : vector<1x2x128xf32> to vector<2x128xf32>
    %75 = vector.shape_cast %71 : vector<2x128xf32> to vector<1x2x128xf32>
    tpu.vector_store %arg3[%72, %c0_20, %c0_21], %75 {strides = array<i32>} : memref<16x2x128xf32, #tpu.memory_space<vmem>>, vector<1x2x128xf32>,
    %c2_i32 = arith.constant 2 : i32
    %76 = arith.index_cast %c2_i32 : i32 to index
    %c0_22 = arith.constant 0 : index
    %c0_23 = arith.constant 0 : index
    %77 = vector.load %arg1[%76, %c0_22, %c0_23] : memref<16x2x512xf32, #tpu.memory_space<vmem>>, vector<1x2x512xf32>
    %78 = vector.shape_cast %77 : vector<1x2x512xf32> to vector<2x512xf32>
    %79 = arith.truncf %71 : vector<2x128xf32> to vector<2x128xbf16>
    %cst_24 = arith.constant dense<0.000000e+00> : vector<2x512xf32>
    %80 = tpu.matmul %79, %3, %cst_24 {dimension_numbers = #tpu.dot_dimension_numbers<[1], [0], [0], [1], [0, 0, 1, 1], [], []>} : vector<2x128xbf16>, vector<128x512xbf16>, vector<2x512xf32> -> vector<2x512xf32>
    %81 = arith.addf %78, %80 : vector<2x512xf32>
    %82 = vector.extract_strided_slice %81 {offsets = [0, 0], sizes = [2, 128], strides = [1, 1]} : vector<2x512xf32> to vector<2x128xf32>
    %83 = vector.extract_strided_slice %81 {offsets = [0, 128], sizes = [2, 128], strides = [1, 1]} : vector<2x512xf32> to vector<2x128xf32>
    %84 = vector.extract_strided_slice %81 {offsets = [0, 256], sizes = [2, 128], strides = [1, 1]} : vector<2x512xf32> to vector<2x128xf32>
    %85 = vector.extract_strided_slice %81 {offsets = [0, 384], sizes = [2, 128], strides = [1, 1]} : vector<2x512xf32> to vector<2x128xf32>
    %86 = arith.negf %83 : vector<2x128xf32>
    %87 = math.exp %86 : vector<2x128xf32>
    %cst_25 = arith.constant 1.000000e+00 : f32
    %88 = vector.broadcast %cst_25 : f32 to vector<2x128xf32>
    %89 = arith.addf %88, %87 : vector<2x128xf32>
    %90 = arith.divf %88, %89 : vector<2x128xf32>
    %91 = arith.mulf %90, %64 : vector<2x128xf32>
    %92 = arith.negf %82 : vector<2x128xf32>
    %93 = math.exp %92 : vector<2x128xf32>
    %cst_26 = arith.constant 1.000000e+00 : f32
    %94 = vector.broadcast %cst_26 : f32 to vector<2x128xf32>
    %95 = arith.addf %94, %93 : vector<2x128xf32>
    %96 = arith.divf %94, %95 : vector<2x128xf32>
    %97 = math.tanh %84 : vector<2x128xf32>
    %98 = arith.mulf %96, %97 : vector<2x128xf32>
    %99 = arith.addf %91, %98 : vector<2x128xf32>
    %100 = arith.negf %85 : vector<2x128xf32>
    %101 = math.exp %100 : vector<2x128xf32>
    %cst_27 = arith.constant 1.000000e+00 : f32
    %102 = vector.broadcast %cst_27 : f32 to vector<2x128xf32>
    %103 = arith.addf %102, %101 : vector<2x128xf32>
    %104 = arith.divf %102, %103 : vector<2x128xf32>
    %105 = math.tanh %99 : vector<2x128xf32>
    %106 = arith.mulf %104, %105 : vector<2x128xf32>
    %107 = arith.index_cast %c2_i32 : i32 to index
    %c0_28 = arith.constant 0 : index
    %c0_29 = arith.constant 0 : index
    %108 = vector.load %arg3[%107, %c0_28, %c0_29] : memref<16x2x128xf32, #tpu.memory_space<vmem>>, vector<1x2x128xf32>
    %109 = vector.shape_cast %108 : vector<1x2x128xf32> to vector<2x128xf32>
    %110 = vector.shape_cast %106 : vector<2x128xf32> to vector<1x2x128xf32>
    tpu.vector_store %arg3[%107, %c0_28, %c0_29], %110 {strides = array<i32>} : memref<16x2x128xf32, #tpu.memory_space<vmem>>, vector<1x2x128xf32>,
    %c3_i32 = arith.constant 3 : i32
    %111 = arith.index_cast %c3_i32 : i32 to index
    %c0_30 = arith.constant 0 : index
    %c0_31 = arith.constant 0 : index
    %112 = vector.load %arg1[%111, %c0_30, %c0_31] : memref<16x2x512xf32, #tpu.memory_space<vmem>>, vector<1x2x512xf32>
    %113 = vector.shape_cast %112 : vector<1x2x512xf32> to vector<2x512xf32>
    %114 = arith.truncf %106 : vector<2x128xf32> to vector<2x128xbf16>
    %cst_32 = arith.constant dense<0.000000e+00> : vector<2x512xf32>
    %115 = tpu.matmul %114, %3, %cst_32 {dimension_numbers = #tpu.dot_dimension_numbers<[1], [0], [0], [1], [0, 0, 1, 1], [], []>} : vector<2x128xbf16>, vector<128x512xbf16>, vector<2x512xf32> -> vector<2x512xf32>
    %116 = arith.addf %113, %115 : vector<2x512xf32>
    %117 = vector.extract_strided_slice %116 {offsets = [0, 0], sizes = [2, 128], strides = [1, 1]} : vector<2x512xf32> to vector<2x128xf32>
    %118 = vector.extract_strided_slice %116 {offsets = [0, 128], sizes = [2, 128], strides = [1, 1]} : vector<2x512xf32> to vector<2x128xf32>
    %119 = vector.extract_strided_slice %116 {offsets = [0, 256], sizes = [2, 128], strides = [1, 1]} : vector<2x512xf32> to vector<2x128xf32>
    %120 = vector.extract_strided_slice %116 {offsets = [0, 384], sizes = [2, 128], strides = [1, 1]} : vector<2x512xf32> to vector<2x128xf32>
    %121 = arith.negf %118 : vector<2x128xf32>
    %122 = math.exp %121 : vector<2x128xf32>
    %cst_33 = arith.constant 1.000000e+00 : f32
    %123 = vector.broadcast %cst_33 : f32 to vector<2x128xf32>
    %124 = arith.addf %123, %122 : vector<2x128xf32>
    %125 = arith.divf %123, %124 : vector<2x128xf32>
    %126 = arith.mulf %125, %99 : vector<2x128xf32>
    %127 = arith.negf %117 : vector<2x128xf32>
    %128 = math.exp %127 : vector<2x128xf32>
    %cst_34 = arith.constant 1.000000e+00 : f32
    %129 = vector.broadcast %cst_34 : f32 to vector<2x128xf32>
    %130 = arith.addf %129, %128 : vector<2x128xf32>
    %131 = arith.divf %129, %130 : vector<2x128xf32>
    %132 = math.tanh %119 : vector<2x128xf32>
    %133 = arith.mulf %131, %132 : vector<2x128xf32>
    %134 = arith.addf %126, %133 : vector<2x128xf32>
    %135 = arith.negf %120 : vector<2x128xf32>
    %136 = math.exp %135 : vector<2x128xf32>
    %cst_35 = arith.constant 1.000000e+00 : f32
    %137 = vector.broadcast %cst_35 : f32 to vector<2x128xf32>
    %138 = arith.addf %137, %136 : vector<2x128xf32>
    %139 = arith.divf %137, %138 : vector<2x128xf32>
    %140 = math.tanh %134 : vector<2x128xf32>
    %141 = arith.mulf %139, %140 : vector<2x128xf32>
    %142 = arith.index_cast %c3_i32 : i32 to index
    %c0_36 = arith.constant 0 : index
    %c0_37 = arith.constant 0 : index
    %143 = vector.load %arg3[%142, %c0_36, %c0_37] : memref<16x2x128xf32, #tpu.memory_space<vmem>>, vector<1x2x128xf32>
    %144 = vector.shape_cast %143 : vector<1x2x128xf32> to vector<2x128xf32>
    %145 = vector.shape_cast %141 : vector<2x128xf32> to vector<1x2x128xf32>
    tpu.vector_store %arg3[%142, %c0_36, %c0_37], %145 {strides = array<i32>} : memref<16x2x128xf32, #tpu.memory_space<vmem>>, vector<1x2x128xf32>,
    %c4_i32 = arith.constant 4 : i32
    %146 = arith.index_cast %c4_i32 : i32 to index
    %c0_38 = arith.constant 0 : index
    %c0_39 = arith.constant 0 : index
    %147 = vector.load %arg1[%146, %c0_38, %c0_39] : memref<16x2x512xf32, #tpu.memory_space<vmem>>, vector<1x2x512xf32>
    %148 = vector.shape_cast %147 : vector<1x2x512xf32> to vector<2x512xf32>
    %149 = arith.truncf %141 : vector<2x128xf32> to vector<2x128xbf16>
    %cst_40 = arith.constant dense<0.000000e+00> : vector<2x512xf32>
    %150 = tpu.matmul %149, %3, %cst_40 {dimension_numbers = #tpu.dot_dimension_numbers<[1], [0], [0], [1], [0, 0, 1, 1], [], []>} : vector<2x128xbf16>, vector<128x512xbf16>, vector<2x512xf32> -> vector<2x512xf32>
    %151 = arith.addf %148, %150 : vector<2x512xf32>
    %152 = vector.extract_strided_slice %151 {offsets = [0, 0], sizes = [2, 128], strides = [1, 1]} : vector<2x512xf32> to vector<2x128xf32>
    %153 = vector.extract_strided_slice %151 {offsets = [0, 128], sizes = [2, 128], strides = [1, 1]} : vector<2x512xf32> to vector<2x128xf32>
    %154 = vector.extract_strided_slice %151 {offsets = [0, 256], sizes = [2, 128], strides = [1, 1]} : vector<2x512xf32> to vector<2x128xf32>
    %155 = vector.extract_strided_slice %151 {offsets = [0, 384], sizes = [2, 128], strides = [1, 1]} : vector<2x512xf32> to vector<2x128xf32>
    %156 = arith.negf %153 : vector<2x128xf32>
    %157 = math.exp %156 : vector<2x128xf32>
    %cst_41 = arith.constant 1.000000e+00 : f32
    %158 = vector.broadcast %cst_41 : f32 to vector<2x128xf32>
    %159 = arith.addf %158, %157 : vector<2x128xf32>
    %160 = arith.divf %158, %159 : vector<2x128xf32>
    %161 = arith.mulf %160, %134 : vector<2x128xf32>
    %162 = arith.negf %152 : vector<2x128xf32>
    %163 = math.exp %162 : vector<2x128xf32>
    %cst_42 = arith.constant 1.000000e+00 : f32
    %164 = vector.broadcast %cst_42 : f32 to vector<2x128xf32>
    %165 = arith.addf %164, %163 : vector<2x128xf32>
    %166 = arith.divf %164, %165 : vector<2x128xf32>
    %167 = math.tanh %154 : vector<2x128xf32>
    %168 = arith.mulf %166, %167 : vector<2x128xf32>
    %169 = arith.addf %161, %168 : vector<2x128xf32>
    %170 = arith.negf %155 : vector<2x128xf32>
    %171 = math.exp %170 : vector<2x128xf32>
    %cst_43 = arith.constant 1.000000e+00 : f32
    %172 = vector.broadcast %cst_43 : f32 to vector<2x128xf32>
    %173 = arith.addf %172, %171 : vector<2x128xf32>
    %174 = arith.divf %172, %173 : vector<2x128xf32>
    %175 = math.tanh %169 : vector<2x128xf32>
    %176 = arith.mulf %174, %175 : vector<2x128xf32>
    %177 = arith.index_cast %c4_i32 : i32 to index
    %c0_44 = arith.constant 0 : index
    %c0_45 = arith.constant 0 : index
    %178 = vector.load %arg3[%177, %c0_44, %c0_45] : memref<16x2x128xf32, #tpu.memory_space<vmem>>, vector<1x2x128xf32>
    %179 = vector.shape_cast %178 : vector<1x2x128xf32> to vector<2x128xf32>
    %180 = vector.shape_cast %176 : vector<2x128xf32> to vector<1x2x128xf32>
    tpu.vector_store %arg3[%177, %c0_44, %c0_45], %180 {strides = array<i32>} : memref<16x2x128xf32, #tpu.memory_space<vmem>>, vector<1x2x128xf32>,
    %c5_i32 = arith.constant 5 : i32
    %181 = arith.index_cast %c5_i32 : i32 to index
    %c0_46 = arith.constant 0 : index
    %c0_47 = arith.constant 0 : index
    %182 = vector.load %arg1[%181, %c0_46, %c0_47] : memref<16x2x512xf32, #tpu.memory_space<vmem>>, vector<1x2x512xf32>
    %183 = vector.shape_cast %182 : vector<1x2x512xf32> to vector<2x512xf32>
    %184 = arith.truncf %176 : vector<2x128xf32> to vector<2x128xbf16>
    %cst_48 = arith.constant dense<0.000000e+00> : vector<2x512xf32>
    %185 = tpu.matmul %184, %3, %cst_48 {dimension_numbers = #tpu.dot_dimension_numbers<[1], [0], [0], [1], [0, 0, 1, 1], [], []>} : vector<2x128xbf16>, vector<128x512xbf16>, vector<2x512xf32> -> vector<2x512xf32>
    %186 = arith.addf %183, %185 : vector<2x512xf32>
    %187 = vector.extract_strided_slice %186 {offsets = [0, 0], sizes = [2, 128], strides = [1, 1]} : vector<2x512xf32> to vector<2x128xf32>
    %188 = vector.extract_strided_slice %186 {offsets = [0, 128], sizes = [2, 128], strides = [1, 1]} : vector<2x512xf32> to vector<2x128xf32>
    %189 = vector.extract_strided_slice %186 {offsets = [0, 256], sizes = [2, 128], strides = [1, 1]} : vector<2x512xf32> to vector<2x128xf32>
    %190 = vector.extract_strided_slice %186 {offsets = [0, 384], sizes = [2, 128], strides = [1, 1]} : vector<2x512xf32> to vector<2x128xf32>
    %191 = arith.negf %188 : vector<2x128xf32>
    %192 = math.exp %191 : vector<2x128xf32>
    %cst_49 = arith.constant 1.000000e+00 : f32
    %193 = vector.broadcast %cst_49 : f32 to vector<2x128xf32>
    %194 = arith.addf %193, %192 : vector<2x128xf32>
    %195 = arith.divf %193, %194 : vector<2x128xf32>
    %196 = arith.mulf %195, %169 : vector<2x128xf32>
    %197 = arith.negf %187 : vector<2x128xf32>
    %198 = math.exp %197 : vector<2x128xf32>
    %cst_50 = arith.constant 1.000000e+00 : f32
    %199 = vector.broadcast %cst_50 : f32 to vector<2x128xf32>
    %200 = arith.addf %199, %198 : vector<2x128xf32>
    %201 = arith.divf %199, %200 : vector<2x128xf32>
    %202 = math.tanh %189 : vector<2x128xf32>
    %203 = arith.mulf %201, %202 : vector<2x128xf32>
    %204 = arith.addf %196, %203 : vector<2x128xf32>
    %205 = arith.negf %190 : vector<2x128xf32>
    %206 = math.exp %205 : vector<2x128xf32>
    %cst_51 = arith.constant 1.000000e+00 : f32
    %207 = vector.broadcast %cst_51 : f32 to vector<2x128xf32>
    %208 = arith.addf %207, %206 : vector<2x128xf32>
    %209 = arith.divf %207, %208 : vector<2x128xf32>
    %210 = math.tanh %204 : vector<2x128xf32>
    %211 = arith.mulf %209, %210 : vector<2x128xf32>
    %212 = arith.index_cast %c5_i32 : i32 to index
    %c0_52 = arith.constant 0 : index
    %c0_53 = arith.constant 0 : index
    %213 = vector.load %arg3[%212, %c0_52, %c0_53] : memref<16x2x128xf32, #tpu.memory_space<vmem>>, vector<1x2x128xf32>
    %214 = vector.shape_cast %213 : vector<1x2x128xf32> to vector<2x128xf32>
    %215 = vector.shape_cast %211 : vector<2x128xf32> to vector<1x2x128xf32>
    tpu.vector_store %arg3[%212, %c0_52, %c0_53], %215 {strides = array<i32>} : memref<16x2x128xf32, #tpu.memory_space<vmem>>, vector<1x2x128xf32>,
    %c6_i32 = arith.constant 6 : i32
    %216 = arith.index_cast %c6_i32 : i32 to index
    %c0_54 = arith.constant 0 : index
    %c0_55 = arith.constant 0 : index
    %217 = vector.load %arg1[%216, %c0_54, %c0_55] : memref<16x2x512xf32, #tpu.memory_space<vmem>>, vector<1x2x512xf32>
    %218 = vector.shape_cast %217 : vector<1x2x512xf32> to vector<2x512xf32>
    %219 = arith.truncf %211 : vector<2x128xf32> to vector<2x128xbf16>
    %cst_56 = arith.constant dense<0.000000e+00> : vector<2x512xf32>
    %220 = tpu.matmul %219, %3, %cst_56 {dimension_numbers = #tpu.dot_dimension_numbers<[1], [0], [0], [1], [0, 0, 1, 1], [], []>} : vector<2x128xbf16>, vector<128x512xbf16>, vector<2x512xf32> -> vector<2x512xf32>
    %221 = arith.addf %218, %220 : vector<2x512xf32>
    %222 = vector.extract_strided_slice %221 {offsets = [0, 0], sizes = [2, 128], strides = [1, 1]} : vector<2x512xf32> to vector<2x128xf32>
    %223 = vector.extract_strided_slice %221 {offsets = [0, 128], sizes = [2, 128], strides = [1, 1]} : vector<2x512xf32> to vector<2x128xf32>
    %224 = vector.extract_strided_slice %221 {offsets = [0, 256], sizes = [2, 128], strides = [1, 1]} : vector<2x512xf32> to vector<2x128xf32>
    %225 = vector.extract_strided_slice %221 {offsets = [0, 384], sizes = [2, 128], strides = [1, 1]} : vector<2x512xf32> to vector<2x128xf32>
    %226 = arith.negf %223 : vector<2x128xf32>
    %227 = math.exp %226 : vector<2x128xf32>
    %cst_57 = arith.constant 1.000000e+00 : f32
    %228 = vector.broadcast %cst_57 : f32 to vector<2x128xf32>
    %229 = arith.addf %228, %227 : vector<2x128xf32>
    %230 = arith.divf %228, %229 : vector<2x128xf32>
    %231 = arith.mulf %230, %204 : vector<2x128xf32>
    %232 = arith.negf %222 : vector<2x128xf32>
    %233 = math.exp %232 : vector<2x128xf32>
    %cst_58 = arith.constant 1.000000e+00 : f32
    %234 = vector.broadcast %cst_58 : f32 to vector<2x128xf32>
    %235 = arith.addf %234, %233 : vector<2x128xf32>
    %236 = arith.divf %234, %235 : vector<2x128xf32>
    %237 = math.tanh %224 : vector<2x128xf32>
    %238 = arith.mulf %236, %237 : vector<2x128xf32>
    %239 = arith.addf %231, %238 : vector<2x128xf32>
    %240 = arith.negf %225 : vector<2x128xf32>
    %241 = math.exp %240 : vector<2x128xf32>
    %cst_59 = arith.constant 1.000000e+00 : f32
    %242 = vector.broadcast %cst_59 : f32 to vector<2x128xf32>
    %243 = arith.addf %242, %241 : vector<2x128xf32>
    %244 = arith.divf %242, %243 : vector<2x128xf32>
    %245 = math.tanh %239 : vector<2x128xf32>
    %246 = arith.mulf %244, %245 : vector<2x128xf32>
    %247 = arith.index_cast %c6_i32 : i32 to index
    %c0_60 = arith.constant 0 : index
    %c0_61 = arith.constant 0 : index
    %248 = vector.load %arg3[%247, %c0_60, %c0_61] : memref<16x2x128xf32, #tpu.memory_space<vmem>>, vector<1x2x128xf32>
    %249 = vector.shape_cast %248 : vector<1x2x128xf32> to vector<2x128xf32>
    %250 = vector.shape_cast %246 : vector<2x128xf32> to vector<1x2x128xf32>
    tpu.vector_store %arg3[%247, %c0_60, %c0_61], %250 {strides = array<i32>} : memref<16x2x128xf32, #tpu.memory_space<vmem>>, vector<1x2x128xf32>,
    %c7_i32 = arith.constant 7 : i32
    %251 = arith.index_cast %c7_i32 : i32 to index
    %c0_62 = arith.constant 0 : index
    %c0_63 = arith.constant 0 : index
    %252 = vector.load %arg1[%251, %c0_62, %c0_63] : memref<16x2x512xf32, #tpu.memory_space<vmem>>, vector<1x2x512xf32>
    %253 = vector.shape_cast %252 : vector<1x2x512xf32> to vector<2x512xf32>
    %254 = arith.truncf %246 : vector<2x128xf32> to vector<2x128xbf16>
    %cst_64 = arith.constant dense<0.000000e+00> : vector<2x512xf32>
    %255 = tpu.matmul %254, %3, %cst_64 {dimension_numbers = #tpu.dot_dimension_numbers<[1], [0], [0], [1], [0, 0, 1, 1], [], []>} : vector<2x128xbf16>, vector<128x512xbf16>, vector<2x512xf32> -> vector<2x512xf32>
    %256 = arith.addf %253, %255 : vector<2x512xf32>
    %257 = vector.extract_strided_slice %256 {offsets = [0, 0], sizes = [2, 128], strides = [1, 1]} : vector<2x512xf32> to vector<2x128xf32>
    %258 = vector.extract_strided_slice %256 {offsets = [0, 128], sizes = [2, 128], strides = [1, 1]} : vector<2x512xf32> to vector<2x128xf32>
    %259 = vector.extract_strided_slice %256 {offsets = [0, 256], sizes = [2, 128], strides = [1, 1]} : vector<2x512xf32> to vector<2x128xf32>
    %260 = vector.extract_strided_slice %256 {offsets = [0, 384], sizes = [2, 128], strides = [1, 1]} : vector<2x512xf32> to vector<2x128xf32>
    %261 = arith.negf %258 : vector<2x128xf32>
    %262 = math.exp %261 : vector<2x128xf32>
    %cst_65 = arith.constant 1.000000e+00 : f32
    %263 = vector.broadcast %cst_65 : f32 to vector<2x128xf32>
    %264 = arith.addf %263, %262 : vector<2x128xf32>
    %265 = arith.divf %263, %264 : vector<2x128xf32>
    %266 = arith.mulf %265, %239 : vector<2x128xf32>
    %267 = arith.negf %257 : vector<2x128xf32>
    %268 = math.exp %267 : vector<2x128xf32>
    %cst_66 = arith.constant 1.000000e+00 : f32
    %269 = vector.broadcast %cst_66 : f32 to vector<2x128xf32>
    %270 = arith.addf %269, %268 : vector<2x128xf32>
    %271 = arith.divf %269, %270 : vector<2x128xf32>
    %272 = math.tanh %259 : vector<2x128xf32>
    %273 = arith.mulf %271, %272 : vector<2x128xf32>
    %274 = arith.addf %266, %273 : vector<2x128xf32>
    %275 = arith.negf %260 : vector<2x128xf32>
    %276 = math.exp %275 : vector<2x128xf32>
    %cst_67 = arith.constant 1.000000e+00 : f32
    %277 = vector.broadcast %cst_67 : f32 to vector<2x128xf32>
    %278 = arith.addf %277, %276 : vector<2x128xf32>
    %279 = arith.divf %277, %278 : vector<2x128xf32>
    %280 = math.tanh %274 : vector<2x128xf32>
    %281 = arith.mulf %279, %280 : vector<2x128xf32>
    %282 = arith.index_cast %c7_i32 : i32 to index
    %c0_68 = arith.constant 0 : index
    %c0_69 = arith.constant 0 : index
    %283 = vector.load %arg3[%282, %c0_68, %c0_69] : memref<16x2x128xf32, #tpu.memory_space<vmem>>, vector<1x2x128xf32>
    %284 = vector.shape_cast %283 : vector<1x2x128xf32> to vector<2x128xf32>
    %285 = vector.shape_cast %281 : vector<2x128xf32> to vector<1x2x128xf32>
    tpu.vector_store %arg3[%282, %c0_68, %c0_69], %285 {strides = array<i32>} : memref<16x2x128xf32, #tpu.memory_space<vmem>>, vector<1x2x128xf32>,
    %c8_i32 = arith.constant 8 : i32
    %286 = arith.index_cast %c8_i32 : i32 to index
    %c0_70 = arith.constant 0 : index
    %c0_71 = arith.constant 0 : index
    %287 = vector.load %arg1[%286, %c0_70, %c0_71] : memref<16x2x512xf32, #tpu.memory_space<vmem>>, vector<1x2x512xf32>
    %288 = vector.shape_cast %287 : vector<1x2x512xf32> to vector<2x512xf32>
    %289 = arith.truncf %281 : vector<2x128xf32> to vector<2x128xbf16>
    %cst_72 = arith.constant dense<0.000000e+00> : vector<2x512xf32>
    %290 = tpu.matmul %289, %3, %cst_72 {dimension_numbers = #tpu.dot_dimension_numbers<[1], [0], [0], [1], [0, 0, 1, 1], [], []>} : vector<2x128xbf16>, vector<128x512xbf16>, vector<2x512xf32> -> vector<2x512xf32>
    %291 = arith.addf %288, %290 : vector<2x512xf32>
    %292 = vector.extract_strided_slice %291 {offsets = [0, 0], sizes = [2, 128], strides = [1, 1]} : vector<2x512xf32> to vector<2x128xf32>
    %293 = vector.extract_strided_slice %291 {offsets = [0, 128], sizes = [2, 128], strides = [1, 1]} : vector<2x512xf32> to vector<2x128xf32>
    %294 = vector.extract_strided_slice %291 {offsets = [0, 256], sizes = [2, 128], strides = [1, 1]} : vector<2x512xf32> to vector<2x128xf32>
    %295 = vector.extract_strided_slice %291 {offsets = [0, 384], sizes = [2, 128], strides = [1, 1]} : vector<2x512xf32> to vector<2x128xf32>
    %296 = arith.negf %293 : vector<2x128xf32>
    %297 = math.exp %296 : vector<2x128xf32>
    %cst_73 = arith.constant 1.000000e+00 : f32
    %298 = vector.broadcast %cst_73 : f32 to vector<2x128xf32>
    %299 = arith.addf %298, %297 : vector<2x128xf32>
    %300 = arith.divf %298, %299 : vector<2x128xf32>
    %301 = arith.mulf %300, %274 : vector<2x128xf32>
    %302 = arith.negf %292 : vector<2x128xf32>
    %303 = math.exp %302 : vector<2x128xf32>
    %cst_74 = arith.constant 1.000000e+00 : f32
    %304 = vector.broadcast %cst_74 : f32 to vector<2x128xf32>
    %305 = arith.addf %304, %303 : vector<2x128xf32>
    %306 = arith.divf %304, %305 : vector<2x128xf32>
    %307 = math.tanh %294 : vector<2x128xf32>
    %308 = arith.mulf %306, %307 : vector<2x128xf32>
    %309 = arith.addf %301, %308 : vector<2x128xf32>
    %310 = arith.negf %295 : vector<2x128xf32>
    %311 = math.exp %310 : vector<2x128xf32>
    %cst_75 = arith.constant 1.000000e+00 : f32
    %312 = vector.broadcast %cst_75 : f32 to vector<2x128xf32>
    %313 = arith.addf %312, %311 : vector<2x128xf32>
    %314 = arith.divf %312, %313 : vector<2x128xf32>
    %315 = math.tanh %309 : vector<2x128xf32>
    %316 = arith.mulf %314, %315 : vector<2x128xf32>
    %317 = arith.index_cast %c8_i32 : i32 to index
    %c0_76 = arith.constant 0 : index
    %c0_77 = arith.constant 0 : index
    %318 = vector.load %arg3[%317, %c0_76, %c0_77] : memref<16x2x128xf32, #tpu.memory_space<vmem>>, vector<1x2x128xf32>
    %319 = vector.shape_cast %318 : vector<1x2x128xf32> to vector<2x128xf32>
    %320 = vector.shape_cast %316 : vector<2x128xf32> to vector<1x2x128xf32>
    tpu.vector_store %arg3[%317, %c0_76, %c0_77], %320 {strides = array<i32>} : memref<16x2x128xf32, #tpu.memory_space<vmem>>, vector<1x2x128xf32>,
    %c9_i32 = arith.constant 9 : i32
    %321 = arith.index_cast %c9_i32 : i32 to index
    %c0_78 = arith.constant 0 : index
    %c0_79 = arith.constant 0 : index
    %322 = vector.load %arg1[%321, %c0_78, %c0_79] : memref<16x2x512xf32, #tpu.memory_space<vmem>>, vector<1x2x512xf32>
    %323 = vector.shape_cast %322 : vector<1x2x512xf32> to vector<2x512xf32>
    %324 = arith.truncf %316 : vector<2x128xf32> to vector<2x128xbf16>
    %cst_80 = arith.constant dense<0.000000e+00> : vector<2x512xf32>
    %325 = tpu.matmul %324, %3, %cst_80 {dimension_numbers = #tpu.dot_dimension_numbers<[1], [0], [0], [1], [0, 0, 1, 1], [], []>} : vector<2x128xbf16>, vector<128x512xbf16>, vector<2x512xf32> -> vector<2x512xf32>
    %326 = arith.addf %323, %325 : vector<2x512xf32>
    %327 = vector.extract_strided_slice %326 {offsets = [0, 0], sizes = [2, 128], strides = [1, 1]} : vector<2x512xf32> to vector<2x128xf32>
    %328 = vector.extract_strided_slice %326 {offsets = [0, 128], sizes = [2, 128], strides = [1, 1]} : vector<2x512xf32> to vector<2x128xf32>
    %329 = vector.extract_strided_slice %326 {offsets = [0, 256], sizes = [2, 128], strides = [1, 1]} : vector<2x512xf32> to vector<2x128xf32>
    %330 = vector.extract_strided_slice %326 {offsets = [0, 384], sizes = [2, 128], strides = [1, 1]} : vector<2x512xf32> to vector<2x128xf32>
    %331 = arith.negf %328 : vector<2x128xf32>
    %332 = math.exp %331 : vector<2x128xf32>
    %cst_81 = arith.constant 1.000000e+00 : f32
    %333 = vector.broadcast %cst_81 : f32 to vector<2x128xf32>
    %334 = arith.addf %333, %332 : vector<2x128xf32>
    %335 = arith.divf %333, %334 : vector<2x128xf32>
    %336 = arith.mulf %335, %309 : vector<2x128xf32>
    %337 = arith.negf %327 : vector<2x128xf32>
    %338 = math.exp %337 : vector<2x128xf32>
    %cst_82 = arith.constant 1.000000e+00 : f32
    %339 = vector.broadcast %cst_82 : f32 to vector<2x128xf32>
    %340 = arith.addf %339, %338 : vector<2x128xf32>
    %341 = arith.divf %339, %340 : vector<2x128xf32>
    %342 = math.tanh %329 : vector<2x128xf32>
    %343 = arith.mulf %341, %342 : vector<2x128xf32>
    %344 = arith.addf %336, %343 : vector<2x128xf32>
    %345 = arith.negf %330 : vector<2x128xf32>
    %346 = math.exp %345 : vector<2x128xf32>
    %cst_83 = arith.constant 1.000000e+00 : f32
    %347 = vector.broadcast %cst_83 : f32 to vector<2x128xf32>
    %348 = arith.addf %347, %346 : vector<2x128xf32>
    %349 = arith.divf %347, %348 : vector<2x128xf32>
    %350 = math.tanh %344 : vector<2x128xf32>
    %351 = arith.mulf %349, %350 : vector<2x128xf32>
    %352 = arith.index_cast %c9_i32 : i32 to index
    %c0_84 = arith.constant 0 : index
    %c0_85 = arith.constant 0 : index
    %353 = vector.load %arg3[%352, %c0_84, %c0_85] : memref<16x2x128xf32, #tpu.memory_space<vmem>>, vector<1x2x128xf32>
    %354 = vector.shape_cast %353 : vector<1x2x128xf32> to vector<2x128xf32>
    %355 = vector.shape_cast %351 : vector<2x128xf32> to vector<1x2x128xf32>
    tpu.vector_store %arg3[%352, %c0_84, %c0_85], %355 {strides = array<i32>} : memref<16x2x128xf32, #tpu.memory_space<vmem>>, vector<1x2x128xf32>,
    %c10_i32 = arith.constant 10 : i32
    %356 = arith.index_cast %c10_i32 : i32 to index
    %c0_86 = arith.constant 0 : index
    %c0_87 = arith.constant 0 : index
    %357 = vector.load %arg1[%356, %c0_86, %c0_87] : memref<16x2x512xf32, #tpu.memory_space<vmem>>, vector<1x2x512xf32>
    %358 = vector.shape_cast %357 : vector<1x2x512xf32> to vector<2x512xf32>
    %359 = arith.truncf %351 : vector<2x128xf32> to vector<2x128xbf16>
    %cst_88 = arith.constant dense<0.000000e+00> : vector<2x512xf32>
    %360 = tpu.matmul %359, %3, %cst_88 {dimension_numbers = #tpu.dot_dimension_numbers<[1], [0], [0], [1], [0, 0, 1, 1], [], []>} : vector<2x128xbf16>, vector<128x512xbf16>, vector<2x512xf32> -> vector<2x512xf32>
    %361 = arith.addf %358, %360 : vector<2x512xf32>
    %362 = vector.extract_strided_slice %361 {offsets = [0, 0], sizes = [2, 128], strides = [1, 1]} : vector<2x512xf32> to vector<2x128xf32>
    %363 = vector.extract_strided_slice %361 {offsets = [0, 128], sizes = [2, 128], strides = [1, 1]} : vector<2x512xf32> to vector<2x128xf32>
    %364 = vector.extract_strided_slice %361 {offsets = [0, 256], sizes = [2, 128], strides = [1, 1]} : vector<2x512xf32> to vector<2x128xf32>
    %365 = vector.extract_strided_slice %361 {offsets = [0, 384], sizes = [2, 128], strides = [1, 1]} : vector<2x512xf32> to vector<2x128xf32>
    %366 = arith.negf %363 : vector<2x128xf32>
    %367 = math.exp %366 : vector<2x128xf32>
    %cst_89 = arith.constant 1.000000e+00 : f32
    %368 = vector.broadcast %cst_89 : f32 to vector<2x128xf32>
    %369 = arith.addf %368, %367 : vector<2x128xf32>
    %370 = arith.divf %368, %369 : vector<2x128xf32>
    %371 = arith.mulf %370, %344 : vector<2x128xf32>
    %372 = arith.negf %362 : vector<2x128xf32>
    %373 = math.exp %372 : vector<2x128xf32>
    %cst_90 = arith.constant 1.000000e+00 : f32
    %374 = vector.broadcast %cst_90 : f32 to vector<2x128xf32>
    %375 = arith.addf %374, %373 : vector<2x128xf32>
    %376 = arith.divf %374, %375 : vector<2x128xf32>
    %377 = math.tanh %364 : vector<2x128xf32>
    %378 = arith.mulf %376, %377 : vector<2x128xf32>
    %379 = arith.addf %371, %378 : vector<2x128xf32>
    %380 = arith.negf %365 : vector<2x128xf32>
    %381 = math.exp %380 : vector<2x128xf32>
    %cst_91 = arith.constant 1.000000e+00 : f32
    %382 = vector.broadcast %cst_91 : f32 to vector<2x128xf32>
    %383 = arith.addf %382, %381 : vector<2x128xf32>
    %384 = arith.divf %382, %383 : vector<2x128xf32>
    %385 = math.tanh %379 : vector<2x128xf32>
    %386 = arith.mulf %384, %385 : vector<2x128xf32>
    %387 = arith.index_cast %c10_i32 : i32 to index
    %c0_92 = arith.constant 0 : index
    %c0_93 = arith.constant 0 : index
    %388 = vector.load %arg3[%387, %c0_92, %c0_93] : memref<16x2x128xf32, #tpu.memory_space<vmem>>, vector<1x2x128xf32>
    %389 = vector.shape_cast %388 : vector<1x2x128xf32> to vector<2x128xf32>
    %390 = vector.shape_cast %386 : vector<2x128xf32> to vector<1x2x128xf32>
    tpu.vector_store %arg3[%387, %c0_92, %c0_93], %390 {strides = array<i32>} : memref<16x2x128xf32, #tpu.memory_space<vmem>>, vector<1x2x128xf32>,
    %c11_i32 = arith.constant 11 : i32
    %391 = arith.index_cast %c11_i32 : i32 to index
    %c0_94 = arith.constant 0 : index
    %c0_95 = arith.constant 0 : index
    %392 = vector.load %arg1[%391, %c0_94, %c0_95] : memref<16x2x512xf32, #tpu.memory_space<vmem>>, vector<1x2x512xf32>
    %393 = vector.shape_cast %392 : vector<1x2x512xf32> to vector<2x512xf32>
    %394 = arith.truncf %386 : vector<2x128xf32> to vector<2x128xbf16>
    %cst_96 = arith.constant dense<0.000000e+00> : vector<2x512xf32>
    %395 = tpu.matmul %394, %3, %cst_96 {dimension_numbers = #tpu.dot_dimension_numbers<[1], [0], [0], [1], [0, 0, 1, 1], [], []>} : vector<2x128xbf16>, vector<128x512xbf16>, vector<2x512xf32> -> vector<2x512xf32>
    %396 = arith.addf %393, %395 : vector<2x512xf32>
    %397 = vector.extract_strided_slice %396 {offsets = [0, 0], sizes = [2, 128], strides = [1, 1]} : vector<2x512xf32> to vector<2x128xf32>
    %398 = vector.extract_strided_slice %396 {offsets = [0, 128], sizes = [2, 128], strides = [1, 1]} : vector<2x512xf32> to vector<2x128xf32>
    %399 = vector.extract_strided_slice %396 {offsets = [0, 256], sizes = [2, 128], strides = [1, 1]} : vector<2x512xf32> to vector<2x128xf32>
    %400 = vector.extract_strided_slice %396 {offsets = [0, 384], sizes = [2, 128], strides = [1, 1]} : vector<2x512xf32> to vector<2x128xf32>
    %401 = arith.negf %398 : vector<2x128xf32>
    %402 = math.exp %401 : vector<2x128xf32>
    %cst_97 = arith.constant 1.000000e+00 : f32
    %403 = vector.broadcast %cst_97 : f32 to vector<2x128xf32>
    %404 = arith.addf %403, %402 : vector<2x128xf32>
    %405 = arith.divf %403, %404 : vector<2x128xf32>
    %406 = arith.mulf %405, %379 : vector<2x128xf32>
    %407 = arith.negf %397 : vector<2x128xf32>
    %408 = math.exp %407 : vector<2x128xf32>
    %cst_98 = arith.constant 1.000000e+00 : f32
    %409 = vector.broadcast %cst_98 : f32 to vector<2x128xf32>
    %410 = arith.addf %409, %408 : vector<2x128xf32>
    %411 = arith.divf %409, %410 : vector<2x128xf32>
    %412 = math.tanh %399 : vector<2x128xf32>
    %413 = arith.mulf %411, %412 : vector<2x128xf32>
    %414 = arith.addf %406, %413 : vector<2x128xf32>
    %415 = arith.negf %400 : vector<2x128xf32>
    %416 = math.exp %415 : vector<2x128xf32>
    %cst_99 = arith.constant 1.000000e+00 : f32
    %417 = vector.broadcast %cst_99 : f32 to vector<2x128xf32>
    %418 = arith.addf %417, %416 : vector<2x128xf32>
    %419 = arith.divf %417, %418 : vector<2x128xf32>
    %420 = math.tanh %414 : vector<2x128xf32>
    %421 = arith.mulf %419, %420 : vector<2x128xf32>
    %422 = arith.index_cast %c11_i32 : i32 to index
    %c0_100 = arith.constant 0 : index
    %c0_101 = arith.constant 0 : index
    %423 = vector.load %arg3[%422, %c0_100, %c0_101] : memref<16x2x128xf32, #tpu.memory_space<vmem>>, vector<1x2x128xf32>
    %424 = vector.shape_cast %423 : vector<1x2x128xf32> to vector<2x128xf32>
    %425 = vector.shape_cast %421 : vector<2x128xf32> to vector<1x2x128xf32>
    tpu.vector_store %arg3[%422, %c0_100, %c0_101], %425 {strides = array<i32>} : memref<16x2x128xf32, #tpu.memory_space<vmem>>, vector<1x2x128xf32>,
    %c12_i32 = arith.constant 12 : i32
    %426 = arith.index_cast %c12_i32 : i32 to index
    %c0_102 = arith.constant 0 : index
    %c0_103 = arith.constant 0 : index
    %427 = vector.load %arg1[%426, %c0_102, %c0_103] : memref<16x2x512xf32, #tpu.memory_space<vmem>>, vector<1x2x512xf32>
    %428 = vector.shape_cast %427 : vector<1x2x512xf32> to vector<2x512xf32>
    %429 = arith.truncf %421 : vector<2x128xf32> to vector<2x128xbf16>
    %cst_104 = arith.constant dense<0.000000e+00> : vector<2x512xf32>
    %430 = tpu.matmul %429, %3, %cst_104 {dimension_numbers = #tpu.dot_dimension_numbers<[1], [0], [0], [1], [0, 0, 1, 1], [], []>} : vector<2x128xbf16>, vector<128x512xbf16>, vector<2x512xf32> -> vector<2x512xf32>
    %431 = arith.addf %428, %430 : vector<2x512xf32>
    %432 = vector.extract_strided_slice %431 {offsets = [0, 0], sizes = [2, 128], strides = [1, 1]} : vector<2x512xf32> to vector<2x128xf32>
    %433 = vector.extract_strided_slice %431 {offsets = [0, 128], sizes = [2, 128], strides = [1, 1]} : vector<2x512xf32> to vector<2x128xf32>
    %434 = vector.extract_strided_slice %431 {offsets = [0, 256], sizes = [2, 128], strides = [1, 1]} : vector<2x512xf32> to vector<2x128xf32>
    %435 = vector.extract_strided_slice %431 {offsets = [0, 384], sizes = [2, 128], strides = [1, 1]} : vector<2x512xf32> to vector<2x128xf32>
    %436 = arith.negf %433 : vector<2x128xf32>
    %437 = math.exp %436 : vector<2x128xf32>
    %cst_105 = arith.constant 1.000000e+00 : f32
    %438 = vector.broadcast %cst_105 : f32 to vector<2x128xf32>
    %439 = arith.addf %438, %437 : vector<2x128xf32>
    %440 = arith.divf %438, %439 : vector<2x128xf32>
    %441 = arith.mulf %440, %414 : vector<2x128xf32>
    %442 = arith.negf %432 : vector<2x128xf32>
    %443 = math.exp %442 : vector<2x128xf32>
    %cst_106 = arith.constant 1.000000e+00 : f32
    %444 = vector.broadcast %cst_106 : f32 to vector<2x128xf32>
    %445 = arith.addf %444, %443 : vector<2x128xf32>
    %446 = arith.divf %444, %445 : vector<2x128xf32>
    %447 = math.tanh %434 : vector<2x128xf32>
    %448 = arith.mulf %446, %447 : vector<2x128xf32>
    %449 = arith.addf %441, %448 : vector<2x128xf32>
    %450 = arith.negf %435 : vector<2x128xf32>
    %451 = math.exp %450 : vector<2x128xf32>
    %cst_107 = arith.constant 1.000000e+00 : f32
    %452 = vector.broadcast %cst_107 : f32 to vector<2x128xf32>
    %453 = arith.addf %452, %451 : vector<2x128xf32>
    %454 = arith.divf %452, %453 : vector<2x128xf32>
    %455 = math.tanh %449 : vector<2x128xf32>
    %456 = arith.mulf %454, %455 : vector<2x128xf32>
    %457 = arith.index_cast %c12_i32 : i32 to index
    %c0_108 = arith.constant 0 : index
    %c0_109 = arith.constant 0 : index
    %458 = vector.load %arg3[%457, %c0_108, %c0_109] : memref<16x2x128xf32, #tpu.memory_space<vmem>>, vector<1x2x128xf32>
    %459 = vector.shape_cast %458 : vector<1x2x128xf32> to vector<2x128xf32>
    %460 = vector.shape_cast %456 : vector<2x128xf32> to vector<1x2x128xf32>
    tpu.vector_store %arg3[%457, %c0_108, %c0_109], %460 {strides = array<i32>} : memref<16x2x128xf32, #tpu.memory_space<vmem>>, vector<1x2x128xf32>,
    %c13_i32 = arith.constant 13 : i32
    %461 = arith.index_cast %c13_i32 : i32 to index
    %c0_110 = arith.constant 0 : index
    %c0_111 = arith.constant 0 : index
    %462 = vector.load %arg1[%461, %c0_110, %c0_111] : memref<16x2x512xf32, #tpu.memory_space<vmem>>, vector<1x2x512xf32>
    %463 = vector.shape_cast %462 : vector<1x2x512xf32> to vector<2x512xf32>
    %464 = arith.truncf %456 : vector<2x128xf32> to vector<2x128xbf16>
    %cst_112 = arith.constant dense<0.000000e+00> : vector<2x512xf32>
    %465 = tpu.matmul %464, %3, %cst_112 {dimension_numbers = #tpu.dot_dimension_numbers<[1], [0], [0], [1], [0, 0, 1, 1], [], []>} : vector<2x128xbf16>, vector<128x512xbf16>, vector<2x512xf32> -> vector<2x512xf32>
    %466 = arith.addf %463, %465 : vector<2x512xf32>
    %467 = vector.extract_strided_slice %466 {offsets = [0, 0], sizes = [2, 128], strides = [1, 1]} : vector<2x512xf32> to vector<2x128xf32>
    %468 = vector.extract_strided_slice %466 {offsets = [0, 128], sizes = [2, 128], strides = [1, 1]} : vector<2x512xf32> to vector<2x128xf32>
    %469 = vector.extract_strided_slice %466 {offsets = [0, 256], sizes = [2, 128], strides = [1, 1]} : vector<2x512xf32> to vector<2x128xf32>
    %470 = vector.extract_strided_slice %466 {offsets = [0, 384], sizes = [2, 128], strides = [1, 1]} : vector<2x512xf32> to vector<2x128xf32>
    %471 = arith.negf %468 : vector<2x128xf32>
    %472 = math.exp %471 : vector<2x128xf32>
    %cst_113 = arith.constant 1.000000e+00 : f32
    %473 = vector.broadcast %cst_113 : f32 to vector<2x128xf32>
    %474 = arith.addf %473, %472 : vector<2x128xf32>
    %475 = arith.divf %473, %474 : vector<2x128xf32>
    %476 = arith.mulf %475, %449 : vector<2x128xf32>
    %477 = arith.negf %467 : vector<2x128xf32>
    %478 = math.exp %477 : vector<2x128xf32>
    %cst_114 = arith.constant 1.000000e+00 : f32
    %479 = vector.broadcast %cst_114 : f32 to vector<2x128xf32>
    %480 = arith.addf %479, %478 : vector<2x128xf32>
    %481 = arith.divf %479, %480 : vector<2x128xf32>
    %482 = math.tanh %469 : vector<2x128xf32>
    %483 = arith.mulf %481, %482 : vector<2x128xf32>
    %484 = arith.addf %476, %483 : vector<2x128xf32>
    %485 = arith.negf %470 : vector<2x128xf32>
    %486 = math.exp %485 : vector<2x128xf32>
    %cst_115 = arith.constant 1.000000e+00 : f32
    %487 = vector.broadcast %cst_115 : f32 to vector<2x128xf32>
    %488 = arith.addf %487, %486 : vector<2x128xf32>
    %489 = arith.divf %487, %488 : vector<2x128xf32>
    %490 = math.tanh %484 : vector<2x128xf32>
    %491 = arith.mulf %489, %490 : vector<2x128xf32>
    %492 = arith.index_cast %c13_i32 : i32 to index
    %c0_116 = arith.constant 0 : index
    %c0_117 = arith.constant 0 : index
    %493 = vector.load %arg3[%492, %c0_116, %c0_117] : memref<16x2x128xf32, #tpu.memory_space<vmem>>, vector<1x2x128xf32>
    %494 = vector.shape_cast %493 : vector<1x2x128xf32> to vector<2x128xf32>
    %495 = vector.shape_cast %491 : vector<2x128xf32> to vector<1x2x128xf32>
    tpu.vector_store %arg3[%492, %c0_116, %c0_117], %495 {strides = array<i32>} : memref<16x2x128xf32, #tpu.memory_space<vmem>>, vector<1x2x128xf32>,
    %c14_i32 = arith.constant 14 : i32
    %496 = arith.index_cast %c14_i32 : i32 to index
    %c0_118 = arith.constant 0 : index
    %c0_119 = arith.constant 0 : index
    %497 = vector.load %arg1[%496, %c0_118, %c0_119] : memref<16x2x512xf32, #tpu.memory_space<vmem>>, vector<1x2x512xf32>
    %498 = vector.shape_cast %497 : vector<1x2x512xf32> to vector<2x512xf32>
    %499 = arith.truncf %491 : vector<2x128xf32> to vector<2x128xbf16>
    %cst_120 = arith.constant dense<0.000000e+00> : vector<2x512xf32>
    %500 = tpu.matmul %499, %3, %cst_120 {dimension_numbers = #tpu.dot_dimension_numbers<[1], [0], [0], [1], [0, 0, 1, 1], [], []>} : vector<2x128xbf16>, vector<128x512xbf16>, vector<2x512xf32> -> vector<2x512xf32>
    %501 = arith.addf %498, %500 : vector<2x512xf32>
    %502 = vector.extract_strided_slice %501 {offsets = [0, 0], sizes = [2, 128], strides = [1, 1]} : vector<2x512xf32> to vector<2x128xf32>
    %503 = vector.extract_strided_slice %501 {offsets = [0, 128], sizes = [2, 128], strides = [1, 1]} : vector<2x512xf32> to vector<2x128xf32>
    %504 = vector.extract_strided_slice %501 {offsets = [0, 256], sizes = [2, 128], strides = [1, 1]} : vector<2x512xf32> to vector<2x128xf32>
    %505 = vector.extract_strided_slice %501 {offsets = [0, 384], sizes = [2, 128], strides = [1, 1]} : vector<2x512xf32> to vector<2x128xf32>
    %506 = arith.negf %503 : vector<2x128xf32>
    %507 = math.exp %506 : vector<2x128xf32>
    %cst_121 = arith.constant 1.000000e+00 : f32
    %508 = vector.broadcast %cst_121 : f32 to vector<2x128xf32>
    %509 = arith.addf %508, %507 : vector<2x128xf32>
    %510 = arith.divf %508, %509 : vector<2x128xf32>
    %511 = arith.mulf %510, %484 : vector<2x128xf32>
    %512 = arith.negf %502 : vector<2x128xf32>
    %513 = math.exp %512 : vector<2x128xf32>
    %cst_122 = arith.constant 1.000000e+00 : f32
    %514 = vector.broadcast %cst_122 : f32 to vector<2x128xf32>
    %515 = arith.addf %514, %513 : vector<2x128xf32>
    %516 = arith.divf %514, %515 : vector<2x128xf32>
    %517 = math.tanh %504 : vector<2x128xf32>
    %518 = arith.mulf %516, %517 : vector<2x128xf32>
    %519 = arith.addf %511, %518 : vector<2x128xf32>
    %520 = arith.negf %505 : vector<2x128xf32>
    %521 = math.exp %520 : vector<2x128xf32>
    %cst_123 = arith.constant 1.000000e+00 : f32
    %522 = vector.broadcast %cst_123 : f32 to vector<2x128xf32>
    %523 = arith.addf %522, %521 : vector<2x128xf32>
    %524 = arith.divf %522, %523 : vector<2x128xf32>
    %525 = math.tanh %519 : vector<2x128xf32>
    %526 = arith.mulf %524, %525 : vector<2x128xf32>
    %527 = arith.index_cast %c14_i32 : i32 to index
    %c0_124 = arith.constant 0 : index
    %c0_125 = arith.constant 0 : index
    %528 = vector.load %arg3[%527, %c0_124, %c0_125] : memref<16x2x128xf32, #tpu.memory_space<vmem>>, vector<1x2x128xf32>
    %529 = vector.shape_cast %528 : vector<1x2x128xf32> to vector<2x128xf32>
    %530 = vector.shape_cast %526 : vector<2x128xf32> to vector<1x2x128xf32>
    tpu.vector_store %arg3[%527, %c0_124, %c0_125], %530 {strides = array<i32>} : memref<16x2x128xf32, #tpu.memory_space<vmem>>, vector<1x2x128xf32>,
    %c15_i32 = arith.constant 15 : i32
    %531 = arith.index_cast %c15_i32 : i32 to index
    %c0_126 = arith.constant 0 : index
    %c0_127 = arith.constant 0 : index
    %532 = vector.load %arg1[%531, %c0_126, %c0_127] : memref<16x2x512xf32, #tpu.memory_space<vmem>>, vector<1x2x512xf32>
    %533 = vector.shape_cast %532 : vector<1x2x512xf32> to vector<2x512xf32>
    %534 = arith.truncf %526 : vector<2x128xf32> to vector<2x128xbf16>
    %cst_128 = arith.constant dense<0.000000e+00> : vector<2x512xf32>
    %535 = tpu.matmul %534, %3, %cst_128 {dimension_numbers = #tpu.dot_dimension_numbers<[1], [0], [0], [1], [0, 0, 1, 1], [], []>} : vector<2x128xbf16>, vector<128x512xbf16>, vector<2x512xf32> -> vector<2x512xf32>
    %536 = arith.addf %533, %535 : vector<2x512xf32>
    %537 = vector.extract_strided_slice %536 {offsets = [0, 0], sizes = [2, 128], strides = [1, 1]} : vector<2x512xf32> to vector<2x128xf32>
    %538 = vector.extract_strided_slice %536 {offsets = [0, 128], sizes = [2, 128], strides = [1, 1]} : vector<2x512xf32> to vector<2x128xf32>
    %539 = vector.extract_strided_slice %536 {offsets = [0, 256], sizes = [2, 128], strides = [1, 1]} : vector<2x512xf32> to vector<2x128xf32>
    %540 = vector.extract_strided_slice %536 {offsets = [0, 384], sizes = [2, 128], strides = [1, 1]} : vector<2x512xf32> to vector<2x128xf32>
    %541 = arith.negf %538 : vector<2x128xf32>
    %542 = math.exp %541 : vector<2x128xf32>
    %cst_129 = arith.constant 1.000000e+00 : f32
    %543 = vector.broadcast %cst_129 : f32 to vector<2x128xf32>
    %544 = arith.addf %543, %542 : vector<2x128xf32>
    %545 = arith.divf %543, %544 : vector<2x128xf32>
    %546 = arith.mulf %545, %519 : vector<2x128xf32>
    %547 = arith.negf %537 : vector<2x128xf32>
    %548 = math.exp %547 : vector<2x128xf32>
    %cst_130 = arith.constant 1.000000e+00 : f32
    %549 = vector.broadcast %cst_130 : f32 to vector<2x128xf32>
    %550 = arith.addf %549, %548 : vector<2x128xf32>
    %551 = arith.divf %549, %550 : vector<2x128xf32>
    %552 = math.tanh %539 : vector<2x128xf32>
    %553 = arith.mulf %551, %552 : vector<2x128xf32>
    %554 = arith.addf %546, %553 : vector<2x128xf32>
    %555 = arith.negf %540 : vector<2x128xf32>
    %556 = math.exp %555 : vector<2x128xf32>
    %cst_131 = arith.constant 1.000000e+00 : f32
    %557 = vector.broadcast %cst_131 : f32 to vector<2x128xf32>
    %558 = arith.addf %557, %556 : vector<2x128xf32>
    %559 = arith.divf %557, %558 : vector<2x128xf32>
    %560 = math.tanh %554 : vector<2x128xf32>
    %561 = arith.mulf %559, %560 : vector<2x128xf32>
    %562 = arith.index_cast %c15_i32 : i32 to index
    %c0_132 = arith.constant 0 : index
    %c0_133 = arith.constant 0 : index
    %563 = vector.load %arg3[%562, %c0_132, %c0_133] : memref<16x2x128xf32, #tpu.memory_space<vmem>>, vector<1x2x128xf32>
    %564 = vector.shape_cast %563 : vector<1x2x128xf32> to vector<2x128xf32>
    %565 = vector.shape_cast %561 : vector<2x128xf32> to vector<1x2x128xf32>
    tpu.vector_store %arg3[%562, %c0_132, %c0_133], %565 {strides = array<i32>} : memref<16x2x128xf32, #tpu.memory_space<vmem>>, vector<1x2x128xf32>,
    %c16_i32 = arith.constant 16 : i32
    %c0_134 = arith.constant 0 : index
    %c0_135 = arith.constant 0 : index
    %566 = vector.load %arg4[%c0_134, %c0_135] : memref<2x128xf32, #tpu.memory_space<vmem>>, vector<2x128xf32>
    tpu.vector_store %arg4[%c0_134, %c0_135], %561 {strides = array<i32>} : memref<2x128xf32, #tpu.memory_space<vmem>>, vector<2x128xf32>,
    %c0_136 = arith.constant 0 : index
    %c0_137 = arith.constant 0 : index
    %567 = vector.load %arg5[%c0_136, %c0_137] : memref<2x128xf32, #tpu.memory_space<vmem>>, vector<2x128xf32>
    tpu.vector_store %arg5[%c0_136, %c0_137], %554 {strides = array<i32>} : memref<2x128xf32, #tpu.memory_space<vmem>>, vector<2x128xf32>,
    return
  }
  func.func @transform_0(%arg0: i32) -> (i32, i32, i32) {
    %c0_i32 = arith.constant 0 : i32
    %c0_i32_0 = arith.constant 0 : i32
    %c0_i32_1 = arith.constant 0 : i32
    return %arg0, %c0_i32, %c0_i32_0 : i32, i32, i32
  }
  func.func @transform_1(%arg0: i32) -> (i32, i32) {
    %c0_i32 = arith.constant 0 : i32
    %c0_i32_0 = arith.constant 0 : i32
    %c0_i32_1 = arith.constant 0 : i32
    return %c0_i32, %c0_i32_0 : i32, i32
  }
  func.func @transform_2(%arg0: i32) -> (i32, i32, i32) {
    %c0_i32 = arith.constant 0 : i32
    %c0_i32_0 = arith.constant 0 : i32
    %c0_i32_1 = arith.constant 0 : i32
    return %arg0, %c0_i32, %c0_i32_0 : i32, i32, i32
  }
}

module attributes {stable_mosaic.version = 11 : i64} {
  func.func @_pf_attn_kernel(%arg0: i32, %arg1: i32, %arg2: memref<1x8x128xbf16, #tpu.memory_space<vmem>>, %arg3: memref<1x17x128xf32, #tpu.memory_space<vmem>>, %arg4: memref<128x17xf32, #tpu.memory_space<vmem>>, %arg5: memref<1x1x128xf32, #tpu.memory_space<vmem>>, %arg6: memref<1x8x128xbf16, #tpu.memory_space<vmem>>, %arg7: memref<8x1xf32, #tpu.memory_space<vmem>>, %arg8: memref<8x1xf32, #tpu.memory_space<vmem>>, %arg9: memref<8x128xf32, #tpu.memory_space<vmem>>) attributes {dimension_semantics = [#tpu.dimension_semantics<parallel>, #tpu.dimension_semantics<arbitrary>], iteration_bounds = array<i64: 2, 2>, scalar_prefetch = 0 : i64, scratch_operands = 3 : i64, tpu.core_type = #tpu.core_type<tc>, window_params = [{transform_indices = @transform_0, window_bounds = array<i64: 1, 8, 128>}, {transform_indices = @transform_1, window_bounds = array<i64: 1, 17, 128>}, {transform_indices = @transform_2, window_bounds = array<i64: 128, 17>}, {transform_indices = @transform_3, window_bounds = array<i64: 1, 1, 128>}, {transform_indices = @transform_4, window_bounds = array<i64: 1, 8, 128>}]} {
    %c0_i32 = arith.constant 0 : i32
    %0 = arith.cmpi eq, %arg1, %c0_i32 : i32
    %1 = arith.extui %0 : i1 to i32
    %c0_i32_0 = arith.constant 0 : i32
    %2 = arith.cmpi ne, %1, %c0_i32_0 : i32
    scf.if %2 {
      %cst_33 = arith.constant -1.000000e+30 : f32
      %48 = vector.broadcast %cst_33 : f32 to vector<8x1xf32>
      %c0_34 = arith.constant 0 : index
      %c0_35 = arith.constant 0 : index
      %49 = vector.load %arg7[%c0_34, %c0_35] : memref<8x1xf32, #tpu.memory_space<vmem>>, vector<8x1xf32>
      tpu.vector_store %arg7[%c0_34, %c0_35], %48 {strides = array<i32>} : memref<8x1xf32, #tpu.memory_space<vmem>>, vector<8x1xf32>,
      %cst_36 = arith.constant 0.000000e+00 : f32
      %50 = vector.broadcast %cst_36 : f32 to vector<8x1xf32>
      %c0_37 = arith.constant 0 : index
      %c0_38 = arith.constant 0 : index
      %51 = vector.load %arg8[%c0_37, %c0_38] : memref<8x1xf32, #tpu.memory_space<vmem>>, vector<8x1xf32>
      tpu.vector_store %arg8[%c0_37, %c0_38], %50 {strides = array<i32>} : memref<8x1xf32, #tpu.memory_space<vmem>>, vector<8x1xf32>,
      %cst_39 = arith.constant 0.000000e+00 : f32
      %52 = vector.broadcast %cst_39 : f32 to vector<8x128xf32>
      %c0_40 = arith.constant 0 : index
      %c0_41 = arith.constant 0 : index
      %53 = vector.load %arg9[%c0_40, %c0_41] : memref<8x128xf32, #tpu.memory_space<vmem>>, vector<8x128xf32>
      tpu.vector_store %arg9[%c0_40, %c0_41], %52 {strides = array<i32>} : memref<8x128xf32, #tpu.memory_space<vmem>>, vector<8x128xf32>,
    } else {
    }
    %c0 = arith.constant 0 : index
    %c0_1 = arith.constant 0 : index
    %3 = vector.load %arg4[%c0, %c0_1] : memref<128x17xf32, #tpu.memory_space<vmem>>, vector<128x17xf32>
    %c0_2 = arith.constant 0 : index
    %c0_3 = arith.constant 0 : index
    %c0_4 = arith.constant 0 : index
    %4 = vector.load %arg3[%c0_2, %c0_3, %c0_4] : memref<1x17x128xf32, #tpu.memory_space<vmem>>, vector<1x17x128xf32>
    %5 = vector.shape_cast %4 : vector<1x17x128xf32> to vector<17x128xf32>
    %cst = arith.constant dense<0.000000e+00> : vector<128x128xf32>
    %6 = tpu.matmul %3, %5, %cst {dimension_numbers = #tpu.dot_dimension_numbers<[1], [0], [0], [1], [0, 0, 1, 1], [], []>} : vector<128x17xf32>, vector<17x128xf32>, vector<128x128xf32> -> vector<128x128xf32>
    %7 = arith.truncf %6 : vector<128x128xf32> to vector<128x128xbf16>
    %c0_5 = arith.constant 0 : index
    %c0_6 = arith.constant 0 : index
    %c0_7 = arith.constant 0 : index
    %8 = vector.load %arg2[%c0_5, %c0_6, %c0_7] : memref<1x8x128xbf16, #tpu.memory_space<vmem>>, vector<1x8x128xbf16>
    %9 = vector.shape_cast %8 : vector<1x8x128xbf16> to vector<8x128xbf16>
    %c0_8 = arith.constant 0 : index
    %c0_9 = arith.constant 0 : index
    %c0_10 = arith.constant 0 : index
    %10 = vector.load %arg5[%c0_8, %c0_9, %c0_10] : memref<1x1x128xf32, #tpu.memory_space<vmem>>, vector<1x1x128xf32>
    %11 = vector.shape_cast %10 : vector<1x1x128xf32> to vector<1x128xf32>
    %cst_11 = arith.constant dense<0.000000e+00> : vector<8x128xf32>
    %12 = tpu.matmul %9, %7, %cst_11 {dimension_numbers = #tpu.dot_dimension_numbers<[1], [1], [0], [0], [0, 0, 1, 0], [], []>} : vector<8x128xbf16>, vector<128x128xbf16>, vector<8x128xf32> -> vector<8x128xf32>
    %cst_12 = arith.constant 0.0883883461 : f32
    %13 = vector.broadcast %cst_12 : f32 to vector<8x128xf32>
    %14 = arith.mulf %12, %13 : vector<8x128xf32>
    %cst_13 = arith.constant 0.000000e+00 : f32
    %15 = vector.broadcast %cst_13 : f32 to vector<1x128xf32>
    %16 = arith.cmpf ogt, %11, %15 : vector<1x128xf32>
    %cst_14 = arith.constant -1.000000e+30 : f32
    %17 = vector.shape_cast %16 : vector<1x128xi1> to vector<1x128xi1>
    %18 = vector.broadcast %17 : vector<1x128xi1> to vector<8x128xi1>
    %19 = vector.broadcast %cst_14 : f32 to vector<8x128xf32>
    %20 = arith.select %18, %14, %19 : vector<8x128xi1>, vector<8x128xf32>
    %c0_15 = arith.constant 0 : index
    %c0_16 = arith.constant 0 : index
    %21 = vector.load %arg7[%c0_15, %c0_16] : memref<8x1xf32, #tpu.memory_space<vmem>>, vector<8x1xf32>
    %cst_17 = arith.constant dense<0xFF800000> : vector<8xf32>
    %22 = vector.multi_reduction <maximumf>, %20, %cst_17 [1] : vector<8x128xf32> to vector<8xf32>
    %23 = vector.shape_cast %22 : vector<8xf32> to vector<8x1xf32>
    %24 = arith.maximumf %21, %23 : vector<8x1xf32>
    %c0_18 = arith.constant 0 : index
    %c0_19 = arith.constant 0 : index
    %25 = vector.load %arg7[%c0_18, %c0_19] : memref<8x1xf32, #tpu.memory_space<vmem>>, vector<8x1xf32>
    %26 = arith.subf %25, %24 : vector<8x1xf32>
    %27 = math.exp %26 : vector<8x1xf32>
    %28 = vector.broadcast %24 : vector<8x1xf32> to vector<8x128xf32>
    %29 = arith.subf %20, %28 : vector<8x128xf32>
    %30 = math.exp %29 : vector<8x128xf32>
    %c0_20 = arith.constant 0 : index
    %c0_21 = arith.constant 0 : index
    %31 = vector.load %arg8[%c0_20, %c0_21] : memref<8x1xf32, #tpu.memory_space<vmem>>, vector<8x1xf32>
    %32 = arith.mulf %27, %31 : vector<8x1xf32>
    %cst_22 = arith.constant dense<0.000000e+00> : vector<8xf32>
    %33 = vector.multi_reduction <add>, %30, %cst_22 [1] : vector<8x128xf32> to vector<8xf32>
    %34 = vector.shape_cast %33 : vector<8xf32> to vector<8x1xf32>
    %35 = arith.addf %32, %34 : vector<8x1xf32>
    %c0_23 = arith.constant 0 : index
    %c0_24 = arith.constant 0 : index
    %36 = vector.load %arg8[%c0_23, %c0_24] : memref<8x1xf32, #tpu.memory_space<vmem>>, vector<8x1xf32>
    tpu.vector_store %arg8[%c0_23, %c0_24], %35 {strides = array<i32>} : memref<8x1xf32, #tpu.memory_space<vmem>>, vector<8x1xf32>,
    %c0_25 = arith.constant 0 : index
    %c0_26 = arith.constant 0 : index
    %37 = vector.load %arg9[%c0_25, %c0_26] : memref<8x128xf32, #tpu.memory_space<vmem>>, vector<8x128xf32>
    %38 = vector.broadcast %27 : vector<8x1xf32> to vector<8x128xf32>
    %39 = arith.mulf %38, %37 : vector<8x128xf32>
    %40 = arith.truncf %30 : vector<8x128xf32> to vector<8x128xbf16>
    %cst_27 = arith.constant dense<0.000000e+00> : vector<8x128xf32>
    %41 = tpu.matmul %40, %7, %cst_27 {dimension_numbers = #tpu.dot_dimension_numbers<[1], [0], [0], [1], [0, 0, 1, 1], [], []>} : vector<8x128xbf16>, vector<128x128xbf16>, vector<8x128xf32> -> vector<8x128xf32>
    %42 = arith.addf %39, %41 : vector<8x128xf32>
    %c0_28 = arith.constant 0 : index
    %c0_29 = arith.constant 0 : index
    %43 = vector.load %arg9[%c0_28, %c0_29] : memref<8x128xf32, #tpu.memory_space<vmem>>, vector<8x128xf32>
    tpu.vector_store %arg9[%c0_28, %c0_29], %42 {strides = array<i32>} : memref<8x128xf32, #tpu.memory_space<vmem>>, vector<8x128xf32>,
    %c0_30 = arith.constant 0 : index
    %c0_31 = arith.constant 0 : index
    %44 = vector.load %arg7[%c0_30, %c0_31] : memref<8x1xf32, #tpu.memory_space<vmem>>, vector<8x1xf32>
    tpu.vector_store %arg7[%c0_30, %c0_31], %24 {strides = array<i32>} : memref<8x1xf32, #tpu.memory_space<vmem>>, vector<8x1xf32>,
    %c1_i32 = arith.constant 1 : i32
    %45 = arith.cmpi eq, %arg1, %c1_i32 : i32
    %46 = arith.extui %45 : i1 to i32
    %c0_i32_32 = arith.constant 0 : i32
    %47 = arith.cmpi ne, %46, %c0_i32_32 : i32
    scf.if %47 {
      %c0_33 = arith.constant 0 : index
      %c0_34 = arith.constant 0 : index
      %48 = vector.load %arg9[%c0_33, %c0_34] : memref<8x128xf32, #tpu.memory_space<vmem>>, vector<8x128xf32>
      %c0_35 = arith.constant 0 : index
      %c0_36 = arith.constant 0 : index
      %49 = vector.load %arg8[%c0_35, %c0_36] : memref<8x1xf32, #tpu.memory_space<vmem>>, vector<8x1xf32>
      %50 = tpu.reciprocal %49 {approx = true} : vector<8x1xf32> -> vector<8x1xf32>
      %51 = vector.broadcast %50 : vector<8x1xf32> to vector<8x128xf32>
      %52 = arith.mulf %48, %51 : vector<8x128xf32>
      %53 = arith.truncf %52 : vector<8x128xf32> to vector<8x128xbf16>
      %c0_37 = arith.constant 0 : index
      %c0_38 = arith.constant 0 : index
      %c0_39 = arith.constant 0 : index
      %54 = vector.load %arg6[%c0_37, %c0_38, %c0_39] : memref<1x8x128xbf16, #tpu.memory_space<vmem>>, vector<1x8x128xbf16>
      %55 = vector.shape_cast %54 : vector<1x8x128xbf16> to vector<8x128xbf16>
      %56 = vector.shape_cast %53 : vector<8x128xbf16> to vector<1x8x128xbf16>
      tpu.vector_store %arg6[%c0_37, %c0_38, %c0_39], %56 {strides = array<i32>} : memref<1x8x128xbf16, #tpu.memory_space<vmem>>, vector<1x8x128xbf16>,
    } else {
    }
    return
  }
  func.func @transform_0(%arg0: i32, %arg1: i32) -> (i32, i32, i32) {
    %c0_i32 = arith.constant 0 : i32
    %c0_i32_0 = arith.constant 0 : i32
    %c0_i32_1 = arith.constant 0 : i32
    return %arg0, %c0_i32, %c0_i32_0 : i32, i32, i32
  }
  func.func @transform_1(%arg0: i32, %arg1: i32) -> (i32, i32, i32) {
    %c0_i32 = arith.constant 0 : i32
    %c0_i32_0 = arith.constant 0 : i32
    %c0_i32_1 = arith.constant 0 : i32
    return %arg0, %c0_i32, %c0_i32_0 : i32, i32, i32
  }
  func.func @transform_2(%arg0: i32, %arg1: i32) -> (i32, i32) {
    %c0_i32 = arith.constant 0 : i32
    %c0_i32_0 = arith.constant 0 : i32
    return %arg1, %c0_i32 : i32, i32
  }
  func.func @transform_3(%arg0: i32, %arg1: i32) -> (i32, i32, i32) {
    %c0_i32 = arith.constant 0 : i32
    %c0_i32_0 = arith.constant 0 : i32
    return %arg0, %c0_i32, %arg1 : i32, i32, i32
  }
  func.func @transform_4(%arg0: i32, %arg1: i32) -> (i32, i32, i32) {
    %c0_i32 = arith.constant 0 : i32
    %c0_i32_0 = arith.constant 0 : i32
    %c0_i32_1 = arith.constant 0 : i32
    return %arg0, %c0_i32, %c0_i32_0 : i32, i32, i32
  }
}

module attributes {stable_mosaic.version = 11 : i64} {
  func.func @_fuse2_rank_kernel(%arg0: i32, %arg1: i32, %arg2: memref<128x17xf32, #tpu.memory_space<vmem>>, %arg3: memref<1x17x128xf32, #tpu.memory_space<vmem>>, %arg4: memref<1x8x128xbf16, #tpu.memory_space<vmem>>, %arg5: memref<1x8x128xbf16, #tpu.memory_space<vmem>>, %arg6: memref<1x1x8xf32, #tpu.memory_space<vmem>>, %arg7: memref<1x128x1xf32, #tpu.memory_space<vmem>>, %arg8: memref<1x1x128xf32, #tpu.memory_space<vmem>>, %arg9: memref<512x128xbf16, #tpu.memory_space<vmem>>, %arg10: memref<1x128xf32, #tpu.memory_space<vmem>>, %arg11: memref<128x128xbf16, #tpu.memory_space<vmem>>, %arg12: memref<1x128xf32, #tpu.memory_space<vmem>>, %arg13: memref<1x128xbf16, #tpu.memory_space<vmem>>, %arg14: memref<1x1xf32, #tpu.memory_space<vmem>>, %arg15: memref<1x1x1x128xf32, #tpu.memory_space<vmem>>) attributes {dimension_semantics = [#tpu.dimension_semantics<parallel>, #tpu.dimension_semantics<parallel>], iteration_bounds = array<i64: 2, 2>, scalar_prefetch = 0 : i64, scratch_operands = 0 : i64, tpu.core_type = #tpu.core_type<tc>, window_params = [{transform_indices = @transform_0, window_bounds = array<i64: 128, 17>}, {transform_indices = @transform_1, window_bounds = array<i64: 1, 17, 128>}, {transform_indices = @transform_2, window_bounds = array<i64: 1, 8, 128>}, {transform_indices = @transform_3, window_bounds = array<i64: 1, 8, 128>}, {transform_indices = @transform_4, window_bounds = array<i64: 1, 1, 8>}, {transform_indices = @transform_5, window_bounds = array<i64: 1, 128, 1>}, {transform_indices = @transform_6, window_bounds = array<i64: 1, 1, 128>}, {pipeline_mode = #tpu.pipeline_mode<synchronous>, transform_indices = @transform_7, window_bounds = array<i64: 512, 128>}, {pipeline_mode = #tpu.pipeline_mode<synchronous>, transform_indices = @transform_8, window_bounds = array<i64: 1, 128>}, {pipeline_mode = #tpu.pipeline_mode<synchronous>, transform_indices = @transform_9, window_bounds = array<i64: 128, 128>}, {pipeline_mode = #tpu.pipeline_mode<synchronous>, transform_indices = @transform_10, window_bounds = array<i64: 1, 128>}, {pipeline_mode = #tpu.pipeline_mode<synchronous>, transform_indices = @transform_11, window_bounds = array<i64: 1, 128>}, {pipeline_mode = #tpu.pipeline_mode<synchronous>, transform_indices = @transform_12, window_bounds = array<i64: 1, 1>}, {transform_indices = @transform_13, window_bounds = array<i64: 1, 1, 1, 128>}]} {
    %c0 = arith.constant 0 : index
    %c0_0 = arith.constant 0 : index
    %0 = vector.load %arg2[%c0, %c0_0] : memref<128x17xf32, #tpu.memory_space<vmem>>, vector<128x17xf32>
    %c0_1 = arith.constant 0 : index
    %c0_2 = arith.constant 0 : index
    %c0_3 = arith.constant 0 : index
    %1 = vector.load %arg3[%c0_1, %c0_2, %c0_3] : memref<1x17x128xf32, #tpu.memory_space<vmem>>, vector<1x17x128xf32>
    %2 = vector.shape_cast %1 : vector<1x17x128xf32> to vector<17x128xf32>
    %cst = arith.constant dense<0.000000e+00> : vector<128x128xf32>
    %3 = tpu.matmul %0, %2, %cst {dimension_numbers = #tpu.dot_dimension_numbers<[1], [0], [0], [1], [0, 0, 1, 1], [], []>} : vector<128x17xf32>, vector<17x128xf32>, vector<128x128xf32> -> vector<128x128xf32>
    %c0_4 = arith.constant 0 : index
    %c0_5 = arith.constant 0 : index
    %c0_6 = arith.constant 0 : index
    %4 = vector.load %arg7[%c0_4, %c0_5, %c0_6] : memref<1x128x1xf32, #tpu.memory_space<vmem>>, vector<1x128x1xf32>
    %5 = vector.shape_cast %4 : vector<1x128x1xf32> to vector<128x1xf32>
    %6 = arith.truncf %3 : vector<128x128xf32> to vector<128x128xbf16>
    %c0_7 = arith.constant 0 : index
    %c0_8 = arith.constant 0 : index
    %c0_9 = arith.constant 0 : index
    %7 = vector.load %arg4[%c0_7, %c0_8, %c0_9] : memref<1x8x128xbf16, #tpu.memory_space<vmem>>, vector<1x8x128xbf16>
    %8 = vector.shape_cast %7 : vector<1x8x128xbf16> to vector<8x128xbf16>
    %c0_10 = arith.constant 0 : index
    %c0_11 = arith.constant 0 : index
    %c0_12 = arith.constant 0 : index
    %9 = vector.load %arg5[%c0_10, %c0_11, %c0_12] : memref<1x8x128xbf16, #tpu.memory_space<vmem>>, vector<1x8x128xbf16>
    %10 = vector.shape_cast %9 : vector<1x8x128xbf16> to vector<8x128xbf16>
    %c0_13 = arith.constant 0 : index
    %c0_14 = arith.constant 0 : index
    %c0_15 = arith.constant 0 : index
    %11 = vector.load %arg6[%c0_13, %c0_14, %c0_15] : memref<1x1x8xf32, #tpu.memory_space<vmem>>, vector<1x1x8xf32>
    %12 = vector.shape_cast %11 : vector<1x1x8xf32> to vector<1x8xf32>
    %c0_16 = arith.constant 0 : index
    %c0_17 = arith.constant 0 : index
    %13 = vector.load %arg9[%c0_16, %c0_17] : memref<512x128xbf16, #tpu.memory_space<vmem>>, vector<512x128xbf16>
    %c0_18 = arith.constant 0 : index
    %c0_19 = arith.constant 0 : index
    %14 = vector.load %arg10[%c0_18, %c0_19] : memref<1x128xf32, #tpu.memory_space<vmem>>, vector<1x128xf32>
    %cst_20 = arith.constant dense<0.000000e+00> : vector<128x8xf32>
    %15 = tpu.matmul %6, %8, %cst_20 {dimension_numbers = #tpu.dot_dimension_numbers<[1], [1], [0], [0], [0, 0, 1, 0], [], []>} : vector<128x128xbf16>, vector<8x128xbf16>, vector<128x8xf32> -> vector<128x8xf32>
    %cst_21 = arith.constant 0.0883883461 : f32
    %16 = vector.broadcast %cst_21 : f32 to vector<128x8xf32>
    %17 = arith.mulf %15, %16 : vector<128x8xf32>
    %cst_22 = arith.constant 0.000000e+00 : f32
    %18 = vector.broadcast %cst_22 : f32 to vector<1x8xf32>
    %19 = arith.cmpf ogt, %12, %18 : vector<1x8xf32>
    %cst_23 = arith.constant -1.000000e+30 : f32
    %20 = vector.shape_cast %19 : vector<1x8xi1> to vector<1x8xi1>
    %21 = vector.broadcast %20 : vector<1x8xi1> to vector<128x8xi1>
    %22 = vector.broadcast %cst_23 : f32 to vector<128x8xf32>
    %23 = arith.select %21, %17, %22 : vector<128x8xi1>, vector<128x8xf32>
    %cst_24 = arith.constant dense<0xFF800000> : vector<128xf32>
    %24 = vector.multi_reduction <maximumf>, %23, %cst_24 [1] : vector<128x8xf32> to vector<128xf32>
    %25 = vector.shape_cast %24 : vector<128xf32> to vector<128x1xf32>
    %26 = vector.broadcast %25 : vector<128x1xf32> to vector<128x8xf32>
    %27 = arith.subf %23, %26 : vector<128x8xf32>
    %28 = math.exp %27 : vector<128x8xf32>
    %cst_25 = arith.constant dense<0.000000e+00> : vector<128xf32>
    %29 = vector.multi_reduction <add>, %28, %cst_25 [1] : vector<128x8xf32> to vector<128xf32>
    %30 = vector.shape_cast %29 : vector<128xf32> to vector<128x1xf32>
    %31 = tpu.reciprocal %30 {approx = true} : vector<128x1xf32> -> vector<128x1xf32>
    %32 = vector.broadcast %31 : vector<128x1xf32> to vector<128x8xf32>
    %33 = arith.mulf %28, %32 : vector<128x8xf32>
    %34 = arith.truncf %33 : vector<128x8xf32> to vector<128x8xbf16>
    %cst_26 = arith.constant dense<0.000000e+00> : vector<128x128xf32>
    %35 = tpu.matmul %34, %8, %cst_26 {dimension_numbers = #tpu.dot_dimension_numbers<[1], [0], [0], [1], [0, 0, 1, 1], [], []>} : vector<128x8xbf16>, vector<8x128xbf16>, vector<128x128xf32> -> vector<128x128xf32>
    %cst_27 = arith.constant dense<0.000000e+00> : vector<128x128xf32>
    %36 = tpu.matmul %34, %10, %cst_27 {dimension_numbers = #tpu.dot_dimension_numbers<[1], [0], [0], [1], [0, 0, 1, 1], [], []>} : vector<128x8xbf16>, vector<8x128xbf16>, vector<128x128xf32> -> vector<128x128xf32>
    %37 = arith.extf %6 : vector<128x128xbf16> to vector<128x128xf32>
    %38 = arith.mulf %37, %35 : vector<128x128xf32>
    %39 = arith.mulf %37, %36 : vector<128x128xf32>
    %40 = tpu.concatenate %37, %35, %38, %39 in 1 : vector<128x128xf32>, vector<128x128xf32>, vector<128x128xf32>, vector<128x128xf32> -> vector<128x512xf32>
    %41 = arith.truncf %40 : vector<128x512xf32> to vector<128x512xbf16>
    %cst_28 = arith.constant dense<0.000000e+00> : vector<128x128xf32>
    %42 = tpu.matmul %41, %13, %cst_28 {dimension_numbers = #tpu.dot_dimension_numbers<[1], [0], [0], [1], [0, 0, 1, 1], [], []>} : vector<128x512xbf16>, vector<512x128xbf16>, vector<128x128xf32> -> vector<128x128xf32>
    %43 = vector.broadcast %14 : vector<1x128xf32> to vector<128x128xf32>
    %44 = arith.addf %42, %43 : vector<128x128xf32>
    %45 = vector.broadcast %5 : vector<128x1xf32> to vector<128x128xf32>
    %46 = arith.mulf %44, %45 : vector<128x128xf32>
    %47 = arith.truncf %46 : vector<128x128xf32> to vector<128x128xbf16>
    %c0_29 = arith.constant 0 : index
    %c0_30 = arith.constant 0 : index
    %48 = vector.load %arg11[%c0_29, %c0_30] : memref<128x128xbf16, #tpu.memory_space<vmem>>, vector<128x128xbf16>
    %cst_31 = arith.constant dense<0.000000e+00> : vector<128x128xf32>
    %49 = tpu.matmul %47, %48, %cst_31 {dimension_numbers = #tpu.dot_dimension_numbers<[1], [0], [0], [1], [0, 0, 1, 1], [], []>} : vector<128x128xbf16>, vector<128x128xbf16>, vector<128x128xf32> -> vector<128x128xf32>
    %c0_32 = arith.constant 0 : index
    %c0_33 = arith.constant 0 : index
    %50 = vector.load %arg12[%c0_32, %c0_33] : memref<1x128xf32, #tpu.memory_space<vmem>>, vector<1x128xf32>
    %51 = vector.broadcast %50 : vector<1x128xf32> to vector<128x128xf32>
    %52 = arith.addf %49, %51 : vector<128x128xf32>
    %cst_34 = arith.constant 0.000000e+00 : f32
    %53 = vector.broadcast %cst_34 : f32 to vector<128x128xf32>
    %54 = arith.maximumf %52, %53 : vector<128x128xf32>
    %c0_35 = arith.constant 0 : index
    %c0_36 = arith.constant 0 : index
    %55 = vector.load %arg13[%c0_35, %c0_36] : memref<1x128xbf16, #tpu.memory_space<vmem>>, vector<1x128xbf16>
    %56 = arith.truncf %54 : vector<128x128xf32> to vector<128x128xbf16>
    %cst_37 = arith.constant dense<0.000000e+00> : vector<1x128xf32>
    %57 = tpu.matmul %55, %56, %cst_37 {dimension_numbers = #tpu.dot_dimension_numbers<[1], [1], [0], [0], [0, 0, 1, 0], [], []>} : vector<1x128xbf16>, vector<128x128xbf16>, vector<1x128xf32> -> vector<1x128xf32>
    %c0_38 = arith.constant 0 : index
    %c0_39 = arith.constant 0 : index
    %58 = vector.load %arg14[%c0_38, %c0_39] : memref<1x1xf32, #tpu.memory_space<vmem>>, vector<1x1xf32>
    %59 = vector.broadcast %58 : vector<1x1xf32> to vector<1x128xf32>
    %60 = arith.addf %57, %59 : vector<1x128xf32>
    %c0_40 = arith.constant 0 : index
    %c0_41 = arith.constant 0 : index
    %c0_42 = arith.constant 0 : index
    %61 = vector.load %arg8[%c0_40, %c0_41, %c0_42] : memref<1x1x128xf32, #tpu.memory_space<vmem>>, vector<1x1x128xf32>
    %62 = vector.shape_cast %61 : vector<1x1x128xf32> to vector<1x128xf32>
    %cst_43 = arith.constant 1.000000e+00 : f32
    %63 = vector.broadcast %cst_43 : f32 to vector<1x128xf32>
    %64 = arith.subf %63, %62 : vector<1x128xf32>
    %cst_44 = arith.constant -1.000000e+30 : f32
    %65 = vector.broadcast %cst_44 : f32 to vector<1x128xf32>
    %66 = arith.mulf %64, %65 : vector<1x128xf32>
    %67 = arith.addf %60, %66 : vector<1x128xf32>
    %68 = arith.negf %67 : vector<1x128xf32>
    %69 = math.exp %68 : vector<1x128xf32>
    %cst_45 = arith.constant 1.000000e+00 : f32
    %70 = vector.broadcast %cst_45 : f32 to vector<1x128xf32>
    %71 = arith.addf %70, %69 : vector<1x128xf32>
    %72 = arith.divf %70, %71 : vector<1x128xf32>
    %73 = arith.mulf %72, %62 : vector<1x128xf32>
    %c0_46 = arith.constant 0 : index
    %c0_47 = arith.constant 0 : index
    %c0_48 = arith.constant 0 : index
    %c0_49 = arith.constant 0 : index
    %74 = vector.load %arg15[%c0_46, %c0_47, %c0_48, %c0_49] : memref<1x1x1x128xf32, #tpu.memory_space<vmem>>, vector<1x1x1x128xf32>
    %75 = vector.shape_cast %74 : vector<1x1x1x128xf32> to vector<1x128xf32>
    %76 = vector.shape_cast %73 : vector<1x128xf32> to vector<1x1x1x128xf32>
    tpu.vector_store %arg15[%c0_46, %c0_47, %c0_48, %c0_49], %76 {strides = array<i32>} : memref<1x1x1x128xf32, #tpu.memory_space<vmem>>, vector<1x1x1x128xf32>,
    return
  }
  func.func @transform_0(%arg0: i32, %arg1: i32) -> (i32, i32) {
    %c0_i32 = arith.constant 0 : i32
    %c0_i32_0 = arith.constant 0 : i32
    return %arg1, %c0_i32 : i32, i32
  }
  func.func @transform_1(%arg0: i32, %arg1: i32) -> (i32, i32, i32) {
    %c0_i32 = arith.constant 0 : i32
    %c0_i32_0 = arith.constant 0 : i32
    %c0_i32_1 = arith.constant 0 : i32
    return %arg0, %c0_i32, %c0_i32_0 : i32, i32, i32
  }
  func.func @transform_2(%arg0: i32, %arg1: i32) -> (i32, i32, i32) {
    %c0_i32 = arith.constant 0 : i32
    %c0_i32_0 = arith.constant 0 : i32
    %c0_i32_1 = arith.constant 0 : i32
    return %arg0, %c0_i32, %c0_i32_0 : i32, i32, i32
  }
  func.func @transform_3(%arg0: i32, %arg1: i32) -> (i32, i32, i32) {
    %c0_i32 = arith.constant 0 : i32
    %c0_i32_0 = arith.constant 0 : i32
    %c0_i32_1 = arith.constant 0 : i32
    return %arg0, %c0_i32, %c0_i32_0 : i32, i32, i32
  }
  func.func @transform_4(%arg0: i32, %arg1: i32) -> (i32, i32, i32) {
    %c0_i32 = arith.constant 0 : i32
    %c0_i32_0 = arith.constant 0 : i32
    %c0_i32_1 = arith.constant 0 : i32
    return %arg0, %c0_i32, %c0_i32_0 : i32, i32, i32
  }
  func.func @transform_5(%arg0: i32, %arg1: i32) -> (i32, i32, i32) {
    %c0_i32 = arith.constant 0 : i32
    %c0_i32_0 = arith.constant 0 : i32
    return %arg0, %arg1, %c0_i32 : i32, i32, i32
  }
  func.func @transform_6(%arg0: i32, %arg1: i32) -> (i32, i32, i32) {
    %c0_i32 = arith.constant 0 : i32
    %c0_i32_0 = arith.constant 0 : i32
    return %arg0, %c0_i32, %arg1 : i32, i32, i32
  }
  func.func @transform_7(%arg0: i32, %arg1: i32) -> (i32, i32) {
    %c0_i32 = arith.constant 0 : i32
    %c0_i32_0 = arith.constant 0 : i32
    %c0_i32_1 = arith.constant 0 : i32
    return %c0_i32, %c0_i32_0 : i32, i32
  }
  func.func @transform_8(%arg0: i32, %arg1: i32) -> (i32, i32) {
    %c0_i32 = arith.constant 0 : i32
    %c0_i32_0 = arith.constant 0 : i32
    %c0_i32_1 = arith.constant 0 : i32
    return %c0_i32, %c0_i32_0 : i32, i32
  }
  func.func @transform_9(%arg0: i32, %arg1: i32) -> (i32, i32) {
    %c0_i32 = arith.constant 0 : i32
    %c0_i32_0 = arith.constant 0 : i32
    %c0_i32_1 = arith.constant 0 : i32
    return %c0_i32, %c0_i32_0 : i32, i32
  }
  func.func @transform_10(%arg0: i32, %arg1: i32) -> (i32, i32) {
    %c0_i32 = arith.constant 0 : i32
    %c0_i32_0 = arith.constant 0 : i32
    %c0_i32_1 = arith.constant 0 : i32
    return %c0_i32, %c0_i32_0 : i32, i32
  }
  func.func @transform_11(%arg0: i32, %arg1: i32) -> (i32, i32) {
    %c0_i32 = arith.constant 0 : i32
    %c0_i32_0 = arith.constant 0 : i32
    %c0_i32_1 = arith.constant 0 : i32
    return %c0_i32, %c0_i32_0 : i32, i32
  }
  func.func @transform_12(%arg0: i32, %arg1: i32) -> (i32, i32) {
    %c0_i32 = arith.constant 0 : i32
    %c0_i32_0 = arith.constant 0 : i32
    %c0_i32_1 = arith.constant 0 : i32
    return %c0_i32, %c0_i32_0 : i32, i32
  }
  func.func @transform_13(%arg0: i32, %arg1: i32) -> (i32, i32, i32, i32) {
    %c0_i32 = arith.constant 0 : i32
    %c0_i32_0 = arith.constant 0 : i32
    %c0_i32_1 = arith.constant 0 : i32
    return %arg0, %arg1, %c0_i32, %c0_i32_0 : i32, i32, i32, i32
  }
}

</mosaic_0001>

<llo_original>
// kernel: emb_forward.8
$region0: #{emb_forward.8}
  #allocation0 [shape = 'u32[]', space=smem, size = 0x4, offset = 0x4, fixed_abs, tag = 'smem constant byte address 0x4 - core index']
  #allocation1 [shape = 'u32[72,128]{1,0:T(1,128)}', space=vmem, size = 0x9000, scoped, tag = 'internal scratch']
  %s0 = inlined_call_operand.vmem [shape: bf16[2,8,128], index: 0, kind: input, shape index: {}]
  %s1 = inlined_call_operand.vmem [shape: bf16[2,16,128], index: 1, kind: input, shape index: {}]
  %s2 = inlined_call_operand.vmem [shape: f32[2,1,16], index: 2, kind: input, shape index: {}]
  %s3 = inlined_call_operand.vmem [shape: f32[2,8,128], index: 3, kind: output, shape index: {}]
  %s4 = sld [smem:[#allocation0]]
  $region45: #{emb_forward.8} parent=0
    _
  %s6 = ssub.s32 1, %s4
  %s7 = scalar_select 0, %s6, %s4
  loop: start=0, step=1, limit=4
  $region2: #{emb_forward.8} parent=0 // loop_pre_header
    _
  $region3: #{emb_forward.8} parent=0 // loop_header
    %s9 = sphi 0, %s13
    %p10 = scmp.ge.s32.totalorder %s9, 4
    %s16 = sphi 0, %s28
    %s17 = sphi 0, %s24
    %s18 = sphi 0, %s16
    %s19 = sphi 0, %s17
    %s20 = sphi 0, %s18
    %s21 = sphi 0, %s19
    %s33 = sphi 0, %s35
    %s36 = sphi 0, %s33
    %s37 = sphi 0, %s36
    %s53 = sphi 0, %s37
    %s59 = sphi 0, %s61
    %s62 = sphi 0, %s59
    %s63 = sphi 0, %s62
    %s79 = sphi 0, %s63
    %s85 = sphi 0, %s87
    %s88 = sphi 0, %s85
    %s89 = sphi 0, %s88
    %s105 = sphi 0, %s89
    %s113 = sphi 0, %s115
    %s116 = sphi 0, %s113
    %s117 = sphi 0, %s116
    %s133 = sphi 0, %s117
  $region4: #{emb_forward.8} parent=0 // loop_header_branch
    %12 = sbr.rel (%p10) target = $region8
  $region5: #{emb_forward.8} parent=0 // loop_body
    %s14 = ssub.s32 %s9, 1
    %s15 = ssub.s32 %s9, 2
    %s22 = sadd.s32 1, %s17
    %p23 = scmp.ge.s32.totalorder %s22, 1
    %s24 = scalar_select %p23, 0, %s22
    %s25 = sadd.s32 1, %s16
    %s26 = scalar_select %p23, %s25, %s16
    %p27 = scmp.ge.s32.totalorder %s26, 2
    %s28 = scalar_select %p27, 0, %s26
    %s29 = ssub.s32 %s16, %s28
    %s30 = ssub.s32 %s17, %s24
    %s31 = sor.u32 %s29, %s30
    %p32 = scmp.eq.s32.totalorder %s31, 0
    %s34 = sadd.s32 %s33, 1
    %s35 = scalar_select %p32, %s33, %s34
    %p38 = pneg %p32
    %p39 = scmp.eq.s32.totalorder %s9, 1
    %p40 = por %p38, %p39
    %p41 = scmp.ne.s32.totalorder %s33, %s36
    %p42 = scmp.eq.s32.totalorder %s9, 0
    %p43 = por %p41, %p42
    %p44 = scmp.ne.s32.totalorder %s33, %s36
    %p45 = scmp.eq.s32.totalorder %s14, 1
    %p46 = por %p44, %p45
    %p47 = scmp.ne.s32.totalorder %s36, %s37
    %p48 = scmp.eq.s32.totalorder %s14, 0
    %p49 = por %p47, %p48
    %p50 = scmp.ne.s32.totalorder %s36, %s37
    %p51 = scmp.eq.s32.totalorder %s15, 1
    %p52 = por %p50, %p51
    %p54 = scmp.ne.s32.totalorder %s37, %s53
    %p55 = scmp.eq.s32.totalorder %s15, 0
    %p56 = por %p54, %p55
    %s57 = ssub.s32 %s16, %s28
    %p58 = scmp.eq.s32.totalorder %s57, 0
    %s60 = sadd.s32 %s59, 1
    %s61 = scalar_select %p58, %s59, %s60
    %p64 = pneg %p58
    %p65 = scmp.eq.s32.totalorder %s9, 1
    %p66 = por %p64, %p65
    %p67 = scmp.ne.s32.totalorder %s59, %s62
    %p68 = scmp.eq.s32.totalorder %s9, 0
    %p69 = por %p67, %p68
    %p70 = scmp.ne.s32.totalorder %s59, %s62
    %p71 = scmp.eq.s32.totalorder %s14, 1
    %p72 = por %p70, %p71
    %p73 = scmp.ne.s32.totalorder %s62, %s63
    %p74 = scmp.eq.s32.totalorder %s14, 0
    %p75 = por %p73, %p74
    %p76 = scmp.ne.s32.totalorder %s62, %s63
    %p77 = scmp.eq.s32.totalorder %s15, 1
    %p78 = por %p76, %p77
    %p80 = scmp.ne.s32.totalorder %s63, %s79
    %p81 = scmp.eq.s32.totalorder %s15, 0
    %p82 = por %p80, %p81
    %s83 = ssub.s32 %s16, %s28
    %p84 = scmp.eq.s32.totalorder %s83, 0
    %s86 = sadd.s32 %s85, 1
    %s87 = scalar_select %p84, %s85, %s86
    %p90 = pneg %p84
    %p91 = scmp.eq.s32.totalorder %s9, 1
    %p92 = por %p90, %p91
    %p93 = scmp.ne.s32.totalorder %s85, %s88
    %p94 = scmp.eq.s32.totalorder %s9, 0
    %p95 = por %p93, %p94
    %p96 = scmp.ne.s32.totalorder %s85, %s88
    %p97 = scmp.eq.s32.totalorder %s14, 1
    %p98 = por %p96, %p97
    %p99 = scmp.ne.s32.totalorder %s88, %s89
    %p100 = scmp.eq.s32.totalorder %s14, 0
    %p101 = por %p99, %p100
    %p102 = scmp.ne.s32.totalorder %s88, %s89
    %p103 = scmp.eq.s32.totalorder %s15, 1
    %p104 = por %p102, %p103
    %p106 = scmp.ne.s32.totalorder %s89, %s105
    %p107 = scmp.eq.s32.totalorder %s15, 0
    %p108 = por %p106, %p107
    %s109 = ssub.s32 %s16, %s28
    %s110 = ssub.s32 %s17, %s24
    %s111 = sor.u32 %s109, %s110
    %p112 = scmp.eq.s32.totalorder %s111, 0
    %s114 = sadd.s32 %s113, 1
    %s115 = scalar_select %p112, %s113, %s114
    %p118 = pneg %p112
    %p119 = scmp.eq.s32.totalorder %s9, 1
    %p120 = por %p118, %p119
    %p121 = scmp.ne.s32.totalorder %s113, %s116
    %p122 = scmp.eq.s32.totalorder %s9, 0
    %p123 = por %p121, %p122
    %p124 = scmp.ne.s32.totalorder %s113, %s116
    %p125 = scmp.eq.s32.totalorder %s14, 1
    %p126 = por %p124, %p125
    %p127 = scmp.ne.s32.totalorder %s116, %s117
    %p128 = scmp.eq.s32.totalorder %s14, 0
    %p129 = por %p127, %p128
    %p130 = scmp.ne.s32.totalorder %s116, %s117
    %p131 = scmp.eq.s32.totalorder %s15, 1
    %p132 = por %p130, %p131
    %p134 = scmp.ne.s32.totalorder %s117, %s133
    %p135 = scmp.eq.s32.totalorder %s15, 0
    %p136 = por %p134, %p135
    %p137 = scmp.le.s32.totalorder 1, %s9
    %p138 = scmp.lt.s32.totalorder %s9, 3
    %p139 = pnand %p137, %p138
    %p140 = pneg %p139
    // Predicated region
    $region9: #{emb_forward.8} parent=5 // pred_check
      _
    $region10: #{emb_forward.8} parent=5 // pred_check_branch
      %142 = sbr.rel (%p139) target = $region12
    $region11: #{emb_forward.8} parent=5 // pred_region
      %s143 = ssub.s32 %s9, 1
    $region12: #{emb_forward.8} parent=5 // pred_fallthru
      _
    %p144 = scmp.lt.s32.totalorder %s9, 2
    // Predicated region
    $region13: #{emb_forward.8} parent=5 // pred_check
      %p145 = pneg %p144
    $region14: #{emb_forward.8} parent=5 // pred_check_branch
      %147 = sbr.rel (%p145) target = $region16
    $region15: #{emb_forward.8} parent=5 // pred_region
      // Predicated region
      $region17: #{emb_forward.8} parent=15 // pred_check
        %p148 = pneg %p43
      $region18: #{emb_forward.8} parent=15 // pred_check_branch
        %150 = sbr.rel (%p148) target = $region20
      $region19: #{emb_forward.8} parent=15 // pred_region
        %p151 = scmp.lt.s32.totalorder %s16, 1
        %s152 = scalar_select %p151, %s16, 1
        %p153 = scmp.lt.s32.totalorder %s17, 0
        %s154 = scalar_select %p153, %s17, 0
        %s155 = sadd.s32 %s154, %s152
        %s156 = smul.addr %s155, 4
        %s157 = scalar_lea.vmem %s0, %s156
      $region20: #{emb_forward.8} parent=15 // pred_fallthru
        _
      // Predicated region
      $region21: #{emb_forward.8} parent=15 // pred_check
        %p158 = pneg %p69
      $region22: #{emb_forward.8} parent=15 // pred_check_branch
        %160 = sbr.rel (%p158) target = $region24
      $region23: #{emb_forward.8} parent=15 // pred_region
        %p161 = scmp.lt.s32.totalorder %s16, 1
        %s162 = scalar_select %p161, %s16, 1
        %s163 = smul.addr %s162, 2
        %s164 = smul.addr %s163, 4
        %s165 = scalar_lea.vmem %s1, %s164
      $region24: #{emb_forward.8} parent=15 // pred_fallthru
        _
      // Predicated region
      $region25: #{emb_forward.8} parent=15 // pred_check
        %p166 = pneg %p95
      $region26: #{emb_forward.8} parent=15 // pred_check_branch
        %168 = sbr.rel (%p166) target = $region28
      $region27: #{emb_forward.8} parent=15 // pred_region
        %p169 = scmp.lt.s32.totalorder %s16, 1
        %s170 = scalar_select %p169, %s16, 1
        %s171 = scalar_lea.vmem %s2, %s170
      $region28: #{emb_forward.8} parent=15 // pred_fallthru
        _
    $region16: #{emb_forward.8} parent=5 // pred_fallthru
      _
    %p172 = scmp.le.s32.totalorder 1, %s9
    %p173 = scmp.lt.s32.totalorder %s9, 3
    %p174 = pnand %p172, %p173
    %p175 = pneg %p174
    // Predicated region
    $region29: #{emb_forward.8} parent=5 // pred_check
      _
    $region30: #{emb_forward.8} parent=5 // pred_check_branch
      %177 = sbr.rel (%p174) target = $region32
    $region31: #{emb_forward.8} parent=5 // pred_region
      %s178 = ssub.s32 %s9, 1
      %p179 = scmp.lt.s32.totalorder %s18, 1
      %s180 = scalar_select %p179, %s18, 1
      %p181 = scmp.lt.s32.totalorder %s19, 0
      %s182 = scalar_select %p181, %s19, 0
      %s183 = sadd.s32 %s182, %s180
      %s184 = smul.addr %s183, 4
      %s185 = scalar_lea.vmem %s0, %s184
      %p186 = pneg %p49
      %p187 = pneg %p46
      %p188 = scmp.lt.s32.totalorder %s18, 1
      %s189 = scalar_select %p188, %s18, 1
      %s190 = smul.addr %s189, 2
      %s191 = smul.addr %s190, 4
      %s192 = scalar_lea.vmem %s1, %s191
      %p193 = pneg %p75
      %p194 = pneg %p72
      %p195 = scmp.lt.s32.totalorder %s18, 1
      %s196 = scalar_select %p195, %s18, 1
      %s197 = scalar_lea.vmem %s2, %s196
      %p198 = pneg %p101
      %p199 = pneg %p98
      %p200 = pneg %p129
      %p201 = pneg %p126
      %p202 = scmp.lt.s32.totalorder %s18, 1
      %s203 = scalar_select %p202, %s18, 1
      %p204 = scmp.lt.s32.totalorder %s19, 0
      %s205 = scalar_select %p204, %s19, 0
      %s206 = sadd.s32 %s205, %s203
      %s207 = smul.addr %s206, 8
      %s208 = scalar_lea.vmem %s3, %s207
      %p209 = scmp.lt.s32.totalorder %s18, 1
      %s210 = scalar_select %p209, %s18, 1
      %p211 = scmp.lt.s32.totalorder %s19, 0
      %s212 = scalar_select %p211, %s19, 0
      %s213 = sadd.s32 %s212, %s210
      %s214 = smul.addr %s213, 4
      %s215 = scalar_lea.vmem %s0, %s214
      %p216 = scmp.lt.s32.totalorder %s18, 1
      %s217 = scalar_select %p216, %s18, 1
      %s218 = smul.addr %s217, 2
      %s219 = smul.addr %s218, 4
      %s220 = scalar_lea.vmem %s1, %s219
      %p221 = scmp.lt.s32.totalorder %s18, 1
      %s222 = scalar_select %p221, %s18, 1
      %s223 = scalar_lea.vmem %s2, %s222
      %p224 = scmp.lt.s32.totalorder %s18, 1
      %s225 = scalar_select %p224, %s18, 1
      %p226 = scmp.lt.s32.totalorder %s19, 0
      %s227 = scalar_select %p226, %s19, 0
      %s228 = sadd.s32 %s227, %s225
      %s229 = smul.addr %s228, 8
      %s230 = scalar_lea.vmem %s3, %s229
      %v232 = vld [vmem:[%s215] sm:$0xf]
      %v233 = vld [vmem:[%s220] sm:$0xf]
      %v234 = vld [vmem:[%s220 + $0x4] sm:$0xf]
      %v235 = vld [vmem:[%s223] sm:$0x1]
      %v238 = vunpack.c.l.b16 %v233
      %v239 = vunpack.c.l.b16 %v234
      %v240 = vpack.c.b16 %v239, %v238
      %242 = vmatpush.bf16.xpose.msra.mxu0 0
      %243 = vmatpush.bf16.xpose.msra.mxu0 0
      %244 = vmatpush.bf16.xpose.msra.mxu0 0
      %245 = vmatpush.bf16.xpose.msra.mxu0 0
      %246 = vmatpush.bf16.xpose.msra.mxu0 0
      %247 = vmatpush.bf16.xpose.msra.mxu0 0
      %248 = vmatpush.bf16.xpose.msra.mxu0 0
      %249 = vmatpush.bf16.xpose.msra.mxu0 %v240
      %250 = vmatmul.bf16.gmra.mxu0 %v232
      %v251 = vpop.f32.mrf.mxu0
      %v252 = vadd.f32 0.0, %v251
      %v253 = vpop.f32.mrf.mxu0
      %254 = vdwg.mxu0
      %v255 = vmul.f32 %v252, 0.088388346
      %vm256 = vcmp.gt.f32.partialorder %v235, 0.0
      %v257 = vsel %vm256, 1, 0
      %v258 = vperm.slane %v257, 0
      %vm259 = vcmp.eq.s32.totalorder %v258, 1
      %v260 = vsel %vm259, %v255, -1e+30
      %vm261 = vcmask 130048
      %v262 = vsel %vm261, %v260, -inf
      %263 = vmax.xlane.f32.xlu0 %v262
      %v264 = vpop.xlane.xlu0 %263
      %v265 = vsub.f32 %v260, %v264
      %v266 = vmul.f32 %v265, 1.442695
      %v267 = vpow.pop %v266
      %v268 = vsel %vm261, %v267, 0.0
      %269 = vadd.xlane.f32.xlu0 %v268
      %v270 = vpop.xlane.xlu0 %269
      %v271 = vrcp.pop %v270
      %v272 = vmul.f32 %v267, %v271
      %v273 = vpack.c.bf16 %v272, %v272
      %v275 = vsel %vm261, %v273, 0
      %277 = vmatpush.bf16.msra.mxu0 0
      %278 = vmatpush.bf16.msra.mxu0 0
      %279 = vmatpush.bf16.msra.mxu0 0
      %280 = vmatpush.bf16.msra.mxu0 0
      %281 = vmatpush.bf16.msra.mxu0 0
      %282 = vmatpush.bf16.msra.mxu0 0
      %283 = vmatpush.bf16.msra.mxu0 0
      %284 = vmatpush.bf16.msra.mxu0 %v240
      %285 = vmatmul.bf16.gmra.mxu0 %v275
      %v286 = vpop.f32.mrf.mxu0
      %v287 = vadd.f32 0.0, %v286
      %v288 = vpop.f32.mrf.mxu0
      %289 = vdwg.mxu0
      %290 = vst [vmem:[%s230] sm:$0xff] %v287
      %p291 = scmp.lt.s32.totalorder %s18, 1
      %s292 = scalar_select %p291, %s18, 1
      %p293 = scmp.lt.s32.totalorder %s19, 0
      %s294 = scalar_select %p293, %s19, 0
      %s295 = sadd.s32 %s294, %s292
      %s296 = smul.addr %s295, 8
      %s297 = scalar_lea.vmem %s3, %s296
      // Predicated region
      $region33: #{emb_forward.8} parent=31 // pred_check
        %p298 = pneg %p126
      $region34: #{emb_forward.8} parent=31 // pred_check_branch
        %300 = sbr.rel (%p298) target = $region36
      $region35: #{emb_forward.8} parent=31 // pred_region
        _
      $region36: #{emb_forward.8} parent=31 // pred_fallthru
        _
    $region32: #{emb_forward.8} parent=5 // pred_fallthru
      _
    %p301 = scmp.le.s32.totalorder 2, %s9
    // Predicated region
    $region37: #{emb_forward.8} parent=5 // pred_check
      %p302 = pneg %p301
    $region38: #{emb_forward.8} parent=5 // pred_check_branch
      %304 = sbr.rel (%p302) target = $region40
    $region39: #{emb_forward.8} parent=5 // pred_region
      %s305 = ssub.s32 %s9, 2
      // Predicated region
      $region41: #{emb_forward.8} parent=39 // pred_check
        %p306 = pneg %p132
      $region42: #{emb_forward.8} parent=39 // pred_check_branch
        %308 = sbr.rel (%p306) target = $region44
      $region43: #{emb_forward.8} parent=39 // pred_region
        %p309 = scmp.lt.s32.totalorder %s20, 1
        %s310 = scalar_select %p309, %s20, 1
        %p311 = scmp.lt.s32.totalorder %s21, 0
        %s312 = scalar_select %p311, %s21, 0
        %s313 = sadd.s32 %s312, %s310
        %s314 = smul.addr %s313, 8
        %s315 = scalar_lea.vmem %s3, %s314
      $region44: #{emb_forward.8} parent=39 // pred_fallthru
        _
    $region40: #{emb_forward.8} parent=5 // pred_fallthru
      _
  $region6: #{emb_forward.8} parent=0 // loop_footer
    %s13 = sadd.s32 1, %s9
  $region7: #{emb_forward.8} parent=0 // loop_footer_branch
    %8 = sbr.rel target = $region3
  $region8: #{emb_forward.8} parent=0 // loop_exit
    _

// kernel: emb_forward.9
$region0: #{emb_forward.9}
  #allocation0 [shape = 'u32[]', space=smem, size = 0x4, offset = 0x4, fixed_abs, tag = 'smem constant byte address 0x4 - core index']
  #allocation1 [shape = 'u32[72,128]{1,0:T(1,128)}', space=vmem, size = 0x9000, scoped, tag = 'internal scratch']
  %s0 = inlined_call_operand.vmem [shape: bf16[2,8,128], index: 0, kind: input, shape index: {}]
  %s1 = inlined_call_operand.vmem [shape: bf16[2,16,128], index: 1, kind: input, shape index: {}]
  %s2 = inlined_call_operand.vmem [shape: f32[2,1,16], index: 2, kind: input, shape index: {}]
  %s3 = inlined_call_operand.vmem [shape: bf16[2,8,128], index: 3, kind: output, shape index: {}]
  %s4 = sld [smem:[#allocation0]]
  $region45: #{emb_forward.9} parent=0
    _
  %s6 = ssub.s32 1, %s4
  %s7 = scalar_select 0, %s6, %s4
  loop: start=0, step=1, limit=4
  $region2: #{emb_forward.9} parent=0 // loop_pre_header
    _
  $region3: #{emb_forward.9} parent=0 // loop_header
    %s9 = sphi 0, %s13
    %p10 = scmp.ge.s32.totalorder %s9, 4
    %s16 = sphi 0, %s28
    %s17 = sphi 0, %s24
    %s18 = sphi 0, %s16
    %s19 = sphi 0, %s17
    %s20 = sphi 0, %s18
    %s21 = sphi 0, %s19
    %s33 = sphi 0, %s35
    %s36 = sphi 0, %s33
    %s37 = sphi 0, %s36
    %s53 = sphi 0, %s37
    %s59 = sphi 0, %s61
    %s62 = sphi 0, %s59
    %s63 = sphi 0, %s62
    %s79 = sphi 0, %s63
    %s85 = sphi 0, %s87
    %s88 = sphi 0, %s85
    %s89 = sphi 0, %s88
    %s105 = sphi 0, %s89
    %s113 = sphi 0, %s115
    %s116 = sphi 0, %s113
    %s117 = sphi 0, %s116
    %s133 = sphi 0, %s117
  $region4: #{emb_forward.9} parent=0 // loop_header_branch
    %12 = sbr.rel (%p10) target = $region8
  $region5: #{emb_forward.9} parent=0 // loop_body
    %s14 = ssub.s32 %s9, 1
    %s15 = ssub.s32 %s9, 2
    %s22 = sadd.s32 1, %s17
    %p23 = scmp.ge.s32.totalorder %s22, 1
    %s24 = scalar_select %p23, 0, %s22
    %s25 = sadd.s32 1, %s16
    %s26 = scalar_select %p23, %s25, %s16
    %p27 = scmp.ge.s32.totalorder %s26, 2
    %s28 = scalar_select %p27, 0, %s26
    %s29 = ssub.s32 %s16, %s28
    %s30 = ssub.s32 %s17, %s24
    %s31 = sor.u32 %s29, %s30
    %p32 = scmp.eq.s32.totalorder %s31, 0
    %s34 = sadd.s32 %s33, 1
    %s35 = scalar_select %p32, %s33, %s34
    %p38 = pneg %p32
    %p39 = scmp.eq.s32.totalorder %s9, 1
    %p40 = por %p38, %p39
    %p41 = scmp.ne.s32.totalorder %s33, %s36
    %p42 = scmp.eq.s32.totalorder %s9, 0
    %p43 = por %p41, %p42
    %p44 = scmp.ne.s32.totalorder %s33, %s36
    %p45 = scmp.eq.s32.totalorder %s14, 1
    %p46 = por %p44, %p45
    %p47 = scmp.ne.s32.totalorder %s36, %s37
    %p48 = scmp.eq.s32.totalorder %s14, 0
    %p49 = por %p47, %p48
    %p50 = scmp.ne.s32.totalorder %s36, %s37
    %p51 = scmp.eq.s32.totalorder %s15, 1
    %p52 = por %p50, %p51
    %p54 = scmp.ne.s32.totalorder %s37, %s53
    %p55 = scmp.eq.s32.totalorder %s15, 0
    %p56 = por %p54, %p55
    %s57 = ssub.s32 %s16, %s28
    %p58 = scmp.eq.s32.totalorder %s57, 0
    %s60 = sadd.s32 %s59, 1
    %s61 = scalar_select %p58, %s59, %s60
    %p64 = pneg %p58
    %p65 = scmp.eq.s32.totalorder %s9, 1
    %p66 = por %p64, %p65
    %p67 = scmp.ne.s32.totalorder %s59, %s62
    %p68 = scmp.eq.s32.totalorder %s9, 0
    %p69 = por %p67, %p68
    %p70 = scmp.ne.s32.totalorder %s59, %s62
    %p71 = scmp.eq.s32.totalorder %s14, 1
    %p72 = por %p70, %p71
    %p73 = scmp.ne.s32.totalorder %s62, %s63
    %p74 = scmp.eq.s32.totalorder %s14, 0
    %p75 = por %p73, %p74
    %p76 = scmp.ne.s32.totalorder %s62, %s63
    %p77 = scmp.eq.s32.totalorder %s15, 1
    %p78 = por %p76, %p77
    %p80 = scmp.ne.s32.totalorder %s63, %s79
    %p81 = scmp.eq.s32.totalorder %s15, 0
    %p82 = por %p80, %p81
    %s83 = ssub.s32 %s16, %s28
    %p84 = scmp.eq.s32.totalorder %s83, 0
    %s86 = sadd.s32 %s85, 1
    %s87 = scalar_select %p84, %s85, %s86
    %p90 = pneg %p84
    %p91 = scmp.eq.s32.totalorder %s9, 1
    %p92 = por %p90, %p91
    %p93 = scmp.ne.s32.totalorder %s85, %s88
    %p94 = scmp.eq.s32.totalorder %s9, 0
    %p95 = por %p93, %p94
    %p96 = scmp.ne.s32.totalorder %s85, %s88
    %p97 = scmp.eq.s32.totalorder %s14, 1
    %p98 = por %p96, %p97
    %p99 = scmp.ne.s32.totalorder %s88, %s89
    %p100 = scmp.eq.s32.totalorder %s14, 0
    %p101 = por %p99, %p100
    %p102 = scmp.ne.s32.totalorder %s88, %s89
    %p103 = scmp.eq.s32.totalorder %s15, 1
    %p104 = por %p102, %p103
    %p106 = scmp.ne.s32.totalorder %s89, %s105
    %p107 = scmp.eq.s32.totalorder %s15, 0
    %p108 = por %p106, %p107
    %s109 = ssub.s32 %s16, %s28
    %s110 = ssub.s32 %s17, %s24
    %s111 = sor.u32 %s109, %s110
    %p112 = scmp.eq.s32.totalorder %s111, 0
    %s114 = sadd.s32 %s113, 1
    %s115 = scalar_select %p112, %s113, %s114
    %p118 = pneg %p112
    %p119 = scmp.eq.s32.totalorder %s9, 1
    %p120 = por %p118, %p119
    %p121 = scmp.ne.s32.totalorder %s113, %s116
    %p122 = scmp.eq.s32.totalorder %s9, 0
    %p123 = por %p121, %p122
    %p124 = scmp.ne.s32.totalorder %s113, %s116
    %p125 = scmp.eq.s32.totalorder %s14, 1
    %p126 = por %p124, %p125
    %p127 = scmp.ne.s32.totalorder %s116, %s117
    %p128 = scmp.eq.s32.totalorder %s14, 0
    %p129 = por %p127, %p128
    %p130 = scmp.ne.s32.totalorder %s116, %s117
    %p131 = scmp.eq.s32.totalorder %s15, 1
    %p132 = por %p130, %p131
    %p134 = scmp.ne.s32.totalorder %s117, %s133
    %p135 = scmp.eq.s32.totalorder %s15, 0
    %p136 = por %p134, %p135
    %p137 = scmp.le.s32.totalorder 1, %s9
    %p138 = scmp.lt.s32.totalorder %s9, 3
    %p139 = pnand %p137, %p138
    %p140 = pneg %p139
    // Predicated region
    $region9: #{emb_forward.9} parent=5 // pred_check
      _
    $region10: #{emb_forward.9} parent=5 // pred_check_branch
      %142 = sbr.rel (%p139) target = $region12
    $region11: #{emb_forward.9} parent=5 // pred_region
      %s143 = ssub.s32 %s9, 1
    $region12: #{emb_forward.9} parent=5 // pred_fallthru
      _
    %p144 = scmp.lt.s32.totalorder %s9, 2
    // Predicated region
    $region13: #{emb_forward.9} parent=5 // pred_check
      %p145 = pneg %p144
    $region14: #{emb_forward.9} parent=5 // pred_check_branch
      %147 = sbr.rel (%p145) target = $region16
    $region15: #{emb_forward.9} parent=5 // pred_region
      // Predicated region
      $region17: #{emb_forward.9} parent=15 // pred_check
        %p148 = pneg %p43
      $region18: #{emb_forward.9} parent=15 // pred_check_branch
        %150 = sbr.rel (%p148) target = $region20
      $region19: #{emb_forward.9} parent=15 // pred_region
        %p151 = scmp.lt.s32.totalorder %s16, 1
        %s152 = scalar_select %p151, %s16, 1
        %p153 = scmp.lt.s32.totalorder %s17, 0
        %s154 = scalar_select %p153, %s17, 0
        %s155 = sadd.s32 %s154, %s152
        %s156 = smul.addr %s155, 4
        %s157 = scalar_lea.vmem %s0, %s156
      $region20: #{emb_forward.9} parent=15 // pred_fallthru
        _
      // Predicated region
      $region21: #{emb_forward.9} parent=15 // pred_check
        %p158 = pneg %p69
      $region22: #{emb_forward.9} parent=15 // pred_check_branch
        %160 = sbr.rel (%p158) target = $region24
      $region23: #{emb_forward.9} parent=15 // pred_region
        %p161 = scmp.lt.s32.totalorder %s16, 1
        %s162 = scalar_select %p161, %s16, 1
        %s163 = smul.addr %s162, 2
        %s164 = smul.addr %s163, 4
        %s165 = scalar_lea.vmem %s1, %s164
      $region24: #{emb_forward.9} parent=15 // pred_fallthru
        _
      // Predicated region
      $region25: #{emb_forward.9} parent=15 // pred_check
        %p166 = pneg %p95
      $region26: #{emb_forward.9} parent=15 // pred_check_branch
        %168 = sbr.rel (%p166) target = $region28
      $region27: #{emb_forward.9} parent=15 // pred_region
        %p169 = scmp.lt.s32.totalorder %s16, 1
        %s170 = scalar_select %p169, %s16, 1
        %s171 = scalar_lea.vmem %s2, %s170
      $region28: #{emb_forward.9} parent=15 // pred_fallthru
        _
    $region16: #{emb_forward.9} parent=5 // pred_fallthru
      _
    %p172 = scmp.le.s32.totalorder 1, %s9
    %p173 = scmp.lt.s32.totalorder %s9, 3
    %p174 = pnand %p172, %p173
    %p175 = pneg %p174
    // Predicated region
    $region29: #{emb_forward.9} parent=5 // pred_check
      _
    $region30: #{emb_forward.9} parent=5 // pred_check_branch
      %177 = sbr.rel (%p174) target = $region32
    $region31: #{emb_forward.9} parent=5 // pred_region
      %s178 = ssub.s32 %s9, 1
      %p179 = scmp.lt.s32.totalorder %s18, 1
      %s180 = scalar_select %p179, %s18, 1
      %p181 = scmp.lt.s32.totalorder %s19, 0
      %s182 = scalar_select %p181, %s19, 0
      %s183 = sadd.s32 %s182, %s180
      %s184 = smul.addr %s183, 4
      %s185 = scalar_lea.vmem %s0, %s184
      %p186 = pneg %p49
      %p187 = pneg %p46
      %p188 = scmp.lt.s32.totalorder %s18, 1
      %s189 = scalar_select %p188, %s18, 1
      %s190 = smul.addr %s189, 2
      %s191 = smul.addr %s190, 4
      %s192 = scalar_lea.vmem %s1, %s191
      %p193 = pneg %p75
      %p194 = pneg %p72
      %p195 = scmp.lt.s32.totalorder %s18, 1
      %s196 = scalar_select %p195, %s18, 1
      %s197 = scalar_lea.vmem %s2, %s196
      %p198 = pneg %p101
      %p199 = pneg %p98
      %p200 = pneg %p129
      %p201 = pneg %p126
      %p202 = scmp.lt.s32.totalorder %s18, 1
      %s203 = scalar_select %p202, %s18, 1
      %p204 = scmp.lt.s32.totalorder %s19, 0
      %s205 = scalar_select %p204, %s19, 0
      %s206 = sadd.s32 %s205, %s203
      %s207 = smul.addr %s206, 4
      %s208 = scalar_lea.vmem %s3, %s207
      %p209 = scmp.lt.s32.totalorder %s18, 1
      %s210 = scalar_select %p209, %s18, 1
      %p211 = scmp.lt.s32.totalorder %s19, 0
      %s212 = scalar_select %p211, %s19, 0
      %s213 = sadd.s32 %s212, %s210
      %s214 = smul.addr %s213, 4
      %s215 = scalar_lea.vmem %s0, %s214
      %p216 = scmp.lt.s32.totalorder %s18, 1
      %s217 = scalar_select %p216, %s18, 1
      %s218 = smul.addr %s217, 2
      %s219 = smul.addr %s218, 4
      %s220 = scalar_lea.vmem %s1, %s219
      %p221 = scmp.lt.s32.totalorder %s18, 1
      %s222 = scalar_select %p221, %s18, 1
      %s223 = scalar_lea.vmem %s2, %s222
      %p224 = scmp.lt.s32.totalorder %s18, 1
      %s225 = scalar_select %p224, %s18, 1
      %p226 = scmp.lt.s32.totalorder %s19, 0
      %s227 = scalar_select %p226, %s19, 0
      %s228 = sadd.s32 %s227, %s225
      %s229 = smul.addr %s228, 4
      %s230 = scalar_lea.vmem %s3, %s229
      %v232 = vld [vmem:[%s215] sm:$0xf]
      %v233 = vld [vmem:[%s220] sm:$0xf]
      %v234 = vld [vmem:[%s220 + $0x4] sm:$0xf]
      %v235 = vld [vmem:[%s223] sm:$0x1]
      %v238 = vunpack.c.l.b16 %v233
      %v239 = vunpack.c.l.b16 %v234
      %v240 = vpack.c.b16 %v239, %v238
      %242 = vmatpush.bf16.xpose.msra.mxu0 0
      %243 = vmatpush.bf16.xpose.msra.mxu0 0
      %244 = vmatpush.bf16.xpose.msra.mxu0 0
      %245 = vmatpush.bf16.xpose.msra.mxu0 0
      %246 = vmatpush.bf16.xpose.msra.mxu0 0
      %247 = vmatpush.bf16.xpose.msra.mxu0 0
      %248 = vmatpush.bf16.xpose.msra.mxu0 0
      %249 = vmatpush.bf16.xpose.msra.mxu0 %v240
      %250 = vmatmul.bf16.gmra.mxu0 %v232
      %v251 = vpop.f32.mrf.mxu0
      %v252 = vadd.f32 0.0, %v251
      %v253 = vpop.f32.mrf.mxu0
      %254 = vdwg.mxu0
      %v255 = vmul.f32 %v252, 0.088388346
      %vm256 = vcmp.gt.f32.partialorder %v235, 0.0
      %v257 = vsel %vm256, 1, 0
      %v258 = vperm.slane %v257, 0
      %vm259 = vcmp.eq.s32.totalorder %v258, 1
      %v260 = vsel %vm259, %v255, -1e+30
      %vm261 = vcmask 130048
      %v262 = vsel %vm261, %v260, -inf
      %263 = vmax.xlane.f32.xlu0 %v262
      %v264 = vpop.xlane.xlu0 %263
      %v265 = vsub.f32 %v260, %v264
      %v266 = vmul.f32 %v265, 1.442695
      %v267 = vpow.pop %v266
      %v268 = vsel %vm261, %v267, 0.0
      %269 = vadd.xlane.f32.xlu0 %v268
      %v270 = vpop.xlane.xlu0 %269
      %v271 = vrcp.pop %v270
      %v272 = vmul.f32 %v267, %v271
      %v273 = vpack.c.bf16 %v272, %v272
      %v275 = vsel %vm261, %v273, 0
      %277 = vmatpush.bf16.msra.mxu0 0
      %278 = vmatpush.bf16.msra.mxu0 0
      %279 = vmatpush.bf16.msra.mxu0 0
      %280 = vmatpush.bf16.msra.mxu0 0
      %281 = vmatpush.bf16.msra.mxu0 0
      %282 = vmatpush.bf16.msra.mxu0 0
      %283 = vmatpush.bf16.msra.mxu0 0
      %284 = vmatpush.bf16.msra.mxu0 %v240
      %285 = vmatmul.bf16.gmra.mxu0 %v275
      %v286 = vpop.f32.mrf.mxu0
      %v287 = vadd.f32 0.0, %v286
      %v288 = vpop.f32.mrf.mxu0
      %289 = vdwg.mxu0
      %v290 = vpack.c.bf16 %v287, %v287
      %291 = vst [vmem:[%s230] sm:$0xf] %v290
      %p292 = scmp.lt.s32.totalorder %s18, 1
      %s293 = scalar_select %p292, %s18, 1
      %p294 = scmp.lt.s32.totalorder %s19, 0
      %s295 = scalar_select %p294, %s19, 0
      %s296 = sadd.s32 %s295, %s293
      %s297 = smul.addr %s296, 4
      %s298 = scalar_lea.vmem %s3, %s297
      // Predicated region
      $region33: #{emb_forward.9} parent=31 // pred_check
        %p299 = pneg %p126
      $region34: #{emb_forward.9} parent=31 // pred_check_branch
        %301 = sbr.rel (%p299) target = $region36
      $region35: #{emb_forward.9} parent=31 // pred_region
        _
      $region36: #{emb_forward.9} parent=31 // pred_fallthru
        _
    $region32: #{emb_forward.9} parent=5 // pred_fallthru
      _
    %p302 = scmp.le.s32.totalorder 2, %s9
    // Predicated region
    $region37: #{emb_forward.9} parent=5 // pred_check
      %p303 = pneg %p302
    $region38: #{emb_forward.9} parent=5 // pred_check_branch
      %305 = sbr.rel (%p303) target = $region40
    $region39: #{emb_forward.9} parent=5 // pred_region
      %s306 = ssub.s32 %s9, 2
      // Predicated region
      $region41: #{emb_forward.9} parent=39 // pred_check
        %p307 = pneg %p132
      $region42: #{emb_forward.9} parent=39 // pred_check_branch
        %309 = sbr.rel (%p307) target = $region44
      $region43: #{emb_forward.9} parent=39 // pred_region
        %p310 = scmp.lt.s32.totalorder %s20, 1
        %s311 = scalar_select %p310, %s20, 1
        %p312 = scmp.lt.s32.totalorder %s21, 0
        %s313 = scalar_select %p312, %s21, 0
        %s314 = sadd.s32 %s313, %s311
        %s315 = smul.addr %s314, 4
        %s316 = scalar_lea.vmem %s3, %s315
      $region44: #{emb_forward.9} parent=39 // pred_fallthru
        _
    $region40: #{emb_forward.9} parent=5 // pred_fallthru
      _
  $region6: #{emb_forward.9} parent=0 // loop_footer
    %s13 = sadd.s32 1, %s9
  $region7: #{emb_forward.9} parent=0 // loop_footer_branch
    %8 = sbr.rel target = $region3
  $region8: #{emb_forward.9} parent=0 // loop_exit
    _

// kernel: emb_forward.7
$region0: #{emb_forward.7}
  #allocation0 [shape = 'u32[]', space=smem, size = 0x4, offset = 0x4, fixed_abs, tag = 'smem constant byte address 0x4 - core index']
  #allocation1 [shape = 'u32[72,128]{1,0:T(1,128)}', space=vmem, size = 0x9000, scoped, tag = 'internal scratch']
  %s0 = inlined_call_operand.vmem [shape: bf16[2,16,128], index: 0, kind: input, shape index: {}]
  %s1 = inlined_call_operand.vmem [shape: bf16[2,8,128], index: 1, kind: input, shape index: {}]
  %s2 = inlined_call_operand.vmem [shape: f32[2,1,8], index: 2, kind: input, shape index: {}]
  %s3 = inlined_call_operand.vmem [shape: f32[2,16,128], index: 3, kind: output, shape index: {}]
  %s4 = sld [smem:[#allocation0]]
  $region45: #{emb_forward.7} parent=0
    _
  %s6 = ssub.s32 1, %s4
  %s7 = scalar_select 0, %s6, %s4
  loop: start=0, step=1, limit=4
  $region2: #{emb_forward.7} parent=0 // loop_pre_header
    _
  $region3: #{emb_forward.7} parent=0 // loop_header
    %s9 = sphi 0, %s13
    %p10 = scmp.ge.s32.totalorder %s9, 4
    %s16 = sphi 0, %s28
    %s17 = sphi 0, %s24
    %s18 = sphi 0, %s16
    %s19 = sphi 0, %s17
    %s20 = sphi 0, %s18
    %s21 = sphi 0, %s19
    %s33 = sphi 0, %s35
    %s36 = sphi 0, %s33
    %s37 = sphi 0, %s36
    %s53 = sphi 0, %s37
    %s59 = sphi 0, %s61
    %s62 = sphi 0, %s59
    %s63 = sphi 0, %s62
    %s79 = sphi 0, %s63
    %s85 = sphi 0, %s87
    %s88 = sphi 0, %s85
    %s89 = sphi 0, %s88
    %s105 = sphi 0, %s89
    %s113 = sphi 0, %s115
    %s116 = sphi 0, %s113
    %s117 = sphi 0, %s116
    %s133 = sphi 0, %s117
  $region4: #{emb_forward.7} parent=0 // loop_header_branch
    %12 = sbr.rel (%p10) target = $region8
  $region5: #{emb_forward.7} parent=0 // loop_body
    %s14 = ssub.s32 %s9, 1
    %s15 = ssub.s32 %s9, 2
    %s22 = sadd.s32 1, %s17
    %p23 = scmp.ge.s32.totalorder %s22, 1
    %s24 = scalar_select %p23, 0, %s22
    %s25 = sadd.s32 1, %s16
    %s26 = scalar_select %p23, %s25, %s16
    %p27 = scmp.ge.s32.totalorder %s26, 2
    %s28 = scalar_select %p27, 0, %s26
    %s29 = ssub.s32 %s16, %s28
    %s30 = ssub.s32 %s17, %s24
    %s31 = sor.u32 %s29, %s30
    %p32 = scmp.eq.s32.totalorder %s31, 0
    %s34 = sadd.s32 %s33, 1
    %s35 = scalar_select %p32, %s33, %s34
    %p38 = pneg %p32
    %p39 = scmp.eq.s32.totalorder %s9, 1
    %p40 = por %p38, %p39
    %p41 = scmp.ne.s32.totalorder %s33, %s36
    %p42 = scmp.eq.s32.totalorder %s9, 0
    %p43 = por %p41, %p42
    %p44 = scmp.ne.s32.totalorder %s33, %s36
    %p45 = scmp.eq.s32.totalorder %s14, 1
    %p46 = por %p44, %p45
    %p47 = scmp.ne.s32.totalorder %s36, %s37
    %p48 = scmp.eq.s32.totalorder %s14, 0
    %p49 = por %p47, %p48
    %p50 = scmp.ne.s32.totalorder %s36, %s37
    %p51 = scmp.eq.s32.totalorder %s15, 1
    %p52 = por %p50, %p51
    %p54 = scmp.ne.s32.totalorder %s37, %s53
    %p55 = scmp.eq.s32.totalorder %s15, 0
    %p56 = por %p54, %p55
    %s57 = ssub.s32 %s16, %s28
    %p58 = scmp.eq.s32.totalorder %s57, 0
    %s60 = sadd.s32 %s59, 1
    %s61 = scalar_select %p58, %s59, %s60
    %p64 = pneg %p58
    %p65 = scmp.eq.s32.totalorder %s9, 1
    %p66 = por %p64, %p65
    %p67 = scmp.ne.s32.totalorder %s59, %s62
    %p68 = scmp.eq.s32.totalorder %s9, 0
    %p69 = por %p67, %p68
    %p70 = scmp.ne.s32.totalorder %s59, %s62
    %p71 = scmp.eq.s32.totalorder %s14, 1
    %p72 = por %p70, %p71
    %p73 = scmp.ne.s32.totalorder %s62, %s63
    %p74 = scmp.eq.s32.totalorder %s14, 0
    %p75 = por %p73, %p74
    %p76 = scmp.ne.s32.totalorder %s62, %s63
    %p77 = scmp.eq.s32.totalorder %s15, 1
    %p78 = por %p76, %p77
    %p80 = scmp.ne.s32.totalorder %s63, %s79
    %p81 = scmp.eq.s32.totalorder %s15, 0
    %p82 = por %p80, %p81
    %s83 = ssub.s32 %s16, %s28
    %p84 = scmp.eq.s32.totalorder %s83, 0
    %s86 = sadd.s32 %s85, 1
    %s87 = scalar_select %p84, %s85, %s86
    %p90 = pneg %p84
    %p91 = scmp.eq.s32.totalorder %s9, 1
    %p92 = por %p90, %p91
    %p93 = scmp.ne.s32.totalorder %s85, %s88
    %p94 = scmp.eq.s32.totalorder %s9, 0
    %p95 = por %p93, %p94
    %p96 = scmp.ne.s32.totalorder %s85, %s88
    %p97 = scmp.eq.s32.totalorder %s14, 1
    %p98 = por %p96, %p97
    %p99 = scmp.ne.s32.totalorder %s88, %s89
    %p100 = scmp.eq.s32.totalorder %s14, 0
    %p101 = por %p99, %p100
    %p102 = scmp.ne.s32.totalorder %s88, %s89
    %p103 = scmp.eq.s32.totalorder %s15, 1
    %p104 = por %p102, %p103
    %p106 = scmp.ne.s32.totalorder %s89, %s105
    %p107 = scmp.eq.s32.totalorder %s15, 0
    %p108 = por %p106, %p107
    %s109 = ssub.s32 %s16, %s28
    %s110 = ssub.s32 %s17, %s24
    %s111 = sor.u32 %s109, %s110
    %p112 = scmp.eq.s32.totalorder %s111, 0
    %s114 = sadd.s32 %s113, 1
    %s115 = scalar_select %p112, %s113, %s114
    %p118 = pneg %p112
    %p119 = scmp.eq.s32.totalorder %s9, 1
    %p120 = por %p118, %p119
    %p121 = scmp.ne.s32.totalorder %s113, %s116
    %p122 = scmp.eq.s32.totalorder %s9, 0
    %p123 = por %p121, %p122
    %p124 = scmp.ne.s32.totalorder %s113, %s116
    %p125 = scmp.eq.s32.totalorder %s14, 1
    %p126 = por %p124, %p125
    %p127 = scmp.ne.s32.totalorder %s116, %s117
    %p128 = scmp.eq.s32.totalorder %s14, 0
    %p129 = por %p127, %p128
    %p130 = scmp.ne.s32.totalorder %s116, %s117
    %p131 = scmp.eq.s32.totalorder %s15, 1
    %p132 = por %p130, %p131
    %p134 = scmp.ne.s32.totalorder %s117, %s133
    %p135 = scmp.eq.s32.totalorder %s15, 0
    %p136 = por %p134, %p135
    %p137 = scmp.le.s32.totalorder 1, %s9
    %p138 = scmp.lt.s32.totalorder %s9, 3
    %p139 = pnand %p137, %p138
    %p140 = pneg %p139
    // Predicated region
    $region9: #{emb_forward.7} parent=5 // pred_check
      _
    $region10: #{emb_forward.7} parent=5 // pred_check_branch
      %142 = sbr.rel (%p139) target = $region12
    $region11: #{emb_forward.7} parent=5 // pred_region
      %s143 = ssub.s32 %s9, 1
    $region12: #{emb_forward.7} parent=5 // pred_fallthru
      _
    %p144 = scmp.lt.s32.totalorder %s9, 2
    // Predicated region
    $region13: #{emb_forward.7} parent=5 // pred_check
      %p145 = pneg %p144
    $region14: #{emb_forward.7} parent=5 // pred_check_branch
      %147 = sbr.rel (%p145) target = $region16
    $region15: #{emb_forward.7} parent=5 // pred_region
      // Predicated region
      $region17: #{emb_forward.7} parent=15 // pred_check
        %p148 = pneg %p43
      $region18: #{emb_forward.7} parent=15 // pred_check_branch
        %150 = sbr.rel (%p148) target = $region20
      $region19: #{emb_forward.7} parent=15 // pred_region
        %s151 = smul.u32 2, %s17
        %p152 = scmp.lt.s32.totalorder %s16, 1
        %s153 = scalar_select %p152, %s16, 1
        %p154 = scmp.lt.s32.totalorder %s151, 1
        %s155 = scalar_select %p154, %s151, 1
        %s156 = smul.addr %s153, 2
        %s157 = sadd.s32 %s155, %s156
        %s158 = smul.addr %s157, 4
        %s159 = scalar_lea.vmem %s0, %s158
        %s160 = smul.u32 2, %s17
      $region20: #{emb_forward.7} parent=15 // pred_fallthru
        _
      // Predicated region
      $region21: #{emb_forward.7} parent=15 // pred_check
        %p161 = pneg %p69
      $region22: #{emb_forward.7} parent=15 // pred_check_branch
        %163 = sbr.rel (%p161) target = $region24
      $region23: #{emb_forward.7} parent=15 // pred_region
        %p164 = scmp.lt.s32.totalorder %s16, 1
        %s165 = scalar_select %p164, %s16, 1
        %s166 = smul.addr %s165, 4
        %s167 = scalar_lea.vmem %s1, %s166
      $region24: #{emb_forward.7} parent=15 // pred_fallthru
        _
      // Predicated region
      $region25: #{emb_forward.7} parent=15 // pred_check
        %p168 = pneg %p95
      $region26: #{emb_forward.7} parent=15 // pred_check_branch
        %170 = sbr.rel (%p168) target = $region28
      $region27: #{emb_forward.7} parent=15 // pred_region
        %p171 = scmp.lt.s32.totalorder %s16, 1
        %s172 = scalar_select %p171, %s16, 1
        %s173 = scalar_lea.vmem %s2, %s172
      $region28: #{emb_forward.7} parent=15 // pred_fallthru
        _
    $region16: #{emb_forward.7} parent=5 // pred_fallthru
      _
    %p174 = scmp.le.s32.totalorder 1, %s9
    %p175 = scmp.lt.s32.totalorder %s9, 3
    %p176 = pnand %p174, %p175
    %p177 = pneg %p176
    // Predicated region
    $region29: #{emb_forward.7} parent=5 // pred_check
      _
    $region30: #{emb_forward.7} parent=5 // pred_check_branch
      %179 = sbr.rel (%p176) target = $region32
    $region31: #{emb_forward.7} parent=5 // pred_region
      %s180 = ssub.s32 %s9, 1
      %s181 = smul.u32 2, %s19
      %p182 = scmp.lt.s32.totalorder %s18, 1
      %s183 = scalar_select %p182, %s18, 1
      %p184 = scmp.lt.s32.totalorder %s181, 1
      %s185 = scalar_select %p184, %s181, 1
      %s186 = smul.addr %s183, 2
      %s187 = sadd.s32 %s185, %s186
      %s188 = smul.addr %s187, 4
      %s189 = scalar_lea.vmem %s0, %s188
      %p190 = pneg %p49
      %p191 = pneg %p46
      %p192 = scmp.lt.s32.totalorder %s18, 1
      %s193 = scalar_select %p192, %s18, 1
      %s194 = smul.addr %s193, 4
      %s195 = scalar_lea.vmem %s1, %s194
      %p196 = pneg %p75
      %p197 = pneg %p72
      %p198 = scmp.lt.s32.totalorder %s18, 1
      %s199 = scalar_select %p198, %s18, 1
      %s200 = scalar_lea.vmem %s2, %s199
      %p201 = pneg %p101
      %p202 = pneg %p98
      %p203 = pneg %p129
      %p204 = pneg %p126
      %s205 = smul.u32 2, %s19
      %p206 = scmp.lt.s32.totalorder %s18, 1
      %s207 = scalar_select %p206, %s18, 1
      %p208 = scmp.lt.s32.totalorder %s205, 1
      %s209 = scalar_select %p208, %s205, 1
      %s210 = smul.addr %s207, 2
      %s211 = sadd.s32 %s209, %s210
      %s212 = smul.addr %s211, 8
      %s213 = scalar_lea.vmem %s3, %s212
      %s214 = smul.u32 2, %s19
      %p215 = scmp.lt.s32.totalorder %s18, 1
      %s216 = scalar_select %p215, %s18, 1
      %p217 = scmp.lt.s32.totalorder %s214, 1
      %s218 = scalar_select %p217, %s214, 1
      %s219 = smul.addr %s216, 2
      %s220 = sadd.s32 %s218, %s219
      %s221 = smul.addr %s220, 4
      %s222 = scalar_lea.vmem %s0, %s221
      %s223 = smul.u32 2, %s19
      %p224 = scmp.lt.s32.totalorder %s18, 1
      %s225 = scalar_select %p224, %s18, 1
      %s226 = smul.addr %s225, 4
      %s227 = scalar_lea.vmem %s1, %s226
      %p228 = scmp.lt.s32.totalorder %s18, 1
      %s229 = scalar_select %p228, %s18, 1
      %s230 = scalar_lea.vmem %s2, %s229
      %s231 = smul.u32 2, %s19
      %p232 = scmp.lt.s32.totalorder %s18, 1
      %s233 = scalar_select %p232, %s18, 1
      %p234 = scmp.lt.s32.totalorder %s231, 1
      %s235 = scalar_select %p234, %s231, 1
      %s236 = smul.addr %s233, 2
      %s237 = sadd.s32 %s235, %s236
      %s238 = smul.addr %s237, 8
      %s239 = scalar_lea.vmem %s3, %s238
      %s240 = smul.u32 2, %s19
      %v242 = vld [vmem:[%s222] sm:$0xf]
      %v243 = vld [vmem:[%s222 + $0x4] sm:$0xf]
      %v244 = vld [vmem:[%s227] sm:$0xf]
      %v245 = vld [vmem:[%s230] sm:$0x1]
      %v248 = vunpack.c.l.b16 %v242
      %v249 = vunpack.c.l.b16 %v243
      %v250 = vpack.c.b16 %v249, %v248
      %252 = vmatpush.bf16.xpose.msra.mxu0 0
      %253 = vmatpush.bf16.xpose.msra.mxu0 0
      %254 = vmatpush.bf16.xpose.msra.mxu0 0
      %255 = vmatpush.bf16.xpose.msra.mxu0 0
      %256 = vmatpush.bf16.xpose.msra.mxu0 0
      %257 = vmatpush.bf16.xpose.msra.mxu0 0
      %258 = vmatpush.bf16.xpose.msra.mxu0 0
      %259 = vmatpush.bf16.xpose.msra.mxu0 %v244
      %260 = vmatmul.bf16.gmra.mxu0 %v250
      %v261 = vpop.f32.mrf.mxu0
      %v262 = vadd.f32 0.0, %v261
      %v263 = vpop.f32.mrf.mxu0
      %v264 = vadd.f32 0.0, %v263
      %265 = vdwg.mxu0
      %v266 = vmul.f32 %v262, 0.088388346
      %v267 = vmul.f32 %v264, 0.088388346
      %vm268 = vcmp.gt.f32.partialorder %v245, 0.0
      %v269 = vsel %vm268, 1, 0
      %v270 = vperm.slane %v269, 0
      %vm271 = vcmp.eq.s32.totalorder %v270, 1
      %v272 = vsel %vm271, %v266, -1e+30
      %v273 = vsel %vm271, %v267, -1e+30
      %vm274 = vcmask 64512
      %v275 = vsel %vm274, %v272, -inf
      %276 = vmax.xlane.f32.xlu0 %v275
      %v277 = vpop.xlane.xlu0 %276
      %v278 = vsel %vm274, %v273, -inf
      %279 = vmax.xlane.f32.xlu0 %v278
      %v280 = vpop.xlane.xlu0 %279
      %v281 = vsub.f32 %v272, %v277
      %v282 = vsub.f32 %v273, %v280
      %v283 = vmul.f32 %v281, 1.442695
      %v284 = vpow.pop %v283
      %v285 = vmul.f32 %v282, 1.442695
      %v286 = vpow.pop %v285
      %v287 = vsel %vm274, %v284, 0.0
      %288 = vadd.xlane.f32.xlu0 %v287
      %v289 = vpop.xlane.xlu0 %288
      %v290 = vsel %vm274, %v286, 0.0
      %291 = vadd.xlane.f32.xlu0 %v290
      %v292 = vpop.xlane.xlu0 %291
      %v293 = vrcp.pop %v289
      %v294 = vrcp.pop %v292
      %v295 = vmul.f32 %v284, %v293
      %v296 = vmul.f32 %v286, %v294
      %v297 = vpack.c.bf16 %v296, %v295
      %v299 = vsel %vm274, %v297, 0
      %vm301 = vcmask 1043456
      %v303 = vsel %vm301, %v244, 0
      %305 = vmatpush.bf16.msra.mxu0 0
      %306 = vmatpush.bf16.msra.mxu0 0
      %307 = vmatpush.bf16.msra.mxu0 0
      %308 = vmatpush.bf16.msra.mxu0 0
      %309 = vmatpush.bf16.msra.mxu0 0
      %310 = vmatpush.bf16.msra.mxu0 0
      %311 = vmatpush.bf16.msra.mxu0 0
      %312 = vmatpush.bf16.msra.mxu0 %v303
      %313 = vmatmul.bf16.gmra.mxu0 %v299
      %v314 = vpop.f32.mrf.mxu0
      %v315 = vadd.f32 0.0, %v314
      %v316 = vpop.f32.mrf.mxu0
      %v317 = vadd.f32 0.0, %v316
      %318 = vdwg.mxu0
      %319 = vst [vmem:[%s239] sm:$0xff] %v315
      %320 = vst [vmem:[%s239 + $0x8] sm:$0xff] %v317
      %s321 = smul.u32 2, %s19
      %p322 = scmp.lt.s32.totalorder %s18, 1
      %s323 = scalar_select %p322, %s18, 1
      %p324 = scmp.lt.s32.totalorder %s321, 1
      %s325 = scalar_select %p324, %s321, 1
      %s326 = smul.addr %s323, 2
      %s327 = sadd.s32 %s325, %s326
      %s328 = smul.addr %s327, 8
      %s329 = scalar_lea.vmem %s3, %s328
      // Predicated region
      $region33: #{emb_forward.7} parent=31 // pred_check
        %p330 = pneg %p126
      $region34: #{emb_forward.7} parent=31 // pred_check_branch
        %332 = sbr.rel (%p330) target = $region36
      $region35: #{emb_forward.7} parent=31 // pred_region
        %s333 = smul.u32 2, %s19
      $region36: #{emb_forward.7} parent=31 // pred_fallthru
        _
    $region32: #{emb_forward.7} parent=5 // pred_fallthru
      _
    %p334 = scmp.le.s32.totalorder 2, %s9
    // Predicated region
    $region37: #{emb_forward.7} parent=5 // pred_check
      %p335 = pneg %p334
    $region38: #{emb_forward.7} parent=5 // pred_check_branch
      %337 = sbr.rel (%p335) target = $region40
    $region39: #{emb_forward.7} parent=5 // pred_region
      %s338 = ssub.s32 %s9, 2
      // Predicated region
      $region41: #{emb_forward.7} parent=39 // pred_check
        %p339 = pneg %p132
      $region42: #{emb_forward.7} parent=39 // pred_check_branch
        %341 = sbr.rel (%p339) target = $region44
      $region43: #{emb_forward.7} parent=39 // pred_region
        %s342 = smul.u32 2, %s21
        %p343 = scmp.lt.s32.totalorder %s20, 1
        %s344 = scalar_select %p343, %s20, 1
        %p345 = scmp.lt.s32.totalorder %s342, 1
        %s346 = scalar_select %p345, %s342, 1
        %s347 = smul.addr %s344, 2
        %s348 = sadd.s32 %s346, %s347
        %s349 = smul.addr %s348, 8
        %s350 = scalar_lea.vmem %s3, %s349
      $region44: #{emb_forward.7} parent=39 // pred_fallthru
        _
    $region40: #{emb_forward.7} parent=5 // pred_fallthru
      _
  $region6: #{emb_forward.7} parent=0 // loop_footer
    %s13 = sadd.s32 1, %s9
  $region7: #{emb_forward.7} parent=0 // loop_footer_branch
    %8 = sbr.rel target = $region3
  $region8: #{emb_forward.7} parent=0 // loop_exit
    _

// kernel: emb_forward.10
$region0: #{emb_forward.10}
  #allocation0 [shape = 'u32[]', space=smem, size = 0x4, offset = 0x4, fixed_abs, tag = 'smem constant byte address 0x4 - core index']
  #allocation1 [shape = 'u32[72,128]{1,0:T(1,128)}', space=vmem, size = 0x9000, scoped, tag = 'internal scratch']
  #allocation2 [shape = 'f32[1,1]{1,0:T(1,128)S(1)}', space=vmem, size = 0x200, scoped, tag = 'scoped memory for emb_forward.10']
  %s0 = inlined_call_operand.vmem [shape: bf16[2,16,128], index: 0, kind: input, shape index: {}]
  %s1 = inlined_call_operand.vmem [shape: bf16[2,8,128], index: 1, kind: input, shape index: {}]
  %s2 = inlined_call_operand.vmem [shape: bf16[2,8,128], index: 2, kind: input, shape index: {}]
  %s3 = inlined_call_operand.vmem [shape: f32[2,1,8], index: 3, kind: input, shape index: {}]
  %s4 = inlined_call_operand.vmem [shape: f32[2,16,1], index: 4, kind: input, shape index: {}]
  %s5 = inlined_call_operand.vmem [shape: bf16[512,128], index: 5, kind: input, shape index: {}]
  %s6 = inlined_call_operand.vmem [shape: f32[1,128], index: 6, kind: input, shape index: {}]
  %s7 = inlined_call_operand.vmem [shape: bf16[128,1], index: 7, kind: input, shape index: {}]
  %s8 = inlined_call_operand.<no memory space> [shape: f32[1,1], index: 8, kind: input, shape index: {}]
  %s9 = inlined_call_operand.vmem [shape: bf16[128,512], index: 9, kind: input, shape index: {}]
  %s10 = inlined_call_operand.vmem [shape: f32[1,512], index: 10, kind: input, shape index: {}]
  %s11 = inlined_call_operand.vmem [shape: f32[2,16,128], index: 11, kind: output, shape index: {0}]
  %s12 = inlined_call_operand.vmem [shape: f32[2,16,512], index: 12, kind: output, shape index: {1}]
  %s13 = inlined_call_operand.vmem [shape: f32[2,16,1], index: 13, kind: output, shape index: {2}]
  %14 = xla_tuple %s11, %s12, %s13
  %s15 = sld [smem:[#allocation0]]
  $region93: #{emb_forward.10} parent=0
    _
  %s17 = ssub.s32 1, %s15
  %s18 = scalar_select 0, %s17, %s15
  %v19 = vstv %s8
  %20 = vst [vmem:[#allocation2] sm:$0x1] %v19
  loop: start=0, step=1, limit=4
  $region2: #{emb_forward.10} parent=0 // loop_pre_header
    _
  $region3: #{emb_forward.10} parent=0 // loop_header
    %s22 = sphi 0, %s26
    %p23 = scmp.ge.s32.totalorder %s22, 4
    %s29 = sphi 0, %s41
    %s30 = sphi 0, %s37
    %s31 = sphi 0, %s29
    %s32 = sphi 0, %s30
    %s33 = sphi 0, %s31
    %s34 = sphi 0, %s32
    %s46 = sphi 0, %s48
    %s49 = sphi 0, %s46
    %s50 = sphi 0, %s49
    %s66 = sphi 0, %s50
    %s72 = sphi 0, %s74
    %s75 = sphi 0, %s72
    %s76 = sphi 0, %s75
    %s92 = sphi 0, %s76
    %s98 = sphi 0, %s100
    %s101 = sphi 0, %s98
    %s102 = sphi 0, %s101
    %s118 = sphi 0, %s102
    %s124 = sphi 0, %s126
    %s127 = sphi 0, %s124
    %s128 = sphi 0, %s127
    %s144 = sphi 0, %s128
    %s152 = sphi 0, %s154
    %s155 = sphi 0, %s152
    %s156 = sphi 0, %s155
    %s172 = sphi 0, %s156
    %s176 = sphi 0, %s176
    %s178 = sphi 0, %s176
    %s179 = sphi 0, %s178
    %s193 = sphi 0, %s179
    %s197 = sphi 0, %s197
    %s199 = sphi 0, %s197
    %s200 = sphi 0, %s199
    %s214 = sphi 0, %s200
    %s218 = sphi 0, %s218
    %s220 = sphi 0, %s218
    %s221 = sphi 0, %s220
    %s235 = sphi 0, %s221
    %s239 = sphi 0, %s239
    %s241 = sphi 0, %s239
    %s242 = sphi 0, %s241
    %s256 = sphi 0, %s242
    %s260 = sphi 0, %s260
    %s262 = sphi 0, %s260
    %s263 = sphi 0, %s262
    %s277 = sphi 0, %s263
    %s281 = sphi 0, %s281
    %s283 = sphi 0, %s281
    %s284 = sphi 0, %s283
    %s298 = sphi 0, %s284
    %s306 = sphi 0, %s308
    %s309 = sphi 0, %s306
    %s310 = sphi 0, %s309
    %s326 = sphi 0, %s310
    %s334 = sphi 0, %s336
    %s337 = sphi 0, %s334
    %s338 = sphi 0, %s337
    %s354 = sphi 0, %s338
    %s362 = sphi 0, %s364
    %s365 = sphi 0, %s362
    %s366 = sphi 0, %s365
    %s382 = sphi 0, %s366
  $region4: #{emb_forward.10} parent=0 // loop_header_branch
    %25 = sbr.rel (%p23) target = $region8
  $region5: #{emb_forward.10} parent=0 // loop_body
    %s27 = ssub.s32 %s22, 1
    %s28 = ssub.s32 %s22, 2
    %s35 = sadd.s32 1, %s30
    %p36 = scmp.ge.s32.totalorder %s35, 1
    %s37 = scalar_select %p36, 0, %s35
    %s38 = sadd.s32 1, %s29
    %s39 = scalar_select %p36, %s38, %s29
    %p40 = scmp.ge.s32.totalorder %s39, 2
    %s41 = scalar_select %p40, 0, %s39
    %s42 = ssub.s32 %s29, %s41
    %s43 = ssub.s32 %s30, %s37
    %s44 = sor.u32 %s42, %s43
    %p45 = scmp.eq.s32.totalorder %s44, 0
    %s47 = sadd.s32 %s46, 1
    %s48 = scalar_select %p45, %s46, %s47
    %p51 = pneg %p45
    %p52 = scmp.eq.s32.totalorder %s22, 1
    %p53 = por %p51, %p52
    %p54 = scmp.ne.s32.totalorder %s46, %s49
    %p55 = scmp.eq.s32.totalorder %s22, 0
    %p56 = por %p54, %p55
    %p57 = scmp.ne.s32.totalorder %s46, %s49
    %p58 = scmp.eq.s32.totalorder %s27, 1
    %p59 = por %p57, %p58
    %p60 = scmp.ne.s32.totalorder %s49, %s50
    %p61 = scmp.eq.s32.totalorder %s27, 0
    %p62 = por %p60, %p61
    %p63 = scmp.ne.s32.totalorder %s49, %s50
    %p64 = scmp.eq.s32.totalorder %s28, 1
    %p65 = por %p63, %p64
    %p67 = scmp.ne.s32.totalorder %s50, %s66
    %p68 = scmp.eq.s32.totalorder %s28, 0
    %p69 = por %p67, %p68
    %s70 = ssub.s32 %s29, %s41
    %p71 = scmp.eq.s32.totalorder %s70, 0
    %s73 = sadd.s32 %s72, 1
    %s74 = scalar_select %p71, %s72, %s73
    %p77 = pneg %p71
    %p78 = scmp.eq.s32.totalorder %s22, 1
    %p79 = por %p77, %p78
    %p80 = scmp.ne.s32.totalorder %s72, %s75
    %p81 = scmp.eq.s32.totalorder %s22, 0
    %p82 = por %p80, %p81
    %p83 = scmp.ne.s32.totalorder %s72, %s75
    %p84 = scmp.eq.s32.totalorder %s27, 1
    %p85 = por %p83, %p84
    %p86 = scmp.ne.s32.totalorder %s75, %s76
    %p87 = scmp.eq.s32.totalorder %s27, 0
    %p88 = por %p86, %p87
    %p89 = scmp.ne.s32.totalorder %s75, %s76
    %p90 = scmp.eq.s32.totalorder %s28, 1
    %p91 = por %p89, %p90
    %p93 = scmp.ne.s32.totalorder %s76, %s92
    %p94 = scmp.eq.s32.totalorder %s28, 0
    %p95 = por %p93, %p94
    %s96 = ssub.s32 %s29, %s41
    %p97 = scmp.eq.s32.totalorder %s96, 0
    %s99 = sadd.s32 %s98, 1
    %s100 = scalar_select %p97, %s98, %s99
    %p103 = pneg %p97
    %p104 = scmp.eq.s32.totalorder %s22, 1
    %p105 = por %p103, %p104
    %p106 = scmp.ne.s32.totalorder %s98, %s101
    %p107 = scmp.eq.s32.totalorder %s22, 0
    %p108 = por %p106, %p107
    %p109 = scmp.ne.s32.totalorder %s98, %s101
    %p110 = scmp.eq.s32.totalorder %s27, 1
    %p111 = por %p109, %p110
    %p112 = scmp.ne.s32.totalorder %s101, %s102
    %p113 = scmp.eq.s32.totalorder %s27, 0
    %p114 = por %p112, %p113
    %p115 = scmp.ne.s32.totalorder %s101, %s102
    %p116 = scmp.eq.s32.totalorder %s28, 1
    %p117 = por %p115, %p116
    %p119 = scmp.ne.s32.totalorder %s102, %s118
    %p120 = scmp.eq.s32.totalorder %s28, 0
    %p121 = por %p119, %p120
    %s122 = ssub.s32 %s29, %s41
    %p123 = scmp.eq.s32.totalorder %s122, 0
    %s125 = sadd.s32 %s124, 1
    %s126 = scalar_select %p123, %s124, %s125
    %p129 = pneg %p123
    %p130 = scmp.eq.s32.totalorder %s22, 1
    %p131 = por %p129, %p130
    %p132 = scmp.ne.s32.totalorder %s124, %s127
    %p133 = scmp.eq.s32.totalorder %s22, 0
    %p134 = por %p132, %p133
    %p135 = scmp.ne.s32.totalorder %s124, %s127
    %p136 = scmp.eq.s32.totalorder %s27, 1
    %p137 = por %p135, %p136
    %p138 = scmp.ne.s32.totalorder %s127, %s128
    %p139 = scmp.eq.s32.totalorder %s27, 0
    %p140 = por %p138, %p139
    %p141 = scmp.ne.s32.totalorder %s127, %s128
    %p142 = scmp.eq.s32.totalorder %s28, 1
    %p143 = por %p141, %p142
    %p145 = scmp.ne.s32.totalorder %s128, %s144
    %p146 = scmp.eq.s32.totalorder %s28, 0
    %p147 = por %p145, %p146
    %s148 = ssub.s32 %s29, %s41
    %s149 = ssub.s32 %s30, %s37
    %s150 = sor.u32 %s148, %s149
    %p151 = scmp.eq.s32.totalorder %s150, 0
    %s153 = sadd.s32 %s152, 1
    %s154 = scalar_select %p151, %s152, %s153
    %p157 = pneg %p151
    %p158 = scmp.eq.s32.totalorder %s22, 1
    %p159 = por %p157, %p158
    %p160 = scmp.ne.s32.totalorder %s152, %s155
    %p161 = scmp.eq.s32.totalorder %s22, 0
    %p162 = por %p160, %p161
    %p163 = scmp.ne.s32.totalorder %s152, %s155
    %p164 = scmp.eq.s32.totalorder %s27, 1
    %p165 = por %p163, %p164
    %p166 = scmp.ne.s32.totalorder %s155, %s156
    %p167 = scmp.eq.s32.totalorder %s27, 0
    %p168 = por %p166, %p167
    %p169 = scmp.ne.s32.totalorder %s155, %s156
    %p170 = scmp.eq.s32.totalorder %s28, 1
    %p171 = por %p169, %p170
    %p173 = scmp.ne.s32.totalorder %s156, %s172
    %p174 = scmp.eq.s32.totalorder %s28, 0
    %p175 = por %p173, %p174
    %s177 = sadd.s32 %s176, 1
    %p180 = scmp.eq.s32.totalorder %s22, 1
    %p181 = scmp.ne.s32.totalorder %s176, %s178
    %p182 = scmp.eq.s32.totalorder %s22, 0
    %p183 = por %p181, %p182
    %p184 = scmp.ne.s32.totalorder %s176, %s178
    %p185 = scmp.eq.s32.totalorder %s27, 1
    %p186 = por %p184, %p185
    %p187 = scmp.ne.s32.totalorder %s178, %s179
    %p188 = scmp.eq.s32.totalorder %s27, 0
    %p189 = por %p187, %p188
    %p190 = scmp.ne.s32.totalorder %s178, %s179
    %p191 = scmp.eq.s32.totalorder %s28, 1
    %p192 = por %p190, %p191
    %p194 = scmp.ne.s32.totalorder %s179, %s193
    %p195 = scmp.eq.s32.totalorder %s28, 0
    %p196 = por %p194, %p195
    %s198 = sadd.s32 %s197, 1
    %p201 = scmp.eq.s32.totalorder %s22, 1
    %p202 = scmp.ne.s32.totalorder %s197, %s199
    %p203 = scmp.eq.s32.totalorder %s22, 0
    %p204 = por %p202, %p203
    %p205 = scmp.ne.s32.totalorder %s197, %s199
    %p206 = scmp.eq.s32.totalorder %s27, 1
    %p207 = por %p205, %p206
    %p208 = scmp.ne.s32.totalorder %s199, %s200
    %p209 = scmp.eq.s32.totalorder %s27, 0
    %p210 = por %p208, %p209
    %p211 = scmp.ne.s32.totalorder %s199, %s200
    %p212 = scmp.eq.s32.totalorder %s28, 1
    %p213 = por %p211, %p212
    %p215 = scmp.ne.s32.totalorder %s200, %s214
    %p216 = scmp.eq.s32.totalorder %s28, 0
    %p217 = por %p215, %p216
    %s219 = sadd.s32 %s218, 1
    %p222 = scmp.eq.s32.totalorder %s22, 1
    %p223 = scmp.ne.s32.totalorder %s218, %s220
    %p224 = scmp.eq.s32.totalorder %s22, 0
    %p225 = por %p223, %p224
    %p226 = scmp.ne.s32.totalorder %s218, %s220
    %p227 = scmp.eq.s32.totalorder %s27, 1
    %p228 = por %p226, %p227
    %p229 = scmp.ne.s32.totalorder %s220, %s221
    %p230 = scmp.eq.s32.totalorder %s27, 0
    %p231 = por %p229, %p230
    %p232 = scmp.ne.s32.totalorder %s220, %s221
    %p233 = scmp.eq.s32.totalorder %s28, 1
    %p234 = por %p232, %p233
    %p236 = scmp.ne.s32.totalorder %s221, %s235
    %p237 = scmp.eq.s32.totalorder %s28, 0
    %p238 = por %p236, %p237
    %s240 = sadd.s32 %s239, 1
    %p243 = scmp.eq.s32.totalorder %s22, 1
    %p244 = scmp.ne.s32.totalorder %s239, %s241
    %p245 = scmp.eq.s32.totalorder %s22, 0
    %p246 = por %p244, %p245
    %p247 = scmp.ne.s32.totalorder %s239, %s241
    %p248 = scmp.eq.s32.totalorder %s27, 1
    %p249 = por %p247, %p248
    %p250 = scmp.ne.s32.totalorder %s241, %s242
    %p251 = scmp.eq.s32.totalorder %s27, 0
    %p252 = por %p250, %p251
    %p253 = scmp.ne.s32.totalorder %s241, %s242
    %p254 = scmp.eq.s32.totalorder %s28, 1
    %p255 = por %p253, %p254
    %p257 = scmp.ne.s32.totalorder %s242, %s256
    %p258 = scmp.eq.s32.totalorder %s28, 0
    %p259 = por %p257, %p258
    %s261 = sadd.s32 %s260, 1
    %p264 = scmp.eq.s32.totalorder %s22, 1
    %p265 = scmp.ne.s32.totalorder %s260, %s262
    %p266 = scmp.eq.s32.totalorder %s22, 0
    %p267 = por %p265, %p266
    %p268 = scmp.ne.s32.totalorder %s260, %s262
    %p269 = scmp.eq.s32.totalorder %s27, 1
    %p270 = por %p268, %p269
    %p271 = scmp.ne.s32.totalorder %s262, %s263
    %p272 = scmp.eq.s32.totalorder %s27, 0
    %p273 = por %p271, %p272
    %p274 = scmp.ne.s32.totalorder %s262, %s263
    %p275 = scmp.eq.s32.totalorder %s28, 1
    %p276 = por %p274, %p275
    %p278 = scmp.ne.s32.totalorder %s263, %s277
    %p279 = scmp.eq.s32.totalorder %s28, 0
    %p280 = por %p278, %p279
    %s282 = sadd.s32 %s281, 1
    %p285 = scmp.eq.s32.totalorder %s22, 1
    %p286 = scmp.ne.s32.totalorder %s281, %s283
    %p287 = scmp.eq.s32.totalorder %s22, 0
    %p288 = por %p286, %p287
    %p289 = scmp.ne.s32.totalorder %s281, %s283
    %p290 = scmp.eq.s32.totalorder %s27, 1
    %p291 = por %p289, %p290
    %p292 = scmp.ne.s32.totalorder %s283, %s284
    %p293 = scmp.eq.s32.totalorder %s27, 0
    %p294 = por %p292, %p293
    %p295 = scmp.ne.s32.totalorder %s283, %s284
    %p296 = scmp.eq.s32.totalorder %s28, 1
    %p297 = por %p295, %p296
    %p299 = scmp.ne.s32.totalorder %s284, %s298
    %p300 = scmp.eq.s32.totalorder %s28, 0
    %p301 = por %p299, %p300
    %s302 = ssub.s32 %s29, %s41
    %s303 = ssub.s32 %s30, %s37
    %s304 = sor.u32 %s302, %s303
    %p305 = scmp.eq.s32.totalorder %s304, 0
    %s307 = sadd.s32 %s306, 1
    %s308 = scalar_select %p305, %s306, %s307
    %p311 = pneg %p305
    %p312 = scmp.eq.s32.totalorder %s22, 1
    %p313 = por %p311, %p312
    %p314 = scmp.ne.s32.totalorder %s306, %s309
    %p315 = scmp.eq.s32.totalorder %s22, 0
    %p316 = por %p314, %p315
    %p317 = scmp.ne.s32.totalorder %s306, %s309
    %p318 = scmp.eq.s32.totalorder %s27, 1
    %p319 = por %p317, %p318
    %p320 = scmp.ne.s32.totalorder %s309, %s310
    %p321 = scmp.eq.s32.totalorder %s27, 0
    %p322 = por %p320, %p321
    %p323 = scmp.ne.s32.totalorder %s309, %s310
    %p324 = scmp.eq.s32.totalorder %s28, 1
    %p325 = por %p323, %p324
    %p327 = scmp.ne.s32.totalorder %s310, %s326
    %p328 = scmp.eq.s32.totalorder %s28, 0
    %p329 = por %p327, %p328
    %s330 = ssub.s32 %s29, %s41
    %s331 = ssub.s32 %s30, %s37
    %s332 = sor.u32 %s330, %s331
    %p333 = scmp.eq.s32.totalorder %s332, 0
    %s335 = sadd.s32 %s334, 1
    %s336 = scalar_select %p333, %s334, %s335
    %p339 = pneg %p333
    %p340 = scmp.eq.s32.totalorder %s22, 1
    %p341 = por %p339, %p340
    %p342 = scmp.ne.s32.totalorder %s334, %s337
    %p343 = scmp.eq.s32.totalorder %s22, 0
    %p344 = por %p342, %p343
    %p345 = scmp.ne.s32.totalorder %s334, %s337
    %p346 = scmp.eq.s32.totalorder %s27, 1
    %p347 = por %p345, %p346
    %p348 = scmp.ne.s32.totalorder %s337, %s338
    %p349 = scmp.eq.s32.totalorder %s27, 0
    %p350 = por %p348, %p349
    %p351 = scmp.ne.s32.totalorder %s337, %s338
    %p352 = scmp.eq.s32.totalorder %s28, 1
    %p353 = por %p351, %p352
    %p355 = scmp.ne.s32.totalorder %s338, %s354
    %p356 = scmp.eq.s32.totalorder %s28, 0
    %p357 = por %p355, %p356
    %s358 = ssub.s32 %s29, %s41
    %s359 = ssub.s32 %s30, %s37
    %s360 = sor.u32 %s358, %s359
    %p361 = scmp.eq.s32.totalorder %s360, 0
    %s363 = sadd.s32 %s362, 1
    %s364 = scalar_select %p361, %s362, %s363
    %p367 = pneg %p361
    %p368 = scmp.eq.s32.totalorder %s22, 1
    %p369 = por %p367, %p368
    %p370 = scmp.ne.s32.totalorder %s362, %s365
    %p371 = scmp.eq.s32.totalorder %s22, 0
    %p372 = por %p370, %p371
    %p373 = scmp.ne.s32.totalorder %s362, %s365
    %p374 = scmp.eq.s32.totalorder %s27, 1
    %p375 = por %p373, %p374
    %p376 = scmp.ne.s32.totalorder %s365, %s366
    %p377 = scmp.eq.s32.totalorder %s27, 0
    %p378 = por %p376, %p377
    %p379 = scmp.ne.s32.totalorder %s365, %s366
    %p380 = scmp.eq.s32.totalorder %s28, 1
    %p381 = por %p379, %p380
    %p383 = scmp.ne.s32.totalorder %s366, %s382
    %p384 = scmp.eq.s32.totalorder %s28, 0
    %p385 = por %p383, %p384
    %p386 = scmp.le.s32.totalorder 1, %s22
    %p387 = scmp.lt.s32.totalorder %s22, 3
    %p388 = pnand %p386, %p387
    %p389 = pneg %p388
    // Predicated region
    $region9: #{emb_forward.10} parent=5 // pred_check
      _
    $region10: #{emb_forward.10} parent=5 // pred_check_branch
      %391 = sbr.rel (%p388) target = $region12
    $region11: #{emb_forward.10} parent=5 // pred_region
      %s392 = ssub.s32 %s22, 1
      // Predicated region
      $region13: #{emb_forward.10} parent=11 // pred_check
        %p393 = pneg %p189
      $region14: #{emb_forward.10} parent=11 // pred_check_branch
        %395 = sbr.rel (%p393) target = $region16
      $region15: #{emb_forward.10} parent=11 // pred_region
        _
      $region16: #{emb_forward.10} parent=11 // pred_fallthru
        _
      // Predicated region
      $region17: #{emb_forward.10} parent=11 // pred_check
        %p396 = pneg %p210
      $region18: #{emb_forward.10} parent=11 // pred_check_branch
        %398 = sbr.rel (%p396) target = $region20
      $region19: #{emb_forward.10} parent=11 // pred_region
        _
      $region20: #{emb_forward.10} parent=11 // pred_fallthru
        _
      // Predicated region
      $region21: #{emb_forward.10} parent=11 // pred_check
        %p399 = pneg %p231
      $region22: #{emb_forward.10} parent=11 // pred_check_branch
        %401 = sbr.rel (%p399) target = $region24
      $region23: #{emb_forward.10} parent=11 // pred_region
        _
      $region24: #{emb_forward.10} parent=11 // pred_fallthru
        _
      // Predicated region
      $region25: #{emb_forward.10} parent=11 // pred_check
        %p402 = pneg %p252
      $region26: #{emb_forward.10} parent=11 // pred_check_branch
        %404 = sbr.rel (%p402) target = $region28
      $region27: #{emb_forward.10} parent=11 // pred_region
        _
      $region28: #{emb_forward.10} parent=11 // pred_fallthru
        _
      // Predicated region
      $region29: #{emb_forward.10} parent=11 // pred_check
        %p405 = pneg %p273
      $region30: #{emb_forward.10} parent=11 // pred_check_branch
        %407 = sbr.rel (%p405) target = $region32
      $region31: #{emb_forward.10} parent=11 // pred_region
        _
      $region32: #{emb_forward.10} parent=11 // pred_fallthru
        _
      // Predicated region
      $region33: #{emb_forward.10} parent=11 // pred_check
        %p408 = pneg %p294
      $region34: #{emb_forward.10} parent=11 // pred_check_branch
        %410 = sbr.rel (%p408) target = $region36
      $region35: #{emb_forward.10} parent=11 // pred_region
        _
      $region36: #{emb_forward.10} parent=11 // pred_fallthru
        _
    $region12: #{emb_forward.10} parent=5 // pred_fallthru
      _
    %p411 = scmp.lt.s32.totalorder %s22, 2
    // Predicated region
    $region37: #{emb_forward.10} parent=5 // pred_check
      %p412 = pneg %p411
    $region38: #{emb_forward.10} parent=5 // pred_check_branch
      %414 = sbr.rel (%p412) target = $region40
    $region39: #{emb_forward.10} parent=5 // pred_region
      // Predicated region
      $region41: #{emb_forward.10} parent=39 // pred_check
        %p415 = pneg %p56
      $region42: #{emb_forward.10} parent=39 // pred_check_branch
        %417 = sbr.rel (%p415) target = $region44
      $region43: #{emb_forward.10} parent=39 // pred_region
        %s418 = smul.u32 2, %s30
        %p419 = scmp.lt.s32.totalorder %s29, 1
        %s420 = scalar_select %p419, %s29, 1
        %p421 = scmp.lt.s32.totalorder %s418, 1
        %s422 = scalar_select %p421, %s418, 1
        %s423 = smul.addr %s420, 2
        %s424 = sadd.s32 %s422, %s423
        %s425 = smul.addr %s424, 4
        %s426 = scalar_lea.vmem %s0, %s425
        %s427 = smul.u32 2, %s30
      $region44: #{emb_forward.10} parent=39 // pred_fallthru
        _
      // Predicated region
      $region45: #{emb_forward.10} parent=39 // pred_check
        %p428 = pneg %p82
      $region46: #{emb_forward.10} parent=39 // pred_check_branch
        %430 = sbr.rel (%p428) target = $region48
      $region47: #{emb_forward.10} parent=39 // pred_region
        %p431 = scmp.lt.s32.totalorder %s29, 1
        %s432 = scalar_select %p431, %s29, 1
        %s433 = smul.addr %s432, 4
        %s434 = scalar_lea.vmem %s1, %s433
      $region48: #{emb_forward.10} parent=39 // pred_fallthru
        _
      // Predicated region
      $region49: #{emb_forward.10} parent=39 // pred_check
        %p435 = pneg %p108
      $region50: #{emb_forward.10} parent=39 // pred_check_branch
        %437 = sbr.rel (%p435) target = $region52
      $region51: #{emb_forward.10} parent=39 // pred_region
        %p438 = scmp.lt.s32.totalorder %s29, 1
        %s439 = scalar_select %p438, %s29, 1
        %s440 = smul.addr %s439, 4
        %s441 = scalar_lea.vmem %s2, %s440
      $region52: #{emb_forward.10} parent=39 // pred_fallthru
        _
      // Predicated region
      $region53: #{emb_forward.10} parent=39 // pred_check
        %p442 = pneg %p134
      $region54: #{emb_forward.10} parent=39 // pred_check_branch
        %444 = sbr.rel (%p442) target = $region56
      $region55: #{emb_forward.10} parent=39 // pred_region
        %p445 = scmp.lt.s32.totalorder %s29, 1
        %s446 = scalar_select %p445, %s29, 1
        %s447 = scalar_lea.vmem %s3, %s446
      $region56: #{emb_forward.10} parent=39 // pred_fallthru
        _
      // Predicated region
      $region57: #{emb_forward.10} parent=39 // pred_check
        %p448 = pneg %p162
      $region58: #{emb_forward.10} parent=39 // pred_check_branch
        %450 = sbr.rel (%p448) target = $region60
      $region59: #{emb_forward.10} parent=39 // pred_region
        %s451 = smul.u32 2, %s30
        %p452 = scmp.lt.s32.totalorder %s29, 1
        %s453 = scalar_select %p452, %s29, 1
        %p454 = scmp.lt.s32.totalorder %s451, 1
        %s455 = scalar_select %p454, %s451, 1
        %s456 = smul.addr %s453, 2
        %s457 = sadd.s32 %s455, %s456
        %s458 = smul.addr %s457, 8
        %s459 = scalar_lea.vmem %s4, %s458
        %s460 = smul.u32 2, %s30
      $region60: #{emb_forward.10} parent=39 // pred_fallthru
        _
    $region40: #{emb_forward.10} parent=5 // pred_fallthru
      _
    %p461 = scmp.le.s32.totalorder 1, %s22
    %p462 = scmp.lt.s32.totalorder %s22, 3
    %p463 = pnand %p461, %p462
    %p464 = pneg %p463
    // Predicated region
    $region61: #{emb_forward.10} parent=5 // pred_check
      _
    $region62: #{emb_forward.10} parent=5 // pred_check_branch
      %466 = sbr.rel (%p463) target = $region64
    $region63: #{emb_forward.10} parent=5 // pred_region
      %s467 = ssub.s32 %s22, 1
      %s468 = smul.u32 2, %s32
      %p469 = scmp.lt.s32.totalorder %s31, 1
      %s470 = scalar_select %p469, %s31, 1
      %p471 = scmp.lt.s32.totalorder %s468, 1
      %s472 = scalar_select %p471, %s468, 1
      %s473 = smul.addr %s470, 2
      %s474 = sadd.s32 %s472, %s473
      %s475 = smul.addr %s474, 4
      %s476 = scalar_lea.vmem %s0, %s475
      %p477 = pneg %p62
      %p478 = pneg %p59
      %p479 = scmp.lt.s32.totalorder %s31, 1
      %s480 = scalar_select %p479, %s31, 1
      %s481 = smul.addr %s480, 4
      %s482 = scalar_lea.vmem %s1, %s481
      %p483 = pneg %p88
      %p484 = pneg %p85
      %p485 = scmp.lt.s32.totalorder %s31, 1
      %s486 = scalar_select %p485, %s31, 1
      %s487 = smul.addr %s486, 4
      %s488 = scalar_lea.vmem %s2, %s487
      %p489 = pneg %p114
      %p490 = pneg %p111
      %p491 = scmp.lt.s32.totalorder %s31, 1
      %s492 = scalar_select %p491, %s31, 1
      %s493 = scalar_lea.vmem %s3, %s492
      %p494 = pneg %p140
      %p495 = pneg %p137
      %s496 = smul.u32 2, %s32
      %p497 = scmp.lt.s32.totalorder %s31, 1
      %s498 = scalar_select %p497, %s31, 1
      %p499 = scmp.lt.s32.totalorder %s496, 1
      %s500 = scalar_select %p499, %s496, 1
      %s501 = smul.addr %s498, 2
      %s502 = sadd.s32 %s500, %s501
      %s503 = smul.addr %s502, 8
      %s504 = scalar_lea.vmem %s4, %s503
      %p505 = pneg %p168
      %p506 = pneg %p165
      %p507 = pneg %p189
      %p508 = pneg %p186
      %p509 = pneg %p210
      %p510 = pneg %p207
      %p511 = pneg %p231
      %p512 = pneg %p228
      %p513 = pneg %p252
      %p514 = pneg %p249
      %p515 = pneg %p273
      %p516 = pneg %p270
      %p517 = pneg %p294
      %p518 = pneg %p291
      %p519 = pneg %p322
      %p520 = pneg %p319
      %s521 = smul.u32 2, %s32
      %p522 = scmp.lt.s32.totalorder %s31, 1
      %s523 = scalar_select %p522, %s31, 1
      %p524 = scmp.lt.s32.totalorder %s521, 1
      %s525 = scalar_select %p524, %s521, 1
      %s526 = smul.addr %s523, 2
      %s527 = sadd.s32 %s525, %s526
      %s528 = smul.addr %s527, 8
      %s529 = scalar_lea.vmem %s11, %s528
      %p530 = pneg %p350
      %p531 = pneg %p347
      %s532 = smul.u32 2, %s32
      %p533 = scmp.lt.s32.totalorder %s31, 1
      %s534 = scalar_select %p533, %s31, 1
      %p535 = scmp.lt.s32.totalorder %s532, 1
      %s536 = scalar_select %p535, %s532, 1
      %s537 = smul.addr %s536, 4
      %s538 = smul.addr %s534, 8
      %s539 = sadd.s32 %s537, %s538
      %s540 = smul.addr %s539, 8
      %s541 = scalar_lea.vmem %s12, %s540
      %p542 = pneg %p378
      %p543 = pneg %p375
      %s544 = smul.u32 2, %s32
      %p545 = scmp.lt.s32.totalorder %s31, 1
      %s546 = scalar_select %p545, %s31, 1
      %p547 = scmp.lt.s32.totalorder %s544, 1
      %s548 = scalar_select %p547, %s544, 1
      %s549 = smul.addr %s546, 2
      %s550 = sadd.s32 %s548, %s549
      %s551 = smul.addr %s550, 8
      %s552 = scalar_lea.vmem %s13, %s551
      %s553 = smul.u32 2, %s32
      %p554 = scmp.lt.s32.totalorder %s31, 1
      %s555 = scalar_select %p554, %s31, 1
      %p556 = scmp.lt.s32.totalorder %s553, 1
      %s557 = scalar_select %p556, %s553, 1
      %s558 = smul.addr %s555, 2
      %s559 = sadd.s32 %s557, %s558
      %s560 = smul.addr %s559, 4
      %s561 = scalar_lea.vmem %s0, %s560
      %s562 = smul.u32 2, %s32
      %p563 = scmp.lt.s32.totalorder %s31, 1
      %s564 = scalar_select %p563, %s31, 1
      %s565 = smul.addr %s564, 4
      %s566 = scalar_lea.vmem %s1, %s565
      %p567 = scmp.lt.s32.totalorder %s31, 1
      %s568 = scalar_select %p567, %s31, 1
      %s569 = smul.addr %s568, 4
      %s570 = scalar_lea.vmem %s2, %s569
      %p571 = scmp.lt.s32.totalorder %s31, 1
      %s572 = scalar_select %p571, %s31, 1
      %s573 = scalar_lea.vmem %s3, %s572
      %s574 = smul.u32 2, %s32
      %p575 = scmp.lt.s32.totalorder %s31, 1
      %s576 = scalar_select %p575, %s31, 1
      %p577 = scmp.lt.s32.totalorder %s574, 1
      %s578 = scalar_select %p577, %s574, 1
      %s579 = smul.addr %s576, 2
      %s580 = sadd.s32 %s578, %s579
      %s581 = smul.addr %s580, 8
      %s582 = scalar_lea.vmem %s4, %s581
      %s583 = smul.u32 2, %s32
      %s584 = smul.u32 2, %s32
      %p585 = scmp.lt.s32.totalorder %s31, 1
      %s586 = scalar_select %p585, %s31, 1
      %p587 = scmp.lt.s32.totalorder %s584, 1
      %s588 = scalar_select %p587, %s584, 1
      %s589 = smul.addr %s586, 2
      %s590 = sadd.s32 %s588, %s589
      %s591 = smul.addr %s590, 8
      %s592 = scalar_lea.vmem %s11, %s591
      %s593 = smul.u32 2, %s32
      %s594 = smul.u32 2, %s32
      %p595 = scmp.lt.s32.totalorder %s31, 1
      %s596 = scalar_select %p595, %s31, 1
      %p597 = scmp.lt.s32.totalorder %s594, 1
      %s598 = scalar_select %p597, %s594, 1
      %s599 = smul.addr %s598, 4
      %s600 = smul.addr %s596, 8
      %s601 = sadd.s32 %s599, %s600
      %s602 = smul.addr %s601, 8
      %s603 = scalar_lea.vmem %s12, %s602
      %s604 = smul.u32 2, %s32
      %s605 = smul.u32 2, %s32
      %p606 = scmp.lt.s32.totalorder %s31, 1
      %s607 = scalar_select %p606, %s31, 1
      %p608 = scmp.lt.s32.totalorder %s605, 1
      %s609 = scalar_select %p608, %s605, 1
      %s610 = smul.addr %s607, 2
      %s611 = sadd.s32 %s609, %s610
      %s612 = smul.addr %s611, 8
      %s613 = scalar_lea.vmem %s13, %s612
      %s614 = smul.u32 2, %s32
      %v616 = vld [vmem:[%s582] sm:$0xff]
      %v617 = vld [vmem:[%s582 + $0x8] sm:$0xff]
      %v618 = vld [vmem:[%s561] sm:$0xf]
      %v619 = vld [vmem:[%s561 + $0x4] sm:$0xf]
      %v620 = vld [vmem:[%s566] sm:$0xf]
      %v621 = vld [vmem:[%s570] sm:$0xf]
      %v622 = vld [vmem:[%s573] sm:$0x1]
      %v623 = vld [vmem:[%s5] sm:$0xf]
      %v624 = vld [vmem:[%s5 + $0x4] sm:$0xf]
      %v625 = vld [vmem:[%s5 + $0x8] sm:$0xf]
      %v626 = vld [vmem:[%s5 + $0xc] sm:$0xf]
      %v627 = vld [vmem:[%s5 + $0x10] sm:$0xf]
      %v628 = vld [vmem:[%s5 + $0x14] sm:$0xf]
      %v629 = vld [vmem:[%s5 + $0x18] sm:$0xf]
      %v630 = vld [vmem:[%s5 + $0x1c] sm:$0xf]
      %v631 = vld [vmem:[%s5 + $0x20] sm:$0xf]
      %v632 = vld [vmem:[%s5 + $0x24] sm:$0xf]
      %v633 = vld [vmem:[%s5 + $0x28] sm:$0xf]
      %v634 = vld [vmem:[%s5 + $0x2c] sm:$0xf]
      %v635 = vld [vmem:[%s5 + $0x30] sm:$0xf]
      %v636 = vld [vmem:[%s5 + $0x34] sm:$0xf]
      %v637 = vld [vmem:[%s5 + $0x38] sm:$0xf]
      %v638 = vld [vmem:[%s5 + $0x3c] sm:$0xf]
      %v639 = vld [vmem:[%s5 + $0x40] sm:$0xf]
      %v640 = vld [vmem:[%s5 + $0x44] sm:$0xf]
      %v641 = vld [vmem:[%s5 + $0x48] sm:$0xf]
      %v642 = vld [vmem:[%s5 + $0x4c] sm:$0xf]
      %v643 = vld [vmem:[%s5 + $0x50] sm:$0xf]
      %v644 = vld [vmem:[%s5 + $0x54] sm:$0xf]
      %v645 = vld [vmem:[%s5 + $0x58] sm:$0xf]
      %v646 = vld [vmem:[%s5 + $0x5c] sm:$0xf]
      %v647 = vld [vmem:[%s5 + $0x60] sm:$0xf]
      %v648 = vld [vmem:[%s5 + $0x64] sm:$0xf]
      %v649 = vld [vmem:[%s5 + $0x68] sm:$0xf]
      %v650 = vld [vmem:[%s5 + $0x6c] sm:$0xf]
      %v651 = vld [vmem:[%s5 + $0x70] sm:$0xf]
      %v652 = vld [vmem:[%s5 + $0x74] sm:$0xf]
      %v653 = vld [vmem:[%s5 + $0x78] sm:$0xf]
      %v654 = vld [vmem:[%s5 + $0x7c] sm:$0xf]
      %v655 = vld [vmem:[%s5 + $0x80] sm:$0xf]
      %v656 = vld [vmem:[%s5 + $0x84] sm:$0xf]
      %v657 = vld [vmem:[%s5 + $0x88] sm:$0xf]
      %v658 = vld [vmem:[%s5 + $0x8c] sm:$0xf]
      %v659 = vld [vmem:[%s5 + $0x90] sm:$0xf]
      %v660 = vld [vmem:[%s5 + $0x94] sm:$0xf]
      %v661 = vld [vmem:[%s5 + $0x98] sm:$0xf]
      %v662 = vld [vmem:[%s5 + $0x9c] sm:$0xf]
      %v663 = vld [vmem:[%s5 + $0xa0] sm:$0xf]
      %v664 = vld [vmem:[%s5 + $0xa4] sm:$0xf]
      %v665 = vld [vmem:[%s5 + $0xa8] sm:$0xf]
      %v666 = vld [vmem:[%s5 + $0xac] sm:$0xf]
      %v667 = vld [vmem:[%s5 + $0xb0] sm:$0xf]
      %v668 = vld [vmem:[%s5 + $0xb4] sm:$0xf]
      %v669 = vld [vmem:[%s5 + $0xb8] sm:$0xf]
      %v670 = vld [vmem:[%s5 + $0xbc] sm:$0xf]
      %v671 = vld [vmem:[%s5 + $0xc0] sm:$0xf]
      %v672 = vld [vmem:[%s5 + $0xc4] sm:$0xf]
      %v673 = vld [vmem:[%s5 + $0xc8] sm:$0xf]
      %v674 = vld [vmem:[%s5 + $0xcc] sm:$0xf]
      %v675 = vld [vmem:[%s5 + $0xd0] sm:$0xf]
      %v676 = vld [vmem:[%s5 + $0xd4] sm:$0xf]
      %v677 = vld [vmem:[%s5 + $0xd8] sm:$0xf]
      %v678 = vld [vmem:[%s5 + $0xdc] sm:$0xf]
      %v679 = vld [vmem:[%s5 + $0xe0] sm:$0xf]
      %v680 = vld [vmem:[%s5 + $0xe4] sm:$0xf]
      %v681 = vld [vmem:[%s5 + $0xe8] sm:$0xf]
      %v682 = vld [vmem:[%s5 + $0xec] sm:$0xf]
      %v683 = vld [vmem:[%s5 + $0xf0] sm:$0xf]
      %v684 = vld [vmem:[%s5 + $0xf4] sm:$0xf]
      %v685 = vld [vmem:[%s5 + $0xf8] sm:$0xf]
      %v686 = vld [vmem:[%s5 + $0xfc] sm:$0xf]
      %v687 = vld [vmem:[%s6] sm:$0x1]
      %v690 = vunpack.c.l.b16 %v618
      %v691 = vunpack.c.l.b16 %v619
      %v692 = vpack.c.b16 %v691, %v690
      %694 = vmatpush.bf16.xpose.msra.mxu0 0
      %695 = vmatpush.bf16.xpose.msra.mxu0 0
      %696 = vmatpush.bf16.xpose.msra.mxu0 0
      %697 = vmatpush.bf16.xpose.msra.mxu0 0
      %698 = vmatpush.bf16.xpose.msra.mxu0 0
      %699 = vmatpush.bf16.xpose.msra.mxu0 0
      %700 = vmatpush.bf16.xpose.msra.mxu0 0
      %701 = vmatpush.bf16.xpose.msra.mxu0 %v620
      %702 = vmatmul.bf16.gmra.mxu0 %v692
      %v703 = vpop.f32.mrf.mxu0
      %v704 = vadd.f32 0.0, %v703
      %v705 = vpop.f32.mrf.mxu0
      %v706 = vadd.f32 0.0, %v705
      %707 = vdwg.mxu0
      %v708 = vmul.f32 %v704, 0.088388346
      %v709 = vmul.f32 %v706, 0.088388346
      %vm710 = vcmp.gt.f32.partialorder %v622, 0.0
      %v711 = vsel %vm710, 1, 0
      %v712 = vperm.slane %v711, 0
      %vm713 = vcmp.eq.s32.totalorder %v712, 1
      %v714 = vsel %vm713, %v708, -1e+30
      %v715 = vsel %vm713, %v709, -1e+30
      %vm716 = vcmask 64512
      %v717 = vsel %vm716, %v714, -inf
      %718 = vmax.xlane.f32.xlu0 %v717
      %v719 = vpop.xlane.xlu0 %718
      %v720 = vsel %vm716, %v715, -inf
      %721 = vmax.xlane.f32.xlu0 %v720
      %v722 = vpop.xlane.xlu0 %721
      %v723 = vsub.f32 %v714, %v719
      %v724 = vsub.f32 %v715, %v722
      %v725 = vmul.f32 %v723, 1.442695
      %v726 = vpow.pop %v725
      %v727 = vmul.f32 %v724, 1.442695
      %v728 = vpow.pop %v727
      %v729 = vsel %vm716, %v726, 0.0
      %730 = vadd.xlane.f32.xlu0 %v729
      %v731 = vpop.xlane.xlu0 %730
      %v732 = vsel %vm716, %v728, 0.0
      %733 = vadd.xlane.f32.xlu0 %v732
      %v734 = vpop.xlane.xlu0 %733
      %v735 = vrcp.pop %v731
      %v736 = vrcp.pop %v734
      %v737 = vmul.f32 %v726, %v735
      %v738 = vmul.f32 %v728, %v736
      %v739 = vpack.c.bf16 %v738, %v737
      %v741 = vsel %vm716, %v739, 0
      %vm743 = vcmask 1043456
      %v745 = vsel %vm743, %v620, 0
      %747 = vmatpush.bf16.msra.mxu0 0
      %748 = vmatpush.bf16.msra.mxu0 0
      %749 = vmatpush.bf16.msra.mxu0 0
      %750 = vmatpush.bf16.msra.mxu0 0
      %751 = vmatpush.bf16.msra.mxu0 0
      %752 = vmatpush.bf16.msra.mxu0 0
      %753 = vmatpush.bf16.msra.mxu0 0
      %754 = vmatpush.bf16.msra.mxu0 %v745
      %755 = vmatmul.bf16.gmra.mxu0 %v741
      %v756 = vpop.f32.mrf.mxu0
      %v757 = vadd.f32 0.0, %v756
      %v758 = vpop.f32.mrf.mxu0
      %v759 = vadd.f32 0.0, %v758
      %760 = vdwg.mxu0
      %v762 = vsel %vm743, %v621, 0
      %764 = vmatpush.bf16.msra.mxu0 0
      %765 = vmatpush.bf16.msra.mxu0 0
      %766 = vmatpush.bf16.msra.mxu0 0
      %767 = vmatpush.bf16.msra.mxu0 0
      %768 = vmatpush.bf16.msra.mxu0 0
      %769 = vmatpush.bf16.msra.mxu0 0
      %770 = vmatpush.bf16.msra.mxu0 0
      %771 = vmatpush.bf16.msra.mxu0 %v762
      %772 = vmatmul.bf16.gmra.mxu0 %v741
      %v773 = vpop.f32.mrf.mxu0
      %v774 = vadd.f32 0.0, %v773
      %v775 = vpop.f32.mrf.mxu0
      %v776 = vadd.f32 0.0, %v775
      %777 = vdwg.mxu0
      %v778 = vunpack.c.l.bf16 %v618
      %v779 = vunpack.c.l.bf16 %v619
      %v780 = vmul.f32 %v778, %v757
      %v781 = vmul.f32 %v779, %v759
      %v782 = vmul.f32 %v778, %v774
      %v783 = vmul.f32 %v779, %v776
      %v784 = vpack.c.bf16 %v779, %v778
      %v785 = vpack.c.bf16 %v759, %v757
      %v786 = vpack.c.bf16 %v781, %v780
      %v787 = vpack.c.bf16 %v783, %v782
      %v789 = vperm.slane %v687, 0
      %v855 = vunpack.c.l.b16 %v623
      %v856 = vunpack.c.l.b16 %v624
      %v857 = vunpack.c.l.b16 %v625
      %v858 = vunpack.c.l.b16 %v626
      %v859 = vunpack.c.l.b16 %v627
      %v860 = vunpack.c.l.b16 %v628
      %v861 = vunpack.c.l.b16 %v629
      %v862 = vunpack.c.l.b16 %v630
      %v863 = vunpack.c.l.b16 %v631
      %v864 = vunpack.c.l.b16 %v632
      %v865 = vunpack.c.l.b16 %v633
      %v866 = vunpack.c.l.b16 %v634
      %v867 = vunpack.c.l.b16 %v635
      %v868 = vunpack.c.l.b16 %v636
      %v869 = vunpack.c.l.b16 %v637
      %v870 = vunpack.c.l.b16 %v638
      %v871 = vunpack.c.l.b16 %v639
      %v872 = vunpack.c.l.b16 %v640
      %v873 = vunpack.c.l.b16 %v641
      %v874 = vunpack.c.l.b16 %v642
      %v875 = vunpack.c.l.b16 %v643
      %v876 = vunpack.c.l.b16 %v644
      %v877 = vunpack.c.l.b16 %v645
      %v878 = vunpack.c.l.b16 %v646
      %v879 = vunpack.c.l.b16 %v647
      %v880 = vunpack.c.l.b16 %v648
      %v881 = vunpack.c.l.b16 %v649
      %v882 = vunpack.c.l.b16 %v650
      %v883 = vunpack.c.l.b16 %v651
      %v884 = vunpack.c.l.b16 %v652
      %v885 = vunpack.c.l.b16 %v653
      %v886 = vunpack.c.l.b16 %v654
      %v887 = vunpack.c.l.b16 %v655
      %v888 = vunpack.c.l.b16 %v656
      %v889 = vunpack.c.l.b16 %v657
      %v890 = vunpack.c.l.b16 %v658
      %v891 = vunpack.c.l.b16 %v659
      %v892 = vunpack.c.l.b16 %v660
      %v893 = vunpack.c.l.b16 %v661
      %v894 = vunpack.c.l.b16 %v662
      %v895 = vunpack.c.l.b16 %v663
      %v896 = vunpack.c.l.b16 %v664
      %v897 = vunpack.c.l.b16 %v665
      %v898 = vunpack.c.l.b16 %v666
      %v899 = vunpack.c.l.b16 %v667
      %v900 = vunpack.c.l.b16 %v668
      %v901 = vunpack.c.l.b16 %v669
      %v902 = vunpack.c.l.b16 %v670
      %v903 = vunpack.c.l.b16 %v671
      %v904 = vunpack.c.l.b16 %v672
      %v905 = vunpack.c.l.b16 %v673
      %v906 = vunpack.c.l.b16 %v674
      %v907 = vunpack.c.l.b16 %v675
      %v908 = vunpack.c.l.b16 %v676
      %v909 = vunpack.c.l.b16 %v677
      %v910 = vunpack.c.l.b16 %v678
      %v911 = vunpack.c.l.b16 %v679
      %v912 = vunpack.c.l.b16 %v680
      %v913 = vunpack.c.l.b16 %v681
      %v914 = vunpack.c.l.b16 %v682
      %v915 = vunpack.c.l.b16 %v683
      %v916 = vunpack.c.l.b16 %v684
      %v917 = vunpack.c.l.b16 %v685
      %v918 = vunpack.c.l.b16 %v686
      %v919 = vpack.c.b16 %v856, %v855
      %v920 = vpack.c.b16 %v858, %v857
      %v921 = vpack.c.b16 %v860, %v859
      %v922 = vpack.c.b16 %v862, %v861
      %v923 = vpack.c.b16 %v864, %v863
      %v924 = vpack.c.b16 %v866, %v865
      %v925 = vpack.c.b16 %v868, %v867
      %v926 = vpack.c.b16 %v870, %v869
      %v927 = vpack.c.b16 %v872, %v871
      %v928 = vpack.c.b16 %v874, %v873
      %v929 = vpack.c.b16 %v876, %v875
      %v930 = vpack.c.b16 %v878, %v877
      %v931 = vpack.c.b16 %v880, %v879
      %v932 = vpack.c.b16 %v882, %v881
      %v933 = vpack.c.b16 %v884, %v883
      %v934 = vpack.c.b16 %v886, %v885
      %v935 = vpack.c.b16 %v888, %v887
      %v936 = vpack.c.b16 %v890, %v889
      %v937 = vpack.c.b16 %v892, %v891
      %v938 = vpack.c.b16 %v894, %v893
      %v939 = vpack.c.b16 %v896, %v895
      %v940 = vpack.c.b16 %v898, %v897
      %v941 = vpack.c.b16 %v900, %v899
      %v942 = vpack.c.b16 %v902, %v901
      %v943 = vpack.c.b16 %v904, %v903
      %v944 = vpack.c.b16 %v906, %v905
      %v945 = vpack.c.b16 %v908, %v907
      %v946 = vpack.c.b16 %v910, %v909
      %v947 = vpack.c.b16 %v912, %v911
      %v948 = vpack.c.b16 %v914, %v913
      %v949 = vpack.c.b16 %v916, %v915
      %v950 = vpack.c.b16 %v918, %v917
      %983 = vmatpush.bf16.msra.mxu0 %v926
      %984 = vmatpush.bf16.msra.mxu0 %v925
      %985 = vmatpush.bf16.msra.mxu0 %v924
      %986 = vmatpush.bf16.msra.mxu0 %v923
      %987 = vmatpush.bf16.msra.mxu0 %v922
      %988 = vmatpush.bf16.msra.mxu0 %v921
      %989 = vmatpush.bf16.msra.mxu0 %v920
      %990 = vmatpush.bf16.msra.mxu0 %v919
      %991 = vmatmul.bf16.gmra.mxu0 %v784
      %v992 = vpop.f32.mrf.mxu0
      %v993 = vadd.f32 %v789, %v992
      %v994 = vpop.f32.mrf.mxu0
      %v995 = vadd.f32 %v789, %v994
      %996 = vdwg.mxu0
      %997 = vmatpush.bf16.msra.mxu0 %v934
      %998 = vmatpush.bf16.msra.mxu0 %v933
      %999 = vmatpush.bf16.msra.mxu0 %v932
      %1000 = vmatpush.bf16.msra.mxu0 %v931
      %1001 = vmatpush.bf16.msra.mxu0 %v930
      %1002 = vmatpush.bf16.msra.mxu0 %v929
      %1003 = vmatpush.bf16.msra.mxu0 %v928
      %1004 = vmatpush.bf16.msra.mxu0 %v927
      %1005 = vmatmul.bf16.gmra.mxu0 %v785
      %v1006 = vpop.f32.mrf.mxu0
      %v1007 = vadd.f32 %v993, %v1006
      %v1008 = vpop.f32.mrf.mxu0
      %v1009 = vadd.f32 %v995, %v1008
      %1010 = vdwg.mxu0
      %1011 = vmatpush.bf16.msra.mxu0 %v942
      %1012 = vmatpush.bf16.msra.mxu0 %v941
      %1013 = vmatpush.bf16.msra.mxu0 %v940
      %1014 = vmatpush.bf16.msra.mxu0 %v939
      %1015 = vmatpush.bf16.msra.mxu0 %v938
      %1016 = vmatpush.bf16.msra.mxu0 %v937
      %1017 = vmatpush.bf16.msra.mxu0 %v936
      %1018 = vmatpush.bf16.msra.mxu0 %v935
      %1019 = vmatmul.bf16.gmra.mxu0 %v786
      %v1020 = vpop.f32.mrf.mxu0
      %v1021 = vadd.f32 %v1007, %v1020
      %v1022 = vpop.f32.mrf.mxu0
      %v1023 = vadd.f32 %v1009, %v1022
      %1024 = vdwg.mxu0
      %1025 = vmatpush.bf16.msra.mxu0 %v950
      %1026 = vmatpush.bf16.msra.mxu0 %v949
      %1027 = vmatpush.bf16.msra.mxu0 %v948
      %1028 = vmatpush.bf16.msra.mxu0 %v947
      %1029 = vmatpush.bf16.msra.mxu0 %v946
      %1030 = vmatpush.bf16.msra.mxu0 %v945
      %1031 = vmatpush.bf16.msra.mxu0 %v944
      %1032 = vmatpush.bf16.msra.mxu0 %v943
      %1033 = vmatmul.bf16.gmra.mxu0 %v787
      %v1034 = vpop.f32.mrf.mxu0
      %v1035 = vadd.f32 %v1021, %v1034
      %v1036 = vpop.f32.mrf.mxu0
      %v1037 = vadd.f32 %v1023, %v1036
      %1038 = vdwg.mxu0
      %1040 = vset.pattern.permute.xlu0 0
      %1041 = vperm.xlu0 %1040, %v616
      %v1042 = vpop.permute.xlu0 %1041
      %1045 = vset.pattern.permute.xlu0 0
      %1046 = vperm.xlu0 %1045, %v617
      %v1047 = vpop.permute.xlu0 %1046
      %v1049 = vmul.f32 %v1035, %v1042
      %v1050 = vmul.f32 %v1037, %v1047
      %v1051 = vpack.c.bf16 %v1050, %v1049
      %v1052 = vld [vmem:[%s7] sm:$0xf]
      %v1053 = vld [vmem:[%s7 + $0x4] sm:$0xf]
      %v1054 = vld [vmem:[%s7 + $0x8] sm:$0xf]
      %v1055 = vld [vmem:[%s7 + $0xc] sm:$0xf]
      %v1056 = vld [vmem:[%s7 + $0x10] sm:$0xf]
      %v1057 = vld [vmem:[%s7 + $0x14] sm:$0xf]
      %v1058 = vld [vmem:[%s7 + $0x18] sm:$0xf]
      %v1059 = vld [vmem:[%s7 + $0x1c] sm:$0xf]
      %v1060 = vld [vmem:[%s7 + $0x20] sm:$0xf]
      %v1061 = vld [vmem:[%s7 + $0x24] sm:$0xf]
      %v1062 = vld [vmem:[%s7 + $0x28] sm:$0xf]
      %v1063 = vld [vmem:[%s7 + $0x2c] sm:$0xf]
      %v1064 = vld [vmem:[%s7 + $0x30] sm:$0xf]
      %v1065 = vld [vmem:[%s7 + $0x34] sm:$0xf]
      %v1066 = vld [vmem:[%s7 + $0x38] sm:$0xf]
      %v1067 = vld [vmem:[%s7 + $0x3c] sm:$0xf]
      %v1068 = vld [vmem:[#allocation2] sm:$0x1]
      %v1070 = vperm.slane %v1068, 0
      %v1088 = vunpack.c.l.b16 %v1052
      %v1089 = vunpack.c.l.b16 %v1053
      %v1090 = vunpack.c.l.b16 %v1054
      %v1091 = vunpack.c.l.b16 %v1055
      %v1092 = vunpack.c.l.b16 %v1056
      %v1093 = vunpack.c.l.b16 %v1057
      %v1094 = vunpack.c.l.b16 %v1058
      %v1095 = vunpack.c.l.b16 %v1059
      %v1096 = vunpack.c.l.b16 %v1060
      %v1097 = vunpack.c.l.b16 %v1061
      %v1098 = vunpack.c.l.b16 %v1062
      %v1099 = vunpack.c.l.b16 %v1063
      %v1100 = vunpack.c.l.b16 %v1064
      %v1101 = vunpack.c.l.b16 %v1065
      %v1102 = vunpack.c.l.b16 %v1066
      %v1103 = vunpack.c.l.b16 %v1067
      %v1104 = vpack.c.b16 %v1089, %v1088
      %v1105 = vpack.c.b16 %v1091, %v1090
      %v1106 = vpack.c.b16 %v1093, %v1092
      %v1107 = vpack.c.b16 %v1095, %v1094
      %v1108 = vpack.c.b16 %v1097, %v1096
      %v1109 = vpack.c.b16 %v1099, %v1098
      %v1110 = vpack.c.b16 %v1101, %v1100
      %v1111 = vpack.c.b16 %v1103, %v1102
      %1120 = vmatpush.bf16.msra.mxu0 %v1111
      %1121 = vmatpush.bf16.msra.mxu0 %v1110
      %1122 = vmatpush.bf16.msra.mxu0 %v1109
      %1123 = vmatpush.bf16.msra.mxu0 %v1108
      %1124 = vmatpush.bf16.msra.mxu0 %v1107
      %1125 = vmatpush.bf16.msra.mxu0 %v1106
      %1126 = vmatpush.bf16.msra.mxu0 %v1105
      %1127 = vmatpush.bf16.msra.mxu0 %v1104
      %1128 = vmatmul.bf16.gmra.mxu0 %v1051
      %v1129 = vpop.f32.mrf.mxu0
      %v1130 = vadd.f32 %v1070, %v1129
      %v1131 = vpop.f32.mrf.mxu0
      %v1132 = vadd.f32 %v1070, %v1131
      %1133 = vdwg.mxu0
      %v1134 = vsub.f32 1.0, %v616
      %v1135 = vsub.f32 1.0, %v617
      %v1136 = vmul.f32 %v1134, -1e+30
      %v1137 = vmul.f32 %v1135, -1e+30
      %v1138 = vadd.f32 %v1130, %v1136
      %v1139 = vadd.f32 %v1132, %v1137
      %v1140 = vxor.u32 %v1138, 2147483648
      %v1141 = vxor.u32 %v1139, 2147483648
      %v1142 = vmul.f32 %v1140, 1.442695
      %v1143 = vpow.pop %v1142
      %v1144 = vmul.f32 %v1141, 1.442695
      %v1145 = vpow.pop %v1144
      %v1146 = vadd.f32 %v1143, 1.0
      %v1147 = vadd.f32 %v1145, 1.0
      %v1148 = vrcp.pop %v1146
      %v1149 = vmul.f32 %v1146, %v1148
      %v1150 = vsub.f32 1.0, %v1149
      %v1151 = vmul.f32 %v1148, %v1150
      %v1152 = vadd.f32 %v1148, %v1151
      %vm1153 = vweird.f32 %v1146
      %vm1154 = vweird.f32 %v1148
      %vm1155 = vmor %vm1153, %vm1154
      %v1156 = vsel %vm1155, %v1148, %v1152
      %v1157 = vand.u32 2147483647, %v1146
      %vm1158 = vcmp.eq.f32.partialorder %v1157, 8.507059e+37
      %v1159 = vand.u32 %v1146, 2147483648
      %v1160 = vor.u32 1.1754944e-38, %v1159
      %v1161 = vsel %vm1158, %v1160, %v1156
      %v1162 = vmul.f32 1.0, %v1161
      %v1163 = vrcp.pop %v1147
      %v1164 = vmul.f32 %v1147, %v1163
      %v1165 = vsub.f32 1.0, %v1164
      %v1166 = vmul.f32 %v1163, %v1165
      %v1167 = vadd.f32 %v1163, %v1166
      %vm1168 = vweird.f32 %v1147
      %vm1169 = vweird.f32 %v1163
      %vm1170 = vmor %vm1168, %vm1169
      %v1171 = vsel %vm1170, %v1163, %v1167
      %v1172 = vand.u32 2147483647, %v1147
      %vm1173 = vcmp.eq.f32.partialorder %v1172, 8.507059e+37
      %v1174 = vand.u32 %v1147, 2147483648
      %v1175 = vor.u32 1.1754944e-38, %v1174
      %v1176 = vsel %vm1173, %v1175, %v1171
      %v1177 = vmul.f32 1.0, %v1176
      %1179 = vset.pattern.permute.xlu0 0
      %1180 = vperm.xlu0 %1179, %v1162
      %v1181 = vpop.permute.xlu0 %1180
      %1184 = vset.pattern.permute.xlu0 0
      %1185 = vperm.xlu0 %1184, %v1177
      %v1186 = vpop.permute.xlu0 %1185
      %v1188 = vmul.f32 %v1049, %v1181
      %v1189 = vmul.f32 %v1050, %v1186
      %v1190 = vpack.c.bf16 %v1189, %v1188
      %v1191 = vld [vmem:[%s9] sm:$0xff]
      %v1192 = vld [vmem:[%s9 + $0x8] sm:$0xff]
      %v1193 = vld [vmem:[%s9 + $0x10] sm:$0xff]
      %v1194 = vld [vmem:[%s9 + $0x18] sm:$0xff]
      %v1195 = vld [vmem:[%s9 + $0x20] sm:$0xff]
      %v1196 = vld [vmem:[%s9 + $0x28] sm:$0xff]
      %v1197 = vld [vmem:[%s9 + $0x30] sm:$0xff]
      %v1198 = vld [vmem:[%s9 + $0x38] sm:$0xff]
      %v1199 = vld [vmem:[%s9 + $0x40] sm:$0xff]
      %v1200 = vld [vmem:[%s9 + $0x48] sm:$0xff]
      %v1201 = vld [vmem:[%s9 + $0x50] sm:$0xff]
      %v1202 = vld [vmem:[%s9 + $0x58] sm:$0xff]
      %v1203 = vld [vmem:[%s9 + $0x60] sm:$0xff]
      %v1204 = vld [vmem:[%s9 + $0x68] sm:$0xff]
      %v1205 = vld [vmem:[%s9 + $0x70] sm:$0xff]
      %v1206 = vld [vmem:[%s9 + $0x78] sm:$0xff]
      %v1207 = vld [vmem:[%s9 + $0x80] sm:$0xff]
      %v1208 = vld [vmem:[%s9 + $0x88] sm:$0xff]
      %v1209 = vld [vmem:[%s9 + $0x90] sm:$0xff]
      %v1210 = vld [vmem:[%s9 + $0x98] sm:$0xff]
      %v1211 = vld [vmem:[%s9 + $0xa0] sm:$0xff]
      %v1212 = vld [vmem:[%s9 + $0xa8] sm:$0xff]
      %v1213 = vld [vmem:[%s9 + $0xb0] sm:$0xff]
      %v1214 = vld [vmem:[%s9 + $0xb8] sm:$0xff]
      %v1215 = vld [vmem:[%s9 + $0xc0] sm:$0xff]
      %v1216 = vld [vmem:[%s9 + $0xc8] sm:$0xff]
      %v1217 = vld [vmem:[%s9 + $0xd0] sm:$0xff]
      %v1218 = vld [vmem:[%s9 + $0xd8] sm:$0xff]
      %v1219 = vld [vmem:[%s9 + $0xe0] sm:$0xff]
      %v1220 = vld [vmem:[%s9 + $0xe8] sm:$0xff]
      %v1221 = vld [vmem:[%s9 + $0xf0] sm:$0xff]
      %v1222 = vld [vmem:[%s9 + $0xf8] sm:$0xff]
      %v1223 = vld [vmem:[%s10] sm:$0xf]
      %v1225 = vperm.slane %v1223, 0
      %v1226 = vperm.slane %v1223, 1
      %v1227 = vperm.slane %v1223, 2
      %v1228 = vperm.slane %v1223, 3
      %v1265 = vunpack.c.l.b16 %v1191
      %v1266 = vunpack.c.h.b16 %v1191
      %v1267 = vunpack.c.l.b16 %v1192
      %v1268 = vunpack.c.h.b16 %v1192
      %v1269 = vunpack.c.l.b16 %v1193
      %v1270 = vunpack.c.h.b16 %v1193
      %v1271 = vunpack.c.l.b16 %v1194
      %v1272 = vunpack.c.h.b16 %v1194
      %v1273 = vunpack.c.l.b16 %v1195
      %v1274 = vunpack.c.h.b16 %v1195
      %v1275 = vunpack.c.l.b16 %v1196
      %v1276 = vunpack.c.h.b16 %v1196
      %v1277 = vunpack.c.l.b16 %v1197
      %v1278 = vunpack.c.h.b16 %v1197
      %v1279 = vunpack.c.l.b16 %v1198
      %v1280 = vunpack.c.h.b16 %v1198
      %v1281 = vunpack.c.l.b16 %v1199
      %v1282 = vunpack.c.h.b16 %v1199
      %v1283 = vunpack.c.l.b16 %v1200
      %v1284 = vunpack.c.h.b16 %v1200
      %v1285 = vunpack.c.l.b16 %v1201
      %v1286 = vunpack.c.h.b16 %v1201
      %v1287 = vunpack.c.l.b16 %v1202
      %v1288 = vunpack.c.h.b16 %v1202
      %v1289 = vunpack.c.l.b16 %v1203
      %v1290 = vunpack.c.h.b16 %v1203
      %v1291 = vunpack.c.l.b16 %v1204
      %v1292 = vunpack.c.h.b16 %v1204
      %v1293 = vunpack.c.l.b16 %v1205
      %v1294 = vunpack.c.h.b16 %v1205
      %v1295 = vunpack.c.l.b16 %v1206
      %v1296 = vunpack.c.h.b16 %v1206
      %v1297 = vunpack.c.l.b16 %v1207
      %v1298 = vunpack.c.h.b16 %v1207
      %v1299 = vunpack.c.l.b16 %v1208
      %v1300 = vunpack.c.h.b16 %v1208
      %v1301 = vunpack.c.l.b16 %v1209
      %v1302 = vunpack.c.h.b16 %v1209
      %v1303 = vunpack.c.l.b16 %v1210
      %v1304 = vunpack.c.h.b16 %v1210
      %v1305 = vunpack.c.l.b16 %v1211
      %v1306 = vunpack.c.h.b16 %v1211
      %v1307 = vunpack.c.l.b16 %v1212
      %v1308 = vunpack.c.h.b16 %v1212
      %v1309 = vunpack.c.l.b16 %v1213
      %v1310 = vunpack.c.h.b16 %v1213
      %v1311 = vunpack.c.l.b16 %v1214
      %v1312 = vunpack.c.h.b16 %v1214
      %v1313 = vunpack.c.l.b16 %v1215
      %v1314 = vunpack.c.h.b16 %v1215
      %v1315 = vunpack.c.l.b16 %v1216
      %v1316 = vunpack.c.h.b16 %v1216
      %v1317 = vunpack.c.l.b16 %v1217
      %v1318 = vunpack.c.h.b16 %v1217
      %v1319 = vunpack.c.l.b16 %v1218
      %v1320 = vunpack.c.h.b16 %v1218
      %v1321 = vunpack.c.l.b16 %v1219
      %v1322 = vunpack.c.h.b16 %v1219
      %v1323 = vunpack.c.l.b16 %v1220
      %v1324 = vunpack.c.h.b16 %v1220
      %v1325 = vunpack.c.l.b16 %v1221
      %v1326 = vunpack.c.h.b16 %v1221
      %v1327 = vunpack.c.l.b16 %v1222
      %v1328 = vunpack.c.h.b16 %v1222
      %v1329 = vpack.c.b16 %v1269, %v1265
      %v1330 = vpack.c.b16 %v1270, %v1266
      %v1331 = vpack.c.b16 %v1271, %v1267
      %v1332 = vpack.c.b16 %v1272, %v1268
      %v1333 = vpack.c.b16 %v1277, %v1273
      %v1334 = vpack.c.b16 %v1278, %v1274
      %v1335 = vpack.c.b16 %v1279, %v1275
      %v1336 = vpack.c.b16 %v1280, %v1276
      %v1337 = vpack.c.b16 %v1285, %v1281
      %v1338 = vpack.c.b16 %v1286, %v1282
      %v1339 = vpack.c.b16 %v1287, %v1283
      %v1340 = vpack.c.b16 %v1288, %v1284
      %v1341 = vpack.c.b16 %v1293, %v1289
      %v1342 = vpack.c.b16 %v1294, %v1290
      %v1343 = vpack.c.b16 %v1295, %v1291
      %v1344 = vpack.c.b16 %v1296, %v1292
      %v1345 = vpack.c.b16 %v1301, %v1297
      %v1346 = vpack.c.b16 %v1302, %v1298
      %v1347 = vpack.c.b16 %v1303, %v1299
      %v1348 = vpack.c.b16 %v1304, %v1300
      %v1349 = vpack.c.b16 %v1309, %v1305
      %v1350 = vpack.c.b16 %v1310, %v1306
      %v1351 = vpack.c.b16 %v1311, %v1307
      %v1352 = vpack.c.b16 %v1312, %v1308
      %v1353 = vpack.c.b16 %v1317, %v1313
      %v1354 = vpack.c.b16 %v1318, %v1314
      %v1355 = vpack.c.b16 %v1319, %v1315
      %v1356 = vpack.c.b16 %v1320, %v1316
      %v1357 = vpack.c.b16 %v1325, %v1321
      %v1358 = vpack.c.b16 %v1326, %v1322
      %v1359 = vpack.c.b16 %v1327, %v1323
      %v1360 = vpack.c.b16 %v1328, %v1324
      %1393 = vmatpush.bf16.msra.mxu0 %v1357
      %1394 = vmatpush.bf16.msra.mxu0 %v1353
      %1395 = vmatpush.bf16.msra.mxu0 %v1349
      %1396 = vmatpush.bf16.msra.mxu0 %v1345
      %1397 = vmatpush.bf16.msra.mxu0 %v1341
      %1398 = vmatpush.bf16.msra.mxu0 %v1337
      %1399 = vmatpush.bf16.msra.mxu0 %v1333
      %1400 = vmatpush.bf16.msra.mxu0 %v1329
      %1401 = vmatmul.bf16.gmra.mxu0 %v1190
      %v1402 = vpop.f32.mrf.mxu0
      %v1403 = vadd.f32 %v1225, %v1402
      %v1404 = vpop.f32.mrf.mxu0
      %v1405 = vadd.f32 %v1225, %v1404
      %1406 = vdwg.mxu0
      %1407 = vmatpush.bf16.msra.mxu0 %v1358
      %1408 = vmatpush.bf16.msra.mxu0 %v1354
      %1409 = vmatpush.bf16.msra.mxu0 %v1350
      %1410 = vmatpush.bf16.msra.mxu0 %v1346
      %1411 = vmatpush.bf16.msra.mxu0 %v1342
      %1412 = vmatpush.bf16.msra.mxu0 %v1338
      %1413 = vmatpush.bf16.msra.mxu0 %v1334
      %1414 = vmatpush.bf16.msra.mxu0 %v1330
      %1415 = vmatmul.bf16.gmra.mxu0 %v1190
      %v1416 = vpop.f32.mrf.mxu0
      %v1417 = vadd.f32 %v1226, %v1416
      %v1418 = vpop.f32.mrf.mxu0
      %v1419 = vadd.f32 %v1226, %v1418
      %1420 = vdwg.mxu0
      %1421 = vmatpush.bf16.msra.mxu0 %v1359
      %1422 = vmatpush.bf16.msra.mxu0 %v1355
      %1423 = vmatpush.bf16.msra.mxu0 %v1351
      %1424 = vmatpush.bf16.msra.mxu0 %v1347
      %1425 = vmatpush.bf16.msra.mxu0 %v1343
      %1426 = vmatpush.bf16.msra.mxu0 %v1339
      %1427 = vmatpush.bf16.msra.mxu0 %v1335
      %1428 = vmatpush.bf16.msra.mxu0 %v1331
      %1429 = vmatmul.bf16.gmra.mxu0 %v1190
      %v1430 = vpop.f32.mrf.mxu0
      %v1431 = vadd.f32 %v1227, %v1430
      %v1432 = vpop.f32.mrf.mxu0
      %v1433 = vadd.f32 %v1227, %v1432
      %1434 = vdwg.mxu0
      %1435 = vmatpush.bf16.msra.mxu0 %v1360
      %1436 = vmatpush.bf16.msra.mxu0 %v1356
      %1437 = vmatpush.bf16.msra.mxu0 %v1352
      %1438 = vmatpush.bf16.msra.mxu0 %v1348
      %1439 = vmatpush.bf16.msra.mxu0 %v1344
      %1440 = vmatpush.bf16.msra.mxu0 %v1340
      %1441 = vmatpush.bf16.msra.mxu0 %v1336
      %1442 = vmatpush.bf16.msra.mxu0 %v1332
      %1443 = vmatmul.bf16.gmra.mxu0 %v1190
      %v1444 = vpop.f32.mrf.mxu0
      %v1445 = vadd.f32 %v1228, %v1444
      %v1446 = vpop.f32.mrf.mxu0
      %v1447 = vadd.f32 %v1228, %v1446
      %1448 = vdwg.mxu0
      %1449 = vst [vmem:[%s603] sm:$0xff] %v1403
      %1450 = vst [vmem:[%s603 + $0x8] sm:$0xff] %v1417
      %1451 = vst [vmem:[%s603 + $0x10] sm:$0xff] %v1431
      %1452 = vst [vmem:[%s603 + $0x18] sm:$0xff] %v1445
      %1453 = vst [vmem:[%s603 + $0x20] sm:$0xff] %v1405
      %1454 = vst [vmem:[%s603 + $0x28] sm:$0xff] %v1419
      %1455 = vst [vmem:[%s603 + $0x30] sm:$0xff] %v1433
      %1456 = vst [vmem:[%s603 + $0x38] sm:$0xff] %v1447
      %1457 = vst [vmem:[%s592] sm:$0xff] %v1188
      %1458 = vst [vmem:[%s592 + $0x8] sm:$0xff] %v1189
      %vm1459 = vcmask 7168
      %1460 = vst.msk [vmem:[%s613] sm:$0xff] %vm1459, %v1162
      %1461 = vst.msk [vmem:[%s613 + $0x8] sm:$0xff] %vm1459, %v1177
      %s1462 = smul.u32 2, %s32
      %p1463 = scmp.lt.s32.totalorder %s31, 1
      %s1464 = scalar_select %p1463, %s31, 1
      %p1465 = scmp.lt.s32.totalorder %s1462, 1
      %s1466 = scalar_select %p1465, %s1462, 1
      %s1467 = smul.addr %s1464, 2
      %s1468 = sadd.s32 %s1466, %s1467
      %s1469 = smul.addr %s1468, 8
      %s1470 = scalar_lea.vmem %s11, %s1469
      %s1471 = smul.u32 2, %s32
      %p1472 = scmp.lt.s32.totalorder %s31, 1
      %s1473 = scalar_select %p1472, %s31, 1
      %p1474 = scmp.lt.s32.totalorder %s1471, 1
      %s1475 = scalar_select %p1474, %s1471, 1
      %s1476 = smul.addr %s1475, 4
      %s1477 = smul.addr %s1473, 8
      %s1478 = sadd.s32 %s1476, %s1477
      %s1479 = smul.addr %s1478, 8
      %s1480 = scalar_lea.vmem %s12, %s1479
      %s1481 = smul.u32 2, %s32
      %p1482 = scmp.lt.s32.totalorder %s31, 1
      %s1483 = scalar_select %p1482, %s31, 1
      %p1484 = scmp.lt.s32.totalorder %s1481, 1
      %s1485 = scalar_select %p1484, %s1481, 1
      %s1486 = smul.addr %s1483, 2
      %s1487 = sadd.s32 %s1485, %s1486
      %s1488 = smul.addr %s1487, 8
      %s1489 = scalar_lea.vmem %s13, %s1488
      // Predicated region
      $region65: #{emb_forward.10} parent=63 // pred_check
        %p1490 = pneg %p319
      $region66: #{emb_forward.10} parent=63 // pred_check_branch
        %1492 = sbr.rel (%p1490) target = $region68
      $region67: #{emb_forward.10} parent=63 // pred_region
        %s1493 = smul.u32 2, %s32
      $region68: #{emb_forward.10} parent=63 // pred_fallthru
        _
      // Predicated region
      $region69: #{emb_forward.10} parent=63 // pred_check
        %p1494 = pneg %p347
      $region70: #{emb_forward.10} parent=63 // pred_check_branch
        %1496 = sbr.rel (%p1494) target = $region72
      $region71: #{emb_forward.10} parent=63 // pred_region
        %s1497 = smul.u32 2, %s32
      $region72: #{emb_forward.10} parent=63 // pred_fallthru
        _
      // Predicated region
      $region73: #{emb_forward.10} parent=63 // pred_check
        %p1498 = pneg %p375
      $region74: #{emb_forward.10} parent=63 // pred_check_branch
        %1500 = sbr.rel (%p1498) target = $region76
      $region75: #{emb_forward.10} parent=63 // pred_region
        %s1501 = smul.u32 2, %s32
      $region76: #{emb_forward.10} parent=63 // pred_fallthru
        _
    $region64: #{emb_forward.10} parent=5 // pred_fallthru
      _
    %p1502 = scmp.le.s32.totalorder 2, %s22
    // Predicated region
    $region77: #{emb_forward.10} parent=5 // pred_check
      %p1503 = pneg %p1502
    $region78: #{emb_forward.10} parent=5 // pred_check_branch
      %1505 = sbr.rel (%p1503) target = $region80
    $region79: #{emb_forward.10} parent=5 // pred_region
      %s1506 = ssub.s32 %s22, 2
      // Predicated region
      $region81: #{emb_forward.10} parent=79 // pred_check
        %p1507 = pneg %p325
      $region82: #{emb_forward.10} parent=79 // pred_check_branch
        %1509 = sbr.rel (%p1507) target = $region84
      $region83: #{emb_forward.10} parent=79 // pred_region
        %s1510 = smul.u32 2, %s34
        %p1511 = scmp.lt.s32.totalorder %s33, 1
        %s1512 = scalar_select %p1511, %s33, 1
        %p1513 = scmp.lt.s32.totalorder %s1510, 1
        %s1514 = scalar_select %p1513, %s1510, 1
        %s1515 = smul.addr %s1512, 2
        %s1516 = sadd.s32 %s1514, %s1515
        %s1517 = smul.addr %s1516, 8
        %s1518 = scalar_lea.vmem %s11, %s1517
      $region84: #{emb_forward.10} parent=79 // pred_fallthru
        _
      // Predicated region
      $region85: #{emb_forward.10} parent=79 // pred_check
        %p1519 = pneg %p353
      $region86: #{emb_forward.10} parent=79 // pred_check_branch
        %1521 = sbr.rel (%p1519) target = $region88
      $region87: #{emb_forward.10} parent=79 // pred_region
        %s1522 = smul.u32 2, %s34
        %p1523 = scmp.lt.s32.totalorder %s33, 1
        %s1524 = scalar_select %p1523, %s33, 1
        %p1525 = scmp.lt.s32.totalorder %s1522, 1
        %s1526 = scalar_select %p1525, %s1522, 1
        %s1527 = smul.addr %s1526, 4
        %s1528 = smul.addr %s1524, 8
        %s1529 = sadd.s32 %s1527, %s1528
        %s1530 = smul.addr %s1529, 8
        %s1531 = scalar_lea.vmem %s12, %s1530
      $region88: #{emb_forward.10} parent=79 // pred_fallthru
        _
      // Predicated region
      $region89: #{emb_forward.10} parent=79 // pred_check
        %p1532 = pneg %p381
      $region90: #{emb_forward.10} parent=79 // pred_check_branch
        %1534 = sbr.rel (%p1532) target = $region92
      $region91: #{emb_forward.10} parent=79 // pred_region
        %s1535 = smul.u32 2, %s34
        %p1536 = scmp.lt.s32.totalorder %s33, 1
        %s1537 = scalar_select %p1536, %s33, 1
        %p1538 = scmp.lt.s32.totalorder %s1535, 1
        %s1539 = scalar_select %p1538, %s1535, 1
        %s1540 = smul.addr %s1537, 2
        %s1541 = sadd.s32 %s1539, %s1540
        %s1542 = smul.addr %s1541, 8
        %s1543 = scalar_lea.vmem %s13, %s1542
      $region92: #{emb_forward.10} parent=79 // pred_fallthru
        _
    $region80: #{emb_forward.10} parent=5 // pred_fallthru
      _
  $region6: #{emb_forward.10} parent=0 // loop_footer
    %s26 = sadd.s32 1, %s22
  $region7: #{emb_forward.10} parent=0 // loop_footer_branch
    %21 = sbr.rel target = $region3
  $region8: #{emb_forward.10} parent=0 // loop_exit
    _

// kernel: emb_forward.12
$region0: #{emb_forward.12}
  #allocation0 [shape = 'u32[]', space=smem, size = 0x4, offset = 0x4, fixed_abs, tag = 'smem constant byte address 0x4 - core index']
  #allocation1 [shape = 'u32[72,128]{1,0:T(1,128)}', space=vmem, size = 0x9000, scoped, tag = 'internal scratch']
  #allocation2 [shape = 'f32[8,1]{1,0:T(8,128)}', space=vmem, size = 0x1000, scoped, tag = 'scratch operand']
  #allocation3 [shape = 'f32[8,1]{1,0:T(8,128)}', space=vmem, size = 0x1000, scoped, tag = 'scratch operand']
  #allocation4 [shape = 'f32[8,128]{1,0:T(8,128)}', space=vmem, size = 0x1000, scoped, tag = 'scratch operand']
  %s0 = inlined_call_operand.vmem [shape: bf16[2,8,128], index: 0, kind: input, shape index: {}]
  %s1 = inlined_call_operand.vmem [shape: f32[2,17,128], index: 1, kind: input, shape index: {}]
  %s2 = inlined_call_operand.vmem [shape: f32[256,17], index: 2, kind: input, shape index: {}]
  %s3 = inlined_call_operand.vmem [shape: f32[2,1,256], index: 3, kind: input, shape index: {}]
  %s4 = inlined_call_operand.vmem [shape: bf16[2,8,128], index: 4, kind: output, shape index: {}]
  %s5 = sld [smem:[#allocation0]]
  $region57: #{emb_forward.12} parent=0
    _
  %s7 = ssub.s32 1, %s5
  %s8 = scalar_select 0, %s7, %s5
  loop: start=0, step=1, limit=6
  $region2: #{emb_forward.12} parent=0 // loop_pre_header
    _
  $region3: #{emb_forward.12} parent=0 // loop_header
    %s10 = sphi 0, %s14
    %p11 = scmp.ge.s32.totalorder %s10, 6
    %s17 = sphi 0, %s29
    %s18 = sphi 0, %s25
    %s19 = sphi 0, %s17
    %s20 = sphi 0, %s18
    %s21 = sphi 0, %s19
    %s22 = sphi 0, %s20
    %s32 = sphi 0, %s34
    %s35 = sphi 0, %s32
    %s36 = sphi 0, %s35
    %s52 = sphi 0, %s36
    %s58 = sphi 0, %s60
    %s61 = sphi 0, %s58
    %s62 = sphi 0, %s61
    %s78 = sphi 0, %s62
    %s84 = sphi 0, %s86
    %s87 = sphi 0, %s84
    %s88 = sphi 0, %s87
    %s104 = sphi 0, %s88
    %s112 = sphi 0, %s114
    %s115 = sphi 0, %s112
    %s116 = sphi 0, %s115
    %s132 = sphi 0, %s116
    %s138 = sphi 0, %s140
    %s141 = sphi 0, %s138
    %s142 = sphi 0, %s141
    %s158 = sphi 0, %s142
  $region4: #{emb_forward.12} parent=0 // loop_header_branch
    %13 = sbr.rel (%p11) target = $region8
  $region5: #{emb_forward.12} parent=0 // loop_body
    %s15 = ssub.s32 %s10, 1
    %s16 = ssub.s32 %s10, 2
    %s23 = sadd.s32 1, %s18
    %p24 = scmp.ge.s32.totalorder %s23, 2
    %s25 = scalar_select %p24, 0, %s23
    %s26 = sadd.s32 1, %s17
    %s27 = scalar_select %p24, %s26, %s17
    %p28 = scmp.ge.s32.totalorder %s27, 2
    %s29 = scalar_select %p28, 0, %s27
    %s30 = ssub.s32 %s17, %s29
    %p31 = scmp.eq.s32.totalorder %s30, 0
    %s33 = sadd.s32 %s32, 1
    %s34 = scalar_select %p31, %s32, %s33
    %p37 = pneg %p31
    %p38 = scmp.eq.s32.totalorder %s10, 3
    %p39 = por %p37, %p38
    %p40 = scmp.ne.s32.totalorder %s32, %s35
    %p41 = scmp.eq.s32.totalorder %s10, 0
    %p42 = por %p40, %p41
    %p43 = scmp.ne.s32.totalorder %s32, %s35
    %p44 = scmp.eq.s32.totalorder %s15, 3
    %p45 = por %p43, %p44
    %p46 = scmp.ne.s32.totalorder %s35, %s36
    %p47 = scmp.eq.s32.totalorder %s15, 0
    %p48 = por %p46, %p47
    %p49 = scmp.ne.s32.totalorder %s35, %s36
    %p50 = scmp.eq.s32.totalorder %s16, 3
    %p51 = por %p49, %p50
    %p53 = scmp.ne.s32.totalorder %s36, %s52
    %p54 = scmp.eq.s32.totalorder %s16, 0
    %p55 = por %p53, %p54
    %s56 = ssub.s32 %s17, %s29
    %p57 = scmp.eq.s32.totalorder %s56, 0
    %s59 = sadd.s32 %s58, 1
    %s60 = scalar_select %p57, %s58, %s59
    %p63 = pneg %p57
    %p64 = scmp.eq.s32.totalorder %s10, 3
    %p65 = por %p63, %p64
    %p66 = scmp.ne.s32.totalorder %s58, %s61
    %p67 = scmp.eq.s32.totalorder %s10, 0
    %p68 = por %p66, %p67
    %p69 = scmp.ne.s32.totalorder %s58, %s61
    %p70 = scmp.eq.s32.totalorder %s15, 3
    %p71 = por %p69, %p70
    %p72 = scmp.ne.s32.totalorder %s61, %s62
    %p73 = scmp.eq.s32.totalorder %s15, 0
    %p74 = por %p72, %p73
    %p75 = scmp.ne.s32.totalorder %s61, %s62
    %p76 = scmp.eq.s32.totalorder %s16, 3
    %p77 = por %p75, %p76
    %p79 = scmp.ne.s32.totalorder %s62, %s78
    %p80 = scmp.eq.s32.totalorder %s16, 0
    %p81 = por %p79, %p80
    %s82 = ssub.s32 %s18, %s25
    %p83 = scmp.eq.s32.totalorder %s82, 0
    %s85 = sadd.s32 %s84, 1
    %s86 = scalar_select %p83, %s84, %s85
    %p89 = pneg %p83
    %p90 = scmp.eq.s32.totalorder %s10, 3
    %p91 = por %p89, %p90
    %p92 = scmp.ne.s32.totalorder %s84, %s87
    %p93 = scmp.eq.s32.totalorder %s10, 0
    %p94 = por %p92, %p93
    %p95 = scmp.ne.s32.totalorder %s84, %s87
    %p96 = scmp.eq.s32.totalorder %s15, 3
    %p97 = por %p95, %p96
    %p98 = scmp.ne.s32.totalorder %s87, %s88
    %p99 = scmp.eq.s32.totalorder %s15, 0
    %p100 = por %p98, %p99
    %p101 = scmp.ne.s32.totalorder %s87, %s88
    %p102 = scmp.eq.s32.totalorder %s16, 3
    %p103 = por %p101, %p102
    %p105 = scmp.ne.s32.totalorder %s88, %s104
    %p106 = scmp.eq.s32.totalorder %s16, 0
    %p107 = por %p105, %p106
    %s108 = ssub.s32 %s17, %s29
    %s109 = ssub.s32 %s18, %s25
    %s110 = sor.u32 %s108, %s109
    %p111 = scmp.eq.s32.totalorder %s110, 0
    %s113 = sadd.s32 %s112, 1
    %s114 = scalar_select %p111, %s112, %s113
    %p117 = pneg %p111
    %p118 = scmp.eq.s32.totalorder %s10, 3
    %p119 = por %p117, %p118
    %p120 = scmp.ne.s32.totalorder %s112, %s115
    %p121 = scmp.eq.s32.totalorder %s10, 0
    %p122 = por %p120, %p121
    %p123 = scmp.ne.s32.totalorder %s112, %s115
    %p124 = scmp.eq.s32.totalorder %s15, 3
    %p125 = por %p123, %p124
    %p126 = scmp.ne.s32.totalorder %s115, %s116
    %p127 = scmp.eq.s32.totalorder %s15, 0
    %p128 = por %p126, %p127
    %p129 = scmp.ne.s32.totalorder %s115, %s116
    %p130 = scmp.eq.s32.totalorder %s16, 3
    %p131 = por %p129, %p130
    %p133 = scmp.ne.s32.totalorder %s116, %s132
    %p134 = scmp.eq.s32.totalorder %s16, 0
    %p135 = por %p133, %p134
    %s136 = ssub.s32 %s17, %s29
    %p137 = scmp.eq.s32.totalorder %s136, 0
    %s139 = sadd.s32 %s138, 1
    %s140 = scalar_select %p137, %s138, %s139
    %p143 = pneg %p137
    %p144 = scmp.eq.s32.totalorder %s10, 3
    %p145 = por %p143, %p144
    %p146 = scmp.ne.s32.totalorder %s138, %s141
    %p147 = scmp.eq.s32.totalorder %s10, 0
    %p148 = por %p146, %p147
    %p149 = scmp.ne.s32.totalorder %s138, %s141
    %p150 = scmp.eq.s32.totalorder %s15, 3
    %p151 = por %p149, %p150
    %p152 = scmp.ne.s32.totalorder %s141, %s142
    %p153 = scmp.eq.s32.totalorder %s15, 0
    %p154 = por %p152, %p153
    %p155 = scmp.ne.s32.totalorder %s141, %s142
    %p156 = scmp.eq.s32.totalorder %s16, 3
    %p157 = por %p155, %p156
    %p159 = scmp.ne.s32.totalorder %s142, %s158
    %p160 = scmp.eq.s32.totalorder %s16, 0
    %p161 = por %p159, %p160
    %p162 = scmp.le.s32.totalorder 1, %s10
    %p163 = scmp.lt.s32.totalorder %s10, 5
    %p164 = pnand %p162, %p163
    %p165 = pneg %p164
    // Predicated region
    $region9: #{emb_forward.12} parent=5 // pred_check
      _
    $region10: #{emb_forward.12} parent=5 // pred_check_branch
      %167 = sbr.rel (%p164) target = $region12
    $region11: #{emb_forward.12} parent=5 // pred_region
      %s168 = ssub.s32 %s10, 1
    $region12: #{emb_forward.12} parent=5 // pred_fallthru
      _
    %p169 = scmp.lt.s32.totalorder %s10, 4
    // Predicated region
    $region13: #{emb_forward.12} parent=5 // pred_check
      %p170 = pneg %p169
    $region14: #{emb_forward.12} parent=5 // pred_check_branch
      %172 = sbr.rel (%p170) target = $region16
    $region15: #{emb_forward.12} parent=5 // pred_region
      // Predicated region
      $region17: #{emb_forward.12} parent=15 // pred_check
        %p173 = pneg %p42
      $region18: #{emb_forward.12} parent=15 // pred_check_branch
        %175 = sbr.rel (%p173) target = $region20
      $region19: #{emb_forward.12} parent=15 // pred_region
        %p176 = scmp.lt.s32.totalorder %s17, 1
        %s177 = scalar_select %p176, %s17, 1
        %s178 = smul.addr %s177, 4
        %s179 = scalar_lea.vmem %s0, %s178
      $region20: #{emb_forward.12} parent=15 // pred_fallthru
        _
      // Predicated region
      $region21: #{emb_forward.12} parent=15 // pred_check
        %p180 = pneg %p68
      $region22: #{emb_forward.12} parent=15 // pred_check_branch
        %182 = sbr.rel (%p180) target = $region24
      $region23: #{emb_forward.12} parent=15 // pred_region
        %p183 = scmp.lt.s32.totalorder %s17, 1
        %s184 = scalar_select %p183, %s17, 1
        %s185 = smul.addr %s184, 3
        %s186 = smul.addr %s185, 8
        %s187 = scalar_lea.vmem %s1, %s186
      $region24: #{emb_forward.12} parent=15 // pred_fallthru
        _
      // Predicated region
      $region25: #{emb_forward.12} parent=15 // pred_check
        %p188 = pneg %p94
      $region26: #{emb_forward.12} parent=15 // pred_check_branch
        %190 = sbr.rel (%p188) target = $region28
      $region27: #{emb_forward.12} parent=15 // pred_region
        %s191 = smul.u32 16, %s18
        %p192 = scmp.lt.s32.totalorder %s191, 31
        %s193 = scalar_select %p192, %s191, 31
        %s194 = smul.addr %s193, 8
        %s195 = scalar_lea.vmem %s2, %s194
        %s196 = smul.u32 16, %s18
      $region28: #{emb_forward.12} parent=15 // pred_fallthru
        _
      // Predicated region
      $region29: #{emb_forward.12} parent=15 // pred_check
        %p197 = pneg %p122
      $region30: #{emb_forward.12} parent=15 // pred_check_branch
        %199 = sbr.rel (%p197) target = $region32
      $region31: #{emb_forward.12} parent=15 // pred_region
        %p200 = scmp.lt.s32.totalorder %s17, 1
        %s201 = scalar_select %p200, %s17, 1
        %p202 = scmp.lt.s32.totalorder %s18, 1
        %s203 = scalar_select %p202, %s18, 1
        %s204 = smul.addr %s201, 2
        %s205 = sadd.s32 %s203, %s204
        %s206 = scalar_lea.vmem %s3, %s205
      $region32: #{emb_forward.12} parent=15 // pred_fallthru
        _
    $region16: #{emb_forward.12} parent=5 // pred_fallthru
      _
    %p207 = scmp.le.s32.totalorder 1, %s10
    %p208 = scmp.lt.s32.totalorder %s10, 5
    %p209 = pnand %p207, %p208
    %p210 = pneg %p209
    // Predicated region
    $region33: #{emb_forward.12} parent=5 // pred_check
      _
    $region34: #{emb_forward.12} parent=5 // pred_check_branch
      %212 = sbr.rel (%p209) target = $region36
    $region35: #{emb_forward.12} parent=5 // pred_region
      %s213 = ssub.s32 %s10, 1
      %p214 = scmp.lt.s32.totalorder %s19, 1
      %s215 = scalar_select %p214, %s19, 1
      %s216 = smul.addr %s215, 4
      %s217 = scalar_lea.vmem %s0, %s216
      %p218 = pneg %p48
      %p219 = pneg %p45
      %p220 = scmp.lt.s32.totalorder %s19, 1
      %s221 = scalar_select %p220, %s19, 1
      %s222 = smul.addr %s221, 3
      %s223 = smul.addr %s222, 8
      %s224 = scalar_lea.vmem %s1, %s223
      %p225 = pneg %p74
      %p226 = pneg %p71
      %s227 = smul.u32 16, %s20
      %p228 = scmp.lt.s32.totalorder %s227, 31
      %s229 = scalar_select %p228, %s227, 31
      %s230 = smul.addr %s229, 8
      %s231 = scalar_lea.vmem %s2, %s230
      %p232 = pneg %p100
      %p233 = pneg %p97
      %p234 = scmp.lt.s32.totalorder %s19, 1
      %s235 = scalar_select %p234, %s19, 1
      %p236 = scmp.lt.s32.totalorder %s20, 1
      %s237 = scalar_select %p236, %s20, 1
      %s238 = smul.addr %s235, 2
      %s239 = sadd.s32 %s237, %s238
      %s240 = scalar_lea.vmem %s3, %s239
      %p241 = pneg %p128
      %p242 = pneg %p125
      %p243 = pneg %p154
      %p244 = pneg %p151
      %p245 = scmp.lt.s32.totalorder %s19, 1
      %s246 = scalar_select %p245, %s19, 1
      %s247 = smul.addr %s246, 4
      %s248 = scalar_lea.vmem %s4, %s247
      %p249 = scmp.lt.s32.totalorder %s19, 1
      %s250 = scalar_select %p249, %s19, 1
      %s251 = smul.addr %s250, 4
      %s252 = scalar_lea.vmem %s0, %s251
      %p253 = scmp.lt.s32.totalorder %s19, 1
      %s254 = scalar_select %p253, %s19, 1
      %s255 = smul.addr %s254, 3
      %s256 = smul.addr %s255, 8
      %s257 = scalar_lea.vmem %s1, %s256
      %s258 = smul.u32 16, %s20
      %p259 = scmp.lt.s32.totalorder %s258, 31
      %s260 = scalar_select %p259, %s258, 31
      %s261 = smul.addr %s260, 8
      %s262 = scalar_lea.vmem %s2, %s261
      %s263 = smul.u32 16, %s20
      %p264 = scmp.lt.s32.totalorder %s19, 1
      %s265 = scalar_select %p264, %s19, 1
      %p266 = scmp.lt.s32.totalorder %s20, 1
      %s267 = scalar_select %p266, %s20, 1
      %s268 = smul.addr %s265, 2
      %s269 = sadd.s32 %s267, %s268
      %s270 = scalar_lea.vmem %s3, %s269
      %p271 = scmp.lt.s32.totalorder %s19, 1
      %s272 = scalar_select %p271, %s19, 1
      %s273 = smul.addr %s272, 4
      %s274 = scalar_lea.vmem %s4, %s273
      %p275 = scmp.eq.s32.totalorder %s20, 0
      // Predicated region
      $region37: #{emb_forward.12} parent=35 // pred_check
        %p276 = pneg %p275
      $region38: #{emb_forward.12} parent=35 // pred_check_branch
        %278 = sbr.rel (%p276) target = $region40
      $region39: #{emb_forward.12} parent=35 // pred_region
        %vm279 = vcmask 7168
        %280 = vst.msk [vmem:[#allocation2] sm:$0xff] %vm279, -1e+30
        %281 = vst.msk [vmem:[#allocation3] sm:$0xff] %vm279, 0.0
        %282 = vst [vmem:[#allocation4] sm:$0xff] 0.0
      $region40: #{emb_forward.12} parent=35 // pred_fallthru
        _
      %v283 = vld [vmem:[%s262] sm:$0xff]
      %v284 = vld [vmem:[%s262 + $0x8] sm:$0xff]
      %v285 = vld [vmem:[%s262 + $0x10] sm:$0xff]
      %v286 = vld [vmem:[%s262 + $0x18] sm:$0xff]
      %v287 = vld [vmem:[%s262 + $0x20] sm:$0xff]
      %v288 = vld [vmem:[%s262 + $0x28] sm:$0xff]
      %v289 = vld [vmem:[%s262 + $0x30] sm:$0xff]
      %v290 = vld [vmem:[%s262 + $0x38] sm:$0xff]
      %v291 = vld [vmem:[%s262 + $0x40] sm:$0xff]
      %v292 = vld [vmem:[%s262 + $0x48] sm:$0xff]
      %v293 = vld [vmem:[%s262 + $0x50] sm:$0xff]
      %v294 = vld [vmem:[%s262 + $0x58] sm:$0xff]
      %v295 = vld [vmem:[%s262 + $0x60] sm:$0xff]
      %v296 = vld [vmem:[%s262 + $0x68] sm:$0xff]
      %v297 = vld [vmem:[%s262 + $0x70] sm:$0xff]
      %v298 = vld [vmem:[%s262 + $0x78] sm:$0xff]
      %v299 = vld [vmem:[%s257] sm:$0xff]
      %v300 = vld [vmem:[%s257 + $0x8] sm:$0xff]
      %v301 = vld [vmem:[%s257 + $0x10] sm:$0x1]
      %vm302 = vcmask 138240
      %v304 = vsel %vm302, %v283, 0
      %v307 = vsel %vm302, %v284, 0
      %v310 = vsel %vm302, %v285, 0
      %v313 = vsel %vm302, %v286, 0
      %v316 = vsel %vm302, %v287, 0
      %v319 = vsel %vm302, %v288, 0
      %v322 = vsel %vm302, %v289, 0
      %v325 = vsel %vm302, %v290, 0
      %v328 = vsel %vm302, %v291, 0
      %v331 = vsel %vm302, %v292, 0
      %v334 = vsel %vm302, %v293, 0
      %v337 = vsel %vm302, %v294, 0
      %v340 = vsel %vm302, %v295, 0
      %v343 = vsel %vm302, %v296, 0
      %v346 = vsel %vm302, %v297, 0
      %v349 = vsel %vm302, %v298, 0
      %vm351 = vcmask 1040384
      %v353 = vsel %vm351, %v301, 0
      %355 = vmatpush.msra.mxu0 0.0
      %356 = vmatpush.msra.mxu0 0.0
      %357 = vmatpush.msra.mxu0 0.0
      %358 = vmatpush.msra.mxu0 0.0
      %359 = vmatpush.msra.mxu0 0.0
      %360 = vmatpush.msra.mxu0 0.0
      %361 = vmatpush.msra.mxu0 0.0
      %362 = vmatpush.msra.mxu0 0.0
      %363 = vmatpush.msra.mxu0 0.0
      %364 = vmatpush.msra.mxu0 0.0
      %365 = vmatpush.msra.mxu0 0.0
      %366 = vmatpush.msra.mxu0 0.0
      %367 = vmatpush.msra.mxu0 0.0
      %368 = vmatpush.msra.mxu0 %v353
      %369 = vmatpush.msra.mxu0 %v300
      %370 = vmatpush.msra.mxu0 %v299
      %371 = vmatmul.f32.gmra.mxu0 %v304
      %v372 = vpop.f32.mrf.mxu0
      %v373 = vadd.f32 0.0, %v372
      %374 = vmatmul.f32.gmra.mxu0 %v307
      %v375 = vpop.f32.mrf.mxu0
      %v376 = vadd.f32 0.0, %v375
      %377 = vmatmul.f32.gmra.mxu0 %v310
      %v378 = vpop.f32.mrf.mxu0
      %v379 = vadd.f32 0.0, %v378
      %380 = vmatmul.f32.gmra.mxu0 %v313
      %v381 = vpop.f32.mrf.mxu0
      %v382 = vadd.f32 0.0, %v381
      %383 = vmatmul.f32.gmra.mxu0 %v316
      %v384 = vpop.f32.mrf.mxu0
      %v385 = vadd.f32 0.0, %v384
      %386 = vmatmul.f32.gmra.mxu0 %v319
      %v387 = vpop.f32.mrf.mxu0
      %v388 = vadd.f32 0.0, %v387
      %389 = vmatmul.f32.gmra.mxu0 %v322
      %v390 = vpop.f32.mrf.mxu0
      %v391 = vadd.f32 0.0, %v390
      %392 = vmatmul.f32.gmra.mxu0 %v325
      %v393 = vpop.f32.mrf.mxu0
      %v394 = vadd.f32 0.0, %v393
      %395 = vmatmul.f32.gmra.mxu0 %v328
      %v396 = vpop.f32.mrf.mxu0
      %v397 = vadd.f32 0.0, %v396
      %398 = vmatmul.f32.gmra.mxu0 %v331
      %v399 = vpop.f32.mrf.mxu0
      %v400 = vadd.f32 0.0, %v399
      %401 = vmatmul.f32.gmra.mxu0 %v334
      %v402 = vpop.f32.mrf.mxu0
      %v403 = vadd.f32 0.0, %v402
      %404 = vmatmul.f32.gmra.mxu0 %v337
      %v405 = vpop.f32.mrf.mxu0
      %v406 = vadd.f32 0.0, %v405
      %407 = vmatmul.f32.gmra.mxu0 %v340
      %v408 = vpop.f32.mrf.mxu0
      %v409 = vadd.f32 0.0, %v408
      %410 = vmatmul.f32.gmra.mxu0 %v343
      %v411 = vpop.f32.mrf.mxu0
      %v412 = vadd.f32 0.0, %v411
      %413 = vmatmul.f32.gmra.mxu0 %v346
      %v414 = vpop.f32.mrf.mxu0
      %v415 = vadd.f32 0.0, %v414
      %416 = vmatmul.f32.gmra.mxu0 %v349
      %v417 = vpop.f32.mrf.mxu0
      %v418 = vadd.f32 0.0, %v417
      %419 = vdwg.mxu0
      %v420 = vpack.c.bf16 %v376, %v373
      %v421 = vpack.c.bf16 %v382, %v379
      %v422 = vpack.c.bf16 %v388, %v385
      %v423 = vpack.c.bf16 %v394, %v391
      %v424 = vpack.c.bf16 %v400, %v397
      %v425 = vpack.c.bf16 %v406, %v403
      %v426 = vpack.c.bf16 %v412, %v409
      %v427 = vpack.c.bf16 %v418, %v415
      %v428 = vld [vmem:[%s252] sm:$0xf]
      %v429 = vld [vmem:[%s270] sm:$0x1]
      %430 = vmatpush.bf16.xpose.msra.mxu0 %v427
      %431 = vmatpush.bf16.xpose.msra.mxu0 %v426
      %432 = vmatpush.bf16.xpose.msra.mxu0 %v425
      %433 = vmatpush.bf16.xpose.msra.mxu0 %v424
      %434 = vmatpush.bf16.xpose.msra.mxu0 %v423
      %435 = vmatpush.bf16.xpose.msra.mxu0 %v422
      %436 = vmatpush.bf16.xpose.msra.mxu0 %v421
      %437 = vmatpush.bf16.xpose.msra.mxu0 %v420
      %438 = vmatmul.bf16.gmra.mxu0 %v428
      %v439 = vpop.f32.mrf.mxu0
      %v440 = vadd.f32 0.0, %v439
      %v441 = vpop.f32.mrf.mxu0
      %442 = vdwg.mxu0
      %v443 = vmul.f32 %v440, 0.088388346
      %vm444 = vcmp.gt.f32.partialorder %v429, 0.0
      %v445 = vsel %vm444, 1, 0
      %v446 = vperm.slane %v445, 0
      %vm447 = vcmp.eq.s32.totalorder %v446, 1
      %v448 = vsel %vm447, %v443, -1e+30
      %v449 = vld [vmem:[#allocation2] sm:$0xff]
      %450 = vmax.xlane.f32.xlu0 %v448
      %v451 = vpop.xlane.xlu0 %450
      %v452 = vmax.f32 %v449, %v451
      %v453 = vsub.f32 %v449, %v452
      %v454 = vmul.f32 %v453, 1.442695
      %v455 = vpow.pop %v454
      %457 = vset.pattern.permute.xlu0 0
      %458 = vperm.xlu0 %457, %v452
      %v459 = vpop.permute.xlu0 %458
      %v461 = vsub.f32 %v448, %v459
      %v462 = vmul.f32 %v461, 1.442695
      %v463 = vpow.pop %v462
      %v464 = vld [vmem:[#allocation3] sm:$0xff]
      %v465 = vmul.f32 %v455, %v464
      %466 = vadd.xlane.f32.xlu0 %v463
      %v467 = vpop.xlane.xlu0 %466
      %v468 = vadd.f32 %v465, %v467
      %vm469 = vcmask 7168
      %470 = vst.msk [vmem:[#allocation3] sm:$0xff] %vm469, %v468
      %v471 = vld [vmem:[#allocation4] sm:$0xff]
      %473 = vset.pattern.permute.xlu0 0
      %474 = vperm.xlu0 %473, %v455
      %v475 = vpop.permute.xlu0 %474
      %v477 = vmul.f32 %v475, %v471
      %v478 = vpack.c.bf16 %v463, %v463
      %479 = vmatpush.bf16.msra.mxu0 %v427
      %480 = vmatpush.bf16.msra.mxu0 %v426
      %481 = vmatpush.bf16.msra.mxu0 %v425
      %482 = vmatpush.bf16.msra.mxu0 %v424
      %483 = vmatpush.bf16.msra.mxu0 %v423
      %484 = vmatpush.bf16.msra.mxu0 %v422
      %485 = vmatpush.bf16.msra.mxu0 %v421
      %486 = vmatpush.bf16.msra.mxu0 %v420
      %487 = vmatmul.bf16.gmra.mxu0 %v478
      %v488 = vpop.f32.mrf.mxu0
      %v489 = vadd.f32 0.0, %v488
      %v490 = vpop.f32.mrf.mxu0
      %491 = vdwg.mxu0
      %v492 = vadd.f32 %v477, %v489
      %493 = vst [vmem:[#allocation4] sm:$0xff] %v492
      %494 = vst.msk [vmem:[#allocation2] sm:$0xff] %vm469, %v452
      %p495 = scmp.eq.s32.totalorder %s20, 1
      // Predicated region
      $region41: #{emb_forward.12} parent=35 // pred_check
        %p496 = pneg %p495
      $region42: #{emb_forward.12} parent=35 // pred_check_branch
        %498 = sbr.rel (%p496) target = $region44
      $region43: #{emb_forward.12} parent=35 // pred_region
        %v499 = vld [vmem:[#allocation4] sm:$0xff]
        %v500 = vld [vmem:[#allocation3] sm:$0xff]
        %v501 = vrcp.pop %v500
        %503 = vset.pattern.permute.xlu0 0
        %504 = vperm.xlu0 %503, %v501
        %v505 = vpop.permute.xlu0 %504
        %v507 = vmul.f32 %v499, %v505
        %v508 = vpack.c.bf16 %v507, %v507
        %509 = vst [vmem:[%s274] sm:$0xf] %v508
      $region44: #{emb_forward.12} parent=35 // pred_fallthru
        _
      %p510 = scmp.lt.s32.totalorder %s19, 1
      %s511 = scalar_select %p510, %s19, 1
      %s512 = smul.addr %s511, 4
      %s513 = scalar_lea.vmem %s4, %s512
      // Predicated region
      $region45: #{emb_forward.12} parent=35 // pred_check
        %p514 = pneg %p151
      $region46: #{emb_forward.12} parent=35 // pred_check_branch
        %516 = sbr.rel (%p514) target = $region48
      $region47: #{emb_forward.12} parent=35 // pred_region
        _
      $region48: #{emb_forward.12} parent=35 // pred_fallthru
        _
    $region36: #{emb_forward.12} parent=5 // pred_fallthru
      _
    %p517 = scmp.le.s32.totalorder 2, %s10
    // Predicated region
    $region49: #{emb_forward.12} parent=5 // pred_check
      %p518 = pneg %p517
    $region50: #{emb_forward.12} parent=5 // pred_check_branch
      %520 = sbr.rel (%p518) target = $region52
    $region51: #{emb_forward.12} parent=5 // pred_region
      %s521 = ssub.s32 %s10, 2
      // Predicated region
      $region53: #{emb_forward.12} parent=51 // pred_check
        %p522 = pneg %p157
      $region54: #{emb_forward.12} parent=51 // pred_check_branch
        %524 = sbr.rel (%p522) target = $region56
      $region55: #{emb_forward.12} parent=51 // pred_region
        %p525 = scmp.lt.s32.totalorder %s21, 1
        %s526 = scalar_select %p525, %s21, 1
        %s527 = smul.addr %s526, 4
        %s528 = scalar_lea.vmem %s4, %s527
      $region56: #{emb_forward.12} parent=51 // pred_fallthru
        _
    $region52: #{emb_forward.12} parent=5 // pred_fallthru
      _
  $region6: #{emb_forward.12} parent=0 // loop_footer
    %s14 = sadd.s32 1, %s10
  $region7: #{emb_forward.12} parent=0 // loop_footer_branch
    %9 = sbr.rel target = $region3
  $region8: #{emb_forward.12} parent=0 // loop_exit
    _

// kernel: emb_forward.11
$region0: #{emb_forward.11}
  #allocation0 [shape = 'u32[]', space=smem, size = 0x4, offset = 0x4, fixed_abs, tag = 'smem constant byte address 0x4 - core index']
  #allocation1 [shape = 'u32[72,128]{1,0:T(1,128)}', space=vmem, size = 0x9000, scoped, tag = 'internal scratch']
  #allocation2 [shape = 'f32[2,128]{1,0:T(2,128)}', space=vmem, size = 0x400, scoped, tag = 'scratch operand']
  #allocation3 [shape = 'f32[2,128]{1,0:T(2,128)}', space=vmem, size = 0x400, scoped, tag = 'scratch operand']
  %s0 = inlined_call_operand.vmem [shape: f32[16,2,512], index: 0, kind: input, shape index: {}]
  %s1 = inlined_call_operand.vmem [shape: bf16[128,512], index: 1, kind: input, shape index: {}]
  %s2 = inlined_call_operand.vmem [shape: f32[16,2,128], index: 2, kind: output, shape index: {}]
  %s3 = sld [smem:[#allocation0]]
  $region22: #{emb_forward.11} parent=0
    _
  %s5 = ssub.s32 1, %s3
  %s6 = scalar_select 0, %s5, %s3
  // Predicated region
  $region2: #{emb_forward.11} parent=0 // pred_check
    _
  $region3: #{emb_forward.11} parent=0 // pred_check_branch
    %8 = sbr.rel (0) target = $region5
  $region4: #{emb_forward.11} parent=0 // pred_region
    _
  $region5: #{emb_forward.11} parent=0 // pred_fallthru
    _
  // Predicated region
  $region6: #{emb_forward.11} parent=0 // pred_check
    _
  $region7: #{emb_forward.11} parent=0 // pred_check_branch
    %10 = sbr.rel (0) target = $region9
  $region8: #{emb_forward.11} parent=0 // pred_region
    _
  $region9: #{emb_forward.11} parent=0 // pred_fallthru
    _
  %p11 = scmp.eq.s32.totalorder 0, 0
  // Predicated region
  $region10: #{emb_forward.11} parent=0 // pred_check
    %p12 = pneg %p11
  $region11: #{emb_forward.11} parent=0 // pred_check_branch
    %14 = sbr.rel (%p12) target = $region13
  $region12: #{emb_forward.11} parent=0 // pred_region
    %15 = vst [vmem:[#allocation2] sm:$0x3] 0.0
    %16 = vst [vmem:[#allocation3] sm:$0x3] 0.0
  $region13: #{emb_forward.11} parent=0 // pred_fallthru
    _
  %v17 = vld [vmem:[%s1] sm:$0xff]
  %v18 = vld [vmem:[%s1 + $0x8] sm:$0xff]
  %v19 = vld [vmem:[%s1 + $0x10] sm:$0xff]
  %v20 = vld [vmem:[%s1 + $0x18] sm:$0xff]
  %v21 = vld [vmem:[%s1 + $0x20] sm:$0xff]
  %v22 = vld [vmem:[%s1 + $0x28] sm:$0xff]
  %v23 = vld [vmem:[%s1 + $0x30] sm:$0xff]
  %v24 = vld [vmem:[%s1 + $0x38] sm:$0xff]
  %v25 = vld [vmem:[%s1 + $0x40] sm:$0xff]
  %v26 = vld [vmem:[%s1 + $0x48] sm:$0xff]
  %v27 = vld [vmem:[%s1 + $0x50] sm:$0xff]
  %v28 = vld [vmem:[%s1 + $0x58] sm:$0xff]
  %v29 = vld [vmem:[%s1 + $0x60] sm:$0xff]
  %v30 = vld [vmem:[%s1 + $0x68] sm:$0xff]
  %v31 = vld [vmem:[%s1 + $0x70] sm:$0xff]
  %v32 = vld [vmem:[%s1 + $0x78] sm:$0xff]
  %v33 = vld [vmem:[%s1 + $0x80] sm:$0xff]
  %v34 = vld [vmem:[%s1 + $0x88] sm:$0xff]
  %v35 = vld [vmem:[%s1 + $0x90] sm:$0xff]
  %v36 = vld [vmem:[%s1 + $0x98] sm:$0xff]
  %v37 = vld [vmem:[%s1 + $0xa0] sm:$0xff]
  %v38 = vld [vmem:[%s1 + $0xa8] sm:$0xff]
  %v39 = vld [vmem:[%s1 + $0xb0] sm:$0xff]
  %v40 = vld [vmem:[%s1 + $0xb8] sm:$0xff]
  %v41 = vld [vmem:[%s1 + $0xc0] sm:$0xff]
  %v42 = vld [vmem:[%s1 + $0xc8] sm:$0xff]
  %v43 = vld [vmem:[%s1 + $0xd0] sm:$0xff]
  %v44 = vld [vmem:[%s1 + $0xd8] sm:$0xff]
  %v45 = vld [vmem:[%s1 + $0xe0] sm:$0xff]
  %v46 = vld [vmem:[%s1 + $0xe8] sm:$0xff]
  %v47 = vld [vmem:[%s1 + $0xf0] sm:$0xff]
  %v48 = vld [vmem:[%s1 + $0xf8] sm:$0xff]
  %v49 = vld [vmem:[#allocation2] sm:$0x3]
  %v50 = vld [vmem:[#allocation3] sm:$0x3]
  %v51 = vld [vmem:[%s0] sm:$0xff]
  %v52 = vpack.c.bf16 %v49, %v49
  %v85 = vunpack.c.l.b16 %v17
  %v86 = vunpack.c.h.b16 %v17
  %v87 = vunpack.c.l.b16 %v18
  %v88 = vunpack.c.h.b16 %v18
  %v89 = vunpack.c.l.b16 %v19
  %v90 = vunpack.c.h.b16 %v19
  %v91 = vunpack.c.l.b16 %v20
  %v92 = vunpack.c.h.b16 %v20
  %v93 = vunpack.c.l.b16 %v21
  %v94 = vunpack.c.h.b16 %v21
  %v95 = vunpack.c.l.b16 %v22
  %v96 = vunpack.c.h.b16 %v22
  %v97 = vunpack.c.l.b16 %v23
  %v98 = vunpack.c.h.b16 %v23
  %v99 = vunpack.c.l.b16 %v24
  %v100 = vunpack.c.h.b16 %v24
  %v101 = vunpack.c.l.b16 %v25
  %v102 = vunpack.c.h.b16 %v25
  %v103 = vunpack.c.l.b16 %v26
  %v104 = vunpack.c.h.b16 %v26
  %v105 = vunpack.c.l.b16 %v27
  %v106 = vunpack.c.h.b16 %v27
  %v107 = vunpack.c.l.b16 %v28
  %v108 = vunpack.c.h.b16 %v28
  %v109 = vunpack.c.l.b16 %v29
  %v110 = vunpack.c.h.b16 %v29
  %v111 = vunpack.c.l.b16 %v30
  %v112 = vunpack.c.h.b16 %v30
  %v113 = vunpack.c.l.b16 %v31
  %v114 = vunpack.c.h.b16 %v31
  %v115 = vunpack.c.l.b16 %v32
  %v116 = vunpack.c.h.b16 %v32
  %v117 = vunpack.c.l.b16 %v33
  %v118 = vunpack.c.h.b16 %v33
  %v119 = vunpack.c.l.b16 %v34
  %v120 = vunpack.c.h.b16 %v34
  %v121 = vunpack.c.l.b16 %v35
  %v122 = vunpack.c.h.b16 %v35
  %v123 = vunpack.c.l.b16 %v36
  %v124 = vunpack.c.h.b16 %v36
  %v125 = vunpack.c.l.b16 %v37
  %v126 = vunpack.c.h.b16 %v37
  %v127 = vunpack.c.l.b16 %v38
  %v128 = vunpack.c.h.b16 %v38
  %v129 = vunpack.c.l.b16 %v39
  %v130 = vunpack.c.h.b16 %v39
  %v131 = vunpack.c.l.b16 %v40
  %v132 = vunpack.c.h.b16 %v40
  %v133 = vunpack.c.l.b16 %v41
  %v134 = vunpack.c.h.b16 %v41
  %v135 = vunpack.c.l.b16 %v42
  %v136 = vunpack.c.h.b16 %v42
  %v137 = vunpack.c.l.b16 %v43
  %v138 = vunpack.c.h.b16 %v43
  %v139 = vunpack.c.l.b16 %v44
  %v140 = vunpack.c.h.b16 %v44
  %v141 = vunpack.c.l.b16 %v45
  %v142 = vunpack.c.h.b16 %v45
  %v143 = vunpack.c.l.b16 %v46
  %v144 = vunpack.c.h.b16 %v46
  %v145 = vunpack.c.l.b16 %v47
  %v146 = vunpack.c.h.b16 %v47
  %v147 = vunpack.c.l.b16 %v48
  %v148 = vunpack.c.h.b16 %v48
  %v149 = vpack.c.b16 %v89, %v85
  %v150 = vpack.c.b16 %v90, %v86
  %v151 = vpack.c.b16 %v91, %v87
  %v152 = vpack.c.b16 %v92, %v88
  %v153 = vpack.c.b16 %v97, %v93
  %v154 = vpack.c.b16 %v98, %v94
  %v155 = vpack.c.b16 %v99, %v95
  %v156 = vpack.c.b16 %v100, %v96
  %v157 = vpack.c.b16 %v105, %v101
  %v158 = vpack.c.b16 %v106, %v102
  %v159 = vpack.c.b16 %v107, %v103
  %v160 = vpack.c.b16 %v108, %v104
  %v161 = vpack.c.b16 %v113, %v109
  %v162 = vpack.c.b16 %v114, %v110
  %v163 = vpack.c.b16 %v115, %v111
  %v164 = vpack.c.b16 %v116, %v112
  %v165 = vpack.c.b16 %v121, %v117
  %v166 = vpack.c.b16 %v122, %v118
  %v167 = vpack.c.b16 %v123, %v119
  %v168 = vpack.c.b16 %v124, %v120
  %v169 = vpack.c.b16 %v129, %v125
  %v170 = vpack.c.b16 %v130, %v126
  %v171 = vpack.c.b16 %v131, %v127
  %v172 = vpack.c.b16 %v132, %v128
  %v173 = vpack.c.b16 %v137, %v133
  %v174 = vpack.c.b16 %v138, %v134
  %v175 = vpack.c.b16 %v139, %v135
  %v176 = vpack.c.b16 %v140, %v136
  %v177 = vpack.c.b16 %v145, %v141
  %v178 = vpack.c.b16 %v146, %v142
  %v179 = vpack.c.b16 %v147, %v143
  %v180 = vpack.c.b16 %v148, %v144
  %213 = vmatpush.bf16.msra.mxu0 %v177
  %214 = vmatpush.bf16.msra.mxu0 %v173
  %215 = vmatpush.bf16.msra.mxu0 %v169
  %216 = vmatpush.bf16.msra.mxu0 %v165
  %217 = vmatpush.bf16.msra.mxu0 %v161
  %218 = vmatpush.bf16.msra.mxu0 %v157
  %219 = vmatpush.bf16.msra.mxu0 %v153
  %220 = vmatpush.bf16.msra.mxu0 %v149
  %221 = vmatmul.bf16.gmra.mxu0 %v52
  %v222 = vpop.f32.mrf.mxu0
  %v223 = vadd.f32 0.0, %v222
  %v224 = vpop.f32.mrf.mxu0
  %225 = vdwg.mxu0
  %226 = vmatpush.bf16.msra.mxu0 %v178
  %227 = vmatpush.bf16.msra.mxu0 %v174
  %228 = vmatpush.bf16.msra.mxu0 %v170
  %229 = vmatpush.bf16.msra.mxu0 %v166
  %230 = vmatpush.bf16.msra.mxu0 %v162
  %231 = vmatpush.bf16.msra.mxu0 %v158
  %232 = vmatpush.bf16.msra.mxu0 %v154
  %233 = vmatpush.bf16.msra.mxu0 %v150
  %234 = vmatmul.bf16.gmra.mxu0 %v52
  %v235 = vpop.f32.mrf.mxu0
  %v236 = vadd.f32 0.0, %v235
  %v237 = vpop.f32.mrf.mxu0
  %238 = vdwg.mxu0
  %239 = vmatpush.bf16.msra.mxu0 %v179
  %240 = vmatpush.bf16.msra.mxu0 %v175
  %241 = vmatpush.bf16.msra.mxu0 %v171
  %242 = vmatpush.bf16.msra.mxu0 %v167
  %243 = vmatpush.bf16.msra.mxu0 %v163
  %244 = vmatpush.bf16.msra.mxu0 %v159
  %245 = vmatpush.bf16.msra.mxu0 %v155
  %246 = vmatpush.bf16.msra.mxu0 %v151
  %247 = vmatmul.bf16.gmra.mxu0 %v52
  %v248 = vpop.f32.mrf.mxu0
  %v249 = vadd.f32 0.0, %v248
  %v250 = vpop.f32.mrf.mxu0
  %251 = vdwg.mxu0
  %252 = vmatpush.bf16.msra.mxu0 %v180
  %253 = vmatpush.bf16.msra.mxu0 %v176
  %254 = vmatpush.bf16.msra.mxu0 %v172
  %255 = vmatpush.bf16.msra.mxu0 %v168
  %256 = vmatpush.bf16.msra.mxu0 %v164
  %257 = vmatpush.bf16.msra.mxu0 %v160
  %258 = vmatpush.bf16.msra.mxu0 %v156
  %259 = vmatpush.bf16.msra.mxu0 %v152
  %260 = vmatmul.bf16.gmra.mxu0 %v52
  %v261 = vpop.f32.mrf.mxu0
  %v262 = vadd.f32 0.0, %v261
  %v263 = vpop.f32.mrf.mxu0
  %264 = vdwg.mxu0
  %v269 = vrot.slane %v236, 6
  %v270 = vrot.slane %v249, 4
  %v271 = vrot.slane %v262, 2
  %vm272 = vcmask 1041408
  %v273 = vsel %vm272, %v223, %v269
  %vm274 = vcmask 1045508
  %v275 = vsel %vm274, %v270, %v271
  %vm276 = vcmask 1043456
  %v277 = vsel %vm276, %v273, %v275
  %v279 = vadd.f32 %v51, %v277
  %v281 = vrot.slane %v279, 2
  %v283 = vxor.u32 %v281, 2147483648
  %v284 = vmul.f32 %v283, 1.442695
  %v285 = vpow.pop %v284
  %v286 = vadd.f32 %v285, 1.0
  %v287 = vrcp.pop %v286
  %v288 = vmul.f32 %v286, %v287
  %v289 = vsub.f32 1.0, %v288
  %v290 = vmul.f32 %v287, %v289
  %v291 = vadd.f32 %v287, %v290
  %vm292 = vweird.f32 %v286
  %vm293 = vweird.f32 %v287
  %vm294 = vmor %vm292, %vm293
  %v295 = vsel %vm294, %v287, %v291
  %v296 = vand.u32 2147483647, %v286
  %vm297 = vcmp.eq.f32.partialorder %v296, 8.507059e+37
  %v298 = vand.u32 %v286, 2147483648
  %v299 = vor.u32 1.1754944e-38, %v298
  %v300 = vsel %vm297, %v299, %v295
  %v301 = vmul.f32 1.0, %v300
  %v302 = vmul.f32 %v301, %v50
  %v303 = vxor.u32 %v279, 2147483648
  %v304 = vmul.f32 %v303, 1.442695
  %v305 = vpow.pop %v304
  %v306 = vadd.f32 %v305, 1.0
  %v307 = vrcp.pop %v306
  %v308 = vmul.f32 %v306, %v307
  %v309 = vsub.f32 1.0, %v308
  %v310 = vmul.f32 %v307, %v309
  %v311 = vadd.f32 %v307, %v310
  %vm312 = vweird.f32 %v306
  %vm313 = vweird.f32 %v307
  %vm314 = vmor %vm312, %vm313
  %v315 = vsel %vm314, %v307, %v311
  %v316 = vand.u32 2147483647, %v306
  %vm317 = vcmp.eq.f32.partialorder %v316, 8.507059e+37
  %v318 = vand.u32 %v306, 2147483648
  %v319 = vor.u32 1.1754944e-38, %v318
  %v320 = vsel %vm317, %v319, %v315
  %v321 = vmul.f32 1.0, %v320
  %v322 = vrot.slane %v279, 4
  %v324 = vtanh.pop %v322
  %v325 = vmul.f32 %v321, %v324
  %v326 = vadd.f32 %v302, %v325
  %v327 = vrot.slane %v279, 6
  %v329 = vxor.u32 %v327, 2147483648
  %v330 = vmul.f32 %v329, 1.442695
  %v331 = vpow.pop %v330
  %v332 = vadd.f32 %v331, 1.0
  %v333 = vrcp.pop %v332
  %v334 = vmul.f32 %v332, %v333
  %v335 = vsub.f32 1.0, %v334
  %v336 = vmul.f32 %v333, %v335
  %v337 = vadd.f32 %v333, %v336
  %vm338 = vweird.f32 %v332
  %vm339 = vweird.f32 %v333
  %vm340 = vmor %vm338, %vm339
  %v341 = vsel %vm340, %v333, %v337
  %v342 = vand.u32 2147483647, %v332
  %vm343 = vcmp.eq.f32.partialorder %v342, 8.507059e+37
  %v344 = vand.u32 %v332, 2147483648
  %v345 = vor.u32 1.1754944e-38, %v344
  %v346 = vsel %vm343, %v345, %v341
  %v347 = vmul.f32 1.0, %v346
  %v348 = vtanh.pop %v326
  %v349 = vmul.f32 %v347, %v348
  %350 = vst [vmem:[%s2] sm:$0x3] %v349
  %s351 = scalar_lea.vmem %s0, 8
  %v352 = vld [vmem:[%s351] sm:$0xff]
  %v353 = vpack.c.bf16 %v349, %v349
  %354 = vmatpush.bf16.msra.mxu0 %v177
  %355 = vmatpush.bf16.msra.mxu0 %v173
  %356 = vmatpush.bf16.msra.mxu0 %v169
  %357 = vmatpush.bf16.msra.mxu0 %v165
  %358 = vmatpush.bf16.msra.mxu0 %v161
  %359 = vmatpush.bf16.msra.mxu0 %v157
  %360 = vmatpush.bf16.msra.mxu0 %v153
  %361 = vmatpush.bf16.msra.mxu0 %v149
  %362 = vmatmul.bf16.gmra.mxu0 %v353
  %v363 = vpop.f32.mrf.mxu0
  %v364 = vadd.f32 0.0, %v363
  %v365 = vpop.f32.mrf.mxu0
  %366 = vdwg.mxu0
  %367 = vmatpush.bf16.msra.mxu0 %v178
  %368 = vmatpush.bf16.msra.mxu0 %v174
  %369 = vmatpush.bf16.msra.mxu0 %v170
  %370 = vmatpush.bf16.msra.mxu0 %v166
  %371 = vmatpush.bf16.msra.mxu0 %v162
  %372 = vmatpush.bf16.msra.mxu0 %v158
  %373 = vmatpush.bf16.msra.mxu0 %v154
  %374 = vmatpush.bf16.msra.mxu0 %v150
  %375 = vmatmul.bf16.gmra.mxu0 %v353
  %v376 = vpop.f32.mrf.mxu0
  %v377 = vadd.f32 0.0, %v376
  %v378 = vpop.f32.mrf.mxu0
  %379 = vdwg.mxu0
  %380 = vmatpush.bf16.msra.mxu0 %v179
  %381 = vmatpush.bf16.msra.mxu0 %v175
  %382 = vmatpush.bf16.msra.mxu0 %v171
  %383 = vmatpush.bf16.msra.mxu0 %v167
  %384 = vmatpush.bf16.msra.mxu0 %v163
  %385 = vmatpush.bf16.msra.mxu0 %v159
  %386 = vmatpush.bf16.msra.mxu0 %v155
  %387 = vmatpush.bf16.msra.mxu0 %v151
  %388 = vmatmul.bf16.gmra.mxu0 %v353
  %v389 = vpop.f32.mrf.mxu0
  %v390 = vadd.f32 0.0, %v389
  %v391 = vpop.f32.mrf.mxu0
  %392 = vdwg.mxu0
  %393 = vmatpush.bf16.msra.mxu0 %v180
  %394 = vmatpush.bf16.msra.mxu0 %v176
  %395 = vmatpush.bf16.msra.mxu0 %v172
  %396 = vmatpush.bf16.msra.mxu0 %v168
  %397 = vmatpush.bf16.msra.mxu0 %v164
  %398 = vmatpush.bf16.msra.mxu0 %v160
  %399 = vmatpush.bf16.msra.mxu0 %v156
  %400 = vmatpush.bf16.msra.mxu0 %v152
  %401 = vmatmul.bf16.gmra.mxu0 %v353
  %v402 = vpop.f32.mrf.mxu0
  %v403 = vadd.f32 0.0, %v402
  %v404 = vpop.f32.mrf.mxu0
  %405 = vdwg.mxu0
  %v410 = vrot.slane %v377, 6
  %v411 = vrot.slane %v390, 4
  %v412 = vrot.slane %v403, 2
  %v413 = vsel %vm272, %v364, %v410
  %v414 = vsel %vm274, %v411, %v412
  %v415 = vsel %vm276, %v413, %v414
  %v417 = vadd.f32 %v352, %v415
  %v419 = vrot.slane %v417, 2
  %v421 = vxor.u32 %v419, 2147483648
  %v422 = vmul.f32 %v421, 1.442695
  %v423 = vpow.pop %v422
  %v424 = vadd.f32 %v423, 1.0
  %v425 = vrcp.pop %v424
  %v426 = vmul.f32 %v424, %v425
  %v427 = vsub.f32 1.0, %v426
  %v428 = vmul.f32 %v425, %v427
  %v429 = vadd.f32 %v425, %v428
  %vm430 = vweird.f32 %v424
  %vm431 = vweird.f32 %v425
  %vm432 = vmor %vm430, %vm431
  %v433 = vsel %vm432, %v425, %v429
  %v434 = vand.u32 2147483647, %v424
  %vm435 = vcmp.eq.f32.partialorder %v434, 8.507059e+37
  %v436 = vand.u32 %v424, 2147483648
  %v437 = vor.u32 1.1754944e-38, %v436
  %v438 = vsel %vm435, %v437, %v433
  %v439 = vmul.f32 1.0, %v438
  %v440 = vmul.f32 %v439, %v326
  %v441 = vxor.u32 %v417, 2147483648
  %v442 = vmul.f32 %v441, 1.442695
  %v443 = vpow.pop %v442
  %v444 = vadd.f32 %v443, 1.0
  %v445 = vrcp.pop %v444
  %v446 = vmul.f32 %v444, %v445
  %v447 = vsub.f32 1.0, %v446
  %v448 = vmul.f32 %v445, %v447
  %v449 = vadd.f32 %v445, %v448
  %vm450 = vweird.f32 %v444
  %vm451 = vweird.f32 %v445
  %vm452 = vmor %vm450, %vm451
  %v453 = vsel %vm452, %v445, %v449
  %v454 = vand.u32 2147483647, %v444
  %vm455 = vcmp.eq.f32.partialorder %v454, 8.507059e+37
  %v456 = vand.u32 %v444, 2147483648
  %v457 = vor.u32 1.1754944e-38, %v456
  %v458 = vsel %vm455, %v457, %v453
  %v459 = vmul.f32 1.0, %v458
  %v460 = vrot.slane %v417, 4
  %v462 = vtanh.pop %v460
  %v463 = vmul.f32 %v459, %v462
  %v464 = vadd.f32 %v440, %v463
  %v465 = vrot.slane %v417, 6
  %v467 = vxor.u32 %v465, 2147483648
  %v468 = vmul.f32 %v467, 1.442695
  %v469 = vpow.pop %v468
  %v470 = vadd.f32 %v469, 1.0
  %v471 = vrcp.pop %v470
  %v472 = vmul.f32 %v470, %v471
  %v473 = vsub.f32 1.0, %v472
  %v474 = vmul.f32 %v471, %v473
  %v475 = vadd.f32 %v471, %v474
  %vm476 = vweird.f32 %v470
  %vm477 = vweird.f32 %v471
  %vm478 = vmor %vm476, %vm477
  %v479 = vsel %vm478, %v471, %v475
  %v480 = vand.u32 2147483647, %v470
  %vm481 = vcmp.eq.f32.partialorder %v480, 8.507059e+37
  %v482 = vand.u32 %v470, 2147483648
  %v483 = vor.u32 1.1754944e-38, %v482
  %v484 = vsel %vm481, %v483, %v479
  %v485 = vmul.f32 1.0, %v484
  %v486 = vtanh.pop %v464
  %v487 = vmul.f32 %v485, %v486
  %s488 = scalar_lea.vmem %s2, 2
  %489 = vst [vmem:[%s488] sm:$0x3] %v487
  %s490 = scalar_lea.vmem %s0, 16
  %v491 = vld [vmem:[%s490] sm:$0xff]
  %v492 = vpack.c.bf16 %v487, %v487
  %493 = vmatpush.bf16.msra.mxu0 %v177
  %494 = vmatpush.bf16.msra.mxu0 %v173
  %495 = vmatpush.bf16.msra.mxu0 %v169
  %496 = vmatpush.bf16.msra.mxu0 %v165
  %497 = vmatpush.bf16.msra.mxu0 %v161
  %498 = vmatpush.bf16.msra.mxu0 %v157
  %499 = vmatpush.bf16.msra.mxu0 %v153
  %500 = vmatpush.bf16.msra.mxu0 %v149
  %501 = vmatmul.bf16.gmra.mxu0 %v492
  %v502 = vpop.f32.mrf.mxu0
  %v503 = vadd.f32 0.0, %v502
  %v504 = vpop.f32.mrf.mxu0
  %505 = vdwg.mxu0
  %506 = vmatpush.bf16.msra.mxu0 %v178
  %507 = vmatpush.bf16.msra.mxu0 %v174
  %508 = vmatpush.bf16.msra.mxu0 %v170
  %509 = vmatpush.bf16.msra.mxu0 %v166
  %510 = vmatpush.bf16.msra.mxu0 %v162
  %511 = vmatpush.bf16.msra.mxu0 %v158
  %512 = vmatpush.bf16.msra.mxu0 %v154
  %513 = vmatpush.bf16.msra.mxu0 %v150
  %514 = vmatmul.bf16.gmra.mxu0 %v492
  %v515 = vpop.f32.mrf.mxu0
  %v516 = vadd.f32 0.0, %v515
  %v517 = vpop.f32.mrf.mxu0
  %518 = vdwg.mxu0
  %519 = vmatpush.bf16.msra.mxu0 %v179
  %520 = vmatpush.bf16.msra.mxu0 %v175
  %521 = vmatpush.bf16.msra.mxu0 %v171
  %522 = vmatpush.bf16.msra.mxu0 %v167
  %523 = vmatpush.bf16.msra.mxu0 %v163
  %524 = vmatpush.bf16.msra.mxu0 %v159
  %525 = vmatpush.bf16.msra.mxu0 %v155
  %526 = vmatpush.bf16.msra.mxu0 %v151
  %527 = vmatmul.bf16.gmra.mxu0 %v492
  %v528 = vpop.f32.mrf.mxu0
  %v529 = vadd.f32 0.0, %v528
  %v530 = vpop.f32.mrf.mxu0
  %531 = vdwg.mxu0
  %532 = vmatpush.bf16.msra.mxu0 %v180
  %533 = vmatpush.bf16.msra.mxu0 %v176
  %534 = vmatpush.bf16.msra.mxu0 %v172
  %535 = vmatpush.bf16.msra.mxu0 %v168
  %536 = vmatpush.bf16.msra.mxu0 %v164
  %537 = vmatpush.bf16.msra.mxu0 %v160
  %538 = vmatpush.bf16.msra.mxu0 %v156
  %539 = vmatpush.bf16.msra.mxu0 %v152
  %540 = vmatmul.bf16.gmra.mxu0 %v492
  %v541 = vpop.f32.mrf.mxu0
  %v542 = vadd.f32 0.0, %v541
  %v543 = vpop.f32.mrf.mxu0
  %544 = vdwg.mxu0
  %v549 = vrot.slane %v516, 6
  %v550 = vrot.slane %v529, 4
  %v551 = vrot.slane %v542, 2
  %v552 = vsel %vm272, %v503, %v549
  %v553 = vsel %vm274, %v550, %v551
  %v554 = vsel %vm276, %v552, %v553
  %v556 = vadd.f32 %v491, %v554
  %v558 = vrot.slane %v556, 2
  %v560 = vxor.u32 %v558, 2147483648
  %v561 = vmul.f32 %v560, 1.442695
  %v562 = vpow.pop %v561
  %v563 = vadd.f32 %v562, 1.0
  %v564 = vrcp.pop %v563
  %v565 = vmul.f32 %v563, %v564
  %v566 = vsub.f32 1.0, %v565
  %v567 = vmul.f32 %v564, %v566
  %v568 = vadd.f32 %v564, %v567
  %vm569 = vweird.f32 %v563
  %vm570 = vweird.f32 %v564
  %vm571 = vmor %vm569, %vm570
  %v572 = vsel %vm571, %v564, %v568
  %v573 = vand.u32 2147483647, %v563
  %vm574 = vcmp.eq.f32.partialorder %v573, 8.507059e+37
  %v575 = vand.u32 %v563, 2147483648
  %v576 = vor.u32 1.1754944e-38, %v575
  %v577 = vsel %vm574, %v576, %v572
  %v578 = vmul.f32 1.0, %v577
  %v579 = vmul.f32 %v578, %v464
  %v580 = vxor.u32 %v556, 2147483648
  %v581 = vmul.f32 %v580, 1.442695
  %v582 = vpow.pop %v581
  %v583 = vadd.f32 %v582, 1.0
  %v584 = vrcp.pop %v583
  %v585 = vmul.f32 %v583, %v584
  %v586 = vsub.f32 1.0, %v585
  %v587 = vmul.f32 %v584, %v586
  %v588 = vadd.f32 %v584, %v587
  %vm589 = vweird.f32 %v583
  %vm590 = vweird.f32 %v584
  %vm591 = vmor %vm589, %vm590
  %v592 = vsel %vm591, %v584, %v588
  %v593 = vand.u32 2147483647, %v583
  %vm594 = vcmp.eq.f32.partialorder %v593, 8.507059e+37
  %v595 = vand.u32 %v583, 2147483648
  %v596 = vor.u32 1.1754944e-38, %v595
  %v597 = vsel %vm594, %v596, %v592
  %v598 = vmul.f32 1.0, %v597
  %v599 = vrot.slane %v556, 4
  %v601 = vtanh.pop %v599
  %v602 = vmul.f32 %v598, %v601
  %v603 = vadd.f32 %v579, %v602
  %v604 = vrot.slane %v556, 6
  %v606 = vxor.u32 %v604, 2147483648
  %v607 = vmul.f32 %v606, 1.442695
  %v608 = vpow.pop %v607
  %v609 = vadd.f32 %v608, 1.0
  %v610 = vrcp.pop %v609
  %v611 = vmul.f32 %v609, %v610
  %v612 = vsub.f32 1.0, %v611
  %v613 = vmul.f32 %v610, %v612
  %v614 = vadd.f32 %v610, %v613
  %vm615 = vweird.f32 %v609
  %vm616 = vweird.f32 %v610
  %vm617 = vmor %vm615, %vm616
  %v618 = vsel %vm617, %v610, %v614
  %v619 = vand.u32 2147483647, %v609
  %vm620 = vcmp.eq.f32.partialorder %v619, 8.507059e+37
  %v621 = vand.u32 %v609, 2147483648
  %v622 = vor.u32 1.1754944e-38, %v621
  %v623 = vsel %vm620, %v622, %v618
  %v624 = vmul.f32 1.0, %v623
  %v625 = vtanh.pop %v603
  %v626 = vmul.f32 %v624, %v625
  %s627 = scalar_lea.vmem %s2, 4
  %628 = vst [vmem:[%s627] sm:$0x3] %v626
  %s629 = scalar_lea.vmem %s0, 24
  %v630 = vld [vmem:[%s629] sm:$0xff]
  %v631 = vpack.c.bf16 %v626, %v626
  %632 = vmatpush.bf16.msra.mxu0 %v177
  %633 = vmatpush.bf16.msra.mxu0 %v173
  %634 = vmatpush.bf16.msra.mxu0 %v169
  %635 = vmatpush.bf16.msra.mxu0 %v165
  %636 = vmatpush.bf16.msra.mxu0 %v161
  %637 = vmatpush.bf16.msra.mxu0 %v157
  %638 = vmatpush.bf16.msra.mxu0 %v153
  %639 = vmatpush.bf16.msra.mxu0 %v149
  %640 = vmatmul.bf16.gmra.mxu0 %v631
  %v641 = vpop.f32.mrf.mxu0
  %v642 = vadd.f32 0.0, %v641
  %v643 = vpop.f32.mrf.mxu0
  %644 = vdwg.mxu0
  %645 = vmatpush.bf16.msra.mxu0 %v178
  %646 = vmatpush.bf16.msra.mxu0 %v174
  %647 = vmatpush.bf16.msra.mxu0 %v170
  %648 = vmatpush.bf16.msra.mxu0 %v166
  %649 = vmatpush.bf16.msra.mxu0 %v162
  %650 = vmatpush.bf16.msra.mxu0 %v158
  %651 = vmatpush.bf16.msra.mxu0 %v154
  %652 = vmatpush.bf16.msra.mxu0 %v150
  %653 = vmatmul.bf16.gmra.mxu0 %v631
  %v654 = vpop.f32.mrf.mxu0
  %v655 = vadd.f32 0.0, %v654
  %v656 = vpop.f32.mrf.mxu0
  %657 = vdwg.mxu0
  %658 = vmatpush.bf16.msra.mxu0 %v179
  %659 = vmatpush.bf16.msra.mxu0 %v175
  %660 = vmatpush.bf16.msra.mxu0 %v171
  %661 = vmatpush.bf16.msra.mxu0 %v167
  %662 = vmatpush.bf16.msra.mxu0 %v163
  %663 = vmatpush.bf16.msra.mxu0 %v159
  %664 = vmatpush.bf16.msra.mxu0 %v155
  %665 = vmatpush.bf16.msra.mxu0 %v151
  %666 = vmatmul.bf16.gmra.mxu0 %v631
  %v667 = vpop.f32.mrf.mxu0
  %v668 = vadd.f32 0.0, %v667
  %v669 = vpop.f32.mrf.mxu0
  %670 = vdwg.mxu0
  %671 = vmatpush.bf16.msra.mxu0 %v180
  %672 = vmatpush.bf16.msra.mxu0 %v176
  %673 = vmatpush.bf16.msra.mxu0 %v172
  %674 = vmatpush.bf16.msra.mxu0 %v168
  %675 = vmatpush.bf16.msra.mxu0 %v164
  %676 = vmatpush.bf16.msra.mxu0 %v160
  %677 = vmatpush.bf16.msra.mxu0 %v156
  %678 = vmatpush.bf16.msra.mxu0 %v152
  %679 = vmatmul.bf16.gmra.mxu0 %v631
  %v680 = vpop.f32.mrf.mxu0
  %v681 = vadd.f32 0.0, %v680
  %v682 = vpop.f32.mrf.mxu0
  %683 = vdwg.mxu0
  %v688 = vrot.slane %v655, 6
  %v689 = vrot.slane %v668, 4
  %v690 = vrot.slane %v681, 2
  %v691 = vsel %vm272, %v642, %v688
  %v692 = vsel %vm274, %v689, %v690
  %v693 = vsel %vm276, %v691, %v692
  %v695 = vadd.f32 %v630, %v693
  %v697 = vrot.slane %v695, 2
  %v699 = vxor.u32 %v697, 2147483648
  %v700 = vmul.f32 %v699, 1.442695
  %v701 = vpow.pop %v700
  %v702 = vadd.f32 %v701, 1.0
  %v703 = vrcp.pop %v702
  %v704 = vmul.f32 %v702, %v703
  %v705 = vsub.f32 1.0, %v704
  %v706 = vmul.f32 %v703, %v705
  %v707 = vadd.f32 %v703, %v706
  %vm708 = vweird.f32 %v702
  %vm709 = vweird.f32 %v703
  %vm710 = vmor %vm708, %vm709
  %v711 = vsel %vm710, %v703, %v707
  %v712 = vand.u32 2147483647, %v702
  %vm713 = vcmp.eq.f32.partialorder %v712, 8.507059e+37
  %v714 = vand.u32 %v702, 2147483648
  %v715 = vor.u32 1.1754944e-38, %v714
  %v716 = vsel %vm713, %v715, %v711
  %v717 = vmul.f32 1.0, %v716
  %v718 = vmul.f32 %v717, %v603
  %v719 = vxor.u32 %v695, 2147483648
  %v720 = vmul.f32 %v719, 1.442695
  %v721 = vpow.pop %v720
  %v722 = vadd.f32 %v721, 1.0
  %v723 = vrcp.pop %v722
  %v724 = vmul.f32 %v722, %v723
  %v725 = vsub.f32 1.0, %v724
  %v726 = vmul.f32 %v723, %v725
  %v727 = vadd.f32 %v723, %v726
  %vm728 = vweird.f32 %v722
  %vm729 = vweird.f32 %v723
  %vm730 = vmor %vm728, %vm729
  %v731 = vsel %vm730, %v723, %v727
  %v732 = vand.u32 2147483647, %v722
  %vm733 = vcmp.eq.f32.partialorder %v732, 8.507059e+37
  %v734 = vand.u32 %v722, 2147483648
  %v735 = vor.u32 1.1754944e-38, %v734
  %v736 = vsel %vm733, %v735, %v731
  %v737 = vmul.f32 1.0, %v736
  %v738 = vrot.slane %v695, 4
  %v740 = vtanh.pop %v738
  %v741 = vmul.f32 %v737, %v740
  %v742 = vadd.f32 %v718, %v741
  %v743 = vrot.slane %v695, 6
  %v745 = vxor.u32 %v743, 2147483648
  %v746 = vmul.f32 %v745, 1.442695
  %v747 = vpow.pop %v746
  %v748 = vadd.f32 %v747, 1.0
  %v749 = vrcp.pop %v748
  %v750 = vmul.f32 %v748, %v749
  %v751 = vsub.f32 1.0, %v750
  %v752 = vmul.f32 %v749, %v751
  %v753 = vadd.f32 %v749, %v752
  %vm754 = vweird.f32 %v748
  %vm755 = vweird.f32 %v749
  %vm756 = vmor %vm754, %vm755
  %v757 = vsel %vm756, %v749, %v753
  %v758 = vand.u32 2147483647, %v748
  %vm759 = vcmp.eq.f32.partialorder %v758, 8.507059e+37
  %v760 = vand.u32 %v748, 2147483648
  %v761 = vor.u32 1.1754944e-38, %v760
  %v762 = vsel %vm759, %v761, %v757
  %v763 = vmul.f32 1.0, %v762
  %v764 = vtanh.pop %v742
  %v765 = vmul.f32 %v763, %v764
  %s766 = scalar_lea.vmem %s2, 6
  %767 = vst [vmem:[%s766] sm:$0x3] %v765
  %s768 = scalar_lea.vmem %s0, 32
  %v769 = vld [vmem:[%s768] sm:$0xff]
  %v770 = vpack.c.bf16 %v765, %v765
  %771 = vmatpush.bf16.msra.mxu0 %v177
  %772 = vmatpush.bf16.msra.mxu0 %v173
  %773 = vmatpush.bf16.msra.mxu0 %v169
  %774 = vmatpush.bf16.msra.mxu0 %v165
  %775 = vmatpush.bf16.msra.mxu0 %v161
  %776 = vmatpush.bf16.msra.mxu0 %v157
  %777 = vmatpush.bf16.msra.mxu0 %v153
  %778 = vmatpush.bf16.msra.mxu0 %v149
  %779 = vmatmul.bf16.gmra.mxu0 %v770
  %v780 = vpop.f32.mrf.mxu0
  %v781 = vadd.f32 0.0, %v780
  %v782 = vpop.f32.mrf.mxu0
  %783 = vdwg.mxu0
  %784 = vmatpush.bf16.msra.mxu0 %v178
  %785 = vmatpush.bf16.msra.mxu0 %v174
  %786 = vmatpush.bf16.msra.mxu0 %v170
  %787 = vmatpush.bf16.msra.mxu0 %v166
  %788 = vmatpush.bf16.msra.mxu0 %v162
  %789 = vmatpush.bf16.msra.mxu0 %v158
  %790 = vmatpush.bf16.msra.mxu0 %v154
  %791 = vmatpush.bf16.msra.mxu0 %v150
  %792 = vmatmul.bf16.gmra.mxu0 %v770
  %v793 = vpop.f32.mrf.mxu0
  %v794 = vadd.f32 0.0, %v793
  %v795 = vpop.f32.mrf.mxu0
  %796 = vdwg.mxu0
  %797 = vmatpush.bf16.msra.mxu0 %v179
  %798 = vmatpush.bf16.msra.mxu0 %v175
  %799 = vmatpush.bf16.msra.mxu0 %v171
  %800 = vmatpush.bf16.msra.mxu0 %v167
  %801 = vmatpush.bf16.msra.mxu0 %v163
  %802 = vmatpush.bf16.msra.mxu0 %v159
  %803 = vmatpush.bf16.msra.mxu0 %v155
  %804 = vmatpush.bf16.msra.mxu0 %v151
  %805 = vmatmul.bf16.gmra.mxu0 %v770
  %v806 = vpop.f32.mrf.mxu0
  %v807 = vadd.f32 0.0, %v806
  %v808 = vpop.f32.mrf.mxu0
  %809 = vdwg.mxu0
  %810 = vmatpush.bf16.msra.mxu0 %v180
  %811 = vmatpush.bf16.msra.mxu0 %v176
  %812 = vmatpush.bf16.msra.mxu0 %v172
  %813 = vmatpush.bf16.msra.mxu0 %v168
  %814 = vmatpush.bf16.msra.mxu0 %v164
  %815 = vmatpush.bf16.msra.mxu0 %v160
  %816 = vmatpush.bf16.msra.mxu0 %v156
  %817 = vmatpush.bf16.msra.mxu0 %v152
  %818 = vmatmul.bf16.gmra.mxu0 %v770
  %v819 = vpop.f32.mrf.mxu0
  %v820 = vadd.f32 0.0, %v819
  %v821 = vpop.f32.mrf.mxu0
  %822 = vdwg.mxu0
  %v827 = vrot.slane %v794, 6
  %v828 = vrot.slane %v807, 4
  %v829 = vrot.slane %v820, 2
  %v830 = vsel %vm272, %v781, %v827
  %v831 = vsel %vm274, %v828, %v829
  %v832 = vsel %vm276, %v830, %v831
  %v834 = vadd.f32 %v769, %v832
  %v836 = vrot.slane %v834, 2
  %v838 = vxor.u32 %v836, 2147483648
  %v839 = vmul.f32 %v838, 1.442695
  %v840 = vpow.pop %v839
  %v841 = vadd.f32 %v840, 1.0
  %v842 = vrcp.pop %v841
  %v843 = vmul.f32 %v841, %v842
  %v844 = vsub.f32 1.0, %v843
  %v845 = vmul.f32 %v842, %v844
  %v846 = vadd.f32 %v842, %v845
  %vm847 = vweird.f32 %v841
  %vm848 = vweird.f32 %v842
  %vm849 = vmor %vm847, %vm848
  %v850 = vsel %vm849, %v842, %v846
  %v851 = vand.u32 2147483647, %v841
  %vm852 = vcmp.eq.f32.partialorder %v851, 8.507059e+37
  %v853 = vand.u32 %v841, 2147483648
  %v854 = vor.u32 1.1754944e-38, %v853
  %v855 = vsel %vm852, %v854, %v850
  %v856 = vmul.f32 1.0, %v855
  %v857 = vmul.f32 %v856, %v742
  %v858 = vxor.u32 %v834, 2147483648
  %v859 = vmul.f32 %v858, 1.442695
  %v860 = vpow.pop %v859
  %v861 = vadd.f32 %v860, 1.0
  %v862 = vrcp.pop %v861
  %v863 = vmul.f32 %v861, %v862
  %v864 = vsub.f32 1.0, %v863
  %v865 = vmul.f32 %v862, %v864
  %v866 = vadd.f32 %v862, %v865
  %vm867 = vweird.f32 %v861
  %vm868 = vweird.f32 %v862
  %vm869 = vmor %vm867, %vm868
  %v870 = vsel %vm869, %v862, %v866
  %v871 = vand.u32 2147483647, %v861
  %vm872 = vcmp.eq.f32.partialorder %v871, 8.507059e+37
  %v873 = vand.u32 %v861, 2147483648
  %v874 = vor.u32 1.1754944e-38, %v873
  %v875 = vsel %vm872, %v874, %v870
  %v876 = vmul.f32 1.0, %v875
  %v877 = vrot.slane %v834, 4
  %v879 = vtanh.pop %v877
  %v880 = vmul.f32 %v876, %v879
  %v881 = vadd.f32 %v857, %v880
  %v882 = vrot.slane %v834, 6
  %v884 = vxor.u32 %v882, 2147483648
  %v885 = vmul.f32 %v884, 1.442695
  %v886 = vpow.pop %v885
  %v887 = vadd.f32 %v886, 1.0
  %v888 = vrcp.pop %v887
  %v889 = vmul.f32 %v887, %v888
  %v890 = vsub.f32 1.0, %v889
  %v891 = vmul.f32 %v888, %v890
  %v892 = vadd.f32 %v888, %v891
  %vm893 = vweird.f32 %v887
  %vm894 = vweird.f32 %v888
  %vm895 = vmor %vm893, %vm894
  %v896 = vsel %vm895, %v888, %v892
  %v897 = vand.u32 2147483647, %v887
  %vm898 = vcmp.eq.f32.partialorder %v897, 8.507059e+37
  %v899 = vand.u32 %v887, 2147483648
  %v900 = vor.u32 1.1754944e-38, %v899
  %v901 = vsel %vm898, %v900, %v896
  %v902 = vmul.f32 1.0, %v901
  %v903 = vtanh.pop %v881
  %v904 = vmul.f32 %v902, %v903
  %s905 = scalar_lea.vmem %s2, 8
  %906 = vst [vmem:[%s905] sm:$0x3] %v904
  %s907 = scalar_lea.vmem %s0, 40
  %v908 = vld [vmem:[%s907] sm:$0xff]
  %v909 = vpack.c.bf16 %v904, %v904
  %910 = vmatpush.bf16.msra.mxu0 %v177
  %911 = vmatpush.bf16.msra.mxu0 %v173
  %912 = vmatpush.bf16.msra.mxu0 %v169
  %913 = vmatpush.bf16.msra.mxu0 %v165
  %914 = vmatpush.bf16.msra.mxu0 %v161
  %915 = vmatpush.bf16.msra.mxu0 %v157
  %916 = vmatpush.bf16.msra.mxu0 %v153
  %917 = vmatpush.bf16.msra.mxu0 %v149
  %918 = vmatmul.bf16.gmra.mxu0 %v909
  %v919 = vpop.f32.mrf.mxu0
  %v920 = vadd.f32 0.0, %v919
  %v921 = vpop.f32.mrf.mxu0
  %922 = vdwg.mxu0
  %923 = vmatpush.bf16.msra.mxu0 %v178
  %924 = vmatpush.bf16.msra.mxu0 %v174
  %925 = vmatpush.bf16.msra.mxu0 %v170
  %926 = vmatpush.bf16.msra.mxu0 %v166
  %927 = vmatpush.bf16.msra.mxu0 %v162
  %928 = vmatpush.bf16.msra.mxu0 %v158
  %929 = vmatpush.bf16.msra.mxu0 %v154
  %930 = vmatpush.bf16.msra.mxu0 %v150
  %931 = vmatmul.bf16.gmra.mxu0 %v909
  %v932 = vpop.f32.mrf.mxu0
  %v933 = vadd.f32 0.0, %v932
  %v934 = vpop.f32.mrf.mxu0
  %935 = vdwg.mxu0
  %936 = vmatpush.bf16.msra.mxu0 %v179
  %937 = vmatpush.bf16.msra.mxu0 %v175
  %938 = vmatpush.bf16.msra.mxu0 %v171
  %939 = vmatpush.bf16.msra.mxu0 %v167
  %940 = vmatpush.bf16.msra.mxu0 %v163
  %941 = vmatpush.bf16.msra.mxu0 %v159
  %942 = vmatpush.bf16.msra.mxu0 %v155
  %943 = vmatpush.bf16.msra.mxu0 %v151
  %944 = vmatmul.bf16.gmra.mxu0 %v909
  %v945 = vpop.f32.mrf.mxu0
  %v946 = vadd.f32 0.0, %v945
  %v947 = vpop.f32.mrf.mxu0
  %948 = vdwg.mxu0
  %949 = vmatpush.bf16.msra.mxu0 %v180
  %950 = vmatpush.bf16.msra.mxu0 %v176
  %951 = vmatpush.bf16.msra.mxu0 %v172
  %952 = vmatpush.bf16.msra.mxu0 %v168
  %953 = vmatpush.bf16.msra.mxu0 %v164
  %954 = vmatpush.bf16.msra.mxu0 %v160
  %955 = vmatpush.bf16.msra.mxu0 %v156
  %956 = vmatpush.bf16.msra.mxu0 %v152
  %957 = vmatmul.bf16.gmra.mxu0 %v909
  %v958 = vpop.f32.mrf.mxu0
  %v959 = vadd.f32 0.0, %v958
  %v960 = vpop.f32.mrf.mxu0
  %961 = vdwg.mxu0
  %v966 = vrot.slane %v933, 6
  %v967 = vrot.slane %v946, 4
  %v968 = vrot.slane %v959, 2
  %v969 = vsel %vm272, %v920, %v966
  %v970 = vsel %vm274, %v967, %v968
  %v971 = vsel %vm276, %v969, %v970
  %v973 = vadd.f32 %v908, %v971
  %v975 = vrot.slane %v973, 2
  %v977 = vxor.u32 %v975, 2147483648
  %v978 = vmul.f32 %v977, 1.442695
  %v979 = vpow.pop %v978
  %v980 = vadd.f32 %v979, 1.0
  %v981 = vrcp.pop %v980
  %v982 = vmul.f32 %v980, %v981
  %v983 = vsub.f32 1.0, %v982
  %v984 = vmul.f32 %v981, %v983
  %v985 = vadd.f32 %v981, %v984
  %vm986 = vweird.f32 %v980
  %vm987 = vweird.f32 %v981
  %vm988 = vmor %vm986, %vm987
  %v989 = vsel %vm988, %v981, %v985
  %v990 = vand.u32 2147483647, %v980
  %vm991 = vcmp.eq.f32.partialorder %v990, 8.507059e+37
  %v992 = vand.u32 %v980, 2147483648
  %v993 = vor.u32 1.1754944e-38, %v992
  %v994 = vsel %vm991, %v993, %v989
  %v995 = vmul.f32 1.0, %v994
  %v996 = vmul.f32 %v995, %v881
  %v997 = vxor.u32 %v973, 2147483648
  %v998 = vmul.f32 %v997, 1.442695
  %v999 = vpow.pop %v998
  %v1000 = vadd.f32 %v999, 1.0
  %v1001 = vrcp.pop %v1000
  %v1002 = vmul.f32 %v1000, %v1001
  %v1003 = vsub.f32 1.0, %v1002
  %v1004 = vmul.f32 %v1001, %v1003
  %v1005 = vadd.f32 %v1001, %v1004
  %vm1006 = vweird.f32 %v1000
  %vm1007 = vweird.f32 %v1001
  %vm1008 = vmor %vm1006, %vm1007
  %v1009 = vsel %vm1008, %v1001, %v1005
  %v1010 = vand.u32 2147483647, %v1000
  %vm1011 = vcmp.eq.f32.partialorder %v1010, 8.507059e+37
  %v1012 = vand.u32 %v1000, 2147483648
  %v1013 = vor.u32 1.1754944e-38, %v1012
  %v1014 = vsel %vm1011, %v1013, %v1009
  %v1015 = vmul.f32 1.0, %v1014
  %v1016 = vrot.slane %v973, 4
  %v1018 = vtanh.pop %v1016
  %v1019 = vmul.f32 %v1015, %v1018
  %v1020 = vadd.f32 %v996, %v1019
  %v1021 = vrot.slane %v973, 6
  %v1023 = vxor.u32 %v1021, 2147483648
  %v1024 = vmul.f32 %v1023, 1.442695
  %v1025 = vpow.pop %v1024
  %v1026 = vadd.f32 %v1025, 1.0
  %v1027 = vrcp.pop %v1026
  %v1028 = vmul.f32 %v1026, %v1027
  %v1029 = vsub.f32 1.0, %v1028
  %v1030 = vmul.f32 %v1027, %v1029
  %v1031 = vadd.f32 %v1027, %v1030
  %vm1032 = vweird.f32 %v1026
  %vm1033 = vweird.f32 %v1027
  %vm1034 = vmor %vm1032, %vm1033
  %v1035 = vsel %vm1034, %v1027, %v1031
  %v1036 = vand.u32 2147483647, %v1026
  %vm1037 = vcmp.eq.f32.partialorder %v1036, 8.507059e+37
  %v1038 = vand.u32 %v1026, 2147483648
  %v1039 = vor.u32 1.1754944e-38, %v1038
  %v1040 = vsel %vm1037, %v1039, %v1035
  %v1041 = vmul.f32 1.0, %v1040
  %v1042 = vtanh.pop %v1020
  %v1043 = vmul.f32 %v1041, %v1042
  %s1044 = scalar_lea.vmem %s2, 10
  %1045 = vst [vmem:[%s1044] sm:$0x3] %v1043
  %s1046 = scalar_lea.vmem %s0, 48
  %v1047 = vld [vmem:[%s1046] sm:$0xff]
  %v1048 = vpack.c.bf16 %v1043, %v1043
  %1049 = vmatpush.bf16.msra.mxu0 %v177
  %1050 = vmatpush.bf16.msra.mxu0 %v173
  %1051 = vmatpush.bf16.msra.mxu0 %v169
  %1052 = vmatpush.bf16.msra.mxu0 %v165
  %1053 = vmatpush.bf16.msra.mxu0 %v161
  %1054 = vmatpush.bf16.msra.mxu0 %v157
  %1055 = vmatpush.bf16.msra.mxu0 %v153
  %1056 = vmatpush.bf16.msra.mxu0 %v149
  %1057 = vmatmul.bf16.gmra.mxu0 %v1048
  %v1058 = vpop.f32.mrf.mxu0
  %v1059 = vadd.f32 0.0, %v1058
  %v1060 = vpop.f32.mrf.mxu0
  %1061 = vdwg.mxu0
  %1062 = vmatpush.bf16.msra.mxu0 %v178
  %1063 = vmatpush.bf16.msra.mxu0 %v174
  %1064 = vmatpush.bf16.msra.mxu0 %v170
  %1065 = vmatpush.bf16.msra.mxu0 %v166
  %1066 = vmatpush.bf16.msra.mxu0 %v162
  %1067 = vmatpush.bf16.msra.mxu0 %v158
  %1068 = vmatpush.bf16.msra.mxu0 %v154
  %1069 = vmatpush.bf16.msra.mxu0 %v150
  %1070 = vmatmul.bf16.gmra.mxu0 %v1048
  %v1071 = vpop.f32.mrf.mxu0
  %v1072 = vadd.f32 0.0, %v1071
  %v1073 = vpop.f32.mrf.mxu0
  %1074 = vdwg.mxu0
  %1075 = vmatpush.bf16.msra.mxu0 %v179
  %1076 = vmatpush.bf16.msra.mxu0 %v175
  %1077 = vmatpush.bf16.msra.mxu0 %v171
  %1078 = vmatpush.bf16.msra.mxu0 %v167
  %1079 = vmatpush.bf16.msra.mxu0 %v163
  %1080 = vmatpush.bf16.msra.mxu0 %v159
  %1081 = vmatpush.bf16.msra.mxu0 %v155
  %1082 = vmatpush.bf16.msra.mxu0 %v151
  %1083 = vmatmul.bf16.gmra.mxu0 %v1048
  %v1084 = vpop.f32.mrf.mxu0
  %v1085 = vadd.f32 0.0, %v1084
  %v1086 = vpop.f32.mrf.mxu0
  %1087 = vdwg.mxu0
  %1088 = vmatpush.bf16.msra.mxu0 %v180
  %1089 = vmatpush.bf16.msra.mxu0 %v176
  %1090 = vmatpush.bf16.msra.mxu0 %v172
  %1091 = vmatpush.bf16.msra.mxu0 %v168
  %1092 = vmatpush.bf16.msra.mxu0 %v164
  %1093 = vmatpush.bf16.msra.mxu0 %v160
  %1094 = vmatpush.bf16.msra.mxu0 %v156
  %1095 = vmatpush.bf16.msra.mxu0 %v152
  %1096 = vmatmul.bf16.gmra.mxu0 %v1048
  %v1097 = vpop.f32.mrf.mxu0
  %v1098 = vadd.f32 0.0, %v1097
  %v1099 = vpop.f32.mrf.mxu0
  %1100 = vdwg.mxu0
  %v1105 = vrot.slane %v1072, 6
  %v1106 = vrot.slane %v1085, 4
  %v1107 = vrot.slane %v1098, 2
  %v1108 = vsel %vm272, %v1059, %v1105
  %v1109 = vsel %vm274, %v1106, %v1107
  %v1110 = vsel %vm276, %v1108, %v1109
  %v1112 = vadd.f32 %v1047, %v1110
  %v1114 = vrot.slane %v1112, 2
  %v1116 = vxor.u32 %v1114, 2147483648
  %v1117 = vmul.f32 %v1116, 1.442695
  %v1118 = vpow.pop %v1117
  %v1119 = vadd.f32 %v1118, 1.0
  %v1120 = vrcp.pop %v1119
  %v1121 = vmul.f32 %v1119, %v1120
  %v1122 = vsub.f32 1.0, %v1121
  %v1123 = vmul.f32 %v1120, %v1122
  %v1124 = vadd.f32 %v1120, %v1123
  %vm1125 = vweird.f32 %v1119
  %vm1126 = vweird.f32 %v1120
  %vm1127 = vmor %vm1125, %vm1126
  %v1128 = vsel %vm1127, %v1120, %v1124
  %v1129 = vand.u32 2147483647, %v1119
  %vm1130 = vcmp.eq.f32.partialorder %v1129, 8.507059e+37
  %v1131 = vand.u32 %v1119, 2147483648
  %v1132 = vor.u32 1.1754944e-38, %v1131
  %v1133 = vsel %vm1130, %v1132, %v1128
  %v1134 = vmul.f32 1.0, %v1133
  %v1135 = vmul.f32 %v1134, %v1020
  %v1136 = vxor.u32 %v1112, 2147483648
  %v1137 = vmul.f32 %v1136, 1.442695
  %v1138 = vpow.pop %v1137
  %v1139 = vadd.f32 %v1138, 1.0
  %v1140 = vrcp.pop %v1139
  %v1141 = vmul.f32 %v1139, %v1140
  %v1142 = vsub.f32 1.0, %v1141
  %v1143 = vmul.f32 %v1140, %v1142
  %v1144 = vadd.f32 %v1140, %v1143
  %vm1145 = vweird.f32 %v1139
  %vm1146 = vweird.f32 %v1140
  %vm1147 = vmor %vm1145, %vm1146
  %v1148 = vsel %vm1147, %v1140, %v1144
  %v1149 = vand.u32 2147483647, %v1139
  %vm1150 = vcmp.eq.f32.partialorder %v1149, 8.507059e+37
  %v1151 = vand.u32 %v1139, 2147483648
  %v1152 = vor.u32 1.1754944e-38, %v1151
  %v1153 = vsel %vm1150, %v1152, %v1148
  %v1154 = vmul.f32 1.0, %v1153
  %v1155 = vrot.slane %v1112, 4
  %v1157 = vtanh.pop %v1155
  %v1158 = vmul.f32 %v1154, %v1157
  %v1159 = vadd.f32 %v1135, %v1158
  %v1160 = vrot.slane %v1112, 6
  %v1162 = vxor.u32 %v1160, 2147483648
  %v1163 = vmul.f32 %v1162, 1.442695
  %v1164 = vpow.pop %v1163
  %v1165 = vadd.f32 %v1164, 1.0
  %v1166 = vrcp.pop %v1165
  %v1167 = vmul.f32 %v1165, %v1166
  %v1168 = vsub.f32 1.0, %v1167
  %v1169 = vmul.f32 %v1166, %v1168
  %v1170 = vadd.f32 %v1166, %v1169
  %vm1171 = vweird.f32 %v1165
  %vm1172 = vweird.f32 %v1166
  %vm1173 = vmor %vm1171, %vm1172
  %v1174 = vsel %vm1173, %v1166, %v1170
  %v1175 = vand.u32 2147483647, %v1165
  %vm1176 = vcmp.eq.f32.partialorder %v1175, 8.507059e+37
  %v1177 = vand.u32 %v1165, 2147483648
  %v1178 = vor.u32 1.1754944e-38, %v1177
  %v1179 = vsel %vm1176, %v1178, %v1174
  %v1180 = vmul.f32 1.0, %v1179
  %v1181 = vtanh.pop %v1159
  %v1182 = vmul.f32 %v1180, %v1181
  %s1183 = scalar_lea.vmem %s2, 12
  %1184 = vst [vmem:[%s1183] sm:$0x3] %v1182
  %s1185 = scalar_lea.vmem %s0, 56
  %v1186 = vld [vmem:[%s1185] sm:$0xff]
  %v1187 = vpack.c.bf16 %v1182, %v1182
  %1188 = vmatpush.bf16.msra.mxu0 %v177
  %1189 = vmatpush.bf16.msra.mxu0 %v173
  %1190 = vmatpush.bf16.msra.mxu0 %v169
  %1191 = vmatpush.bf16.msra.mxu0 %v165
  %1192 = vmatpush.bf16.msra.mxu0 %v161
  %1193 = vmatpush.bf16.msra.mxu0 %v157
  %1194 = vmatpush.bf16.msra.mxu0 %v153
  %1195 = vmatpush.bf16.msra.mxu0 %v149
  %1196 = vmatmul.bf16.gmra.mxu0 %v1187
  %v1197 = vpop.f32.mrf.mxu0
  %v1198 = vadd.f32 0.0, %v1197
  %v1199 = vpop.f32.mrf.mxu0
  %1200 = vdwg.mxu0
  %1201 = vmatpush.bf16.msra.mxu0 %v178
  %1202 = vmatpush.bf16.msra.mxu0 %v174
  %1203 = vmatpush.bf16.msra.mxu0 %v170
  %1204 = vmatpush.bf16.msra.mxu0 %v166
  %1205 = vmatpush.bf16.msra.mxu0 %v162
  %1206 = vmatpush.bf16.msra.mxu0 %v158
  %1207 = vmatpush.bf16.msra.mxu0 %v154
  %1208 = vmatpush.bf16.msra.mxu0 %v150
  %1209 = vmatmul.bf16.gmra.mxu0 %v1187
  %v1210 = vpop.f32.mrf.mxu0
  %v1211 = vadd.f32 0.0, %v1210
  %v1212 = vpop.f32.mrf.mxu0
  %1213 = vdwg.mxu0
  %1214 = vmatpush.bf16.msra.mxu0 %v179
  %1215 = vmatpush.bf16.msra.mxu0 %v175
  %1216 = vmatpush.bf16.msra.mxu0 %v171
  %1217 = vmatpush.bf16.msra.mxu0 %v167
  %1218 = vmatpush.bf16.msra.mxu0 %v163
  %1219 = vmatpush.bf16.msra.mxu0 %v159
  %1220 = vmatpush.bf16.msra.mxu0 %v155
  %1221 = vmatpush.bf16.msra.mxu0 %v151
  %1222 = vmatmul.bf16.gmra.mxu0 %v1187
  %v1223 = vpop.f32.mrf.mxu0
  %v1224 = vadd.f32 0.0, %v1223
  %v1225 = vpop.f32.mrf.mxu0
  %1226 = vdwg.mxu0
  %1227 = vmatpush.bf16.msra.mxu0 %v180
  %1228 = vmatpush.bf16.msra.mxu0 %v176
  %1229 = vmatpush.bf16.msra.mxu0 %v172
  %1230 = vmatpush.bf16.msra.mxu0 %v168
  %1231 = vmatpush.bf16.msra.mxu0 %v164
  %1232 = vmatpush.bf16.msra.mxu0 %v160
  %1233 = vmatpush.bf16.msra.mxu0 %v156
  %1234 = vmatpush.bf16.msra.mxu0 %v152
  %1235 = vmatmul.bf16.gmra.mxu0 %v1187
  %v1236 = vpop.f32.mrf.mxu0
  %v1237 = vadd.f32 0.0, %v1236
  %v1238 = vpop.f32.mrf.mxu0
  %1239 = vdwg.mxu0
  %v1244 = vrot.slane %v1211, 6
  %v1245 = vrot.slane %v1224, 4
  %v1246 = vrot.slane %v1237, 2
  %v1247 = vsel %vm272, %v1198, %v1244
  %v1248 = vsel %vm274, %v1245, %v1246
  %v1249 = vsel %vm276, %v1247, %v1248
  %v1251 = vadd.f32 %v1186, %v1249
  %v1253 = vrot.slane %v1251, 2
  %v1255 = vxor.u32 %v1253, 2147483648
  %v1256 = vmul.f32 %v1255, 1.442695
  %v1257 = vpow.pop %v1256
  %v1258 = vadd.f32 %v1257, 1.0
  %v1259 = vrcp.pop %v1258
  %v1260 = vmul.f32 %v1258, %v1259
  %v1261 = vsub.f32 1.0, %v1260
  %v1262 = vmul.f32 %v1259, %v1261
  %v1263 = vadd.f32 %v1259, %v1262
  %vm1264 = vweird.f32 %v1258
  %vm1265 = vweird.f32 %v1259
  %vm1266 = vmor %vm1264, %vm1265
  %v1267 = vsel %vm1266, %v1259, %v1263
  %v1268 = vand.u32 2147483647, %v1258
  %vm1269 = vcmp.eq.f32.partialorder %v1268, 8.507059e+37
  %v1270 = vand.u32 %v1258, 2147483648
  %v1271 = vor.u32 1.1754944e-38, %v1270
  %v1272 = vsel %vm1269, %v1271, %v1267
  %v1273 = vmul.f32 1.0, %v1272
  %v1274 = vmul.f32 %v1273, %v1159
  %v1275 = vxor.u32 %v1251, 2147483648
  %v1276 = vmul.f32 %v1275, 1.442695
  %v1277 = vpow.pop %v1276
  %v1278 = vadd.f32 %v1277, 1.0
  %v1279 = vrcp.pop %v1278
  %v1280 = vmul.f32 %v1278, %v1279
  %v1281 = vsub.f32 1.0, %v1280
  %v1282 = vmul.f32 %v1279, %v1281
  %v1283 = vadd.f32 %v1279, %v1282
  %vm1284 = vweird.f32 %v1278
  %vm1285 = vweird.f32 %v1279
  %vm1286 = vmor %vm1284, %vm1285
  %v1287 = vsel %vm1286, %v1279, %v1283
  %v1288 = vand.u32 2147483647, %v1278
  %vm1289 = vcmp.eq.f32.partialorder %v1288, 8.507059e+37
  %v1290 = vand.u32 %v1278, 2147483648
  %v1291 = vor.u32 1.1754944e-38, %v1290
  %v1292 = vsel %vm1289, %v1291, %v1287
  %v1293 = vmul.f32 1.0, %v1292
  %v1294 = vrot.slane %v1251, 4
  %v1296 = vtanh.pop %v1294
  %v1297 = vmul.f32 %v1293, %v1296
  %v1298 = vadd.f32 %v1274, %v1297
  %v1299 = vrot.slane %v1251, 6
  %v1301 = vxor.u32 %v1299, 2147483648
  %v1302 = vmul.f32 %v1301, 1.442695
  %v1303 = vpow.pop %v1302
  %v1304 = vadd.f32 %v1303, 1.0
  %v1305 = vrcp.pop %v1304
  %v1306 = vmul.f32 %v1304, %v1305
  %v1307 = vsub.f32 1.0, %v1306
  %v1308 = vmul.f32 %v1305, %v1307
  %v1309 = vadd.f32 %v1305, %v1308
  %vm1310 = vweird.f32 %v1304
  %vm1311 = vweird.f32 %v1305
  %vm1312 = vmor %vm1310, %vm1311
  %v1313 = vsel %vm1312, %v1305, %v1309
  %v1314 = vand.u32 2147483647, %v1304
  %vm1315 = vcmp.eq.f32.partialorder %v1314, 8.507059e+37
  %v1316 = vand.u32 %v1304, 2147483648
  %v1317 = vor.u32 1.1754944e-38, %v1316
  %v1318 = vsel %vm1315, %v1317, %v1313
  %v1319 = vmul.f32 1.0, %v1318
  %v1320 = vtanh.pop %v1298
  %v1321 = vmul.f32 %v1319, %v1320
  %s1322 = scalar_lea.vmem %s2, 14
  %1323 = vst [vmem:[%s1322] sm:$0x3] %v1321
  %s1324 = scalar_lea.vmem %s0, 64
  %v1325 = vld [vmem:[%s1324] sm:$0xff]
  %v1326 = vpack.c.bf16 %v1321, %v1321
  %1327 = vmatpush.bf16.msra.mxu0 %v177
  %1328 = vmatpush.bf16.msra.mxu0 %v173
  %1329 = vmatpush.bf16.msra.mxu0 %v169
  %1330 = vmatpush.bf16.msra.mxu0 %v165
  %1331 = vmatpush.bf16.msra.mxu0 %v161
  %1332 = vmatpush.bf16.msra.mxu0 %v157
  %1333 = vmatpush.bf16.msra.mxu0 %v153
  %1334 = vmatpush.bf16.msra.mxu0 %v149
  %1335 = vmatmul.bf16.gmra.mxu0 %v1326
  %v1336 = vpop.f32.mrf.mxu0
  %v1337 = vadd.f32 0.0, %v1336
  %v1338 = vpop.f32.mrf.mxu0
  %1339 = vdwg.mxu0
  %1340 = vmatpush.bf16.msra.mxu0 %v178
  %1341 = vmatpush.bf16.msra.mxu0 %v174
  %1342 = vmatpush.bf16.msra.mxu0 %v170
  %1343 = vmatpush.bf16.msra.mxu0 %v166
  %1344 = vmatpush.bf16.msra.mxu0 %v162
  %1345 = vmatpush.bf16.msra.mxu0 %v158
  %1346 = vmatpush.bf16.msra.mxu0 %v154
  %1347 = vmatpush.bf16.msra.mxu0 %v150
  %1348 = vmatmul.bf16.gmra.mxu0 %v1326
  %v1349 = vpop.f32.mrf.mxu0
  %v1350 = vadd.f32 0.0, %v1349
  %v1351 = vpop.f32.mrf.mxu0
  %1352 = vdwg.mxu0
  %1353 = vmatpush.bf16.msra.mxu0 %v179
  %1354 = vmatpush.bf16.msra.mxu0 %v175
  %1355 = vmatpush.bf16.msra.mxu0 %v171
  %1356 = vmatpush.bf16.msra.mxu0 %v167
  %1357 = vmatpush.bf16.msra.mxu0 %v163
  %1358 = vmatpush.bf16.msra.mxu0 %v159
  %1359 = vmatpush.bf16.msra.mxu0 %v155
  %1360 = vmatpush.bf16.msra.mxu0 %v151
  %1361 = vmatmul.bf16.gmra.mxu0 %v1326
  %v1362 = vpop.f32.mrf.mxu0
  %v1363 = vadd.f32 0.0, %v1362
  %v1364 = vpop.f32.mrf.mxu0
  %1365 = vdwg.mxu0
  %1366 = vmatpush.bf16.msra.mxu0 %v180
  %1367 = vmatpush.bf16.msra.mxu0 %v176
  %1368 = vmatpush.bf16.msra.mxu0 %v172
  %1369 = vmatpush.bf16.msra.mxu0 %v168
  %1370 = vmatpush.bf16.msra.mxu0 %v164
  %1371 = vmatpush.bf16.msra.mxu0 %v160
  %1372 = vmatpush.bf16.msra.mxu0 %v156
  %1373 = vmatpush.bf16.msra.mxu0 %v152
  %1374 = vmatmul.bf16.gmra.mxu0 %v1326
  %v1375 = vpop.f32.mrf.mxu0
  %v1376 = vadd.f32 0.0, %v1375
  %v1377 = vpop.f32.mrf.mxu0
  %1378 = vdwg.mxu0
  %v1383 = vrot.slane %v1350, 6
  %v1384 = vrot.slane %v1363, 4
  %v1385 = vrot.slane %v1376, 2
  %v1386 = vsel %vm272, %v1337, %v1383
  %v1387 = vsel %vm274, %v1384, %v1385
  %v1388 = vsel %vm276, %v1386, %v1387
  %v1390 = vadd.f32 %v1325, %v1388
  %v1392 = vrot.slane %v1390, 2
  %v1394 = vxor.u32 %v1392, 2147483648
  %v1395 = vmul.f32 %v1394, 1.442695
  %v1396 = vpow.pop %v1395
  %v1397 = vadd.f32 %v1396, 1.0
  %v1398 = vrcp.pop %v1397
  %v1399 = vmul.f32 %v1397, %v1398
  %v1400 = vsub.f32 1.0, %v1399
  %v1401 = vmul.f32 %v1398, %v1400
  %v1402 = vadd.f32 %v1398, %v1401
  %vm1403 = vweird.f32 %v1397
  %vm1404 = vweird.f32 %v1398
  %vm1405 = vmor %vm1403, %vm1404
  %v1406 = vsel %vm1405, %v1398, %v1402
  %v1407 = vand.u32 2147483647, %v1397
  %vm1408 = vcmp.eq.f32.partialorder %v1407, 8.507059e+37
  %v1409 = vand.u32 %v1397, 2147483648
  %v1410 = vor.u32 1.1754944e-38, %v1409
  %v1411 = vsel %vm1408, %v1410, %v1406
  %v1412 = vmul.f32 1.0, %v1411
  %v1413 = vmul.f32 %v1412, %v1298
  %v1414 = vxor.u32 %v1390, 2147483648
  %v1415 = vmul.f32 %v1414, 1.442695
  %v1416 = vpow.pop %v1415
  %v1417 = vadd.f32 %v1416, 1.0
  %v1418 = vrcp.pop %v1417
  %v1419 = vmul.f32 %v1417, %v1418
  %v1420 = vsub.f32 1.0, %v1419
  %v1421 = vmul.f32 %v1418, %v1420
  %v1422 = vadd.f32 %v1418, %v1421
  %vm1423 = vweird.f32 %v1417
  %vm1424 = vweird.f32 %v1418
  %vm1425 = vmor %vm1423, %vm1424
  %v1426 = vsel %vm1425, %v1418, %v1422
  %v1427 = vand.u32 2147483647, %v1417
  %vm1428 = vcmp.eq.f32.partialorder %v1427, 8.507059e+37
  %v1429 = vand.u32 %v1417, 2147483648
  %v1430 = vor.u32 1.1754944e-38, %v1429
  %v1431 = vsel %vm1428, %v1430, %v1426
  %v1432 = vmul.f32 1.0, %v1431
  %v1433 = vrot.slane %v1390, 4
  %v1435 = vtanh.pop %v1433
  %v1436 = vmul.f32 %v1432, %v1435
  %v1437 = vadd.f32 %v1413, %v1436
  %v1438 = vrot.slane %v1390, 6
  %v1440 = vxor.u32 %v1438, 2147483648
  %v1441 = vmul.f32 %v1440, 1.442695
  %v1442 = vpow.pop %v1441
  %v1443 = vadd.f32 %v1442, 1.0
  %v1444 = vrcp.pop %v1443
  %v1445 = vmul.f32 %v1443, %v1444
  %v1446 = vsub.f32 1.0, %v1445
  %v1447 = vmul.f32 %v1444, %v1446
  %v1448 = vadd.f32 %v1444, %v1447
  %vm1449 = vweird.f32 %v1443
  %vm1450 = vweird.f32 %v1444
  %vm1451 = vmor %vm1449, %vm1450
  %v1452 = vsel %vm1451, %v1444, %v1448
  %v1453 = vand.u32 2147483647, %v1443
  %vm1454 = vcmp.eq.f32.partialorder %v1453, 8.507059e+37
  %v1455 = vand.u32 %v1443, 2147483648
  %v1456 = vor.u32 1.1754944e-38, %v1455
  %v1457 = vsel %vm1454, %v1456, %v1452
  %v1458 = vmul.f32 1.0, %v1457
  %v1459 = vtanh.pop %v1437
  %v1460 = vmul.f32 %v1458, %v1459
  %s1461 = scalar_lea.vmem %s2, 16
  %1462 = vst [vmem:[%s1461] sm:$0x3] %v1460
  %s1463 = scalar_lea.vmem %s0, 72
  %v1464 = vld [vmem:[%s1463] sm:$0xff]
  %v1465 = vpack.c.bf16 %v1460, %v1460
  %1466 = vmatpush.bf16.msra.mxu0 %v177
  %1467 = vmatpush.bf16.msra.mxu0 %v173
  %1468 = vmatpush.bf16.msra.mxu0 %v169
  %1469 = vmatpush.bf16.msra.mxu0 %v165
  %1470 = vmatpush.bf16.msra.mxu0 %v161
  %1471 = vmatpush.bf16.msra.mxu0 %v157
  %1472 = vmatpush.bf16.msra.mxu0 %v153
  %1473 = vmatpush.bf16.msra.mxu0 %v149
  %1474 = vmatmul.bf16.gmra.mxu0 %v1465
  %v1475 = vpop.f32.mrf.mxu0
  %v1476 = vadd.f32 0.0, %v1475
  %v1477 = vpop.f32.mrf.mxu0
  %1478 = vdwg.mxu0
  %1479 = vmatpush.bf16.msra.mxu0 %v178
  %1480 = vmatpush.bf16.msra.mxu0 %v174
  %1481 = vmatpush.bf16.msra.mxu0 %v170
  %1482 = vmatpush.bf16.msra.mxu0 %v166
  %1483 = vmatpush.bf16.msra.mxu0 %v162
  %1484 = vmatpush.bf16.msra.mxu0 %v158
  %1485 = vmatpush.bf16.msra.mxu0 %v154
  %1486 = vmatpush.bf16.msra.mxu0 %v150
  %1487 = vmatmul.bf16.gmra.mxu0 %v1465
  %v1488 = vpop.f32.mrf.mxu0
  %v1489 = vadd.f32 0.0, %v1488
  %v1490 = vpop.f32.mrf.mxu0
  %1491 = vdwg.mxu0
  %1492 = vmatpush.bf16.msra.mxu0 %v179
  %1493 = vmatpush.bf16.msra.mxu0 %v175
  %1494 = vmatpush.bf16.msra.mxu0 %v171
  %1495 = vmatpush.bf16.msra.mxu0 %v167
  %1496 = vmatpush.bf16.msra.mxu0 %v163
  %1497 = vmatpush.bf16.msra.mxu0 %v159
  %1498 = vmatpush.bf16.msra.mxu0 %v155
  %1499 = vmatpush.bf16.msra.mxu0 %v151
  %1500 = vmatmul.bf16.gmra.mxu0 %v1465
  %v1501 = vpop.f32.mrf.mxu0
  %v1502 = vadd.f32 0.0, %v1501
  %v1503 = vpop.f32.mrf.mxu0
  %1504 = vdwg.mxu0
  %1505 = vmatpush.bf16.msra.mxu0 %v180
  %1506 = vmatpush.bf16.msra.mxu0 %v176
  %1507 = vmatpush.bf16.msra.mxu0 %v172
  %1508 = vmatpush.bf16.msra.mxu0 %v168
  %1509 = vmatpush.bf16.msra.mxu0 %v164
  %1510 = vmatpush.bf16.msra.mxu0 %v160
  %1511 = vmatpush.bf16.msra.mxu0 %v156
  %1512 = vmatpush.bf16.msra.mxu0 %v152
  %1513 = vmatmul.bf16.gmra.mxu0 %v1465
  %v1514 = vpop.f32.mrf.mxu0
  %v1515 = vadd.f32 0.0, %v1514
  %v1516 = vpop.f32.mrf.mxu0
  %1517 = vdwg.mxu0
  %v1522 = vrot.slane %v1489, 6
  %v1523 = vrot.slane %v1502, 4
  %v1524 = vrot.slane %v1515, 2
  %v1525 = vsel %vm272, %v1476, %v1522
  %v1526 = vsel %vm274, %v1523, %v1524
  %v1527 = vsel %vm276, %v1525, %v1526
  %v1529 = vadd.f32 %v1464, %v1527
  %v1531 = vrot.slane %v1529, 2
  %v1533 = vxor.u32 %v1531, 2147483648
  %v1534 = vmul.f32 %v1533, 1.442695
  %v1535 = vpow.pop %v1534
  %v1536 = vadd.f32 %v1535, 1.0
  %v1537 = vrcp.pop %v1536
  %v1538 = vmul.f32 %v1536, %v1537
  %v1539 = vsub.f32 1.0, %v1538
  %v1540 = vmul.f32 %v1537, %v1539
  %v1541 = vadd.f32 %v1537, %v1540
  %vm1542 = vweird.f32 %v1536
  %vm1543 = vweird.f32 %v1537
  %vm1544 = vmor %vm1542, %vm1543
  %v1545 = vsel %vm1544, %v1537, %v1541
  %v1546 = vand.u32 2147483647, %v1536
  %vm1547 = vcmp.eq.f32.partialorder %v1546, 8.507059e+37
  %v1548 = vand.u32 %v1536, 2147483648
  %v1549 = vor.u32 1.1754944e-38, %v1548
  %v1550 = vsel %vm1547, %v1549, %v1545
  %v1551 = vmul.f32 1.0, %v1550
  %v1552 = vmul.f32 %v1551, %v1437
  %v1553 = vxor.u32 %v1529, 2147483648
  %v1554 = vmul.f32 %v1553, 1.442695
  %v1555 = vpow.pop %v1554
  %v1556 = vadd.f32 %v1555, 1.0
  %v1557 = vrcp.pop %v1556
  %v1558 = vmul.f32 %v1556, %v1557
  %v1559 = vsub.f32 1.0, %v1558
  %v1560 = vmul.f32 %v1557, %v1559
  %v1561 = vadd.f32 %v1557, %v1560
  %vm1562 = vweird.f32 %v1556
  %vm1563 = vweird.f32 %v1557
  %vm1564 = vmor %vm1562, %vm1563
  %v1565 = vsel %vm1564, %v1557, %v1561
  %v1566 = vand.u32 2147483647, %v1556
  %vm1567 = vcmp.eq.f32.partialorder %v1566, 8.507059e+37
  %v1568 = vand.u32 %v1556, 2147483648
  %v1569 = vor.u32 1.1754944e-38, %v1568
  %v1570 = vsel %vm1567, %v1569, %v1565
  %v1571 = vmul.f32 1.0, %v1570
  %v1572 = vrot.slane %v1529, 4
  %v1574 = vtanh.pop %v1572
  %v1575 = vmul.f32 %v1571, %v1574
  %v1576 = vadd.f32 %v1552, %v1575
  %v1577 = vrot.slane %v1529, 6
  %v1579 = vxor.u32 %v1577, 2147483648
  %v1580 = vmul.f32 %v1579, 1.442695
  %v1581 = vpow.pop %v1580
  %v1582 = vadd.f32 %v1581, 1.0
  %v1583 = vrcp.pop %v1582
  %v1584 = vmul.f32 %v1582, %v1583
  %v1585 = vsub.f32 1.0, %v1584
  %v1586 = vmul.f32 %v1583, %v1585
  %v1587 = vadd.f32 %v1583, %v1586
  %vm1588 = vweird.f32 %v1582
  %vm1589 = vweird.f32 %v1583
  %vm1590 = vmor %vm1588, %vm1589
  %v1591 = vsel %vm1590, %v1583, %v1587
  %v1592 = vand.u32 2147483647, %v1582
  %vm1593 = vcmp.eq.f32.partialorder %v1592, 8.507059e+37
  %v1594 = vand.u32 %v1582, 2147483648
  %v1595 = vor.u32 1.1754944e-38, %v1594
  %v1596 = vsel %vm1593, %v1595, %v1591
  %v1597 = vmul.f32 1.0, %v1596
  %v1598 = vtanh.pop %v1576
  %v1599 = vmul.f32 %v1597, %v1598
  %s1600 = scalar_lea.vmem %s2, 18
  %1601 = vst [vmem:[%s1600] sm:$0x3] %v1599
  %s1602 = scalar_lea.vmem %s0, 80
  %v1603 = vld [vmem:[%s1602] sm:$0xff]
  %v1604 = vpack.c.bf16 %v1599, %v1599
  %1605 = vmatpush.bf16.msra.mxu0 %v177
  %1606 = vmatpush.bf16.msra.mxu0 %v173
  %1607 = vmatpush.bf16.msra.mxu0 %v169
  %1608 = vmatpush.bf16.msra.mxu0 %v165
  %1609 = vmatpush.bf16.msra.mxu0 %v161
  %1610 = vmatpush.bf16.msra.mxu0 %v157
  %1611 = vmatpush.bf16.msra.mxu0 %v153
  %1612 = vmatpush.bf16.msra.mxu0 %v149
  %1613 = vmatmul.bf16.gmra.mxu0 %v1604
  %v1614 = vpop.f32.mrf.mxu0
  %v1615 = vadd.f32 0.0, %v1614
  %v1616 = vpop.f32.mrf.mxu0
  %1617 = vdwg.mxu0
  %1618 = vmatpush.bf16.msra.mxu0 %v178
  %1619 = vmatpush.bf16.msra.mxu0 %v174
  %1620 = vmatpush.bf16.msra.mxu0 %v170
  %1621 = vmatpush.bf16.msra.mxu0 %v166
  %1622 = vmatpush.bf16.msra.mxu0 %v162
  %1623 = vmatpush.bf16.msra.mxu0 %v158
  %1624 = vmatpush.bf16.msra.mxu0 %v154
  %1625 = vmatpush.bf16.msra.mxu0 %v150
  %1626 = vmatmul.bf16.gmra.mxu0 %v1604
  %v1627 = vpop.f32.mrf.mxu0
  %v1628 = vadd.f32 0.0, %v1627
  %v1629 = vpop.f32.mrf.mxu0
  %1630 = vdwg.mxu0
  %1631 = vmatpush.bf16.msra.mxu0 %v179
  %1632 = vmatpush.bf16.msra.mxu0 %v175
  %1633 = vmatpush.bf16.msra.mxu0 %v171
  %1634 = vmatpush.bf16.msra.mxu0 %v167
  %1635 = vmatpush.bf16.msra.mxu0 %v163
  %1636 = vmatpush.bf16.msra.mxu0 %v159
  %1637 = vmatpush.bf16.msra.mxu0 %v155
  %1638 = vmatpush.bf16.msra.mxu0 %v151
  %1639 = vmatmul.bf16.gmra.mxu0 %v1604
  %v1640 = vpop.f32.mrf.mxu0
  %v1641 = vadd.f32 0.0, %v1640
  %v1642 = vpop.f32.mrf.mxu0
  %1643 = vdwg.mxu0
  %1644 = vmatpush.bf16.msra.mxu0 %v180
  %1645 = vmatpush.bf16.msra.mxu0 %v176
  %1646 = vmatpush.bf16.msra.mxu0 %v172
  %1647 = vmatpush.bf16.msra.mxu0 %v168
  %1648 = vmatpush.bf16.msra.mxu0 %v164
  %1649 = vmatpush.bf16.msra.mxu0 %v160
  %1650 = vmatpush.bf16.msra.mxu0 %v156
  %1651 = vmatpush.bf16.msra.mxu0 %v152
  %1652 = vmatmul.bf16.gmra.mxu0 %v1604
  %v1653 = vpop.f32.mrf.mxu0
  %v1654 = vadd.f32 0.0, %v1653
  %v1655 = vpop.f32.mrf.mxu0
  %1656 = vdwg.mxu0
  %v1661 = vrot.slane %v1628, 6
  %v1662 = vrot.slane %v1641, 4
  %v1663 = vrot.slane %v1654, 2
  %v1664 = vsel %vm272, %v1615, %v1661
  %v1665 = vsel %vm274, %v1662, %v1663
  %v1666 = vsel %vm276, %v1664, %v1665
  %v1668 = vadd.f32 %v1603, %v1666
  %v1670 = vrot.slane %v1668, 2
  %v1672 = vxor.u32 %v1670, 2147483648
  %v1673 = vmul.f32 %v1672, 1.442695
  %v1674 = vpow.pop %v1673
  %v1675 = vadd.f32 %v1674, 1.0
  %v1676 = vrcp.pop %v1675
  %v1677 = vmul.f32 %v1675, %v1676
  %v1678 = vsub.f32 1.0, %v1677
  %v1679 = vmul.f32 %v1676, %v1678
  %v1680 = vadd.f32 %v1676, %v1679
  %vm1681 = vweird.f32 %v1675
  %vm1682 = vweird.f32 %v1676
  %vm1683 = vmor %vm1681, %vm1682
  %v1684 = vsel %vm1683, %v1676, %v1680
  %v1685 = vand.u32 2147483647, %v1675
  %vm1686 = vcmp.eq.f32.partialorder %v1685, 8.507059e+37
  %v1687 = vand.u32 %v1675, 2147483648
  %v1688 = vor.u32 1.1754944e-38, %v1687
  %v1689 = vsel %vm1686, %v1688, %v1684
  %v1690 = vmul.f32 1.0, %v1689
  %v1691 = vmul.f32 %v1690, %v1576
  %v1692 = vxor.u32 %v1668, 2147483648
  %v1693 = vmul.f32 %v1692, 1.442695
  %v1694 = vpow.pop %v1693
  %v1695 = vadd.f32 %v1694, 1.0
  %v1696 = vrcp.pop %v1695
  %v1697 = vmul.f32 %v1695, %v1696
  %v1698 = vsub.f32 1.0, %v1697
  %v1699 = vmul.f32 %v1696, %v1698
  %v1700 = vadd.f32 %v1696, %v1699
  %vm1701 = vweird.f32 %v1695
  %vm1702 = vweird.f32 %v1696
  %vm1703 = vmor %vm1701, %vm1702
  %v1704 = vsel %vm1703, %v1696, %v1700
  %v1705 = vand.u32 2147483647, %v1695
  %vm1706 = vcmp.eq.f32.partialorder %v1705, 8.507059e+37
  %v1707 = vand.u32 %v1695, 2147483648
  %v1708 = vor.u32 1.1754944e-38, %v1707
  %v1709 = vsel %vm1706, %v1708, %v1704
  %v1710 = vmul.f32 1.0, %v1709
  %v1711 = vrot.slane %v1668, 4
  %v1713 = vtanh.pop %v1711
  %v1714 = vmul.f32 %v1710, %v1713
  %v1715 = vadd.f32 %v1691, %v1714
  %v1716 = vrot.slane %v1668, 6
  %v1718 = vxor.u32 %v1716, 2147483648
  %v1719 = vmul.f32 %v1718, 1.442695
  %v1720 = vpow.pop %v1719
  %v1721 = vadd.f32 %v1720, 1.0
  %v1722 = vrcp.pop %v1721
  %v1723 = vmul.f32 %v1721, %v1722
  %v1724 = vsub.f32 1.0, %v1723
  %v1725 = vmul.f32 %v1722, %v1724
  %v1726 = vadd.f32 %v1722, %v1725
  %vm1727 = vweird.f32 %v1721
  %vm1728 = vweird.f32 %v1722
  %vm1729 = vmor %vm1727, %vm1728
  %v1730 = vsel %vm1729, %v1722, %v1726
  %v1731 = vand.u32 2147483647, %v1721
  %vm1732 = vcmp.eq.f32.partialorder %v1731, 8.507059e+37
  %v1733 = vand.u32 %v1721, 2147483648
  %v1734 = vor.u32 1.1754944e-38, %v1733
  %v1735 = vsel %vm1732, %v1734, %v1730
  %v1736 = vmul.f32 1.0, %v1735
  %v1737 = vtanh.pop %v1715
  %v1738 = vmul.f32 %v1736, %v1737
  %s1739 = scalar_lea.vmem %s2, 20
  %1740 = vst [vmem:[%s1739] sm:$0x3] %v1738
  %s1741 = scalar_lea.vmem %s0, 88
  %v1742 = vld [vmem:[%s1741] sm:$0xff]
  %v1743 = vpack.c.bf16 %v1738, %v1738
  %1744 = vmatpush.bf16.msra.mxu0 %v177
  %1745 = vmatpush.bf16.msra.mxu0 %v173
  %1746 = vmatpush.bf16.msra.mxu0 %v169
  %1747 = vmatpush.bf16.msra.mxu0 %v165
  %1748 = vmatpush.bf16.msra.mxu0 %v161
  %1749 = vmatpush.bf16.msra.mxu0 %v157
  %1750 = vmatpush.bf16.msra.mxu0 %v153
  %1751 = vmatpush.bf16.msra.mxu0 %v149
  %1752 = vmatmul.bf16.gmra.mxu0 %v1743
  %v1753 = vpop.f32.mrf.mxu0
  %v1754 = vadd.f32 0.0, %v1753
  %v1755 = vpop.f32.mrf.mxu0
  %1756 = vdwg.mxu0
  %1757 = vmatpush.bf16.msra.mxu0 %v178
  %1758 = vmatpush.bf16.msra.mxu0 %v174
  %1759 = vmatpush.bf16.msra.mxu0 %v170
  %1760 = vmatpush.bf16.msra.mxu0 %v166
  %1761 = vmatpush.bf16.msra.mxu0 %v162
  %1762 = vmatpush.bf16.msra.mxu0 %v158
  %1763 = vmatpush.bf16.msra.mxu0 %v154
  %1764 = vmatpush.bf16.msra.mxu0 %v150
  %1765 = vmatmul.bf16.gmra.mxu0 %v1743
  %v1766 = vpop.f32.mrf.mxu0
  %v1767 = vadd.f32 0.0, %v1766
  %v1768 = vpop.f32.mrf.mxu0
  %1769 = vdwg.mxu0
  %1770 = vmatpush.bf16.msra.mxu0 %v179
  %1771 = vmatpush.bf16.msra.mxu0 %v175
  %1772 = vmatpush.bf16.msra.mxu0 %v171
  %1773 = vmatpush.bf16.msra.mxu0 %v167
  %1774 = vmatpush.bf16.msra.mxu0 %v163
  %1775 = vmatpush.bf16.msra.mxu0 %v159
  %1776 = vmatpush.bf16.msra.mxu0 %v155
  %1777 = vmatpush.bf16.msra.mxu0 %v151
  %1778 = vmatmul.bf16.gmra.mxu0 %v1743
  %v1779 = vpop.f32.mrf.mxu0
  %v1780 = vadd.f32 0.0, %v1779
  %v1781 = vpop.f32.mrf.mxu0
  %1782 = vdwg.mxu0
  %1783 = vmatpush.bf16.msra.mxu0 %v180
  %1784 = vmatpush.bf16.msra.mxu0 %v176
  %1785 = vmatpush.bf16.msra.mxu0 %v172
  %1786 = vmatpush.bf16.msra.mxu0 %v168
  %1787 = vmatpush.bf16.msra.mxu0 %v164
  %1788 = vmatpush.bf16.msra.mxu0 %v160
  %1789 = vmatpush.bf16.msra.mxu0 %v156
  %1790 = vmatpush.bf16.msra.mxu0 %v152
  %1791 = vmatmul.bf16.gmra.mxu0 %v1743
  %v1792 = vpop.f32.mrf.mxu0
  %v1793 = vadd.f32 0.0, %v1792
  %v1794 = vpop.f32.mrf.mxu0
  %1795 = vdwg.mxu0
  %v1800 = vrot.slane %v1767, 6
  %v1801 = vrot.slane %v1780, 4
  %v1802 = vrot.slane %v1793, 2
  %v1803 = vsel %vm272, %v1754, %v1800
  %v1804 = vsel %vm274, %v1801, %v1802
  %v1805 = vsel %vm276, %v1803, %v1804
  %v1807 = vadd.f32 %v1742, %v1805
  %v1809 = vrot.slane %v1807, 2
  %v1811 = vxor.u32 %v1809, 2147483648
  %v1812 = vmul.f32 %v1811, 1.442695
  %v1813 = vpow.pop %v1812
  %v1814 = vadd.f32 %v1813, 1.0
  %v1815 = vrcp.pop %v1814
  %v1816 = vmul.f32 %v1814, %v1815
  %v1817 = vsub.f32 1.0, %v1816
  %v1818 = vmul.f32 %v1815, %v1817
  %v1819 = vadd.f32 %v1815, %v1818
  %vm1820 = vweird.f32 %v1814
  %vm1821 = vweird.f32 %v1815
  %vm1822 = vmor %vm1820, %vm1821
  %v1823 = vsel %vm1822, %v1815, %v1819
  %v1824 = vand.u32 2147483647, %v1814
  %vm1825 = vcmp.eq.f32.partialorder %v1824, 8.507059e+37
  %v1826 = vand.u32 %v1814, 2147483648
  %v1827 = vor.u32 1.1754944e-38, %v1826
  %v1828 = vsel %vm1825, %v1827, %v1823
  %v1829 = vmul.f32 1.0, %v1828
  %v1830 = vmul.f32 %v1829, %v1715
  %v1831 = vxor.u32 %v1807, 2147483648
  %v1832 = vmul.f32 %v1831, 1.442695
  %v1833 = vpow.pop %v1832
  %v1834 = vadd.f32 %v1833, 1.0
  %v1835 = vrcp.pop %v1834
  %v1836 = vmul.f32 %v1834, %v1835
  %v1837 = vsub.f32 1.0, %v1836
  %v1838 = vmul.f32 %v1835, %v1837
  %v1839 = vadd.f32 %v1835, %v1838
  %vm1840 = vweird.f32 %v1834
  %vm1841 = vweird.f32 %v1835
  %vm1842 = vmor %vm1840, %vm1841
  %v1843 = vsel %vm1842, %v1835, %v1839
  %v1844 = vand.u32 2147483647, %v1834
  %vm1845 = vcmp.eq.f32.partialorder %v1844, 8.507059e+37
  %v1846 = vand.u32 %v1834, 2147483648
  %v1847 = vor.u32 1.1754944e-38, %v1846
  %v1848 = vsel %vm1845, %v1847, %v1843
  %v1849 = vmul.f32 1.0, %v1848
  %v1850 = vrot.slane %v1807, 4
  %v1852 = vtanh.pop %v1850
  %v1853 = vmul.f32 %v1849, %v1852
  %v1854 = vadd.f32 %v1830, %v1853
  %v1855 = vrot.slane %v1807, 6
  %v1857 = vxor.u32 %v1855, 2147483648
  %v1858 = vmul.f32 %v1857, 1.442695
  %v1859 = vpow.pop %v1858
  %v1860 = vadd.f32 %v1859, 1.0
  %v1861 = vrcp.pop %v1860
  %v1862 = vmul.f32 %v1860, %v1861
  %v1863 = vsub.f32 1.0, %v1862
  %v1864 = vmul.f32 %v1861, %v1863
  %v1865 = vadd.f32 %v1861, %v1864
  %vm1866 = vweird.f32 %v1860
  %vm1867 = vweird.f32 %v1861
  %vm1868 = vmor %vm1866, %vm1867
  %v1869 = vsel %vm1868, %v1861, %v1865
  %v1870 = vand.u32 2147483647, %v1860
  %vm1871 = vcmp.eq.f32.partialorder %v1870, 8.507059e+37
  %v1872 = vand.u32 %v1860, 2147483648
  %v1873 = vor.u32 1.1754944e-38, %v1872
  %v1874 = vsel %vm1871, %v1873, %v1869
  %v1875 = vmul.f32 1.0, %v1874
  %v1876 = vtanh.pop %v1854
  %v1877 = vmul.f32 %v1875, %v1876
  %s1878 = scalar_lea.vmem %s2, 22
  %1879 = vst [vmem:[%s1878] sm:$0x3] %v1877
  %s1880 = scalar_lea.vmem %s0, 96
  %v1881 = vld [vmem:[%s1880] sm:$0xff]
  %v1882 = vpack.c.bf16 %v1877, %v1877
  %1883 = vmatpush.bf16.msra.mxu0 %v177
  %1884 = vmatpush.bf16.msra.mxu0 %v173
  %1885 = vmatpush.bf16.msra.mxu0 %v169
  %1886 = vmatpush.bf16.msra.mxu0 %v165
  %1887 = vmatpush.bf16.msra.mxu0 %v161
  %1888 = vmatpush.bf16.msra.mxu0 %v157
  %1889 = vmatpush.bf16.msra.mxu0 %v153
  %1890 = vmatpush.bf16.msra.mxu0 %v149
  %1891 = vmatmul.bf16.gmra.mxu0 %v1882
  %v1892 = vpop.f32.mrf.mxu0
  %v1893 = vadd.f32 0.0, %v1892
  %v1894 = vpop.f32.mrf.mxu0
  %1895 = vdwg.mxu0
  %1896 = vmatpush.bf16.msra.mxu0 %v178
  %1897 = vmatpush.bf16.msra.mxu0 %v174
  %1898 = vmatpush.bf16.msra.mxu0 %v170
  %1899 = vmatpush.bf16.msra.mxu0 %v166
  %1900 = vmatpush.bf16.msra.mxu0 %v162
  %1901 = vmatpush.bf16.msra.mxu0 %v158
  %1902 = vmatpush.bf16.msra.mxu0 %v154
  %1903 = vmatpush.bf16.msra.mxu0 %v150
  %1904 = vmatmul.bf16.gmra.mxu0 %v1882
  %v1905 = vpop.f32.mrf.mxu0
  %v1906 = vadd.f32 0.0, %v1905
  %v1907 = vpop.f32.mrf.mxu0
  %1908 = vdwg.mxu0
  %1909 = vmatpush.bf16.msra.mxu0 %v179
  %1910 = vmatpush.bf16.msra.mxu0 %v175
  %1911 = vmatpush.bf16.msra.mxu0 %v171
  %1912 = vmatpush.bf16.msra.mxu0 %v167
  %1913 = vmatpush.bf16.msra.mxu0 %v163
  %1914 = vmatpush.bf16.msra.mxu0 %v159
  %1915 = vmatpush.bf16.msra.mxu0 %v155
  %1916 = vmatpush.bf16.msra.mxu0 %v151
  %1917 = vmatmul.bf16.gmra.mxu0 %v1882
  %v1918 = vpop.f32.mrf.mxu0
  %v1919 = vadd.f32 0.0, %v1918
  %v1920 = vpop.f32.mrf.mxu0
  %1921 = vdwg.mxu0
  %1922 = vmatpush.bf16.msra.mxu0 %v180
  %1923 = vmatpush.bf16.msra.mxu0 %v176
  %1924 = vmatpush.bf16.msra.mxu0 %v172
  %1925 = vmatpush.bf16.msra.mxu0 %v168
  %1926 = vmatpush.bf16.msra.mxu0 %v164
  %1927 = vmatpush.bf16.msra.mxu0 %v160
  %1928 = vmatpush.bf16.msra.mxu0 %v156
  %1929 = vmatpush.bf16.msra.mxu0 %v152
  %1930 = vmatmul.bf16.gmra.mxu0 %v1882
  %v1931 = vpop.f32.mrf.mxu0
  %v1932 = vadd.f32 0.0, %v1931
  %v1933 = vpop.f32.mrf.mxu0
  %1934 = vdwg.mxu0
  %v1939 = vrot.slane %v1906, 6
  %v1940 = vrot.slane %v1919, 4
  %v1941 = vrot.slane %v1932, 2
  %v1942 = vsel %vm272, %v1893, %v1939
  %v1943 = vsel %vm274, %v1940, %v1941
  %v1944 = vsel %vm276, %v1942, %v1943
  %v1946 = vadd.f32 %v1881, %v1944
  %v1948 = vrot.slane %v1946, 2
  %v1950 = vxor.u32 %v1948, 2147483648
  %v1951 = vmul.f32 %v1950, 1.442695
  %v1952 = vpow.pop %v1951
  %v1953 = vadd.f32 %v1952, 1.0
  %v1954 = vrcp.pop %v1953
  %v1955 = vmul.f32 %v1953, %v1954
  %v1956 = vsub.f32 1.0, %v1955
  %v1957 = vmul.f32 %v1954, %v1956
  %v1958 = vadd.f32 %v1954, %v1957
  %vm1959 = vweird.f32 %v1953
  %vm1960 = vweird.f32 %v1954
  %vm1961 = vmor %vm1959, %vm1960
  %v1962 = vsel %vm1961, %v1954, %v1958
  %v1963 = vand.u32 2147483647, %v1953
  %vm1964 = vcmp.eq.f32.partialorder %v1963, 8.507059e+37
  %v1965 = vand.u32 %v1953, 2147483648
  %v1966 = vor.u32 1.1754944e-38, %v1965
  %v1967 = vsel %vm1964, %v1966, %v1962
  %v1968 = vmul.f32 1.0, %v1967
  %v1969 = vmul.f32 %v1968, %v1854
  %v1970 = vxor.u32 %v1946, 2147483648
  %v1971 = vmul.f32 %v1970, 1.442695
  %v1972 = vpow.pop %v1971
  %v1973 = vadd.f32 %v1972, 1.0
  %v1974 = vrcp.pop %v1973
  %v1975 = vmul.f32 %v1973, %v1974
  %v1976 = vsub.f32 1.0, %v1975
  %v1977 = vmul.f32 %v1974, %v1976
  %v1978 = vadd.f32 %v1974, %v1977
  %vm1979 = vweird.f32 %v1973
  %vm1980 = vweird.f32 %v1974
  %vm1981 = vmor %vm1979, %vm1980
  %v1982 = vsel %vm1981, %v1974, %v1978
  %v1983 = vand.u32 2147483647, %v1973
  %vm1984 = vcmp.eq.f32.partialorder %v1983, 8.507059e+37
  %v1985 = vand.u32 %v1973, 2147483648
  %v1986 = vor.u32 1.1754944e-38, %v1985
  %v1987 = vsel %vm1984, %v1986, %v1982
  %v1988 = vmul.f32 1.0, %v1987
  %v1989 = vrot.slane %v1946, 4
  %v1991 = vtanh.pop %v1989
  %v1992 = vmul.f32 %v1988, %v1991
  %v1993 = vadd.f32 %v1969, %v1992
  %v1994 = vrot.slane %v1946, 6
  %v1996 = vxor.u32 %v1994, 2147483648
  %v1997 = vmul.f32 %v1996, 1.442695
  %v1998 = vpow.pop %v1997
  %v1999 = vadd.f32 %v1998, 1.0
  %v2000 = vrcp.pop %v1999
  %v2001 = vmul.f32 %v1999, %v2000
  %v2002 = vsub.f32 1.0, %v2001
  %v2003 = vmul.f32 %v2000, %v2002
  %v2004 = vadd.f32 %v2000, %v2003
  %vm2005 = vweird.f32 %v1999
  %vm2006 = vweird.f32 %v2000
  %vm2007 = vmor %vm2005, %vm2006
  %v2008 = vsel %vm2007, %v2000, %v2004
  %v2009 = vand.u32 2147483647, %v1999
  %vm2010 = vcmp.eq.f32.partialorder %v2009, 8.507059e+37
  %v2011 = vand.u32 %v1999, 2147483648
  %v2012 = vor.u32 1.1754944e-38, %v2011
  %v2013 = vsel %vm2010, %v2012, %v2008
  %v2014 = vmul.f32 1.0, %v2013
  %v2015 = vtanh.pop %v1993
  %v2016 = vmul.f32 %v2014, %v2015
  %s2017 = scalar_lea.vmem %s2, 24
  %2018 = vst [vmem:[%s2017] sm:$0x3] %v2016
  %s2019 = scalar_lea.vmem %s0, 104
  %v2020 = vld [vmem:[%s2019] sm:$0xff]
  %v2021 = vpack.c.bf16 %v2016, %v2016
  %2022 = vmatpush.bf16.msra.mxu0 %v177
  %2023 = vmatpush.bf16.msra.mxu0 %v173
  %2024 = vmatpush.bf16.msra.mxu0 %v169
  %2025 = vmatpush.bf16.msra.mxu0 %v165
  %2026 = vmatpush.bf16.msra.mxu0 %v161
  %2027 = vmatpush.bf16.msra.mxu0 %v157
  %2028 = vmatpush.bf16.msra.mxu0 %v153
  %2029 = vmatpush.bf16.msra.mxu0 %v149
  %2030 = vmatmul.bf16.gmra.mxu0 %v2021
  %v2031 = vpop.f32.mrf.mxu0
  %v2032 = vadd.f32 0.0, %v2031
  %v2033 = vpop.f32.mrf.mxu0
  %2034 = vdwg.mxu0
  %2035 = vmatpush.bf16.msra.mxu0 %v178
  %2036 = vmatpush.bf16.msra.mxu0 %v174
  %2037 = vmatpush.bf16.msra.mxu0 %v170
  %2038 = vmatpush.bf16.msra.mxu0 %v166
  %2039 = vmatpush.bf16.msra.mxu0 %v162
  %2040 = vmatpush.bf16.msra.mxu0 %v158
  %2041 = vmatpush.bf16.msra.mxu0 %v154
  %2042 = vmatpush.bf16.msra.mxu0 %v150
  %2043 = vmatmul.bf16.gmra.mxu0 %v2021
  %v2044 = vpop.f32.mrf.mxu0
  %v2045 = vadd.f32 0.0, %v2044
  %v2046 = vpop.f32.mrf.mxu0
  %2047 = vdwg.mxu0
  %2048 = vmatpush.bf16.msra.mxu0 %v179
  %2049 = vmatpush.bf16.msra.mxu0 %v175
  %2050 = vmatpush.bf16.msra.mxu0 %v171
  %2051 = vmatpush.bf16.msra.mxu0 %v167
  %2052 = vmatpush.bf16.msra.mxu0 %v163
  %2053 = vmatpush.bf16.msra.mxu0 %v159
  %2054 = vmatpush.bf16.msra.mxu0 %v155
  %2055 = vmatpush.bf16.msra.mxu0 %v151
  %2056 = vmatmul.bf16.gmra.mxu0 %v2021
  %v2057 = vpop.f32.mrf.mxu0
  %v2058 = vadd.f32 0.0, %v2057
  %v2059 = vpop.f32.mrf.mxu0
  %2060 = vdwg.mxu0
  %2061 = vmatpush.bf16.msra.mxu0 %v180
  %2062 = vmatpush.bf16.msra.mxu0 %v176
  %2063 = vmatpush.bf16.msra.mxu0 %v172
  %2064 = vmatpush.bf16.msra.mxu0 %v168
  %2065 = vmatpush.bf16.msra.mxu0 %v164
  %2066 = vmatpush.bf16.msra.mxu0 %v160
  %2067 = vmatpush.bf16.msra.mxu0 %v156
  %2068 = vmatpush.bf16.msra.mxu0 %v152
  %2069 = vmatmul.bf16.gmra.mxu0 %v2021
  %v2070 = vpop.f32.mrf.mxu0
  %v2071 = vadd.f32 0.0, %v2070
  %v2072 = vpop.f32.mrf.mxu0
  %2073 = vdwg.mxu0
  %v2078 = vrot.slane %v2045, 6
  %v2079 = vrot.slane %v2058, 4
  %v2080 = vrot.slane %v2071, 2
  %v2081 = vsel %vm272, %v2032, %v2078
  %v2082 = vsel %vm274, %v2079, %v2080
  %v2083 = vsel %vm276, %v2081, %v2082
  %v2085 = vadd.f32 %v2020, %v2083
  %v2087 = vrot.slane %v2085, 2
  %v2089 = vxor.u32 %v2087, 2147483648
  %v2090 = vmul.f32 %v2089, 1.442695
  %v2091 = vpow.pop %v2090
  %v2092 = vadd.f32 %v2091, 1.0
  %v2093 = vrcp.pop %v2092
  %v2094 = vmul.f32 %v2092, %v2093
  %v2095 = vsub.f32 1.0, %v2094
  %v2096 = vmul.f32 %v2093, %v2095
  %v2097 = vadd.f32 %v2093, %v2096
  %vm2098 = vweird.f32 %v2092
  %vm2099 = vweird.f32 %v2093
  %vm2100 = vmor %vm2098, %vm2099
  %v2101 = vsel %vm2100, %v2093, %v2097
  %v2102 = vand.u32 2147483647, %v2092
  %vm2103 = vcmp.eq.f32.partialorder %v2102, 8.507059e+37
  %v2104 = vand.u32 %v2092, 2147483648
  %v2105 = vor.u32 1.1754944e-38, %v2104
  %v2106 = vsel %vm2103, %v2105, %v2101
  %v2107 = vmul.f32 1.0, %v2106
  %v2108 = vmul.f32 %v2107, %v1993
  %v2109 = vxor.u32 %v2085, 2147483648
  %v2110 = vmul.f32 %v2109, 1.442695
  %v2111 = vpow.pop %v2110
  %v2112 = vadd.f32 %v2111, 1.0
  %v2113 = vrcp.pop %v2112
  %v2114 = vmul.f32 %v2112, %v2113
  %v2115 = vsub.f32 1.0, %v2114
  %v2116 = vmul.f32 %v2113, %v2115
  %v2117 = vadd.f32 %v2113, %v2116
  %vm2118 = vweird.f32 %v2112
  %vm2119 = vweird.f32 %v2113
  %vm2120 = vmor %vm2118, %vm2119
  %v2121 = vsel %vm2120, %v2113, %v2117
  %v2122 = vand.u32 2147483647, %v2112
  %vm2123 = vcmp.eq.f32.partialorder %v2122, 8.507059e+37
  %v2124 = vand.u32 %v2112, 2147483648
  %v2125 = vor.u32 1.1754944e-38, %v2124
  %v2126 = vsel %vm2123, %v2125, %v2121
  %v2127 = vmul.f32 1.0, %v2126
  %v2128 = vrot.slane %v2085, 4
  %v2130 = vtanh.pop %v2128
  %v2131 = vmul.f32 %v2127, %v2130
  %v2132 = vadd.f32 %v2108, %v2131
  %v2133 = vrot.slane %v2085, 6
  %v2135 = vxor.u32 %v2133, 2147483648
  %v2136 = vmul.f32 %v2135, 1.442695
  %v2137 = vpow.pop %v2136
  %v2138 = vadd.f32 %v2137, 1.0
  %v2139 = vrcp.pop %v2138
  %v2140 = vmul.f32 %v2138, %v2139
  %v2141 = vsub.f32 1.0, %v2140
  %v2142 = vmul.f32 %v2139, %v2141
  %v2143 = vadd.f32 %v2139, %v2142
  %vm2144 = vweird.f32 %v2138
  %vm2145 = vweird.f32 %v2139
  %vm2146 = vmor %vm2144, %vm2145
  %v2147 = vsel %vm2146, %v2139, %v2143
  %v2148 = vand.u32 2147483647, %v2138
  %vm2149 = vcmp.eq.f32.partialorder %v2148, 8.507059e+37
  %v2150 = vand.u32 %v2138, 2147483648
  %v2151 = vor.u32 1.1754944e-38, %v2150
  %v2152 = vsel %vm2149, %v2151, %v2147
  %v2153 = vmul.f32 1.0, %v2152
  %v2154 = vtanh.pop %v2132
  %v2155 = vmul.f32 %v2153, %v2154
  %s2156 = scalar_lea.vmem %s2, 26
  %2157 = vst [vmem:[%s2156] sm:$0x3] %v2155
  %s2158 = scalar_lea.vmem %s0, 112
  %v2159 = vld [vmem:[%s2158] sm:$0xff]
  %v2160 = vpack.c.bf16 %v2155, %v2155
  %2161 = vmatpush.bf16.msra.mxu0 %v177
  %2162 = vmatpush.bf16.msra.mxu0 %v173
  %2163 = vmatpush.bf16.msra.mxu0 %v169
  %2164 = vmatpush.bf16.msra.mxu0 %v165
  %2165 = vmatpush.bf16.msra.mxu0 %v161
  %2166 = vmatpush.bf16.msra.mxu0 %v157
  %2167 = vmatpush.bf16.msra.mxu0 %v153
  %2168 = vmatpush.bf16.msra.mxu0 %v149
  %2169 = vmatmul.bf16.gmra.mxu0 %v2160
  %v2170 = vpop.f32.mrf.mxu0
  %v2171 = vadd.f32 0.0, %v2170
  %v2172 = vpop.f32.mrf.mxu0
  %2173 = vdwg.mxu0
  %2174 = vmatpush.bf16.msra.mxu0 %v178
  %2175 = vmatpush.bf16.msra.mxu0 %v174
  %2176 = vmatpush.bf16.msra.mxu0 %v170
  %2177 = vmatpush.bf16.msra.mxu0 %v166
  %2178 = vmatpush.bf16.msra.mxu0 %v162
  %2179 = vmatpush.bf16.msra.mxu0 %v158
  %2180 = vmatpush.bf16.msra.mxu0 %v154
  %2181 = vmatpush.bf16.msra.mxu0 %v150
  %2182 = vmatmul.bf16.gmra.mxu0 %v2160
  %v2183 = vpop.f32.mrf.mxu0
  %v2184 = vadd.f32 0.0, %v2183
  %v2185 = vpop.f32.mrf.mxu0
  %2186 = vdwg.mxu0
  %2187 = vmatpush.bf16.msra.mxu0 %v179
  %2188 = vmatpush.bf16.msra.mxu0 %v175
  %2189 = vmatpush.bf16.msra.mxu0 %v171
  %2190 = vmatpush.bf16.msra.mxu0 %v167
  %2191 = vmatpush.bf16.msra.mxu0 %v163
  %2192 = vmatpush.bf16.msra.mxu0 %v159
  %2193 = vmatpush.bf16.msra.mxu0 %v155
  %2194 = vmatpush.bf16.msra.mxu0 %v151
  %2195 = vmatmul.bf16.gmra.mxu0 %v2160
  %v2196 = vpop.f32.mrf.mxu0
  %v2197 = vadd.f32 0.0, %v2196
  %v2198 = vpop.f32.mrf.mxu0
  %2199 = vdwg.mxu0
  %2200 = vmatpush.bf16.msra.mxu0 %v180
  %2201 = vmatpush.bf16.msra.mxu0 %v176
  %2202 = vmatpush.bf16.msra.mxu0 %v172
  %2203 = vmatpush.bf16.msra.mxu0 %v168
  %2204 = vmatpush.bf16.msra.mxu0 %v164
  %2205 = vmatpush.bf16.msra.mxu0 %v160
  %2206 = vmatpush.bf16.msra.mxu0 %v156
  %2207 = vmatpush.bf16.msra.mxu0 %v152
  %2208 = vmatmul.bf16.gmra.mxu0 %v2160
  %v2209 = vpop.f32.mrf.mxu0
  %v2210 = vadd.f32 0.0, %v2209
  %v2211 = vpop.f32.mrf.mxu0
  %2212 = vdwg.mxu0
  %v2217 = vrot.slane %v2184, 6
  %v2218 = vrot.slane %v2197, 4
  %v2219 = vrot.slane %v2210, 2
  %v2220 = vsel %vm272, %v2171, %v2217
  %v2221 = vsel %vm274, %v2218, %v2219
  %v2222 = vsel %vm276, %v2220, %v2221
  %v2224 = vadd.f32 %v2159, %v2222
  %v2226 = vrot.slane %v2224, 2
  %v2228 = vxor.u32 %v2226, 2147483648
  %v2229 = vmul.f32 %v2228, 1.442695
  %v2230 = vpow.pop %v2229
  %v2231 = vadd.f32 %v2230, 1.0
  %v2232 = vrcp.pop %v2231
  %v2233 = vmul.f32 %v2231, %v2232
  %v2234 = vsub.f32 1.0, %v2233
  %v2235 = vmul.f32 %v2232, %v2234
  %v2236 = vadd.f32 %v2232, %v2235
  %vm2237 = vweird.f32 %v2231
  %vm2238 = vweird.f32 %v2232
  %vm2239 = vmor %vm2237, %vm2238
  %v2240 = vsel %vm2239, %v2232, %v2236
  %v2241 = vand.u32 2147483647, %v2231
  %vm2242 = vcmp.eq.f32.partialorder %v2241, 8.507059e+37
  %v2243 = vand.u32 %v2231, 2147483648
  %v2244 = vor.u32 1.1754944e-38, %v2243
  %v2245 = vsel %vm2242, %v2244, %v2240
  %v2246 = vmul.f32 1.0, %v2245
  %v2247 = vmul.f32 %v2246, %v2132
  %v2248 = vxor.u32 %v2224, 2147483648
  %v2249 = vmul.f32 %v2248, 1.442695
  %v2250 = vpow.pop %v2249
  %v2251 = vadd.f32 %v2250, 1.0
  %v2252 = vrcp.pop %v2251
  %v2253 = vmul.f32 %v2251, %v2252
  %v2254 = vsub.f32 1.0, %v2253
  %v2255 = vmul.f32 %v2252, %v2254
  %v2256 = vadd.f32 %v2252, %v2255
  %vm2257 = vweird.f32 %v2251
  %vm2258 = vweird.f32 %v2252
  %vm2259 = vmor %vm2257, %vm2258
  %v2260 = vsel %vm2259, %v2252, %v2256
  %v2261 = vand.u32 2147483647, %v2251
  %vm2262 = vcmp.eq.f32.partialorder %v2261, 8.507059e+37
  %v2263 = vand.u32 %v2251, 2147483648
  %v2264 = vor.u32 1.1754944e-38, %v2263
  %v2265 = vsel %vm2262, %v2264, %v2260
  %v2266 = vmul.f32 1.0, %v2265
  %v2267 = vrot.slane %v2224, 4
  %v2269 = vtanh.pop %v2267
  %v2270 = vmul.f32 %v2266, %v2269
  %v2271 = vadd.f32 %v2247, %v2270
  %v2272 = vrot.slane %v2224, 6
  %v2274 = vxor.u32 %v2272, 2147483648
  %v2275 = vmul.f32 %v2274, 1.442695
  %v2276 = vpow.pop %v2275
  %v2277 = vadd.f32 %v2276, 1.0
  %v2278 = vrcp.pop %v2277
  %v2279 = vmul.f32 %v2277, %v2278
  %v2280 = vsub.f32 1.0, %v2279
  %v2281 = vmul.f32 %v2278, %v2280
  %v2282 = vadd.f32 %v2278, %v2281
  %vm2283 = vweird.f32 %v2277
  %vm2284 = vweird.f32 %v2278
  %vm2285 = vmor %vm2283, %vm2284
  %v2286 = vsel %vm2285, %v2278, %v2282
  %v2287 = vand.u32 2147483647, %v2277
  %vm2288 = vcmp.eq.f32.partialorder %v2287, 8.507059e+37
  %v2289 = vand.u32 %v2277, 2147483648
  %v2290 = vor.u32 1.1754944e-38, %v2289
  %v2291 = vsel %vm2288, %v2290, %v2286
  %v2292 = vmul.f32 1.0, %v2291
  %v2293 = vtanh.pop %v2271
  %v2294 = vmul.f32 %v2292, %v2293
  %s2295 = scalar_lea.vmem %s2, 28
  %2296 = vst [vmem:[%s2295] sm:$0x3] %v2294
  %s2297 = scalar_lea.vmem %s0, 120
  %v2298 = vld [vmem:[%s2297] sm:$0xff]
  %v2299 = vpack.c.bf16 %v2294, %v2294
  %2300 = vmatpush.bf16.msra.mxu0 %v177
  %2301 = vmatpush.bf16.msra.mxu0 %v173
  %2302 = vmatpush.bf16.msra.mxu0 %v169
  %2303 = vmatpush.bf16.msra.mxu0 %v165
  %2304 = vmatpush.bf16.msra.mxu0 %v161
  %2305 = vmatpush.bf16.msra.mxu0 %v157
  %2306 = vmatpush.bf16.msra.mxu0 %v153
  %2307 = vmatpush.bf16.msra.mxu0 %v149
  %2308 = vmatmul.bf16.gmra.mxu0 %v2299
  %v2309 = vpop.f32.mrf.mxu0
  %v2310 = vadd.f32 0.0, %v2309
  %v2311 = vpop.f32.mrf.mxu0
  %2312 = vdwg.mxu0
  %2313 = vmatpush.bf16.msra.mxu0 %v178
  %2314 = vmatpush.bf16.msra.mxu0 %v174
  %2315 = vmatpush.bf16.msra.mxu0 %v170
  %2316 = vmatpush.bf16.msra.mxu0 %v166
  %2317 = vmatpush.bf16.msra.mxu0 %v162
  %2318 = vmatpush.bf16.msra.mxu0 %v158
  %2319 = vmatpush.bf16.msra.mxu0 %v154
  %2320 = vmatpush.bf16.msra.mxu0 %v150
  %2321 = vmatmul.bf16.gmra.mxu0 %v2299
  %v2322 = vpop.f32.mrf.mxu0
  %v2323 = vadd.f32 0.0, %v2322
  %v2324 = vpop.f32.mrf.mxu0
  %2325 = vdwg.mxu0
  %2326 = vmatpush.bf16.msra.mxu0 %v179
  %2327 = vmatpush.bf16.msra.mxu0 %v175
  %2328 = vmatpush.bf16.msra.mxu0 %v171
  %2329 = vmatpush.bf16.msra.mxu0 %v167
  %2330 = vmatpush.bf16.msra.mxu0 %v163
  %2331 = vmatpush.bf16.msra.mxu0 %v159
  %2332 = vmatpush.bf16.msra.mxu0 %v155
  %2333 = vmatpush.bf16.msra.mxu0 %v151
  %2334 = vmatmul.bf16.gmra.mxu0 %v2299
  %v2335 = vpop.f32.mrf.mxu0
  %v2336 = vadd.f32 0.0, %v2335
  %v2337 = vpop.f32.mrf.mxu0
  %2338 = vdwg.mxu0
  %2339 = vmatpush.bf16.msra.mxu0 %v180
  %2340 = vmatpush.bf16.msra.mxu0 %v176
  %2341 = vmatpush.bf16.msra.mxu0 %v172
  %2342 = vmatpush.bf16.msra.mxu0 %v168
  %2343 = vmatpush.bf16.msra.mxu0 %v164
  %2344 = vmatpush.bf16.msra.mxu0 %v160
  %2345 = vmatpush.bf16.msra.mxu0 %v156
  %2346 = vmatpush.bf16.msra.mxu0 %v152
  %2347 = vmatmul.bf16.gmra.mxu0 %v2299
  %v2348 = vpop.f32.mrf.mxu0
  %v2349 = vadd.f32 0.0, %v2348
  %v2350 = vpop.f32.mrf.mxu0
  %2351 = vdwg.mxu0
  %v2356 = vrot.slane %v2323, 6
  %v2357 = vrot.slane %v2336, 4
  %v2358 = vrot.slane %v2349, 2
  %v2359 = vsel %vm272, %v2310, %v2356
  %v2360 = vsel %vm274, %v2357, %v2358
  %v2361 = vsel %vm276, %v2359, %v2360
  %v2363 = vadd.f32 %v2298, %v2361
  %v2365 = vrot.slane %v2363, 2
  %v2367 = vxor.u32 %v2365, 2147483648
  %v2368 = vmul.f32 %v2367, 1.442695
  %v2369 = vpow.pop %v2368
  %v2370 = vadd.f32 %v2369, 1.0
  %v2371 = vrcp.pop %v2370
  %v2372 = vmul.f32 %v2370, %v2371
  %v2373 = vsub.f32 1.0, %v2372
  %v2374 = vmul.f32 %v2371, %v2373
  %v2375 = vadd.f32 %v2371, %v2374
  %vm2376 = vweird.f32 %v2370
  %vm2377 = vweird.f32 %v2371
  %vm2378 = vmor %vm2376, %vm2377
  %v2379 = vsel %vm2378, %v2371, %v2375
  %v2380 = vand.u32 2147483647, %v2370
  %vm2381 = vcmp.eq.f32.partialorder %v2380, 8.507059e+37
  %v2382 = vand.u32 %v2370, 2147483648
  %v2383 = vor.u32 1.1754944e-38, %v2382
  %v2384 = vsel %vm2381, %v2383, %v2379
  %v2385 = vmul.f32 1.0, %v2384
  %v2386 = vmul.f32 %v2385, %v2271
  %v2387 = vxor.u32 %v2363, 2147483648
  %v2388 = vmul.f32 %v2387, 1.442695
  %v2389 = vpow.pop %v2388
  %v2390 = vadd.f32 %v2389, 1.0
  %v2391 = vrcp.pop %v2390
  %v2392 = vmul.f32 %v2390, %v2391
  %v2393 = vsub.f32 1.0, %v2392
  %v2394 = vmul.f32 %v2391, %v2393
  %v2395 = vadd.f32 %v2391, %v2394
  %vm2396 = vweird.f32 %v2390
  %vm2397 = vweird.f32 %v2391
  %vm2398 = vmor %vm2396, %vm2397
  %v2399 = vsel %vm2398, %v2391, %v2395
  %v2400 = vand.u32 2147483647, %v2390
  %vm2401 = vcmp.eq.f32.partialorder %v2400, 8.507059e+37
  %v2402 = vand.u32 %v2390, 2147483648
  %v2403 = vor.u32 1.1754944e-38, %v2402
  %v2404 = vsel %vm2401, %v2403, %v2399
  %v2405 = vmul.f32 1.0, %v2404
  %v2406 = vrot.slane %v2363, 4
  %v2408 = vtanh.pop %v2406
  %v2409 = vmul.f32 %v2405, %v2408
  %v2410 = vadd.f32 %v2386, %v2409
  %v2411 = vrot.slane %v2363, 6
  %v2413 = vxor.u32 %v2411, 2147483648
  %v2414 = vmul.f32 %v2413, 1.442695
  %v2415 = vpow.pop %v2414
  %v2416 = vadd.f32 %v2415, 1.0
  %v2417 = vrcp.pop %v2416
  %v2418 = vmul.f32 %v2416, %v2417
  %v2419 = vsub.f32 1.0, %v2418
  %v2420 = vmul.f32 %v2417, %v2419
  %v2421 = vadd.f32 %v2417, %v2420
  %vm2422 = vweird.f32 %v2416
  %vm2423 = vweird.f32 %v2417
  %vm2424 = vmor %vm2422, %vm2423
  %v2425 = vsel %vm2424, %v2417, %v2421
  %v2426 = vand.u32 2147483647, %v2416
  %vm2427 = vcmp.eq.f32.partialorder %v2426, 8.507059e+37
  %v2428 = vand.u32 %v2416, 2147483648
  %v2429 = vor.u32 1.1754944e-38, %v2428
  %v2430 = vsel %vm2427, %v2429, %v2425
  %v2431 = vmul.f32 1.0, %v2430
  %v2432 = vtanh.pop %v2410
  %v2433 = vmul.f32 %v2431, %v2432
  %s2434 = scalar_lea.vmem %s2, 30
  %2435 = vst [vmem:[%s2434] sm:$0x3] %v2433
  %2436 = vst [vmem:[#allocation2] sm:$0x3] %v2433
  %2437 = vst [vmem:[#allocation3] sm:$0x3] %v2410
  // Predicated region
  $region14: #{emb_forward.11} parent=0 // pred_check
    _
  $region15: #{emb_forward.11} parent=0 // pred_check_branch
    %2439 = sbr.rel (0) target = $region17
  $region16: #{emb_forward.11} parent=0 // pred_region
    _
  $region17: #{emb_forward.11} parent=0 // pred_fallthru
    _
  // Predicated region
  $region18: #{emb_forward.11} parent=0 // pred_check
    _
  $region19: #{emb_forward.11} parent=0 // pred_check_branch
    %2441 = sbr.rel (0) target = $region21
  $region20: #{emb_forward.11} parent=0 // pred_region
    _
  $region21: #{emb_forward.11} parent=0 // pred_fallthru
    _

// kernel: emb_forward.13
$region0: #{emb_forward.13}
  #allocation0 [shape = 'u32[]', space=smem, size = 0x4, offset = 0x4, fixed_abs, tag = 'smem constant byte address 0x4 - core index']
  #allocation1 [shape = 'u32[72,128]{1,0:T(1,128)}', space=vmem, size = 0x9000, scoped, tag = 'internal scratch']
  #allocation2 [shape = 'f32[1,1]{1,0:T(1,128)S(1)}', space=vmem, size = 0x200, scoped, tag = 'scoped memory for emb_forward.13']
  %s0 = inlined_call_operand.vmem [shape: f32[256,17], index: 0, kind: input, shape index: {}]
  %s1 = inlined_call_operand.vmem [shape: f32[2,17,128], index: 1, kind: input, shape index: {}]
  %s2 = inlined_call_operand.vmem [shape: bf16[2,8,128], index: 2, kind: input, shape index: {}]
  %s3 = inlined_call_operand.vmem [shape: bf16[2,8,128], index: 3, kind: input, shape index: {}]
  %s4 = inlined_call_operand.vmem [shape: f32[2,1,8], index: 4, kind: input, shape index: {}]
  %s5 = inlined_call_operand.vmem [shape: f32[2,256,1], index: 5, kind: input, shape index: {}]
  %s6 = inlined_call_operand.vmem [shape: f32[2,1,256], index: 6, kind: input, shape index: {}]
  %s7 = inlined_call_operand.vmem [shape: bf16[512,128], index: 7, kind: input, shape index: {}]
  %s8 = inlined_call_operand.vmem [shape: f32[1,128], index: 8, kind: input, shape index: {}]
  %s9 = inlined_call_operand.vmem [shape: bf16[128,128], index: 9, kind: input, shape index: {}]
  %s10 = inlined_call_operand.vmem [shape: f32[1,128], index: 10, kind: input, shape index: {}]
  %s11 = inlined_call_operand.vmem [shape: bf16[1,128], index: 11, kind: input, shape index: {}]
  %s12 = inlined_call_operand.<no memory space> [shape: f32[1,1], index: 12, kind: input, shape index: {}]
  %s13 = inlined_call_operand.vmem [shape: f32[2,2,1,128], index: 13, kind: output, shape index: {}]
  %s14 = sld [smem:[#allocation0]]
  $region85: #{emb_forward.13} parent=0
    _
  %s16 = ssub.s32 1, %s14
  %s17 = scalar_select 0, %s16, %s14
  %v18 = vstv %s12
  %19 = vst [vmem:[#allocation2] sm:$0x1] %v18
  loop: start=0, step=1, limit=6
  $region2: #{emb_forward.13} parent=0 // loop_pre_header
    _
  $region3: #{emb_forward.13} parent=0 // loop_header
    %s21 = sphi 0, %s25
    %p22 = scmp.ge.s32.totalorder %s21, 6
    %s28 = sphi 0, %s40
    %s29 = sphi 0, %s36
    %s30 = sphi 0, %s28
    %s31 = sphi 0, %s29
    %s32 = sphi 0, %s30
    %s33 = sphi 0, %s31
    %s43 = sphi 0, %s45
    %s46 = sphi 0, %s43
    %s47 = sphi 0, %s46
    %s63 = sphi 0, %s47
    %s69 = sphi 0, %s71
    %s72 = sphi 0, %s69
    %s73 = sphi 0, %s72
    %s89 = sphi 0, %s73
    %s95 = sphi 0, %s97
    %s98 = sphi 0, %s95
    %s99 = sphi 0, %s98
    %s115 = sphi 0, %s99
    %s121 = sphi 0, %s123
    %s124 = sphi 0, %s121
    %s125 = sphi 0, %s124
    %s141 = sphi 0, %s125
    %s147 = sphi 0, %s149
    %s150 = sphi 0, %s147
    %s151 = sphi 0, %s150
    %s167 = sphi 0, %s151
    %s175 = sphi 0, %s177
    %s178 = sphi 0, %s175
    %s179 = sphi 0, %s178
    %s195 = sphi 0, %s179
    %s203 = sphi 0, %s205
    %s206 = sphi 0, %s203
    %s207 = sphi 0, %s206
    %s223 = sphi 0, %s207
    %s227 = sphi 0, %s227
    %s229 = sphi 0, %s227
    %s230 = sphi 0, %s229
    %s244 = sphi 0, %s230
    %s248 = sphi 0, %s248
    %s250 = sphi 0, %s248
    %s251 = sphi 0, %s250
    %s265 = sphi 0, %s251
    %s269 = sphi 0, %s269
    %s271 = sphi 0, %s269
    %s272 = sphi 0, %s271
    %s286 = sphi 0, %s272
    %s290 = sphi 0, %s290
    %s292 = sphi 0, %s290
    %s293 = sphi 0, %s292
    %s307 = sphi 0, %s293
    %s311 = sphi 0, %s311
    %s313 = sphi 0, %s311
    %s314 = sphi 0, %s313
    %s328 = sphi 0, %s314
    %s332 = sphi 0, %s332
    %s334 = sphi 0, %s332
    %s335 = sphi 0, %s334
    %s349 = sphi 0, %s335
    %s357 = sphi 0, %s359
    %s360 = sphi 0, %s357
    %s361 = sphi 0, %s360
    %s377 = sphi 0, %s361
  $region4: #{emb_forward.13} parent=0 // loop_header_branch
    %24 = sbr.rel (%p22) target = $region8
  $region5: #{emb_forward.13} parent=0 // loop_body
    %s26 = ssub.s32 %s21, 1
    %s27 = ssub.s32 %s21, 2
    %s34 = sadd.s32 1, %s29
    %p35 = scmp.ge.s32.totalorder %s34, 2
    %s36 = scalar_select %p35, 0, %s34
    %s37 = sadd.s32 1, %s28
    %s38 = scalar_select %p35, %s37, %s28
    %p39 = scmp.ge.s32.totalorder %s38, 2
    %s40 = scalar_select %p39, 0, %s38
    %s41 = ssub.s32 %s29, %s36
    %p42 = scmp.eq.s32.totalorder %s41, 0
    %s44 = sadd.s32 %s43, 1
    %s45 = scalar_select %p42, %s43, %s44
    %p48 = pneg %p42
    %p49 = scmp.eq.s32.totalorder %s21, 3
    %p50 = por %p48, %p49
    %p51 = scmp.ne.s32.totalorder %s43, %s46
    %p52 = scmp.eq.s32.totalorder %s21, 0
    %p53 = por %p51, %p52
    %p54 = scmp.ne.s32.totalorder %s43, %s46
    %p55 = scmp.eq.s32.totalorder %s26, 3
    %p56 = por %p54, %p55
    %p57 = scmp.ne.s32.totalorder %s46, %s47
    %p58 = scmp.eq.s32.totalorder %s26, 0
    %p59 = por %p57, %p58
    %p60 = scmp.ne.s32.totalorder %s46, %s47
    %p61 = scmp.eq.s32.totalorder %s27, 3
    %p62 = por %p60, %p61
    %p64 = scmp.ne.s32.totalorder %s47, %s63
    %p65 = scmp.eq.s32.totalorder %s27, 0
    %p66 = por %p64, %p65
    %s67 = ssub.s32 %s28, %s40
    %p68 = scmp.eq.s32.totalorder %s67, 0
    %s70 = sadd.s32 %s69, 1
    %s71 = scalar_select %p68, %s69, %s70
    %p74 = pneg %p68
    %p75 = scmp.eq.s32.totalorder %s21, 3
    %p76 = por %p74, %p75
    %p77 = scmp.ne.s32.totalorder %s69, %s72
    %p78 = scmp.eq.s32.totalorder %s21, 0
    %p79 = por %p77, %p78
    %p80 = scmp.ne.s32.totalorder %s69, %s72
    %p81 = scmp.eq.s32.totalorder %s26, 3
    %p82 = por %p80, %p81
    %p83 = scmp.ne.s32.totalorder %s72, %s73
    %p84 = scmp.eq.s32.totalorder %s26, 0
    %p85 = por %p83, %p84
    %p86 = scmp.ne.s32.totalorder %s72, %s73
    %p87 = scmp.eq.s32.totalorder %s27, 3
    %p88 = por %p86, %p87
    %p90 = scmp.ne.s32.totalorder %s73, %s89
    %p91 = scmp.eq.s32.totalorder %s27, 0
    %p92 = por %p90, %p91
    %s93 = ssub.s32 %s28, %s40
    %p94 = scmp.eq.s32.totalorder %s93, 0
    %s96 = sadd.s32 %s95, 1
    %s97 = scalar_select %p94, %s95, %s96
    %p100 = pneg %p94
    %p101 = scmp.eq.s32.totalorder %s21, 3
    %p102 = por %p100, %p101
    %p103 = scmp.ne.s32.totalorder %s95, %s98
    %p104 = scmp.eq.s32.totalorder %s21, 0
    %p105 = por %p103, %p104
    %p106 = scmp.ne.s32.totalorder %s95, %s98
    %p107 = scmp.eq.s32.totalorder %s26, 3
    %p108 = por %p106, %p107
    %p109 = scmp.ne.s32.totalorder %s98, %s99
    %p110 = scmp.eq.s32.totalorder %s26, 0
    %p111 = por %p109, %p110
    %p112 = scmp.ne.s32.totalorder %s98, %s99
    %p113 = scmp.eq.s32.totalorder %s27, 3
    %p114 = por %p112, %p113
    %p116 = scmp.ne.s32.totalorder %s99, %s115
    %p117 = scmp.eq.s32.totalorder %s27, 0
    %p118 = por %p116, %p117
    %s119 = ssub.s32 %s28, %s40
    %p120 = scmp.eq.s32.totalorder %s119, 0
    %s122 = sadd.s32 %s121, 1
    %s123 = scalar_select %p120, %s121, %s122
    %p126 = pneg %p120
    %p127 = scmp.eq.s32.totalorder %s21, 3
    %p128 = por %p126, %p127
    %p129 = scmp.ne.s32.totalorder %s121, %s124
    %p130 = scmp.eq.s32.totalorder %s21, 0
    %p131 = por %p129, %p130
    %p132 = scmp.ne.s32.totalorder %s121, %s124
    %p133 = scmp.eq.s32.totalorder %s26, 3
    %p134 = por %p132, %p133
    %p135 = scmp.ne.s32.totalorder %s124, %s125
    %p136 = scmp.eq.s32.totalorder %s26, 0
    %p137 = por %p135, %p136
    %p138 = scmp.ne.s32.totalorder %s124, %s125
    %p139 = scmp.eq.s32.totalorder %s27, 3
    %p140 = por %p138, %p139
    %p142 = scmp.ne.s32.totalorder %s125, %s141
    %p143 = scmp.eq.s32.totalorder %s27, 0
    %p144 = por %p142, %p143
    %s145 = ssub.s32 %s28, %s40
    %p146 = scmp.eq.s32.totalorder %s145, 0
    %s148 = sadd.s32 %s147, 1
    %s149 = scalar_select %p146, %s147, %s148
    %p152 = pneg %p146
    %p153 = scmp.eq.s32.totalorder %s21, 3
    %p154 = por %p152, %p153
    %p155 = scmp.ne.s32.totalorder %s147, %s150
    %p156 = scmp.eq.s32.totalorder %s21, 0
    %p157 = por %p155, %p156
    %p158 = scmp.ne.s32.totalorder %s147, %s150
    %p159 = scmp.eq.s32.totalorder %s26, 3
    %p160 = por %p158, %p159
    %p161 = scmp.ne.s32.totalorder %s150, %s151
    %p162 = scmp.eq.s32.totalorder %s26, 0
    %p163 = por %p161, %p162
    %p164 = scmp.ne.s32.totalorder %s150, %s151
    %p165 = scmp.eq.s32.totalorder %s27, 3
    %p166 = por %p164, %p165
    %p168 = scmp.ne.s32.totalorder %s151, %s167
    %p169 = scmp.eq.s32.totalorder %s27, 0
    %p170 = por %p168, %p169
    %s171 = ssub.s32 %s28, %s40
    %s172 = ssub.s32 %s29, %s36
    %s173 = sor.u32 %s171, %s172
    %p174 = scmp.eq.s32.totalorder %s173, 0
    %s176 = sadd.s32 %s175, 1
    %s177 = scalar_select %p174, %s175, %s176
    %p180 = pneg %p174
    %p181 = scmp.eq.s32.totalorder %s21, 3
    %p182 = por %p180, %p181
    %p183 = scmp.ne.s32.totalorder %s175, %s178
    %p184 = scmp.eq.s32.totalorder %s21, 0
    %p185 = por %p183, %p184
    %p186 = scmp.ne.s32.totalorder %s175, %s178
    %p187 = scmp.eq.s32.totalorder %s26, 3
    %p188 = por %p186, %p187
    %p189 = scmp.ne.s32.totalorder %s178, %s179
    %p190 = scmp.eq.s32.totalorder %s26, 0
    %p191 = por %p189, %p190
    %p192 = scmp.ne.s32.totalorder %s178, %s179
    %p193 = scmp.eq.s32.totalorder %s27, 3
    %p194 = por %p192, %p193
    %p196 = scmp.ne.s32.totalorder %s179, %s195
    %p197 = scmp.eq.s32.totalorder %s27, 0
    %p198 = por %p196, %p197
    %s199 = ssub.s32 %s28, %s40
    %s200 = ssub.s32 %s29, %s36
    %s201 = sor.u32 %s199, %s200
    %p202 = scmp.eq.s32.totalorder %s201, 0
    %s204 = sadd.s32 %s203, 1
    %s205 = scalar_select %p202, %s203, %s204
    %p208 = pneg %p202
    %p209 = scmp.eq.s32.totalorder %s21, 3
    %p210 = por %p208, %p209
    %p211 = scmp.ne.s32.totalorder %s203, %s206
    %p212 = scmp.eq.s32.totalorder %s21, 0
    %p213 = por %p211, %p212
    %p214 = scmp.ne.s32.totalorder %s203, %s206
    %p215 = scmp.eq.s32.totalorder %s26, 3
    %p216 = por %p214, %p215
    %p217 = scmp.ne.s32.totalorder %s206, %s207
    %p218 = scmp.eq.s32.totalorder %s26, 0
    %p219 = por %p217, %p218
    %p220 = scmp.ne.s32.totalorder %s206, %s207
    %p221 = scmp.eq.s32.totalorder %s27, 3
    %p222 = por %p220, %p221
    %p224 = scmp.ne.s32.totalorder %s207, %s223
    %p225 = scmp.eq.s32.totalorder %s27, 0
    %p226 = por %p224, %p225
    %s228 = sadd.s32 %s227, 1
    %p231 = scmp.eq.s32.totalorder %s21, 3
    %p232 = scmp.ne.s32.totalorder %s227, %s229
    %p233 = scmp.eq.s32.totalorder %s21, 0
    %p234 = por %p232, %p233
    %p235 = scmp.ne.s32.totalorder %s227, %s229
    %p236 = scmp.eq.s32.totalorder %s26, 3
    %p237 = por %p235, %p236
    %p238 = scmp.ne.s32.totalorder %s229, %s230
    %p239 = scmp.eq.s32.totalorder %s26, 0
    %p240 = por %p238, %p239
    %p241 = scmp.ne.s32.totalorder %s229, %s230
    %p242 = scmp.eq.s32.totalorder %s27, 3
    %p243 = por %p241, %p242
    %p245 = scmp.ne.s32.totalorder %s230, %s244
    %p246 = scmp.eq.s32.totalorder %s27, 0
    %p247 = por %p245, %p246
    %s249 = sadd.s32 %s248, 1
    %p252 = scmp.eq.s32.totalorder %s21, 3
    %p253 = scmp.ne.s32.totalorder %s248, %s250
    %p254 = scmp.eq.s32.totalorder %s21, 0
    %p255 = por %p253, %p254
    %p256 = scmp.ne.s32.totalorder %s248, %s250
    %p257 = scmp.eq.s32.totalorder %s26, 3
    %p258 = por %p256, %p257
    %p259 = scmp.ne.s32.totalorder %s250, %s251
    %p260 = scmp.eq.s32.totalorder %s26, 0
    %p261 = por %p259, %p260
    %p262 = scmp.ne.s32.totalorder %s250, %s251
    %p263 = scmp.eq.s32.totalorder %s27, 3
    %p264 = por %p262, %p263
    %p266 = scmp.ne.s32.totalorder %s251, %s265
    %p267 = scmp.eq.s32.totalorder %s27, 0
    %p268 = por %p266, %p267
    %s270 = sadd.s32 %s269, 1
    %p273 = scmp.eq.s32.totalorder %s21, 3
    %p274 = scmp.ne.s32.totalorder %s269, %s271
    %p275 = scmp.eq.s32.totalorder %s21, 0
    %p276 = por %p274, %p275
    %p277 = scmp.ne.s32.totalorder %s269, %s271
    %p278 = scmp.eq.s32.totalorder %s26, 3
    %p279 = por %p277, %p278
    %p280 = scmp.ne.s32.totalorder %s271, %s272
    %p281 = scmp.eq.s32.totalorder %s26, 0
    %p282 = por %p280, %p281
    %p283 = scmp.ne.s32.totalorder %s271, %s272
    %p284 = scmp.eq.s32.totalorder %s27, 3
    %p285 = por %p283, %p284
    %p287 = scmp.ne.s32.totalorder %s272, %s286
    %p288 = scmp.eq.s32.totalorder %s27, 0
    %p289 = por %p287, %p288
    %s291 = sadd.s32 %s290, 1
    %p294 = scmp.eq.s32.totalorder %s21, 3
    %p295 = scmp.ne.s32.totalorder %s290, %s292
    %p296 = scmp.eq.s32.totalorder %s21, 0
    %p297 = por %p295, %p296
    %p298 = scmp.ne.s32.totalorder %s290, %s292
    %p299 = scmp.eq.s32.totalorder %s26, 3
    %p300 = por %p298, %p299
    %p301 = scmp.ne.s32.totalorder %s292, %s293
    %p302 = scmp.eq.s32.totalorder %s26, 0
    %p303 = por %p301, %p302
    %p304 = scmp.ne.s32.totalorder %s292, %s293
    %p305 = scmp.eq.s32.totalorder %s27, 3
    %p306 = por %p304, %p305
    %p308 = scmp.ne.s32.totalorder %s293, %s307
    %p309 = scmp.eq.s32.totalorder %s27, 0
    %p310 = por %p308, %p309
    %s312 = sadd.s32 %s311, 1
    %p315 = scmp.eq.s32.totalorder %s21, 3
    %p316 = scmp.ne.s32.totalorder %s311, %s313
    %p317 = scmp.eq.s32.totalorder %s21, 0
    %p318 = por %p316, %p317
    %p319 = scmp.ne.s32.totalorder %s311, %s313
    %p320 = scmp.eq.s32.totalorder %s26, 3
    %p321 = por %p319, %p320
    %p322 = scmp.ne.s32.totalorder %s313, %s314
    %p323 = scmp.eq.s32.totalorder %s26, 0
    %p324 = por %p322, %p323
    %p325 = scmp.ne.s32.totalorder %s313, %s314
    %p326 = scmp.eq.s32.totalorder %s27, 3
    %p327 = por %p325, %p326
    %p329 = scmp.ne.s32.totalorder %s314, %s328
    %p330 = scmp.eq.s32.totalorder %s27, 0
    %p331 = por %p329, %p330
    %s333 = sadd.s32 %s332, 1
    %p336 = scmp.eq.s32.totalorder %s21, 3
    %p337 = scmp.ne.s32.totalorder %s332, %s334
    %p338 = scmp.eq.s32.totalorder %s21, 0
    %p339 = por %p337, %p338
    %p340 = scmp.ne.s32.totalorder %s332, %s334
    %p341 = scmp.eq.s32.totalorder %s26, 3
    %p342 = por %p340, %p341
    %p343 = scmp.ne.s32.totalorder %s334, %s335
    %p344 = scmp.eq.s32.totalorder %s26, 0
    %p345 = por %p343, %p344
    %p346 = scmp.ne.s32.totalorder %s334, %s335
    %p347 = scmp.eq.s32.totalorder %s27, 3
    %p348 = por %p346, %p347
    %p350 = scmp.ne.s32.totalorder %s335, %s349
    %p351 = scmp.eq.s32.totalorder %s27, 0
    %p352 = por %p350, %p351
    %s353 = ssub.s32 %s28, %s40
    %s354 = ssub.s32 %s29, %s36
    %s355 = sor.u32 %s353, %s354
    %p356 = scmp.eq.s32.totalorder %s355, 0
    %s358 = sadd.s32 %s357, 1
    %s359 = scalar_select %p356, %s357, %s358
    %p362 = pneg %p356
    %p363 = scmp.eq.s32.totalorder %s21, 3
    %p364 = por %p362, %p363
    %p365 = scmp.ne.s32.totalorder %s357, %s360
    %p366 = scmp.eq.s32.totalorder %s21, 0
    %p367 = por %p365, %p366
    %p368 = scmp.ne.s32.totalorder %s357, %s360
    %p369 = scmp.eq.s32.totalorder %s26, 3
    %p370 = por %p368, %p369
    %p371 = scmp.ne.s32.totalorder %s360, %s361
    %p372 = scmp.eq.s32.totalorder %s26, 0
    %p373 = por %p371, %p372
    %p374 = scmp.ne.s32.totalorder %s360, %s361
    %p375 = scmp.eq.s32.totalorder %s27, 3
    %p376 = por %p374, %p375
    %p378 = scmp.ne.s32.totalorder %s361, %s377
    %p379 = scmp.eq.s32.totalorder %s27, 0
    %p380 = por %p378, %p379
    %p381 = scmp.le.s32.totalorder 1, %s21
    %p382 = scmp.lt.s32.totalorder %s21, 5
    %p383 = pnand %p381, %p382
    %p384 = pneg %p383
    // Predicated region
    $region9: #{emb_forward.13} parent=5 // pred_check
      _
    $region10: #{emb_forward.13} parent=5 // pred_check_branch
      %386 = sbr.rel (%p383) target = $region12
    $region11: #{emb_forward.13} parent=5 // pred_region
      %s387 = ssub.s32 %s21, 1
      // Predicated region
      $region13: #{emb_forward.13} parent=11 // pred_check
        %p388 = pneg %p240
      $region14: #{emb_forward.13} parent=11 // pred_check_branch
        %390 = sbr.rel (%p388) target = $region16
      $region15: #{emb_forward.13} parent=11 // pred_region
        _
      $region16: #{emb_forward.13} parent=11 // pred_fallthru
        _
      // Predicated region
      $region17: #{emb_forward.13} parent=11 // pred_check
        %p391 = pneg %p261
      $region18: #{emb_forward.13} parent=11 // pred_check_branch
        %393 = sbr.rel (%p391) target = $region20
      $region19: #{emb_forward.13} parent=11 // pred_region
        _
      $region20: #{emb_forward.13} parent=11 // pred_fallthru
        _
      // Predicated region
      $region21: #{emb_forward.13} parent=11 // pred_check
        %p394 = pneg %p282
      $region22: #{emb_forward.13} parent=11 // pred_check_branch
        %396 = sbr.rel (%p394) target = $region24
      $region23: #{emb_forward.13} parent=11 // pred_region
        _
      $region24: #{emb_forward.13} parent=11 // pred_fallthru
        _
      // Predicated region
      $region25: #{emb_forward.13} parent=11 // pred_check
        %p397 = pneg %p303
      $region26: #{emb_forward.13} parent=11 // pred_check_branch
        %399 = sbr.rel (%p397) target = $region28
      $region27: #{emb_forward.13} parent=11 // pred_region
        _
      $region28: #{emb_forward.13} parent=11 // pred_fallthru
        _
      // Predicated region
      $region29: #{emb_forward.13} parent=11 // pred_check
        %p400 = pneg %p324
      $region30: #{emb_forward.13} parent=11 // pred_check_branch
        %402 = sbr.rel (%p400) target = $region32
      $region31: #{emb_forward.13} parent=11 // pred_region
        _
      $region32: #{emb_forward.13} parent=11 // pred_fallthru
        _
      // Predicated region
      $region33: #{emb_forward.13} parent=11 // pred_check
        %p403 = pneg %p345
      $region34: #{emb_forward.13} parent=11 // pred_check_branch
        %405 = sbr.rel (%p403) target = $region36
      $region35: #{emb_forward.13} parent=11 // pred_region
        _
      $region36: #{emb_forward.13} parent=11 // pred_fallthru
        _
    $region12: #{emb_forward.13} parent=5 // pred_fallthru
      _
    %p406 = scmp.lt.s32.totalorder %s21, 4
    // Predicated region
    $region37: #{emb_forward.13} parent=5 // pred_check
      %p407 = pneg %p406
    $region38: #{emb_forward.13} parent=5 // pred_check_branch
      %409 = sbr.rel (%p407) target = $region40
    $region39: #{emb_forward.13} parent=5 // pred_region
      // Predicated region
      $region41: #{emb_forward.13} parent=39 // pred_check
        %p410 = pneg %p53
      $region42: #{emb_forward.13} parent=39 // pred_check_branch
        %412 = sbr.rel (%p410) target = $region44
      $region43: #{emb_forward.13} parent=39 // pred_region
        %s413 = smul.u32 16, %s29
        %p414 = scmp.lt.s32.totalorder %s413, 31
        %s415 = scalar_select %p414, %s413, 31
        %s416 = smul.addr %s415, 8
        %s417 = scalar_lea.vmem %s0, %s416
        %s418 = smul.u32 16, %s29
      $region44: #{emb_forward.13} parent=39 // pred_fallthru
        _
      // Predicated region
      $region45: #{emb_forward.13} parent=39 // pred_check
        %p419 = pneg %p79
      $region46: #{emb_forward.13} parent=39 // pred_check_branch
        %421 = sbr.rel (%p419) target = $region48
      $region47: #{emb_forward.13} parent=39 // pred_region
        %p422 = scmp.lt.s32.totalorder %s28, 1
        %s423 = scalar_select %p422, %s28, 1
        %s424 = smul.addr %s423, 3
        %s425 = smul.addr %s424, 8
        %s426 = scalar_lea.vmem %s1, %s425
      $region48: #{emb_forward.13} parent=39 // pred_fallthru
        _
      // Predicated region
      $region49: #{emb_forward.13} parent=39 // pred_check
        %p427 = pneg %p105
      $region50: #{emb_forward.13} parent=39 // pred_check_branch
        %429 = sbr.rel (%p427) target = $region52
      $region51: #{emb_forward.13} parent=39 // pred_region
        %p430 = scmp.lt.s32.totalorder %s28, 1
        %s431 = scalar_select %p430, %s28, 1
        %s432 = smul.addr %s431, 4
        %s433 = scalar_lea.vmem %s2, %s432
      $region52: #{emb_forward.13} parent=39 // pred_fallthru
        _
      // Predicated region
      $region53: #{emb_forward.13} parent=39 // pred_check
        %p434 = pneg %p131
      $region54: #{emb_forward.13} parent=39 // pred_check_branch
        %436 = sbr.rel (%p434) target = $region56
      $region55: #{emb_forward.13} parent=39 // pred_region
        %p437 = scmp.lt.s32.totalorder %s28, 1
        %s438 = scalar_select %p437, %s28, 1
        %s439 = smul.addr %s438, 4
        %s440 = scalar_lea.vmem %s3, %s439
      $region56: #{emb_forward.13} parent=39 // pred_fallthru
        _
      // Predicated region
      $region57: #{emb_forward.13} parent=39 // pred_check
        %p441 = pneg %p157
      $region58: #{emb_forward.13} parent=39 // pred_check_branch
        %443 = sbr.rel (%p441) target = $region60
      $region59: #{emb_forward.13} parent=39 // pred_region
        %p444 = scmp.lt.s32.totalorder %s28, 1
        %s445 = scalar_select %p444, %s28, 1
        %s446 = scalar_lea.vmem %s4, %s445
      $region60: #{emb_forward.13} parent=39 // pred_fallthru
        _
      // Predicated region
      $region61: #{emb_forward.13} parent=39 // pred_check
        %p447 = pneg %p185
      $region62: #{emb_forward.13} parent=39 // pred_check_branch
        %449 = sbr.rel (%p447) target = $region64
      $region63: #{emb_forward.13} parent=39 // pred_region
        %s450 = smul.u32 16, %s29
        %p451 = scmp.lt.s32.totalorder %s28, 1
        %s452 = scalar_select %p451, %s28, 1
        %p453 = scmp.lt.s32.totalorder %s450, 31
        %s454 = scalar_select %p453, %s450, 31
        %s455 = smul.addr %s452, 32
        %s456 = sadd.s32 %s454, %s455
        %s457 = smul.addr %s456, 8
        %s458 = scalar_lea.vmem %s5, %s457
        %s459 = smul.u32 16, %s29
      $region64: #{emb_forward.13} parent=39 // pred_fallthru
        _
      // Predicated region
      $region65: #{emb_forward.13} parent=39 // pred_check
        %p460 = pneg %p213
      $region66: #{emb_forward.13} parent=39 // pred_check_branch
        %462 = sbr.rel (%p460) target = $region68
      $region67: #{emb_forward.13} parent=39 // pred_region
        %p463 = scmp.lt.s32.totalorder %s28, 1
        %s464 = scalar_select %p463, %s28, 1
        %p465 = scmp.lt.s32.totalorder %s29, 1
        %s466 = scalar_select %p465, %s29, 1
        %s467 = smul.addr %s464, 2
        %s468 = sadd.s32 %s466, %s467
        %s469 = scalar_lea.vmem %s6, %s468
      $region68: #{emb_forward.13} parent=39 // pred_fallthru
        _
    $region40: #{emb_forward.13} parent=5 // pred_fallthru
      _
    %p470 = scmp.le.s32.totalorder 1, %s21
    %p471 = scmp.lt.s32.totalorder %s21, 5
    %p472 = pnand %p470, %p471
    %p473 = pneg %p472
    // Predicated region
    $region69: #{emb_forward.13} parent=5 // pred_check
      _
    $region70: #{emb_forward.13} parent=5 // pred_check_branch
      %475 = sbr.rel (%p472) target = $region72
    $region71: #{emb_forward.13} parent=5 // pred_region
      %s476 = ssub.s32 %s21, 1
      %s477 = smul.u32 16, %s31
      %p478 = scmp.lt.s32.totalorder %s477, 31
      %s479 = scalar_select %p478, %s477, 31
      %s480 = smul.addr %s479, 8
      %s481 = scalar_lea.vmem %s0, %s480
      %p482 = pneg %p59
      %p483 = pneg %p56
      %p484 = scmp.lt.s32.totalorder %s30, 1
      %s485 = scalar_select %p484, %s30, 1
      %s486 = smul.addr %s485, 3
      %s487 = smul.addr %s486, 8
      %s488 = scalar_lea.vmem %s1, %s487
      %p489 = pneg %p85
      %p490 = pneg %p82
      %p491 = scmp.lt.s32.totalorder %s30, 1
      %s492 = scalar_select %p491, %s30, 1
      %s493 = smul.addr %s492, 4
      %s494 = scalar_lea.vmem %s2, %s493
      %p495 = pneg %p111
      %p496 = pneg %p108
      %p497 = scmp.lt.s32.totalorder %s30, 1
      %s498 = scalar_select %p497, %s30, 1
      %s499 = smul.addr %s498, 4
      %s500 = scalar_lea.vmem %s3, %s499
      %p501 = pneg %p137
      %p502 = pneg %p134
      %p503 = scmp.lt.s32.totalorder %s30, 1
      %s504 = scalar_select %p503, %s30, 1
      %s505 = scalar_lea.vmem %s4, %s504
      %p506 = pneg %p163
      %p507 = pneg %p160
      %s508 = smul.u32 16, %s31
      %p509 = scmp.lt.s32.totalorder %s30, 1
      %s510 = scalar_select %p509, %s30, 1
      %p511 = scmp.lt.s32.totalorder %s508, 31
      %s512 = scalar_select %p511, %s508, 31
      %s513 = smul.addr %s510, 32
      %s514 = sadd.s32 %s512, %s513
      %s515 = smul.addr %s514, 8
      %s516 = scalar_lea.vmem %s5, %s515
      %p517 = pneg %p191
      %p518 = pneg %p188
      %p519 = scmp.lt.s32.totalorder %s30, 1
      %s520 = scalar_select %p519, %s30, 1
      %p521 = scmp.lt.s32.totalorder %s31, 1
      %s522 = scalar_select %p521, %s31, 1
      %s523 = smul.addr %s520, 2
      %s524 = sadd.s32 %s522, %s523
      %s525 = scalar_lea.vmem %s6, %s524
      %p526 = pneg %p219
      %p527 = pneg %p216
      %p528 = pneg %p240
      %p529 = pneg %p237
      %p530 = pneg %p261
      %p531 = pneg %p258
      %p532 = pneg %p282
      %p533 = pneg %p279
      %p534 = pneg %p303
      %p535 = pneg %p300
      %p536 = pneg %p324
      %p537 = pneg %p321
      %p538 = pneg %p345
      %p539 = pneg %p342
      %p540 = pneg %p373
      %p541 = pneg %p370
      %p542 = scmp.lt.s32.totalorder %s30, 1
      %s543 = scalar_select %p542, %s30, 1
      %p544 = scmp.lt.s32.totalorder %s31, 1
      %s545 = scalar_select %p544, %s31, 1
      %s546 = smul.addr %s543, 2
      %s547 = sadd.s32 %s545, %s546
      %s548 = scalar_lea.vmem %s13, %s547
      %s549 = smul.u32 16, %s31
      %p550 = scmp.lt.s32.totalorder %s549, 31
      %s551 = scalar_select %p550, %s549, 31
      %s552 = smul.addr %s551, 8
      %s553 = scalar_lea.vmem %s0, %s552
      %s554 = smul.u32 16, %s31
      %p555 = scmp.lt.s32.totalorder %s30, 1
      %s556 = scalar_select %p555, %s30, 1
      %s557 = smul.addr %s556, 3
      %s558 = smul.addr %s557, 8
      %s559 = scalar_lea.vmem %s1, %s558
      %p560 = scmp.lt.s32.totalorder %s30, 1
      %s561 = scalar_select %p560, %s30, 1
      %s562 = smul.addr %s561, 4
      %s563 = scalar_lea.vmem %s2, %s562
      %p564 = scmp.lt.s32.totalorder %s30, 1
      %s565 = scalar_select %p564, %s30, 1
      %s566 = smul.addr %s565, 4
      %s567 = scalar_lea.vmem %s3, %s566
      %p568 = scmp.lt.s32.totalorder %s30, 1
      %s569 = scalar_select %p568, %s30, 1
      %s570 = scalar_lea.vmem %s4, %s569
      %s571 = smul.u32 16, %s31
      %p572 = scmp.lt.s32.totalorder %s30, 1
      %s573 = scalar_select %p572, %s30, 1
      %p574 = scmp.lt.s32.totalorder %s571, 31
      %s575 = scalar_select %p574, %s571, 31
      %s576 = smul.addr %s573, 32
      %s577 = sadd.s32 %s575, %s576
      %s578 = smul.addr %s577, 8
      %s579 = scalar_lea.vmem %s5, %s578
      %s580 = smul.u32 16, %s31
      %p581 = scmp.lt.s32.totalorder %s30, 1
      %s582 = scalar_select %p581, %s30, 1
      %p583 = scmp.lt.s32.totalorder %s31, 1
      %s584 = scalar_select %p583, %s31, 1
      %s585 = smul.addr %s582, 2
      %s586 = sadd.s32 %s584, %s585
      %s587 = scalar_lea.vmem %s6, %s586
      %p588 = scmp.lt.s32.totalorder %s30, 1
      %s589 = scalar_select %p588, %s30, 1
      %p590 = scmp.lt.s32.totalorder %s31, 1
      %s591 = scalar_select %p590, %s31, 1
      %s592 = smul.addr %s589, 2
      %s593 = sadd.s32 %s591, %s592
      %s594 = scalar_lea.vmem %s13, %s593
      %v596 = vld [vmem:[%s553] sm:$0xff]
      %v597 = vld [vmem:[%s553 + $0x8] sm:$0xff]
      %v598 = vld [vmem:[%s553 + $0x10] sm:$0xff]
      %v599 = vld [vmem:[%s553 + $0x18] sm:$0xff]
      %v600 = vld [vmem:[%s553 + $0x20] sm:$0xff]
      %v601 = vld [vmem:[%s553 + $0x28] sm:$0xff]
      %v602 = vld [vmem:[%s553 + $0x30] sm:$0xff]
      %v603 = vld [vmem:[%s553 + $0x38] sm:$0xff]
      %v604 = vld [vmem:[%s553 + $0x40] sm:$0xff]
      %v605 = vld [vmem:[%s553 + $0x48] sm:$0xff]
      %v606 = vld [vmem:[%s553 + $0x50] sm:$0xff]
      %v607 = vld [vmem:[%s553 + $0x58] sm:$0xff]
      %v608 = vld [vmem:[%s553 + $0x60] sm:$0xff]
      %v609 = vld [vmem:[%s553 + $0x68] sm:$0xff]
      %v610 = vld [vmem:[%s553 + $0x70] sm:$0xff]
      %v611 = vld [vmem:[%s553 + $0x78] sm:$0xff]
      %v612 = vld [vmem:[%s559] sm:$0xff]
      %v613 = vld [vmem:[%s559 + $0x8] sm:$0xff]
      %v614 = vld [vmem:[%s559 + $0x10] sm:$0x1]
      %vm615 = vcmask 138240
      %v617 = vsel %vm615, %v596, 0
      %v620 = vsel %vm615, %v597, 0
      %v623 = vsel %vm615, %v598, 0
      %v626 = vsel %vm615, %v599, 0
      %v629 = vsel %vm615, %v600, 0
      %v632 = vsel %vm615, %v601, 0
      %v635 = vsel %vm615, %v602, 0
      %v638 = vsel %vm615, %v603, 0
      %v641 = vsel %vm615, %v604, 0
      %v644 = vsel %vm615, %v605, 0
      %v647 = vsel %vm615, %v606, 0
      %v650 = vsel %vm615, %v607, 0
      %v653 = vsel %vm615, %v608, 0
      %v656 = vsel %vm615, %v609, 0
      %v659 = vsel %vm615, %v610, 0
      %v662 = vsel %vm615, %v611, 0
      %vm664 = vcmask 1040384
      %v666 = vsel %vm664, %v614, 0
      %668 = vmatpush.msra.mxu0 0.0
      %669 = vmatpush.msra.mxu0 0.0
      %670 = vmatpush.msra.mxu0 0.0
      %671 = vmatpush.msra.mxu0 0.0
      %672 = vmatpush.msra.mxu0 0.0
      %673 = vmatpush.msra.mxu0 0.0
      %674 = vmatpush.msra.mxu0 0.0
      %675 = vmatpush.msra.mxu0 0.0
      %676 = vmatpush.msra.mxu0 0.0
      %677 = vmatpush.msra.mxu0 0.0
      %678 = vmatpush.msra.mxu0 0.0
      %679 = vmatpush.msra.mxu0 0.0
      %680 = vmatpush.msra.mxu0 0.0
      %681 = vmatpush.msra.mxu0 %v666
      %682 = vmatpush.msra.mxu0 %v613
      %683 = vmatpush.msra.mxu0 %v612
      %684 = vmatmul.f32.gmra.mxu0 %v617
      %v685 = vpop.f32.mrf.mxu0
      %v686 = vadd.f32 0.0, %v685
      %687 = vmatmul.f32.gmra.mxu0 %v620
      %v688 = vpop.f32.mrf.mxu0
      %v689 = vadd.f32 0.0, %v688
      %690 = vmatmul.f32.gmra.mxu0 %v623
      %v691 = vpop.f32.mrf.mxu0
      %v692 = vadd.f32 0.0, %v691
      %693 = vmatmul.f32.gmra.mxu0 %v626
      %v694 = vpop.f32.mrf.mxu0
      %v695 = vadd.f32 0.0, %v694
      %696 = vmatmul.f32.gmra.mxu0 %v629
      %v697 = vpop.f32.mrf.mxu0
      %v698 = vadd.f32 0.0, %v697
      %699 = vmatmul.f32.gmra.mxu0 %v632
      %v700 = vpop.f32.mrf.mxu0
      %v701 = vadd.f32 0.0, %v700
      %702 = vmatmul.f32.gmra.mxu0 %v635
      %v703 = vpop.f32.mrf.mxu0
      %v704 = vadd.f32 0.0, %v703
      %705 = vmatmul.f32.gmra.mxu0 %v638
      %v706 = vpop.f32.mrf.mxu0
      %v707 = vadd.f32 0.0, %v706
      %708 = vmatmul.f32.gmra.mxu0 %v641
      %v709 = vpop.f32.mrf.mxu0
      %v710 = vadd.f32 0.0, %v709
      %711 = vmatmul.f32.gmra.mxu0 %v644
      %v712 = vpop.f32.mrf.mxu0
      %v713 = vadd.f32 0.0, %v712
      %714 = vmatmul.f32.gmra.mxu0 %v647
      %v715 = vpop.f32.mrf.mxu0
      %v716 = vadd.f32 0.0, %v715
      %717 = vmatmul.f32.gmra.mxu0 %v650
      %v718 = vpop.f32.mrf.mxu0
      %v719 = vadd.f32 0.0, %v718
      %720 = vmatmul.f32.gmra.mxu0 %v653
      %v721 = vpop.f32.mrf.mxu0
      %v722 = vadd.f32 0.0, %v721
      %723 = vmatmul.f32.gmra.mxu0 %v656
      %v724 = vpop.f32.mrf.mxu0
      %v725 = vadd.f32 0.0, %v724
      %726 = vmatmul.f32.gmra.mxu0 %v659
      %v727 = vpop.f32.mrf.mxu0
      %v728 = vadd.f32 0.0, %v727
      %729 = vmatmul.f32.gmra.mxu0 %v662
      %v730 = vpop.f32.mrf.mxu0
      %v731 = vadd.f32 0.0, %v730
      %732 = vdwg.mxu0
      %v733 = vld [vmem:[%s579] sm:$0xff]
      %v734 = vld [vmem:[%s579 + $0x8] sm:$0xff]
      %v735 = vld [vmem:[%s579 + $0x10] sm:$0xff]
      %v736 = vld [vmem:[%s579 + $0x18] sm:$0xff]
      %v737 = vld [vmem:[%s579 + $0x20] sm:$0xff]
      %v738 = vld [vmem:[%s579 + $0x28] sm:$0xff]
      %v739 = vld [vmem:[%s579 + $0x30] sm:$0xff]
      %v740 = vld [vmem:[%s579 + $0x38] sm:$0xff]
      %v741 = vld [vmem:[%s579 + $0x40] sm:$0xff]
      %v742 = vld [vmem:[%s579 + $0x48] sm:$0xff]
      %v743 = vld [vmem:[%s579 + $0x50] sm:$0xff]
      %v744 = vld [vmem:[%s579 + $0x58] sm:$0xff]
      %v745 = vld [vmem:[%s579 + $0x60] sm:$0xff]
      %v746 = vld [vmem:[%s579 + $0x68] sm:$0xff]
      %v747 = vld [vmem:[%s579 + $0x70] sm:$0xff]
      %v748 = vld [vmem:[%s579 + $0x78] sm:$0xff]
      %v749 = vpack.c.bf16 %v686, %v686
      %v750 = vpack.c.bf16 %v689, %v689
      %v751 = vpack.c.bf16 %v692, %v692
      %v752 = vpack.c.bf16 %v695, %v695
      %v753 = vpack.c.bf16 %v698, %v698
      %v754 = vpack.c.bf16 %v701, %v701
      %v755 = vpack.c.bf16 %v704, %v704
      %v756 = vpack.c.bf16 %v707, %v707
      %v757 = vpack.c.bf16 %v710, %v710
      %v758 = vpack.c.bf16 %v713, %v713
      %v759 = vpack.c.bf16 %v716, %v716
      %v760 = vpack.c.bf16 %v719, %v719
      %v761 = vpack.c.bf16 %v722, %v722
      %v762 = vpack.c.bf16 %v725, %v725
      %v763 = vpack.c.bf16 %v728, %v728
      %v764 = vpack.c.bf16 %v731, %v731
      %v765 = vld [vmem:[%s563] sm:$0xf]
      %v766 = vld [vmem:[%s567] sm:$0xf]
      %v767 = vld [vmem:[%s570] sm:$0x1]
      %v768 = vld [vmem:[%s7] sm:$0xf]
      %v769 = vld [vmem:[%s7 + $0x4] sm:$0xf]
      %v770 = vld [vmem:[%s7 + $0x8] sm:$0xf]
      %v771 = vld [vmem:[%s7 + $0xc] sm:$0xf]
      %v772 = vld [vmem:[%s7 + $0x10] sm:$0xf]
      %v773 = vld [vmem:[%s7 + $0x14] sm:$0xf]
      %v774 = vld [vmem:[%s7 + $0x18] sm:$0xf]
      %v775 = vld [vmem:[%s7 + $0x1c] sm:$0xf]
      %v776 = vld [vmem:[%s7 + $0x20] sm:$0xf]
      %v777 = vld [vmem:[%s7 + $0x24] sm:$0xf]
      %v778 = vld [vmem:[%s7 + $0x28] sm:$0xf]
      %v779 = vld [vmem:[%s7 + $0x2c] sm:$0xf]
      %v780 = vld [vmem:[%s7 + $0x30] sm:$0xf]
      %v781 = vld [vmem:[%s7 + $0x34] sm:$0xf]
      %v782 = vld [vmem:[%s7 + $0x38] sm:$0xf]
      %v783 = vld [vmem:[%s7 + $0x3c] sm:$0xf]
      %v784 = vld [vmem:[%s7 + $0x40] sm:$0xf]
      %v785 = vld [vmem:[%s7 + $0x44] sm:$0xf]
      %v786 = vld [vmem:[%s7 + $0x48] sm:$0xf]
      %v787 = vld [vmem:[%s7 + $0x4c] sm:$0xf]
      %v788 = vld [vmem:[%s7 + $0x50] sm:$0xf]
      %v789 = vld [vmem:[%s7 + $0x54] sm:$0xf]
      %v790 = vld [vmem:[%s7 + $0x58] sm:$0xf]
      %v791 = vld [vmem:[%s7 + $0x5c] sm:$0xf]
      %v792 = vld [vmem:[%s7 + $0x60] sm:$0xf]
      %v793 = vld [vmem:[%s7 + $0x64] sm:$0xf]
      %v794 = vld [vmem:[%s7 + $0x68] sm:$0xf]
      %v795 = vld [vmem:[%s7 + $0x6c] sm:$0xf]
      %v796 = vld [vmem:[%s7 + $0x70] sm:$0xf]
      %v797 = vld [vmem:[%s7 + $0x74] sm:$0xf]
      %v798 = vld [vmem:[%s7 + $0x78] sm:$0xf]
      %v799 = vld [vmem:[%s7 + $0x7c] sm:$0xf]
      %v800 = vld [vmem:[%s7 + $0x80] sm:$0xf]
      %v801 = vld [vmem:[%s7 + $0x84] sm:$0xf]
      %v802 = vld [vmem:[%s7 + $0x88] sm:$0xf]
      %v803 = vld [vmem:[%s7 + $0x8c] sm:$0xf]
      %v804 = vld [vmem:[%s7 + $0x90] sm:$0xf]
      %v805 = vld [vmem:[%s7 + $0x94] sm:$0xf]
      %v806 = vld [vmem:[%s7 + $0x98] sm:$0xf]
      %v807 = vld [vmem:[%s7 + $0x9c] sm:$0xf]
      %v808 = vld [vmem:[%s7 + $0xa0] sm:$0xf]
      %v809 = vld [vmem:[%s7 + $0xa4] sm:$0xf]
      %v810 = vld [vmem:[%s7 + $0xa8] sm:$0xf]
      %v811 = vld [vmem:[%s7 + $0xac] sm:$0xf]
      %v812 = vld [vmem:[%s7 + $0xb0] sm:$0xf]
      %v813 = vld [vmem:[%s7 + $0xb4] sm:$0xf]
      %v814 = vld [vmem:[%s7 + $0xb8] sm:$0xf]
      %v815 = vld [vmem:[%s7 + $0xbc] sm:$0xf]
      %v816 = vld [vmem:[%s7 + $0xc0] sm:$0xf]
      %v817 = vld [vmem:[%s7 + $0xc4] sm:$0xf]
      %v818 = vld [vmem:[%s7 + $0xc8] sm:$0xf]
      %v819 = vld [vmem:[%s7 + $0xcc] sm:$0xf]
      %v820 = vld [vmem:[%s7 + $0xd0] sm:$0xf]
      %v821 = vld [vmem:[%s7 + $0xd4] sm:$0xf]
      %v822 = vld [vmem:[%s7 + $0xd8] sm:$0xf]
      %v823 = vld [vmem:[%s7 + $0xdc] sm:$0xf]
      %v824 = vld [vmem:[%s7 + $0xe0] sm:$0xf]
      %v825 = vld [vmem:[%s7 + $0xe4] sm:$0xf]
      %v826 = vld [vmem:[%s7 + $0xe8] sm:$0xf]
      %v827 = vld [vmem:[%s7 + $0xec] sm:$0xf]
      %v828 = vld [vmem:[%s7 + $0xf0] sm:$0xf]
      %v829 = vld [vmem:[%s7 + $0xf4] sm:$0xf]
      %v830 = vld [vmem:[%s7 + $0xf8] sm:$0xf]
      %v831 = vld [vmem:[%s7 + $0xfc] sm:$0xf]
      %v832 = vld [vmem:[%s8] sm:$0x1]
      %v849 = vunpack.c.l.b16 %v749
      %v850 = vunpack.c.l.b16 %v750
      %v851 = vunpack.c.l.b16 %v751
      %v852 = vunpack.c.l.b16 %v752
      %v853 = vunpack.c.l.b16 %v753
      %v854 = vunpack.c.l.b16 %v754
      %v855 = vunpack.c.l.b16 %v755
      %v856 = vunpack.c.l.b16 %v756
      %v857 = vunpack.c.l.b16 %v757
      %v858 = vunpack.c.l.b16 %v758
      %v859 = vunpack.c.l.b16 %v759
      %v860 = vunpack.c.l.b16 %v760
      %v861 = vunpack.c.l.b16 %v761
      %v862 = vunpack.c.l.b16 %v762
      %v863 = vunpack.c.l.b16 %v763
      %v864 = vunpack.c.l.b16 %v764
      %v865 = vpack.c.b16 %v850, %v849
      %v866 = vpack.c.b16 %v852, %v851
      %v867 = vpack.c.b16 %v854, %v853
      %v868 = vpack.c.b16 %v856, %v855
      %v869 = vpack.c.b16 %v858, %v857
      %v870 = vpack.c.b16 %v860, %v859
      %v871 = vpack.c.b16 %v862, %v861
      %v872 = vpack.c.b16 %v864, %v863
      %881 = vmatpush.bf16.xpose.msra.mxu0 0
      %882 = vmatpush.bf16.xpose.msra.mxu0 0
      %883 = vmatpush.bf16.xpose.msra.mxu0 0
      %884 = vmatpush.bf16.xpose.msra.mxu0 0
      %885 = vmatpush.bf16.xpose.msra.mxu0 0
      %886 = vmatpush.bf16.xpose.msra.mxu0 0
      %887 = vmatpush.bf16.xpose.msra.mxu0 0
      %888 = vmatpush.bf16.xpose.msra.mxu0 %v765
      %889 = vmatmul.bf16.gmra.mxu0 %v865
      %v890 = vpop.f32.mrf.mxu0
      %v891 = vadd.f32 0.0, %v890
      %v892 = vpop.f32.mrf.mxu0
      %v893 = vadd.f32 0.0, %v892
      %894 = vmatmul.bf16.gmra.mxu0 %v866
      %v895 = vpop.f32.mrf.mxu0
      %v896 = vadd.f32 0.0, %v895
      %v897 = vpop.f32.mrf.mxu0
      %v898 = vadd.f32 0.0, %v897
      %899 = vmatmul.bf16.gmra.mxu0 %v867
      %v900 = vpop.f32.mrf.mxu0
      %v901 = vadd.f32 0.0, %v900
      %v902 = vpop.f32.mrf.mxu0
      %v903 = vadd.f32 0.0, %v902
      %904 = vmatmul.bf16.gmra.mxu0 %v868
      %v905 = vpop.f32.mrf.mxu0
      %v906 = vadd.f32 0.0, %v905
      %v907 = vpop.f32.mrf.mxu0
      %v908 = vadd.f32 0.0, %v907
      %909 = vmatmul.bf16.gmra.mxu0 %v869
      %v910 = vpop.f32.mrf.mxu0
      %v911 = vadd.f32 0.0, %v910
      %v912 = vpop.f32.mrf.mxu0
      %v913 = vadd.f32 0.0, %v912
      %914 = vmatmul.bf16.gmra.mxu0 %v870
      %v915 = vpop.f32.mrf.mxu0
      %v916 = vadd.f32 0.0, %v915
      %v917 = vpop.f32.mrf.mxu0
      %v918 = vadd.f32 0.0, %v917
      %919 = vmatmul.bf16.gmra.mxu0 %v871
      %v920 = vpop.f32.mrf.mxu0
      %v921 = vadd.f32 0.0, %v920
      %v922 = vpop.f32.mrf.mxu0
      %v923 = vadd.f32 0.0, %v922
      %924 = vmatmul.bf16.gmra.mxu0 %v872
      %v925 = vpop.f32.mrf.mxu0
      %v926 = vadd.f32 0.0, %v925
      %v927 = vpop.f32.mrf.mxu0
      %v928 = vadd.f32 0.0, %v927
      %929 = vdwg.mxu0
      %v930 = vmul.f32 %v891, 0.088388346
      %v931 = vmul.f32 %v893, 0.088388346
      %v932 = vmul.f32 %v896, 0.088388346
      %v933 = vmul.f32 %v898, 0.088388346
      %v934 = vmul.f32 %v901, 0.088388346
      %v935 = vmul.f32 %v903, 0.088388346
      %v936 = vmul.f32 %v906, 0.088388346
      %v937 = vmul.f32 %v908, 0.088388346
      %v938 = vmul.f32 %v911, 0.088388346
      %v939 = vmul.f32 %v913, 0.088388346
      %v940 = vmul.f32 %v916, 0.088388346
      %v941 = vmul.f32 %v918, 0.088388346
      %v942 = vmul.f32 %v921, 0.088388346
      %v943 = vmul.f32 %v923, 0.088388346
      %v944 = vmul.f32 %v926, 0.088388346
      %v945 = vmul.f32 %v928, 0.088388346
      %vm946 = vcmp.gt.f32.partialorder %v767, 0.0
      %v947 = vsel %vm946, 1, 0
      %v948 = vperm.slane %v947, 0
      %vm949 = vcmp.eq.s32.totalorder %v948, 1
      %v950 = vsel %vm949, %v930, -1e+30
      %v951 = vsel %vm949, %v931, -1e+30
      %v952 = vsel %vm949, %v932, -1e+30
      %v953 = vsel %vm949, %v933, -1e+30
      %v954 = vsel %vm949, %v934, -1e+30
      %v955 = vsel %vm949, %v935, -1e+30
      %v956 = vsel %vm949, %v936, -1e+30
      %v957 = vsel %vm949, %v937, -1e+30
      %v958 = vsel %vm949, %v938, -1e+30
      %v959 = vsel %vm949, %v939, -1e+30
      %v960 = vsel %vm949, %v940, -1e+30
      %v961 = vsel %vm949, %v941, -1e+30
      %v962 = vsel %vm949, %v942, -1e+30
      %v963 = vsel %vm949, %v943, -1e+30
      %v964 = vsel %vm949, %v944, -1e+30
      %v965 = vsel %vm949, %v945, -1e+30
      %vm966 = vcmask 64512
      %v967 = vsel %vm966, %v950, -inf
      %968 = vmax.xlane.f32.xlu0 %v967
      %v969 = vpop.xlane.xlu0 %968
      %v970 = vsel %vm966, %v951, -inf
      %971 = vmax.xlane.f32.xlu0 %v970
      %v972 = vpop.xlane.xlu0 %971
      %v973 = vsel %vm966, %v952, -inf
      %974 = vmax.xlane.f32.xlu0 %v973
      %v975 = vpop.xlane.xlu0 %974
      %v976 = vsel %vm966, %v953, -inf
      %977 = vmax.xlane.f32.xlu0 %v976
      %v978 = vpop.xlane.xlu0 %977
      %v979 = vsel %vm966, %v954, -inf
      %980 = vmax.xlane.f32.xlu0 %v979
      %v981 = vpop.xlane.xlu0 %980
      %v982 = vsel %vm966, %v955, -inf
      %983 = vmax.xlane.f32.xlu0 %v982
      %v984 = vpop.xlane.xlu0 %983
      %v985 = vsel %vm966, %v956, -inf
      %986 = vmax.xlane.f32.xlu0 %v985
      %v987 = vpop.xlane.xlu0 %986
      %v988 = vsel %vm966, %v957, -inf
      %989 = vmax.xlane.f32.xlu0 %v988
      %v990 = vpop.xlane.xlu0 %989
      %v991 = vsel %vm966, %v958, -inf
      %992 = vmax.xlane.f32.xlu0 %v991
      %v993 = vpop.xlane.xlu0 %992
      %v994 = vsel %vm966, %v959, -inf
      %995 = vmax.xlane.f32.xlu0 %v994
      %v996 = vpop.xlane.xlu0 %995
      %v997 = vsel %vm966, %v960, -inf
      %998 = vmax.xlane.f32.xlu0 %v997
      %v999 = vpop.xlane.xlu0 %998
      %v1000 = vsel %vm966, %v961, -inf
      %1001 = vmax.xlane.f32.xlu0 %v1000
      %v1002 = vpop.xlane.xlu0 %1001
      %v1003 = vsel %vm966, %v962, -inf
      %1004 = vmax.xlane.f32.xlu0 %v1003
      %v1005 = vpop.xlane.xlu0 %1004
      %v1006 = vsel %vm966, %v963, -inf
      %1007 = vmax.xlane.f32.xlu0 %v1006
      %v1008 = vpop.xlane.xlu0 %1007
      %v1009 = vsel %vm966, %v964, -inf
      %1010 = vmax.xlane.f32.xlu0 %v1009
      %v1011 = vpop.xlane.xlu0 %1010
      %v1012 = vsel %vm966, %v965, -inf
      %1013 = vmax.xlane.f32.xlu0 %v1012
      %v1014 = vpop.xlane.xlu0 %1013
      %v1015 = vsub.f32 %v950, %v969
      %v1016 = vsub.f32 %v951, %v972
      %v1017 = vsub.f32 %v952, %v975
      %v1018 = vsub.f32 %v953, %v978
      %v1019 = vsub.f32 %v954, %v981
      %v1020 = vsub.f32 %v955, %v984
      %v1021 = vsub.f32 %v956, %v987
      %v1022 = vsub.f32 %v957, %v990
      %v1023 = vsub.f32 %v958, %v993
      %v1024 = vsub.f32 %v959, %v996
      %v1025 = vsub.f32 %v960, %v999
      %v1026 = vsub.f32 %v961, %v1002
      %v1027 = vsub.f32 %v962, %v1005
      %v1028 = vsub.f32 %v963, %v1008
      %v1029 = vsub.f32 %v964, %v1011
      %v1030 = vsub.f32 %v965, %v1014
      %v1031 = vmul.f32 %v1015, 1.442695
      %v1032 = vpow.pop %v1031
      %v1033 = vmul.f32 %v1016, 1.442695
      %v1034 = vpow.pop %v1033
      %v1035 = vmul.f32 %v1017, 1.442695
      %v1036 = vpow.pop %v1035
      %v1037 = vmul.f32 %v1018, 1.442695
      %v1038 = vpow.pop %v1037
      %v1039 = vmul.f32 %v1019, 1.442695
      %v1040 = vpow.pop %v1039
      %v1041 = vmul.f32 %v1020, 1.442695
      %v1042 = vpow.pop %v1041
      %v1043 = vmul.f32 %v1021, 1.442695
      %v1044 = vpow.pop %v1043
      %v1045 = vmul.f32 %v1022, 1.442695
      %v1046 = vpow.pop %v1045
      %v1047 = vmul.f32 %v1023, 1.442695
      %v1048 = vpow.pop %v1047
      %v1049 = vmul.f32 %v1024, 1.442695
      %v1050 = vpow.pop %v1049
      %v1051 = vmul.f32 %v1025, 1.442695
      %v1052 = vpow.pop %v1051
      %v1053 = vmul.f32 %v1026, 1.442695
      %v1054 = vpow.pop %v1053
      %v1055 = vmul.f32 %v1027, 1.442695
      %v1056 = vpow.pop %v1055
      %v1057 = vmul.f32 %v1028, 1.442695
      %v1058 = vpow.pop %v1057
      %v1059 = vmul.f32 %v1029, 1.442695
      %v1060 = vpow.pop %v1059
      %v1061 = vmul.f32 %v1030, 1.442695
      %v1062 = vpow.pop %v1061
      %v1063 = vsel %vm966, %v1032, 0.0
      %1064 = vadd.xlane.f32.xlu0 %v1063
      %v1065 = vpop.xlane.xlu0 %1064
      %v1066 = vsel %vm966, %v1034, 0.0
      %1067 = vadd.xlane.f32.xlu0 %v1066
      %v1068 = vpop.xlane.xlu0 %1067
      %v1069 = vsel %vm966, %v1036, 0.0
      %1070 = vadd.xlane.f32.xlu0 %v1069
      %v1071 = vpop.xlane.xlu0 %1070
      %v1072 = vsel %vm966, %v1038, 0.0
      %1073 = vadd.xlane.f32.xlu0 %v1072
      %v1074 = vpop.xlane.xlu0 %1073
      %v1075 = vsel %vm966, %v1040, 0.0
      %1076 = vadd.xlane.f32.xlu0 %v1075
      %v1077 = vpop.xlane.xlu0 %1076
      %v1078 = vsel %vm966, %v1042, 0.0
      %1079 = vadd.xlane.f32.xlu0 %v1078
      %v1080 = vpop.xlane.xlu0 %1079
      %v1081 = vsel %vm966, %v1044, 0.0
      %1082 = vadd.xlane.f32.xlu0 %v1081
      %v1083 = vpop.xlane.xlu0 %1082
      %v1084 = vsel %vm966, %v1046, 0.0
      %1085 = vadd.xlane.f32.xlu0 %v1084
      %v1086 = vpop.xlane.xlu0 %1085
      %v1087 = vsel %vm966, %v1048, 0.0
      %1088 = vadd.xlane.f32.xlu0 %v1087
      %v1089 = vpop.xlane.xlu0 %1088
      %v1090 = vsel %vm966, %v1050, 0.0
      %1091 = vadd.xlane.f32.xlu0 %v1090
      %v1092 = vpop.xlane.xlu0 %1091
      %v1093 = vsel %vm966, %v1052, 0.0
      %1094 = vadd.xlane.f32.xlu0 %v1093
      %v1095 = vpop.xlane.xlu0 %1094
      %v1096 = vsel %vm966, %v1054, 0.0
      %1097 = vadd.xlane.f32.xlu0 %v1096
      %v1098 = vpop.xlane.xlu0 %1097
      %v1099 = vsel %vm966, %v1056, 0.0
      %1100 = vadd.xlane.f32.xlu0 %v1099
      %v1101 = vpop.xlane.xlu0 %1100
      %v1102 = vsel %vm966, %v1058, 0.0
      %1103 = vadd.xlane.f32.xlu0 %v1102
      %v1104 = vpop.xlane.xlu0 %1103
      %v1105 = vsel %vm966, %v1060, 0.0
      %1106 = vadd.xlane.f32.xlu0 %v1105
      %v1107 = vpop.xlane.xlu0 %1106
      %v1108 = vsel %vm966, %v1062, 0.0
      %1109 = vadd.xlane.f32.xlu0 %v1108
      %v1110 = vpop.xlane.xlu0 %1109
      %v1111 = vrcp.pop %v1065
      %v1112 = vrcp.pop %v1068
      %v1113 = vrcp.pop %v1071
      %v1114 = vrcp.pop %v1074
      %v1115 = vrcp.pop %v1077
      %v1116 = vrcp.pop %v1080
      %v1117 = vrcp.pop %v1083
      %v1118 = vrcp.pop %v1086
      %v1119 = vrcp.pop %v1089
      %v1120 = vrcp.pop %v1092
      %v1121 = vrcp.pop %v1095
      %v1122 = vrcp.pop %v1098
      %v1123 = vrcp.pop %v1101
      %v1124 = vrcp.pop %v1104
      %v1125 = vrcp.pop %v1107
      %v1126 = vrcp.pop %v1110
      %v1127 = vmul.f32 %v1032, %v1111
      %v1128 = vmul.f32 %v1034, %v1112
      %v1129 = vmul.f32 %v1036, %v1113
      %v1130 = vmul.f32 %v1038, %v1114
      %v1131 = vmul.f32 %v1040, %v1115
      %v1132 = vmul.f32 %v1042, %v1116
      %v1133 = vmul.f32 %v1044, %v1117
      %v1134 = vmul.f32 %v1046, %v1118
      %v1135 = vmul.f32 %v1048, %v1119
      %v1136 = vmul.f32 %v1050, %v1120
      %v1137 = vmul.f32 %v1052, %v1121
      %v1138 = vmul.f32 %v1054, %v1122
      %v1139 = vmul.f32 %v1056, %v1123
      %v1140 = vmul.f32 %v1058, %v1124
      %v1141 = vmul.f32 %v1060, %v1125
      %v1142 = vmul.f32 %v1062, %v1126
      %v1143 = vpack.c.bf16 %v1128, %v1127
      %v1144 = vpack.c.bf16 %v1130, %v1129
      %v1145 = vpack.c.bf16 %v1132, %v1131
      %v1146 = vpack.c.bf16 %v1134, %v1133
      %v1147 = vpack.c.bf16 %v1136, %v1135
      %v1148 = vpack.c.bf16 %v1138, %v1137
      %v1149 = vpack.c.bf16 %v1140, %v1139
      %v1150 = vpack.c.bf16 %v1142, %v1141
      %v1152 = vsel %vm966, %v1143, 0
      %v1155 = vsel %vm966, %v1144, 0
      %v1158 = vsel %vm966, %v1145, 0
      %v1161 = vsel %vm966, %v1146, 0
      %v1164 = vsel %vm966, %v1147, 0
      %v1167 = vsel %vm966, %v1148, 0
      %v1170 = vsel %vm966, %v1149, 0
      %v1173 = vsel %vm966, %v1150, 0
      %vm1175 = vcmask 1043456
      %v1177 = vsel %vm1175, %v765, 0
      %1179 = vmatpush.bf16.msra.mxu0 0
      %1180 = vmatpush.bf16.msra.mxu0 0
      %1181 = vmatpush.bf16.msra.mxu0 0
      %1182 = vmatpush.bf16.msra.mxu0 0
      %1183 = vmatpush.bf16.msra.mxu0 0
      %1184 = vmatpush.bf16.msra.mxu0 0
      %1185 = vmatpush.bf16.msra.mxu0 0
      %1186 = vmatpush.bf16.msra.mxu0 %v1177
      %1187 = vmatmul.bf16.gmra.mxu0 %v1152
      %v1188 = vpop.f32.mrf.mxu0
      %v1189 = vadd.f32 0.0, %v1188
      %v1190 = vpop.f32.mrf.mxu0
      %v1191 = vadd.f32 0.0, %v1190
      %1192 = vmatmul.bf16.gmra.mxu0 %v1155
      %v1193 = vpop.f32.mrf.mxu0
      %v1194 = vadd.f32 0.0, %v1193
      %v1195 = vpop.f32.mrf.mxu0
      %v1196 = vadd.f32 0.0, %v1195
      %1197 = vmatmul.bf16.gmra.mxu0 %v1158
      %v1198 = vpop.f32.mrf.mxu0
      %v1199 = vadd.f32 0.0, %v1198
      %v1200 = vpop.f32.mrf.mxu0
      %v1201 = vadd.f32 0.0, %v1200
      %1202 = vmatmul.bf16.gmra.mxu0 %v1161
      %v1203 = vpop.f32.mrf.mxu0
      %v1204 = vadd.f32 0.0, %v1203
      %v1205 = vpop.f32.mrf.mxu0
      %v1206 = vadd.f32 0.0, %v1205
      %1207 = vmatmul.bf16.gmra.mxu0 %v1164
      %v1208 = vpop.f32.mrf.mxu0
      %v1209 = vadd.f32 0.0, %v1208
      %v1210 = vpop.f32.mrf.mxu0
      %v1211 = vadd.f32 0.0, %v1210
      %1212 = vmatmul.bf16.gmra.mxu0 %v1167
      %v1213 = vpop.f32.mrf.mxu0
      %v1214 = vadd.f32 0.0, %v1213
      %v1215 = vpop.f32.mrf.mxu0
      %v1216 = vadd.f32 0.0, %v1215
      %1217 = vmatmul.bf16.gmra.mxu0 %v1170
      %v1218 = vpop.f32.mrf.mxu0
      %v1219 = vadd.f32 0.0, %v1218
      %v1220 = vpop.f32.mrf.mxu0
      %v1221 = vadd.f32 0.0, %v1220
      %1222 = vmatmul.bf16.gmra.mxu0 %v1173
      %v1223 = vpop.f32.mrf.mxu0
      %v1224 = vadd.f32 0.0, %v1223
      %v1225 = vpop.f32.mrf.mxu0
      %v1226 = vadd.f32 0.0, %v1225
      %1227 = vdwg.mxu0
      %v1229 = vsel %vm1175, %v766, 0
      %1231 = vmatpush.bf16.msra.mxu0 0
      %1232 = vmatpush.bf16.msra.mxu0 0
      %1233 = vmatpush.bf16.msra.mxu0 0
      %1234 = vmatpush.bf16.msra.mxu0 0
      %1235 = vmatpush.bf16.msra.mxu0 0
      %1236 = vmatpush.bf16.msra.mxu0 0
      %1237 = vmatpush.bf16.msra.mxu0 0
      %1238 = vmatpush.bf16.msra.mxu0 %v1229
      %1239 = vmatmul.bf16.gmra.mxu0 %v1152
      %v1240 = vpop.f32.mrf.mxu0
      %v1241 = vadd.f32 0.0, %v1240
      %v1242 = vpop.f32.mrf.mxu0
      %v1243 = vadd.f32 0.0, %v1242
      %1244 = vmatmul.bf16.gmra.mxu0 %v1155
      %v1245 = vpop.f32.mrf.mxu0
      %v1246 = vadd.f32 0.0, %v1245
      %v1247 = vpop.f32.mrf.mxu0
      %v1248 = vadd.f32 0.0, %v1247
      %1249 = vmatmul.bf16.gmra.mxu0 %v1158
      %v1250 = vpop.f32.mrf.mxu0
      %v1251 = vadd.f32 0.0, %v1250
      %v1252 = vpop.f32.mrf.mxu0
      %v1253 = vadd.f32 0.0, %v1252
      %1254 = vmatmul.bf16.gmra.mxu0 %v1161
      %v1255 = vpop.f32.mrf.mxu0
      %v1256 = vadd.f32 0.0, %v1255
      %v1257 = vpop.f32.mrf.mxu0
      %v1258 = vadd.f32 0.0, %v1257
      %1259 = vmatmul.bf16.gmra.mxu0 %v1164
      %v1260 = vpop.f32.mrf.mxu0
      %v1261 = vadd.f32 0.0, %v1260
      %v1262 = vpop.f32.mrf.mxu0
      %v1263 = vadd.f32 0.0, %v1262
      %1264 = vmatmul.bf16.gmra.mxu0 %v1167
      %v1265 = vpop.f32.mrf.mxu0
      %v1266 = vadd.f32 0.0, %v1265
      %v1267 = vpop.f32.mrf.mxu0
      %v1268 = vadd.f32 0.0, %v1267
      %1269 = vmatmul.bf16.gmra.mxu0 %v1170
      %v1270 = vpop.f32.mrf.mxu0
      %v1271 = vadd.f32 0.0, %v1270
      %v1272 = vpop.f32.mrf.mxu0
      %v1273 = vadd.f32 0.0, %v1272
      %1274 = vmatmul.bf16.gmra.mxu0 %v1173
      %v1275 = vpop.f32.mrf.mxu0
      %v1276 = vadd.f32 0.0, %v1275
      %v1277 = vpop.f32.mrf.mxu0
      %v1278 = vadd.f32 0.0, %v1277
      %1279 = vdwg.mxu0
      %v1280 = vunpack.c.l.bf16 %v749
      %v1281 = vunpack.c.l.bf16 %v750
      %v1282 = vunpack.c.l.bf16 %v751
      %v1283 = vunpack.c.l.bf16 %v752
      %v1284 = vunpack.c.l.bf16 %v753
      %v1285 = vunpack.c.l.bf16 %v754
      %v1286 = vunpack.c.l.bf16 %v755
      %v1287 = vunpack.c.l.bf16 %v756
      %v1288 = vunpack.c.l.bf16 %v757
      %v1289 = vunpack.c.l.bf16 %v758
      %v1290 = vunpack.c.l.bf16 %v759
      %v1291 = vunpack.c.l.bf16 %v760
      %v1292 = vunpack.c.l.bf16 %v761
      %v1293 = vunpack.c.l.bf16 %v762
      %v1294 = vunpack.c.l.bf16 %v763
      %v1295 = vunpack.c.l.bf16 %v764
      %v1296 = vmul.f32 %v1280, %v1189
      %v1297 = vmul.f32 %v1281, %v1191
      %v1298 = vmul.f32 %v1282, %v1194
      %v1299 = vmul.f32 %v1283, %v1196
      %v1300 = vmul.f32 %v1284, %v1199
      %v1301 = vmul.f32 %v1285, %v1201
      %v1302 = vmul.f32 %v1286, %v1204
      %v1303 = vmul.f32 %v1287, %v1206
      %v1304 = vmul.f32 %v1288, %v1209
      %v1305 = vmul.f32 %v1289, %v1211
      %v1306 = vmul.f32 %v1290, %v1214
      %v1307 = vmul.f32 %v1291, %v1216
      %v1308 = vmul.f32 %v1292, %v1219
      %v1309 = vmul.f32 %v1293, %v1221
      %v1310 = vmul.f32 %v1294, %v1224
      %v1311 = vmul.f32 %v1295, %v1226
      %v1312 = vmul.f32 %v1280, %v1241
      %v1313 = vmul.f32 %v1281, %v1243
      %v1314 = vmul.f32 %v1282, %v1246
      %v1315 = vmul.f32 %v1283, %v1248
      %v1316 = vmul.f32 %v1284, %v1251
      %v1317 = vmul.f32 %v1285, %v1253
      %v1318 = vmul.f32 %v1286, %v1256
      %v1319 = vmul.f32 %v1287, %v1258
      %v1320 = vmul.f32 %v1288, %v1261
      %v1321 = vmul.f32 %v1289, %v1263
      %v1322 = vmul.f32 %v1290, %v1266
      %v1323 = vmul.f32 %v1291, %v1268
      %v1324 = vmul.f32 %v1292, %v1271
      %v1325 = vmul.f32 %v1293, %v1273
      %v1326 = vmul.f32 %v1294, %v1276
      %v1327 = vmul.f32 %v1295, %v1278
      %v1328 = vpack.c.bf16 %v1281, %v1280
      %v1329 = vpack.c.bf16 %v1191, %v1189
      %v1330 = vpack.c.bf16 %v1297, %v1296
      %v1331 = vpack.c.bf16 %v1313, %v1312
      %v1332 = vpack.c.bf16 %v1283, %v1282
      %v1333 = vpack.c.bf16 %v1196, %v1194
      %v1334 = vpack.c.bf16 %v1299, %v1298
      %v1335 = vpack.c.bf16 %v1315, %v1314
      %v1336 = vpack.c.bf16 %v1285, %v1284
      %v1337 = vpack.c.bf16 %v1201, %v1199
      %v1338 = vpack.c.bf16 %v1301, %v1300
      %v1339 = vpack.c.bf16 %v1317, %v1316
      %v1340 = vpack.c.bf16 %v1287, %v1286
      %v1341 = vpack.c.bf16 %v1206, %v1204
      %v1342 = vpack.c.bf16 %v1303, %v1302
      %v1343 = vpack.c.bf16 %v1319, %v1318
      %v1344 = vpack.c.bf16 %v1289, %v1288
      %v1345 = vpack.c.bf16 %v1211, %v1209
      %v1346 = vpack.c.bf16 %v1305, %v1304
      %v1347 = vpack.c.bf16 %v1321, %v1320
      %v1348 = vpack.c.bf16 %v1291, %v1290
      %v1349 = vpack.c.bf16 %v1216, %v1214
      %v1350 = vpack.c.bf16 %v1307, %v1306
      %v1351 = vpack.c.bf16 %v1323, %v1322
      %v1352 = vpack.c.bf16 %v1293, %v1292
      %v1353 = vpack.c.bf16 %v1221, %v1219
      %v1354 = vpack.c.bf16 %v1309, %v1308
      %v1355 = vpack.c.bf16 %v1325, %v1324
      %v1356 = vpack.c.bf16 %v1295, %v1294
      %v1357 = vpack.c.bf16 %v1226, %v1224
      %v1358 = vpack.c.bf16 %v1311, %v1310
      %v1359 = vpack.c.bf16 %v1327, %v1326
      %v1361 = vperm.slane %v832, 0
      %v1427 = vunpack.c.l.b16 %v768
      %v1428 = vunpack.c.l.b16 %v769
      %v1429 = vunpack.c.l.b16 %v770
      %v1430 = vunpack.c.l.b16 %v771
      %v1431 = vunpack.c.l.b16 %v772
      %v1432 = vunpack.c.l.b16 %v773
      %v1433 = vunpack.c.l.b16 %v774
      %v1434 = vunpack.c.l.b16 %v775
      %v1435 = vunpack.c.l.b16 %v776
      %v1436 = vunpack.c.l.b16 %v777
      %v1437 = vunpack.c.l.b16 %v778
      %v1438 = vunpack.c.l.b16 %v779
      %v1439 = vunpack.c.l.b16 %v780
      %v1440 = vunpack.c.l.b16 %v781
      %v1441 = vunpack.c.l.b16 %v782
      %v1442 = vunpack.c.l.b16 %v783
      %v1443 = vunpack.c.l.b16 %v784
      %v1444 = vunpack.c.l.b16 %v785
      %v1445 = vunpack.c.l.b16 %v786
      %v1446 = vunpack.c.l.b16 %v787
      %v1447 = vunpack.c.l.b16 %v788
      %v1448 = vunpack.c.l.b16 %v789
      %v1449 = vunpack.c.l.b16 %v790
      %v1450 = vunpack.c.l.b16 %v791
      %v1451 = vunpack.c.l.b16 %v792
      %v1452 = vunpack.c.l.b16 %v793
      %v1453 = vunpack.c.l.b16 %v794
      %v1454 = vunpack.c.l.b16 %v795
      %v1455 = vunpack.c.l.b16 %v796
      %v1456 = vunpack.c.l.b16 %v797
      %v1457 = vunpack.c.l.b16 %v798
      %v1458 = vunpack.c.l.b16 %v799
      %v1459 = vunpack.c.l.b16 %v800
      %v1460 = vunpack.c.l.b16 %v801
      %v1461 = vunpack.c.l.b16 %v802
      %v1462 = vunpack.c.l.b16 %v803
      %v1463 = vunpack.c.l.b16 %v804
      %v1464 = vunpack.c.l.b16 %v805
      %v1465 = vunpack.c.l.b16 %v806
      %v1466 = vunpack.c.l.b16 %v807
      %v1467 = vunpack.c.l.b16 %v808
      %v1468 = vunpack.c.l.b16 %v809
      %v1469 = vunpack.c.l.b16 %v810
      %v1470 = vunpack.c.l.b16 %v811
      %v1471 = vunpack.c.l.b16 %v812
      %v1472 = vunpack.c.l.b16 %v813
      %v1473 = vunpack.c.l.b16 %v814
      %v1474 = vunpack.c.l.b16 %v815
      %v1475 = vunpack.c.l.b16 %v816
      %v1476 = vunpack.c.l.b16 %v817
      %v1477 = vunpack.c.l.b16 %v818
      %v1478 = vunpack.c.l.b16 %v819
      %v1479 = vunpack.c.l.b16 %v820
      %v1480 = vunpack.c.l.b16 %v821
      %v1481 = vunpack.c.l.b16 %v822
      %v1482 = vunpack.c.l.b16 %v823
      %v1483 = vunpack.c.l.b16 %v824
      %v1484 = vunpack.c.l.b16 %v825
      %v1485 = vunpack.c.l.b16 %v826
      %v1486 = vunpack.c.l.b16 %v827
      %v1487 = vunpack.c.l.b16 %v828
      %v1488 = vunpack.c.l.b16 %v829
      %v1489 = vunpack.c.l.b16 %v830
      %v1490 = vunpack.c.l.b16 %v831
      %v1491 = vpack.c.b16 %v1428, %v1427
      %v1492 = vpack.c.b16 %v1430, %v1429
      %v1493 = vpack.c.b16 %v1432, %v1431
      %v1494 = vpack.c.b16 %v1434, %v1433
      %v1495 = vpack.c.b16 %v1436, %v1435
      %v1496 = vpack.c.b16 %v1438, %v1437
      %v1497 = vpack.c.b16 %v1440, %v1439
      %v1498 = vpack.c.b16 %v1442, %v1441
      %v1499 = vpack.c.b16 %v1444, %v1443
      %v1500 = vpack.c.b16 %v1446, %v1445
      %v1501 = vpack.c.b16 %v1448, %v1447
      %v1502 = vpack.c.b16 %v1450, %v1449
      %v1503 = vpack.c.b16 %v1452, %v1451
      %v1504 = vpack.c.b16 %v1454, %v1453
      %v1505 = vpack.c.b16 %v1456, %v1455
      %v1506 = vpack.c.b16 %v1458, %v1457
      %v1507 = vpack.c.b16 %v1460, %v1459
      %v1508 = vpack.c.b16 %v1462, %v1461
      %v1509 = vpack.c.b16 %v1464, %v1463
      %v1510 = vpack.c.b16 %v1466, %v1465
      %v1511 = vpack.c.b16 %v1468, %v1467
      %v1512 = vpack.c.b16 %v1470, %v1469
      %v1513 = vpack.c.b16 %v1472, %v1471
      %v1514 = vpack.c.b16 %v1474, %v1473
      %v1515 = vpack.c.b16 %v1476, %v1475
      %v1516 = vpack.c.b16 %v1478, %v1477
      %v1517 = vpack.c.b16 %v1480, %v1479
      %v1518 = vpack.c.b16 %v1482, %v1481
      %v1519 = vpack.c.b16 %v1484, %v1483
      %v1520 = vpack.c.b16 %v1486, %v1485
      %v1521 = vpack.c.b16 %v1488, %v1487
      %v1522 = vpack.c.b16 %v1490, %v1489
      %1555 = vmatpush.bf16.msra.mxu0 %v1498
      %1556 = vmatpush.bf16.msra.mxu0 %v1497
      %1557 = vmatpush.bf16.msra.mxu0 %v1496
      %1558 = vmatpush.bf16.msra.mxu0 %v1495
      %1559 = vmatpush.bf16.msra.mxu0 %v1494
      %1560 = vmatpush.bf16.msra.mxu0 %v1493
      %1561 = vmatpush.bf16.msra.mxu0 %v1492
      %1562 = vmatpush.bf16.msra.mxu0 %v1491
      %1563 = vmatmul.bf16.gmra.mxu0 %v1328
      %v1564 = vpop.f32.mrf.mxu0
      %v1565 = vadd.f32 %v1361, %v1564
      %v1566 = vpop.f32.mrf.mxu0
      %v1567 = vadd.f32 %v1361, %v1566
      %1568 = vmatmul.bf16.gmra.mxu0 %v1332
      %v1569 = vpop.f32.mrf.mxu0
      %v1570 = vadd.f32 %v1361, %v1569
      %v1571 = vpop.f32.mrf.mxu0
      %v1572 = vadd.f32 %v1361, %v1571
      %1573 = vmatmul.bf16.gmra.mxu0 %v1336
      %v1574 = vpop.f32.mrf.mxu0
      %v1575 = vadd.f32 %v1361, %v1574
      %v1576 = vpop.f32.mrf.mxu0
      %v1577 = vadd.f32 %v1361, %v1576
      %1578 = vmatmul.bf16.gmra.mxu0 %v1340
      %v1579 = vpop.f32.mrf.mxu0
      %v1580 = vadd.f32 %v1361, %v1579
      %v1581 = vpop.f32.mrf.mxu0
      %v1582 = vadd.f32 %v1361, %v1581
      %1583 = vmatmul.bf16.gmra.mxu0 %v1344
      %v1584 = vpop.f32.mrf.mxu0
      %v1585 = vadd.f32 %v1361, %v1584
      %v1586 = vpop.f32.mrf.mxu0
      %v1587 = vadd.f32 %v1361, %v1586
      %1588 = vmatmul.bf16.gmra.mxu0 %v1348
      %v1589 = vpop.f32.mrf.mxu0
      %v1590 = vadd.f32 %v1361, %v1589
      %v1591 = vpop.f32.mrf.mxu0
      %v1592 = vadd.f32 %v1361, %v1591
      %1593 = vmatmul.bf16.gmra.mxu0 %v1352
      %v1594 = vpop.f32.mrf.mxu0
      %v1595 = vadd.f32 %v1361, %v1594
      %v1596 = vpop.f32.mrf.mxu0
      %v1597 = vadd.f32 %v1361, %v1596
      %1598 = vmatmul.bf16.gmra.mxu0 %v1356
      %v1599 = vpop.f32.mrf.mxu0
      %v1600 = vadd.f32 %v1361, %v1599
      %v1601 = vpop.f32.mrf.mxu0
      %v1602 = vadd.f32 %v1361, %v1601
      %1603 = vdwg.mxu0
      %1604 = vmatpush.bf16.msra.mxu0 %v1506
      %1605 = vmatpush.bf16.msra.mxu0 %v1505
      %1606 = vmatpush.bf16.msra.mxu0 %v1504
      %1607 = vmatpush.bf16.msra.mxu0 %v1503
      %1608 = vmatpush.bf16.msra.mxu0 %v1502
      %1609 = vmatpush.bf16.msra.mxu0 %v1501
      %1610 = vmatpush.bf16.msra.mxu0 %v1500
      %1611 = vmatpush.bf16.msra.mxu0 %v1499
      %1612 = vmatmul.bf16.gmra.mxu0 %v1329
      %v1613 = vpop.f32.mrf.mxu0
      %v1614 = vadd.f32 %v1565, %v1613
      %v1615 = vpop.f32.mrf.mxu0
      %v1616 = vadd.f32 %v1567, %v1615
      %1617 = vmatmul.bf16.gmra.mxu0 %v1333
      %v1618 = vpop.f32.mrf.mxu0
      %v1619 = vadd.f32 %v1570, %v1618
      %v1620 = vpop.f32.mrf.mxu0
      %v1621 = vadd.f32 %v1572, %v1620
      %1622 = vmatmul.bf16.gmra.mxu0 %v1337
      %v1623 = vpop.f32.mrf.mxu0
      %v1624 = vadd.f32 %v1575, %v1623
      %v1625 = vpop.f32.mrf.mxu0
      %v1626 = vadd.f32 %v1577, %v1625
      %1627 = vmatmul.bf16.gmra.mxu0 %v1341
      %v1628 = vpop.f32.mrf.mxu0
      %v1629 = vadd.f32 %v1580, %v1628
      %v1630 = vpop.f32.mrf.mxu0
      %v1631 = vadd.f32 %v1582, %v1630
      %1632 = vmatmul.bf16.gmra.mxu0 %v1345
      %v1633 = vpop.f32.mrf.mxu0
      %v1634 = vadd.f32 %v1585, %v1633
      %v1635 = vpop.f32.mrf.mxu0
      %v1636 = vadd.f32 %v1587, %v1635
      %1637 = vmatmul.bf16.gmra.mxu0 %v1349
      %v1638 = vpop.f32.mrf.mxu0
      %v1639 = vadd.f32 %v1590, %v1638
      %v1640 = vpop.f32.mrf.mxu0
      %v1641 = vadd.f32 %v1592, %v1640
      %1642 = vmatmul.bf16.gmra.mxu0 %v1353
      %v1643 = vpop.f32.mrf.mxu0
      %v1644 = vadd.f32 %v1595, %v1643
      %v1645 = vpop.f32.mrf.mxu0
      %v1646 = vadd.f32 %v1597, %v1645
      %1647 = vmatmul.bf16.gmra.mxu0 %v1357
      %v1648 = vpop.f32.mrf.mxu0
      %v1649 = vadd.f32 %v1600, %v1648
      %v1650 = vpop.f32.mrf.mxu0
      %v1651 = vadd.f32 %v1602, %v1650
      %1652 = vdwg.mxu0
      %1653 = vmatpush.bf16.msra.mxu0 %v1514
      %1654 = vmatpush.bf16.msra.mxu0 %v1513
      %1655 = vmatpush.bf16.msra.mxu0 %v1512
      %1656 = vmatpush.bf16.msra.mxu0 %v1511
      %1657 = vmatpush.bf16.msra.mxu0 %v1510
      %1658 = vmatpush.bf16.msra.mxu0 %v1509
      %1659 = vmatpush.bf16.msra.mxu0 %v1508
      %1660 = vmatpush.bf16.msra.mxu0 %v1507
      %1661 = vmatmul.bf16.gmra.mxu0 %v1330
      %v1662 = vpop.f32.mrf.mxu0
      %v1663 = vadd.f32 %v1614, %v1662
      %v1664 = vpop.f32.mrf.mxu0
      %v1665 = vadd.f32 %v1616, %v1664
      %1666 = vmatmul.bf16.gmra.mxu0 %v1334
      %v1667 = vpop.f32.mrf.mxu0
      %v1668 = vadd.f32 %v1619, %v1667
      %v1669 = vpop.f32.mrf.mxu0
      %v1670 = vadd.f32 %v1621, %v1669
      %1671 = vmatmul.bf16.gmra.mxu0 %v1338
      %v1672 = vpop.f32.mrf.mxu0
      %v1673 = vadd.f32 %v1624, %v1672
      %v1674 = vpop.f32.mrf.mxu0
      %v1675 = vadd.f32 %v1626, %v1674
      %1676 = vmatmul.bf16.gmra.mxu0 %v1342
      %v1677 = vpop.f32.mrf.mxu0
      %v1678 = vadd.f32 %v1629, %v1677
      %v1679 = vpop.f32.mrf.mxu0
      %v1680 = vadd.f32 %v1631, %v1679
      %1681 = vmatmul.bf16.gmra.mxu0 %v1346
      %v1682 = vpop.f32.mrf.mxu0
      %v1683 = vadd.f32 %v1634, %v1682
      %v1684 = vpop.f32.mrf.mxu0
      %v1685 = vadd.f32 %v1636, %v1684
      %1686 = vmatmul.bf16.gmra.mxu0 %v1350
      %v1687 = vpop.f32.mrf.mxu0
      %v1688 = vadd.f32 %v1639, %v1687
      %v1689 = vpop.f32.mrf.mxu0
      %v1690 = vadd.f32 %v1641, %v1689
      %1691 = vmatmul.bf16.gmra.mxu0 %v1354
      %v1692 = vpop.f32.mrf.mxu0
      %v1693 = vadd.f32 %v1644, %v1692
      %v1694 = vpop.f32.mrf.mxu0
      %v1695 = vadd.f32 %v1646, %v1694
      %1696 = vmatmul.bf16.gmra.mxu0 %v1358
      %v1697 = vpop.f32.mrf.mxu0
      %v1698 = vadd.f32 %v1649, %v1697
      %v1699 = vpop.f32.mrf.mxu0
      %v1700 = vadd.f32 %v1651, %v1699
      %1701 = vdwg.mxu0
      %1702 = vmatpush.bf16.msra.mxu0 %v1522
      %1703 = vmatpush.bf16.msra.mxu0 %v1521
      %1704 = vmatpush.bf16.msra.mxu0 %v1520
      %1705 = vmatpush.bf16.msra.mxu0 %v1519
      %1706 = vmatpush.bf16.msra.mxu0 %v1518
      %1707 = vmatpush.bf16.msra.mxu0 %v1517
      %1708 = vmatpush.bf16.msra.mxu0 %v1516
      %1709 = vmatpush.bf16.msra.mxu0 %v1515
      %1710 = vmatmul.bf16.gmra.mxu0 %v1331
      %v1711 = vpop.f32.mrf.mxu0
      %v1712 = vadd.f32 %v1663, %v1711
      %v1713 = vpop.f32.mrf.mxu0
      %v1714 = vadd.f32 %v1665, %v1713
      %1715 = vmatmul.bf16.gmra.mxu0 %v1335
      %v1716 = vpop.f32.mrf.mxu0
      %v1717 = vadd.f32 %v1668, %v1716
      %v1718 = vpop.f32.mrf.mxu0
      %v1719 = vadd.f32 %v1670, %v1718
      %1720 = vmatmul.bf16.gmra.mxu0 %v1339
      %v1721 = vpop.f32.mrf.mxu0
      %v1722 = vadd.f32 %v1673, %v1721
      %v1723 = vpop.f32.mrf.mxu0
      %v1724 = vadd.f32 %v1675, %v1723
      %1725 = vmatmul.bf16.gmra.mxu0 %v1343
      %v1726 = vpop.f32.mrf.mxu0
      %v1727 = vadd.f32 %v1678, %v1726
      %v1728 = vpop.f32.mrf.mxu0
      %v1729 = vadd.f32 %v1680, %v1728
      %1730 = vmatmul.bf16.gmra.mxu0 %v1347
      %v1731 = vpop.f32.mrf.mxu0
      %v1732 = vadd.f32 %v1683, %v1731
      %v1733 = vpop.f32.mrf.mxu0
      %v1734 = vadd.f32 %v1685, %v1733
      %1735 = vmatmul.bf16.gmra.mxu0 %v1351
      %v1736 = vpop.f32.mrf.mxu0
      %v1737 = vadd.f32 %v1688, %v1736
      %v1738 = vpop.f32.mrf.mxu0
      %v1739 = vadd.f32 %v1690, %v1738
      %1740 = vmatmul.bf16.gmra.mxu0 %v1355
      %v1741 = vpop.f32.mrf.mxu0
      %v1742 = vadd.f32 %v1693, %v1741
      %v1743 = vpop.f32.mrf.mxu0
      %v1744 = vadd.f32 %v1695, %v1743
      %1745 = vmatmul.bf16.gmra.mxu0 %v1359
      %v1746 = vpop.f32.mrf.mxu0
      %v1747 = vadd.f32 %v1698, %v1746
      %v1748 = vpop.f32.mrf.mxu0
      %v1749 = vadd.f32 %v1700, %v1748
      %1750 = vdwg.mxu0
      %1752 = vset.pattern.permute.xlu0 0
      %1753 = vperm.xlu0 %1752, %v733
      %v1754 = vpop.permute.xlu0 %1753
      %1757 = vset.pattern.permute.xlu0 0
      %1758 = vperm.xlu0 %1757, %v734
      %v1759 = vpop.permute.xlu0 %1758
      %1762 = vset.pattern.permute.xlu0 0
      %1763 = vperm.xlu0 %1762, %v735
      %v1764 = vpop.permute.xlu0 %1763
      %1767 = vset.pattern.permute.xlu0 0
      %1768 = vperm.xlu0 %1767, %v736
      %v1769 = vpop.permute.xlu0 %1768
      %1772 = vset.pattern.permute.xlu0 0
      %1773 = vperm.xlu0 %1772, %v737
      %v1774 = vpop.permute.xlu0 %1773
      %1777 = vset.pattern.permute.xlu0 0
      %1778 = vperm.xlu0 %1777, %v738
      %v1779 = vpop.permute.xlu0 %1778
      %1782 = vset.pattern.permute.xlu0 0
      %1783 = vperm.xlu0 %1782, %v739
      %v1784 = vpop.permute.xlu0 %1783
      %1787 = vset.pattern.permute.xlu0 0
      %1788 = vperm.xlu0 %1787, %v740
      %v1789 = vpop.permute.xlu0 %1788
      %1792 = vset.pattern.permute.xlu0 0
      %1793 = vperm.xlu0 %1792, %v741
      %v1794 = vpop.permute.xlu0 %1793
      %1797 = vset.pattern.permute.xlu0 0
      %1798 = vperm.xlu0 %1797, %v742
      %v1799 = vpop.permute.xlu0 %1798
      %1802 = vset.pattern.permute.xlu0 0
      %1803 = vperm.xlu0 %1802, %v743
      %v1804 = vpop.permute.xlu0 %1803
      %1807 = vset.pattern.permute.xlu0 0
      %1808 = vperm.xlu0 %1807, %v744
      %v1809 = vpop.permute.xlu0 %1808
      %1812 = vset.pattern.permute.xlu0 0
      %1813 = vperm.xlu0 %1812, %v745
      %v1814 = vpop.permute.xlu0 %1813
      %1817 = vset.pattern.permute.xlu0 0
      %1818 = vperm.xlu0 %1817, %v746
      %v1819 = vpop.permute.xlu0 %1818
      %1822 = vset.pattern.permute.xlu0 0
      %1823 = vperm.xlu0 %1822, %v747
      %v1824 = vpop.permute.xlu0 %1823
      %1827 = vset.pattern.permute.xlu0 0
      %1828 = vperm.xlu0 %1827, %v748
      %v1829 = vpop.permute.xlu0 %1828
      %v1831 = vmul.f32 %v1712, %v1754
      %v1832 = vmul.f32 %v1714, %v1759
      %v1833 = vmul.f32 %v1717, %v1764
      %v1834 = vmul.f32 %v1719, %v1769
      %v1835 = vmul.f32 %v1722, %v1774
      %v1836 = vmul.f32 %v1724, %v1779
      %v1837 = vmul.f32 %v1727, %v1784
      %v1838 = vmul.f32 %v1729, %v1789
      %v1839 = vmul.f32 %v1732, %v1794
      %v1840 = vmul.f32 %v1734, %v1799
      %v1841 = vmul.f32 %v1737, %v1804
      %v1842 = vmul.f32 %v1739, %v1809
      %v1843 = vmul.f32 %v1742, %v1814
      %v1844 = vmul.f32 %v1744, %v1819
      %v1845 = vmul.f32 %v1747, %v1824
      %v1846 = vmul.f32 %v1749, %v1829
      %v1847 = vpack.c.bf16 %v1832, %v1831
      %v1848 = vpack.c.bf16 %v1834, %v1833
      %v1849 = vpack.c.bf16 %v1836, %v1835
      %v1850 = vpack.c.bf16 %v1838, %v1837
      %v1851 = vpack.c.bf16 %v1840, %v1839
      %v1852 = vpack.c.bf16 %v1842, %v1841
      %v1853 = vpack.c.bf16 %v1844, %v1843
      %v1854 = vpack.c.bf16 %v1846, %v1845
      %v1855 = vld [vmem:[%s9] sm:$0xf]
      %v1856 = vld [vmem:[%s9 + $0x4] sm:$0xf]
      %v1857 = vld [vmem:[%s9 + $0x8] sm:$0xf]
      %v1858 = vld [vmem:[%s9 + $0xc] sm:$0xf]
      %v1859 = vld [vmem:[%s9 + $0x10] sm:$0xf]
      %v1860 = vld [vmem:[%s9 + $0x14] sm:$0xf]
      %v1861 = vld [vmem:[%s9 + $0x18] sm:$0xf]
      %v1862 = vld [vmem:[%s9 + $0x1c] sm:$0xf]
      %v1863 = vld [vmem:[%s9 + $0x20] sm:$0xf]
      %v1864 = vld [vmem:[%s9 + $0x24] sm:$0xf]
      %v1865 = vld [vmem:[%s9 + $0x28] sm:$0xf]
      %v1866 = vld [vmem:[%s9 + $0x2c] sm:$0xf]
      %v1867 = vld [vmem:[%s9 + $0x30] sm:$0xf]
      %v1868 = vld [vmem:[%s9 + $0x34] sm:$0xf]
      %v1869 = vld [vmem:[%s9 + $0x38] sm:$0xf]
      %v1870 = vld [vmem:[%s9 + $0x3c] sm:$0xf]
      %v1871 = vld [vmem:[%s10] sm:$0x1]
      %v1873 = vperm.slane %v1871, 0
      %v1891 = vunpack.c.l.b16 %v1855
      %v1892 = vunpack.c.l.b16 %v1856
      %v1893 = vunpack.c.l.b16 %v1857
      %v1894 = vunpack.c.l.b16 %v1858
      %v1895 = vunpack.c.l.b16 %v1859
      %v1896 = vunpack.c.l.b16 %v1860
      %v1897 = vunpack.c.l.b16 %v1861
      %v1898 = vunpack.c.l.b16 %v1862
      %v1899 = vunpack.c.l.b16 %v1863
      %v1900 = vunpack.c.l.b16 %v1864
      %v1901 = vunpack.c.l.b16 %v1865
      %v1902 = vunpack.c.l.b16 %v1866
      %v1903 = vunpack.c.l.b16 %v1867
      %v1904 = vunpack.c.l.b16 %v1868
      %v1905 = vunpack.c.l.b16 %v1869
      %v1906 = vunpack.c.l.b16 %v1870
      %v1907 = vpack.c.b16 %v1892, %v1891
      %v1908 = vpack.c.b16 %v1894, %v1893
      %v1909 = vpack.c.b16 %v1896, %v1895
      %v1910 = vpack.c.b16 %v1898, %v1897
      %v1911 = vpack.c.b16 %v1900, %v1899
      %v1912 = vpack.c.b16 %v1902, %v1901
      %v1913 = vpack.c.b16 %v1904, %v1903
      %v1914 = vpack.c.b16 %v1906, %v1905
      %1923 = vmatpush.bf16.msra.mxu0 %v1914
      %1924 = vmatpush.bf16.msra.mxu0 %v1913
      %1925 = vmatpush.bf16.msra.mxu0 %v1912
      %1926 = vmatpush.bf16.msra.mxu0 %v1911
      %1927 = vmatpush.bf16.msra.mxu0 %v1910
      %1928 = vmatpush.bf16.msra.mxu0 %v1909
      %1929 = vmatpush.bf16.msra.mxu0 %v1908
      %1930 = vmatpush.bf16.msra.mxu0 %v1907
      %1931 = vmatmul.bf16.gmra.mxu0 %v1847
      %v1932 = vpop.f32.mrf.mxu0
      %v1933 = vadd.f32 %v1873, %v1932
      %v1934 = vpop.f32.mrf.mxu0
      %v1935 = vadd.f32 %v1873, %v1934
      %1936 = vmatmul.bf16.gmra.mxu0 %v1848
      %v1937 = vpop.f32.mrf.mxu0
      %v1938 = vadd.f32 %v1873, %v1937
      %v1939 = vpop.f32.mrf.mxu0
      %v1940 = vadd.f32 %v1873, %v1939
      %1941 = vmatmul.bf16.gmra.mxu0 %v1849
      %v1942 = vpop.f32.mrf.mxu0
      %v1943 = vadd.f32 %v1873, %v1942
      %v1944 = vpop.f32.mrf.mxu0
      %v1945 = vadd.f32 %v1873, %v1944
      %1946 = vmatmul.bf16.gmra.mxu0 %v1850
      %v1947 = vpop.f32.mrf.mxu0
      %v1948 = vadd.f32 %v1873, %v1947
      %v1949 = vpop.f32.mrf.mxu0
      %v1950 = vadd.f32 %v1873, %v1949
      %1951 = vmatmul.bf16.gmra.mxu0 %v1851
      %v1952 = vpop.f32.mrf.mxu0
      %v1953 = vadd.f32 %v1873, %v1952
      %v1954 = vpop.f32.mrf.mxu0
      %v1955 = vadd.f32 %v1873, %v1954
      %1956 = vmatmul.bf16.gmra.mxu0 %v1852
      %v1957 = vpop.f32.mrf.mxu0
      %v1958 = vadd.f32 %v1873, %v1957
      %v1959 = vpop.f32.mrf.mxu0
      %v1960 = vadd.f32 %v1873, %v1959
      %1961 = vmatmul.bf16.gmra.mxu0 %v1853
      %v1962 = vpop.f32.mrf.mxu0
      %v1963 = vadd.f32 %v1873, %v1962
      %v1964 = vpop.f32.mrf.mxu0
      %v1965 = vadd.f32 %v1873, %v1964
      %1966 = vmatmul.bf16.gmra.mxu0 %v1854
      %v1967 = vpop.f32.mrf.mxu0
      %v1968 = vadd.f32 %v1873, %v1967
      %v1969 = vpop.f32.mrf.mxu0
      %v1970 = vadd.f32 %v1873, %v1969
      %1971 = vdwg.mxu0
      %v1972 = vmax.f32 %v1933, 0.0
      %v1973 = vmax.f32 %v1935, 0.0
      %v1974 = vmax.f32 %v1938, 0.0
      %v1975 = vmax.f32 %v1940, 0.0
      %v1976 = vmax.f32 %v1943, 0.0
      %v1977 = vmax.f32 %v1945, 0.0
      %v1978 = vmax.f32 %v1948, 0.0
      %v1979 = vmax.f32 %v1950, 0.0
      %v1980 = vmax.f32 %v1953, 0.0
      %v1981 = vmax.f32 %v1955, 0.0
      %v1982 = vmax.f32 %v1958, 0.0
      %v1983 = vmax.f32 %v1960, 0.0
      %v1984 = vmax.f32 %v1963, 0.0
      %v1985 = vmax.f32 %v1965, 0.0
      %v1986 = vmax.f32 %v1968, 0.0
      %v1987 = vmax.f32 %v1970, 0.0
      %v1988 = vld [vmem:[%s11] sm:$0x1]
      %v1989 = vpack.c.bf16 %v1973, %v1972
      %v1990 = vpack.c.bf16 %v1975, %v1974
      %v1991 = vpack.c.bf16 %v1977, %v1976
      %v1992 = vpack.c.bf16 %v1979, %v1978
      %v1993 = vpack.c.bf16 %v1981, %v1980
      %v1994 = vpack.c.bf16 %v1983, %v1982
      %v1995 = vpack.c.bf16 %v1985, %v1984
      %v1996 = vpack.c.bf16 %v1987, %v1986
      %v1997 = vld [vmem:[#allocation2] sm:$0x1]
      %1999 = vset.pattern.permute.xlu0 0
      %2000 = vperm.xlu0 %1999, %v1997
      %v2001 = vpop.permute.xlu0 %2000
      %v2003 = vperm.slane %v2001, 0
      %2004 = vmatpush.bf16.xpose.msra.mxu0 %v1996
      %2005 = vmatpush.bf16.xpose.msra.mxu0 %v1995
      %2006 = vmatpush.bf16.xpose.msra.mxu0 %v1994
      %2007 = vmatpush.bf16.xpose.msra.mxu0 %v1993
      %2008 = vmatpush.bf16.xpose.msra.mxu0 %v1992
      %2009 = vmatpush.bf16.xpose.msra.mxu0 %v1991
      %2010 = vmatpush.bf16.xpose.msra.mxu0 %v1990
      %2011 = vmatpush.bf16.xpose.msra.mxu0 %v1989
      %2012 = vmatmul.bf16.gmra.mxu0 %v1988
      %v2013 = vpop.f32.mrf.mxu0
      %v2014 = vadd.f32 %v2003, %v2013
      %v2015 = vpop.f32.mrf.mxu0
      %2016 = vdwg.mxu0
      %v2017 = vld [vmem:[%s587] sm:$0x1]
      %v2018 = vsub.f32 1.0, %v2017
      %v2019 = vmul.f32 %v2018, -1e+30
      %v2020 = vadd.f32 %v2014, %v2019
      %v2021 = vxor.u32 %v2020, 2147483648
      %v2022 = vmul.f32 %v2021, 1.442695
      %v2023 = vpow.pop %v2022
      %v2024 = vadd.f32 %v2023, 1.0
      %v2025 = vrcp.pop %v2024
      %v2026 = vmul.f32 %v2024, %v2025
      %v2027 = vsub.f32 1.0, %v2026
      %v2028 = vmul.f32 %v2025, %v2027
      %v2029 = vadd.f32 %v2025, %v2028
      %vm2030 = vweird.f32 %v2024
      %vm2031 = vweird.f32 %v2025
      %vm2032 = vmor %vm2030, %vm2031
      %v2033 = vsel %vm2032, %v2025, %v2029
      %v2034 = vand.u32 2147483647, %v2024
      %vm2035 = vcmp.eq.f32.partialorder %v2034, 8.507059e+37
      %v2036 = vand.u32 %v2024, 2147483648
      %v2037 = vor.u32 1.1754944e-38, %v2036
      %v2038 = vsel %vm2035, %v2037, %v2033
      %v2039 = vmul.f32 1.0, %v2038
      %v2040 = vmul.f32 %v2039, %v2017
      %2041 = vst [vmem:[%s594] sm:$0x1] %v2040
      %p2042 = scmp.lt.s32.totalorder %s30, 1
      %s2043 = scalar_select %p2042, %s30, 1
      %p2044 = scmp.lt.s32.totalorder %s31, 1
      %s2045 = scalar_select %p2044, %s31, 1
      %s2046 = smul.addr %s2043, 2
      %s2047 = sadd.s32 %s2045, %s2046
      %s2048 = scalar_lea.vmem %s13, %s2047
      // Predicated region
      $region73: #{emb_forward.13} parent=71 // pred_check
        %p2049 = pneg %p370
      $region74: #{emb_forward.13} parent=71 // pred_check_branch
        %2051 = sbr.rel (%p2049) target = $region76
      $region75: #{emb_forward.13} parent=71 // pred_region
        _
      $region76: #{emb_forward.13} parent=71 // pred_fallthru
        _
    $region72: #{emb_forward.13} parent=5 // pred_fallthru
      _
    %p2052 = scmp.le.s32.totalorder 2, %s21
    // Predicated region
    $region77: #{emb_forward.13} parent=5 // pred_check
      %p2053 = pneg %p2052
    $region78: #{emb_forward.13} parent=5 // pred_check_branch
      %2055 = sbr.rel (%p2053) target = $region80
    $region79: #{emb_forward.13} parent=5 // pred_region
      %s2056 = ssub.s32 %s21, 2
      // Predicated region
      $region81: #{emb_forward.13} parent=79 // pred_check
        %p2057 = pneg %p376
      $region82: #{emb_forward.13} parent=79 // pred_check_branch
        %2059 = sbr.rel (%p2057) target = $region84
      $region83: #{emb_forward.13} parent=79 // pred_region
        %p2060 = scmp.lt.s32.totalorder %s32, 1
        %s2061 = scalar_select %p2060, %s32, 1
        %p2062 = scmp.lt.s32.totalorder %s33, 1
        %s2063 = scalar_select %p2062, %s33, 1
        %s2064 = smul.addr %s2061, 2
        %s2065 = sadd.s32 %s2063, %s2064
        %s2066 = scalar_lea.vmem %s13, %s2065
      $region84: #{emb_forward.13} parent=79 // pred_fallthru
        _
    $region80: #{emb_forward.13} parent=5 // pred_fallthru
      _
  $region6: #{emb_forward.13} parent=0 // loop_footer
    %s25 = sadd.s32 1, %s21
  $region7: #{emb_forward.13} parent=0 // loop_footer_branch
    %20 = sbr.rel target = $region3
  $region8: #{emb_forward.13} parent=0 // loop_exit
    _

</llo_original>
